<compile_context>
chip_gen: v7x
topology: tpu7x:2x2x1
jax: 0.10.0
libtpu: 0.0.40
codegen_flags: <defaults>
</compile_context>

<pallas_src>
import functools

import jax
import jax.numpy as jnp
from jax.experimental import pallas as pl
from jax.experimental.pallas import tpu as pltpu


# ----------------------------------------------------------------------------
# Device-aware configuration helpers
# ----------------------------------------------------------------------------
def _device_kind():
    try:
        return jax.devices()[0].device_kind.lower()
    except Exception:
        return ""


def _attn_compute_dtype(kind):
    # v6e / v7x have bf16 VPU+EUP paths; v5e (and older) keep the elementwise math f32.
    return jnp.bfloat16 if ("v6" in kind or "v7" in kind) else jnp.float32


def _pick_tiles(n_pad, heads, f_out, out_dim, kind, elem_bytes, out_bytes):
    """Largest (tile_n, tile_k) whose double-buffered working set fits a
    per-generation VMEM budget.  Returns ((tile_n, tile_k), vmem_limit_bytes)."""
    if "v7" in kind:          # 64 MiB physical per TensorCore, 2 TCs
        budget, limit, split2 = 20 << 20, 48 << 20, True
    elif "v6" in kind:        # 128 MiB physical, 32 MiB default scoped
        budget, limit, split2 = 32 << 20, 64 << 20, False
    elif "v5" in kind:        # v5e: 16 MiB default scoped -> raise explicitly
        budget, limit, split2 = 10 << 20, 28 << 20, False
    else:                     # unknown generation: stay conservative, keep defaults
        budget, limit, split2 = 8 << 20, None, False

    hf_aug = heads * (f_out + 1)
    cands = [t for t in (1024, 512, 256, 128) if n_pad % t == 0] or [128]

    def fits(tn, tk):
        adj = 2 * tn * tk                              # int8 adj tile, double-buffered
        xp = 2 * tk * hf_aug * 2                       # bf16 [xp | 1], double-buffered
        asrc = 2 * heads * tk * elem_bytes             # alpha_src^T column tile
        small = 4 * tn * heads * elem_bytes + 2 * tn * out_dim * out_bytes
        acc = tn * hf_aug * 4                          # f32 accumulator scratch
        temps = 3 * tn * tk * elem_bytes               # live (T, K) elementwise temps
        return adj + xp + asrc + small + acc + temps <= budget

    best = (128, 128)
    for tn in cands:
        if split2 and n_pad >= 256 and tn > n_pad // 2:
            continue  # keep >=2 "parallel" row steps so both v7x TensorCores get work
        for tk in cands:
            if fits(tn, tk) and tn * tk > best[0] * best[1]:
                best = (tn, tk)
    return best, limit


# ----------------------------------------------------------------------------
# Kernel 1: linear transform + batched attention logits
# ----------------------------------------------------------------------------
def _gat_transform_kernel(x_ref, w_ref, a_ref, xp_ref, alpha_ref):
    # bf16 x bf16 -> f32 accumulate on the MXU.
    xp = jnp.dot(x_ref[...], w_ref[...], preferred_element_type=jnp.float32)
    # All heads' (alpha_src | alpha_dst) in one MXU pass: (T, H*F) @ (H*F, 2H).
    alpha_ref[...] = jnp.dot(xp, a_ref[...], preferred_element_type=jnp.float32)
    xp_ref[...] = xp.astype(xp_ref.dtype)              # bf16 for the aggregation matmul


def gat_transform(x, w_bf16, a_packed, *, tile_n, vmem_limit):
    n_pad, f_in = x.shape
    hf = w_bf16.shape[1]
    two_h = a_packed.shape[1]
    return pl.pallas_call(
        _gat_transform_kernel,
        out_shape=(jax.ShapeDtypeStruct((n_pad, hf), jnp.bfloat16),
                   jax.ShapeDtypeStruct((n_pad, two_h), jnp.float32)),
        grid_spec=pltpu.PrefetchScalarGridSpec(
            num_scalar_prefetch=0, grid=(n_pad // tile_n,),
            in_specs=[pl.BlockSpec((tile_n, f_in), lambda i: (i, 0)),
                      pl.BlockSpec((f_in, hf), lambda i: (0, 0)),
                      pl.BlockSpec((hf, two_h), lambda i: (0, 0))],
            out_specs=[pl.BlockSpec((tile_n, hf), lambda i: (i, 0)),
                       pl.BlockSpec((tile_n, two_h), lambda i: (i, 0))]),
        compiler_params=pltpu.CompilerParams(dimension_semantics=("parallel",),
                                             vmem_limit_bytes=vmem_limit),
    )(x, w_bf16, a_packed)


# ----------------------------------------------------------------------------
# Kernel 2: masked softmax attention + neighbour aggregation
#           grid = (row tiles "parallel", column tiles "arbitrary")
# ----------------------------------------------------------------------------
def _gat_attention_kernel(adj_ref, adst_ref, bound_ref, asrc_ref, xpa_ref, bias_ref,
                          out_ref, acc_ref, *, heads, f_out, concat, apply_elu):
    k = pl.program_id(1)
    fo1 = f_out + 1

    @pl.when(k == 0)
    def _init():
        acc_ref[...] = jnp.zeros_like(acc_ref)

    adst = adst_ref[...]                               # (T, H) compute dtype
    bound = bound_ref[...]                             # (T, H) global logit bound
    asrc = asrc_ref[...]                               # (H, K)
    adjf = adj_ref[...].astype(adst.dtype)             # int8 0/1 -> compute dtype, once
    xpa = xpa_ref[...]                                 # (K, H*(F+1)) bf16, [xp_h | 1]

    res = []
    for h in range(heads):                             # static unroll over heads
        # e[i, j] = LeakyReLU(alpha_dst[i] + alpha_src[j], 0.2) - bound[i]  (<= ~0)
        e = adst[:, h:h + 1] + asrc[h:h + 1, :]
        e = jnp.maximum(e, 0.2 * e) - bound[:, h:h + 1]
        p = jnp.exp(e) * adjf                          # masked, unnormalized weights
        # One MXU pass yields aggregated neighbours AND the softmax denominator (f32).
        res.append(jnp.dot(p.astype(jnp.bfloat16), xpa[:, h * fo1:(h + 1) * fo1],
                           preferred_element_type=jnp.float32))      # (T, F+1)
    acc_ref[...] += jnp.concatenate(res, axis=1)

    @pl.when(k == pl.num_programs(1) - 1)
    def _finalize():
        acc = acc_ref[...]
        outs = []
        for h in range(heads):
            base = h * fo1
            agg = acc[:, base:base + f_out]
            den = jnp.maximum(acc[:, base + f_out:base + fo1], 1e-30)  # guard empty rows
            outs.append(agg * pl.reciprocal(den, approx=True))
        bias = bias_ref[...].astype(jnp.float32)
        if concat:
            out = jnp.concatenate(outs, axis=1) + bias
        else:
            out = outs[0]
            for o in outs[1:]:
                out = out + o
            out = out * (1.0 / heads) + bias
        if apply_elu:
            out = jnp.where(out > 0, out, jnp.exp(jnp.minimum(out, 0.0)) - 1.0)
        out_ref[...] = out.astype(out_ref.dtype)


def gat_attention(adj, alpha_dst, bound, alpha_src_t, xp_aug, bias, *, heads, f_out,
                  concat, apply_elu, tile_n, tile_k, vmem_limit, out_dtype):
    n_pad = adj.shape[0]
    out_dim = heads * f_out if concat else f_out
    fo1 = f_out + 1
    kernel = functools.partial(_gat_attention_kernel, heads=heads, f_out=f_out,
                               concat=concat, apply_elu=apply_elu)
    grid = (n_pad // tile_n, n_pad // tile_k)
    return pl.pallas_call(
        kernel,
        out_shape=jax.ShapeDtypeStruct((n_pad, out_dim), out_dtype),
        grid_spec=pltpu.PrefetchScalarGridSpec(
            num_scalar_prefetch=0, grid=grid,
            in_specs=[
                pl.BlockSpec((tile_n, tile_k), lambda i, k: (i, k)),        # adj int8
                pl.BlockSpec((tile_n, heads), lambda i, k: (i, 0)),         # alpha_dst
                pl.BlockSpec((tile_n, heads), lambda i, k: (i, 0)),         # logit bound
                pl.BlockSpec((heads, tile_k), lambda i, k: (0, k)),         # alpha_src^T
                pl.BlockSpec((tile_k, heads * fo1), lambda i, k: (k, 0)),   # [xp | 1] bf16
                pl.BlockSpec((1, out_dim), lambda i, k: (0, 0)),            # bias
            ],
            out_specs=pl.BlockSpec((tile_n, out_dim), lambda i, k: (i, 0)),
            scratch_shapes=[pltpu.VMEM((tile_n, heads * fo1), jnp.float32)]),
        compiler_params=pltpu.CompilerParams(
            dimension_semantics=("parallel", "arbitrary"),
            vmem_limit_bytes=vmem_limit),
    )(adj, alpha_dst, bound, alpha_src_t, xp_aug, bias)


# ----------------------------------------------------------------------------
# Layer / model wrappers
# ----------------------------------------------------------------------------
def _pack_attention_vectors(a_src, a_dst):
    """Block-diagonal packing so alphas = xp @ A_packed computes both logits
    for every head with a single MXU matmul.  Shape: (H*F_out, 2H)."""
    heads, f_out = a_src.shape
    eye = jnp.eye(heads, dtype=jnp.float32)
    src_mat = (a_src.astype(jnp.float32)[:, :, None] * eye[:, None, :]).reshape(
        heads * f_out, heads)
    dst_mat = (a_dst.astype(jnp.float32)[:, :, None] * eye[:, None, :]).reshape(
        heads * f_out, heads)
    return jnp.concatenate([src_mat, dst_mat], axis=1)


def gat_layer(x, adj, w, a_src, a_dst, bias, *, heads, f_out, concat, apply_elu,
              tile_n, tile_k, vmem_limit, compute_dtype, out_dtype):
    n_pad = x.shape[0]
    a_packed = _pack_attention_vectors(a_src, a_dst)
    xp, alphas = gat_transform(x, w.astype(jnp.bfloat16), a_packed,
                               tile_n=tile_n, vmem_limit=vmem_limit)
    alpha_src = alphas[:, :heads]               # (N, H)
    alpha_dst = alphas[:, heads:]               # (N, H)
    # Global per-head upper bound on the logits.  Normalization is deferred inside the
    # kernel, so shifting by any upper bound is exact -> no per-row XLU max needed.
    s = alpha_dst + jnp.max(alpha_src, axis=0, keepdims=True)
    bound = jnp.maximum(s, 0.2 * s)             # LeakyReLU is monotone -> valid bound
    # Append a per-head ones column so the MXU also produces the softmax denominator.
    xp_aug = jnp.concatenate(
        [xp.reshape(n_pad, heads, f_out),
         jnp.ones((n_pad, heads, 1), jnp.bfloat16)],
        axis=2).reshape(n_pad, heads * (f_out + 1))
    return gat_attention(adj,
                         alpha_dst.astype(compute_dtype),
                         bound.astype(compute_dtype),
                         alpha_src.T.astype(compute_dtype),   # lane-dense (H, N)
                         xp_aug, bias.reshape(1, -1),
                         heads=heads, f_out=f_out, concat=concat,
                         apply_elu=apply_elu, tile_n=tile_n, tile_k=tile_k,
                         vmem_limit=vmem_limit, out_dtype=out_dtype)


def _round_up(v, m):
    return ((v + m - 1) // m) * m


def dense_adjacency(edge_index, num_nodes):
    """edge_index: (2, E) int32, row 0 = source, row 1 = target.
    Returns (N, N) int8 mask with adj[target, source] = 1 plus self-loops
    (GATConv default add_self_loops=True)."""
    src, dst = edge_index[0], edge_index[1]
    adj = jnp.zeros((num_nodes, num_nodes), jnp.int8)
    adj = adj.at[dst, src].set(1)
    diag = jnp.arange(num_nodes)
    adj = adj.at[diag, diag].set(1)
    return adj


def init_gat_params(key, in_channels, out_channels, hidden=8, heads=8):
    """Deterministic (glorot-style) parameter init matching GATConv shapes."""
    ks = jax.random.split(key, 8)

    def glorot(k, shape):
        fan_in, fan_out = shape[-2], shape[-1]
        limit = jnp.sqrt(6.0 / (fan_in + fan_out))
        return jax.random.uniform(k, shape, jnp.float32, -limit, limit)

    return {
        # conv1: in_channels -> 8, heads=8, concat=True
        "w1": glorot(ks[0], (in_channels, heads * hidden)),
        "a_src1": glorot(ks[1], (heads, hidden)),
        "a_dst1": glorot(ks[2], (heads, hidden)),
        "b1": jnp.zeros((heads * hidden,), jnp.float32),
        # conv2: 8*8 -> out_channels, heads=1, concat=False
        "w2": glorot(ks[3], (heads * hidden, out_channels)),
        "a_src2": glorot(ks[4], (1, out_channels)),
        "a_dst2": glorot(ks[5], (1, out_channels)),
        "b2": jnp.zeros((out_channels,), jnp.float32),
    }


@jax.jit
def gat_forward(x, adj, params):
    n = x.shape[0]
    n_pad = max(_round_up(n, 128), 128)      # lane-dense: all blocks (8,128)-aligned
    kind = _device_kind()
    cdt = _attn_compute_dtype(kind)
    ebytes = jnp.dtype(cdt).itemsize

    x_p = jnp.pad(x, ((0, n_pad - n), (0, 0))).astype(jnp.bfloat16)
    adj_p = jnp.pad(adj, ((0, n_pad - n), (0, n_pad - n)))

    heads1, hid = 8, 8
    out_ch = params["b2"].shape[0]

    # F.dropout(p=0.6) is identity in eval mode.
    (tn1, tk1), lim1 = _pick_tiles(n_pad, heads1, hid, heads1 * hid, kind, ebytes, 2)
    h = gat_layer(x_p, adj_p, params["w1"], params["a_src1"], params["a_dst1"],
                  params["b1"], heads=heads1, f_out=hid, concat=True, apply_elu=True,
                  tile_n=tn1, tile_k=tk1, vmem_limit=lim1,
                  compute_dtype=cdt, out_dtype=jnp.bfloat16)      # ELU(conv1(x)), bf16
    # F.dropout(p=0.6) is identity in eval mode.
    (tn2, tk2), lim2 = _pick_tiles(n_pad, 1, out_ch, out_ch, kind, ebytes, 4)
    out = gat_layer(h, adj_p, params["w2"], params["a_src2"], params["a_dst2"],
                    params["b2"], heads=1, f_out=out_ch, concat=False, apply_elu=False,
                    tile_n=tn2, tile_k=tk2, vmem_limit=lim2,
                    compute_dtype=cdt, out_dtype=jnp.float32)     # conv2(h)
    return out[:n]


if __name__ == "__main__":
    N = 32            # nodes
    IN_CHANNELS = 16
    OUT_CHANNELS = 4
    E = 64            # directed edges

    key = jax.random.PRNGKey(0)
    k_x, k_e, k_p = jax.random.split(key, 3)

    x = jax.random.normal(k_x, (N, IN_CHANNELS), jnp.float32)
    edge_index = jax.random.randint(k_e, (2, E), 0, N, dtype=jnp.int32)
    adj = dense_adjacency(edge_index, N)

    params = init_gat_params(k_p, IN_CHANNELS, OUT_CHANNELS)

    out = gat_forward(x, adj, params)
    out = jax.block_until_ready(out)

    assert out.shape == (N, OUT_CHANNELS), out.shape
    assert bool(jnp.all(jnp.isfinite(out)))
    print("KERNEL_OK")
</pallas_src>

<mosaic_0001>
module attributes {stable_mosaic.version = 11 : i64} {
  func.func @_gat_transform_kernel(%arg0: i32, %arg1: memref<128x16xbf16, #tpu.memory_space<vmem>>, %arg2: memref<16x64xbf16, #tpu.memory_space<vmem>>, %arg3: memref<64x16xf32, #tpu.memory_space<vmem>>, %arg4: memref<128x64xbf16, #tpu.memory_space<vmem>>, %arg5: memref<128x16xf32, #tpu.memory_space<vmem>>) attributes {dimension_semantics = [#tpu.dimension_semantics<parallel>], iteration_bounds = array<i64: 1>, scalar_prefetch = 0 : i64, scratch_operands = 0 : i64, tpu.core_type = #tpu.core_type<tc>, window_params = [{transform_indices = @transform_0, window_bounds = array<i64: 128, 16>}, {pipeline_mode = #tpu.pipeline_mode<synchronous>, transform_indices = @transform_1, window_bounds = array<i64: 16, 64>}, {pipeline_mode = #tpu.pipeline_mode<synchronous>, transform_indices = @transform_2, window_bounds = array<i64: 64, 16>}, {transform_indices = @transform_3, window_bounds = array<i64: 128, 64>}, {transform_indices = @transform_4, window_bounds = array<i64: 128, 16>}]} {
    %c0 = arith.constant 0 : index
    %c0_0 = arith.constant 0 : index
    %0 = vector.load %arg1[%c0, %c0_0] : memref<128x16xbf16, #tpu.memory_space<vmem>>, vector<128x16xbf16>
    %c0_1 = arith.constant 0 : index
    %c0_2 = arith.constant 0 : index
    %1 = vector.load %arg2[%c0_1, %c0_2] : memref<16x64xbf16, #tpu.memory_space<vmem>>, vector<16x64xbf16>
    %cst = arith.constant dense<0.000000e+00> : vector<128x64xf32>
    %2 = tpu.matmul %0, %1, %cst {dimension_numbers = #tpu.dot_dimension_numbers<[1], [0], [0], [1], [0, 0, 1, 1], [], []>} : vector<128x16xbf16>, vector<16x64xbf16>, vector<128x64xf32> -> vector<128x64xf32>
    %c0_3 = arith.constant 0 : index
    %c0_4 = arith.constant 0 : index
    %3 = vector.load %arg3[%c0_3, %c0_4] : memref<64x16xf32, #tpu.memory_space<vmem>>, vector<64x16xf32>
    %cst_5 = arith.constant dense<0.000000e+00> : vector<128x16xf32>
    %4 = tpu.matmul %2, %3, %cst_5 {dimension_numbers = #tpu.dot_dimension_numbers<[1], [0], [0], [1], [0, 0, 1, 1], [], []>} : vector<128x64xf32>, vector<64x16xf32>, vector<128x16xf32> -> vector<128x16xf32>
    %c0_6 = arith.constant 0 : index
    %c0_7 = arith.constant 0 : index
    %5 = vector.load %arg5[%c0_6, %c0_7] : memref<128x16xf32, #tpu.memory_space<vmem>>, vector<128x16xf32>
    tpu.vector_store %arg5[%c0_6, %c0_7], %4 {strides = array<i32>} : memref<128x16xf32, #tpu.memory_space<vmem>>, vector<128x16xf32>,
    %6 = arith.truncf %2 : vector<128x64xf32> to vector<128x64xbf16>
    %c0_8 = arith.constant 0 : index
    %c0_9 = arith.constant 0 : index
    %7 = vector.load %arg4[%c0_8, %c0_9] : memref<128x64xbf16, #tpu.memory_space<vmem>>, vector<128x64xbf16>
    tpu.vector_store %arg4[%c0_8, %c0_9], %6 {strides = array<i32>} : memref<128x64xbf16, #tpu.memory_space<vmem>>, vector<128x64xbf16>,
    return
  }
  func.func @transform_0(%arg0: i32) -> (i32, i32) {
    %c0_i32 = arith.constant 0 : i32
    %c0_i32_0 = arith.constant 0 : i32
    return %arg0, %c0_i32 : i32, i32
  }
  func.func @transform_1(%arg0: i32) -> (i32, i32) {
    %c0_i32 = arith.constant 0 : i32
    %c0_i32_0 = arith.constant 0 : i32
    %c0_i32_1 = arith.constant 0 : i32
    return %c0_i32, %c0_i32_0 : i32, i32
  }
  func.func @transform_2(%arg0: i32) -> (i32, i32) {
    %c0_i32 = arith.constant 0 : i32
    %c0_i32_0 = arith.constant 0 : i32
    %c0_i32_1 = arith.constant 0 : i32
    return %c0_i32, %c0_i32_0 : i32, i32
  }
  func.func @transform_3(%arg0: i32) -> (i32, i32) {
    %c0_i32 = arith.constant 0 : i32
    %c0_i32_0 = arith.constant 0 : i32
    return %arg0, %c0_i32 : i32, i32
  }
  func.func @transform_4(%arg0: i32) -> (i32, i32) {
    %c0_i32 = arith.constant 0 : i32
    %c0_i32_0 = arith.constant 0 : i32
    return %arg0, %c0_i32 : i32, i32
  }
}

module attributes {stable_mosaic.version = 11 : i64} {
  func.func @_gat_attention_kernel(%arg0: i32, %arg1: i32, %arg2: memref<128x128xi8, #tpu.memory_space<vmem>>, %arg3: memref<128x8xf32, #tpu.memory_space<vmem>>, %arg4: memref<128x8xf32, #tpu.memory_space<vmem>>, %arg5: memref<8x128xf32, #tpu.memory_space<vmem>>, %arg6: memref<128x72xbf16, #tpu.memory_space<vmem>>, %arg7: memref<1x64xf32, #tpu.memory_space<vmem>>, %arg8: memref<128x64xbf16, #tpu.memory_space<vmem>>, %arg9: memref<128x72xf32, #tpu.memory_space<vmem>>) attributes {dimension_semantics = [#tpu.dimension_semantics<parallel>, #tpu.dimension_semantics<arbitrary>], iteration_bounds = array<i64: 1, 1>, scalar_prefetch = 0 : i64, scratch_operands = 1 : i64, tpu.core_type = #tpu.core_type<tc>, window_params = [{transform_indices = @transform_0, window_bounds = array<i64: 128, 128>}, {transform_indices = @transform_1, window_bounds = array<i64: 128, 8>}, {transform_indices = @transform_2, window_bounds = array<i64: 128, 8>}, {transform_indices = @transform_3, window_bounds = array<i64: 8, 128>}, {transform_indices = @transform_4, window_bounds = array<i64: 128, 72>}, {pipeline_mode = #tpu.pipeline_mode<synchronous>, transform_indices = @transform_5, window_bounds = array<i64: 1, 64>}, {transform_indices = @transform_6, window_bounds = array<i64: 128, 64>}]} {
    %c0_i32 = arith.constant 0 : i32
    %0 = arith.cmpi eq, %arg1, %c0_i32 : i32
    %1 = arith.extui %0 : i1 to i32
    %c0_i32_0 = arith.constant 0 : i32
    %2 = arith.cmpi ne, %1, %c0_i32_0 : i32
    scf.if %2 {
      %cst_31 = arith.constant 0.000000e+00 : f32
      %144 = vector.broadcast %cst_31 : f32 to vector<128x72xf32>
      %c0_32 = arith.constant 0 : index
      %c0_33 = arith.constant 0 : index
      %145 = vector.load %arg9[%c0_32, %c0_33] : memref<128x72xf32, #tpu.memory_space<vmem>>, vector<128x72xf32>
      tpu.vector_store %arg9[%c0_32, %c0_33], %144 {strides = array<i32>} : memref<128x72xf32, #tpu.memory_space<vmem>>, vector<128x72xf32>,
    } else {
    }
    %c0 = arith.constant 0 : index
    %c0_1 = arith.constant 0 : index
    %3 = vector.load %arg3[%c0, %c0_1] : memref<128x8xf32, #tpu.memory_space<vmem>>, vector<128x8xf32>
    %c0_2 = arith.constant 0 : index
    %c0_3 = arith.constant 0 : index
    %4 = vector.load %arg4[%c0_2, %c0_3] : memref<128x8xf32, #tpu.memory_space<vmem>>, vector<128x8xf32>
    %c0_4 = arith.constant 0 : index
    %c0_5 = arith.constant 0 : index
    %5 = vector.load %arg5[%c0_4, %c0_5] : memref<8x128xf32, #tpu.memory_space<vmem>>, vector<8x128xf32>
    %c0_6 = arith.constant 0 : index
    %c0_7 = arith.constant 0 : index
    %6 = vector.load %arg2[%c0_6, %c0_7] : memref<128x128xi8, #tpu.memory_space<vmem>>, vector<128x128xi8>
    %7 = arith.sitofp %6 : vector<128x128xi8> to vector<128x128xf32>
    %c0_8 = arith.constant 0 : index
    %c0_9 = arith.constant 0 : index
    %8 = vector.load %arg6[%c0_8, %c0_9] : memref<128x72xbf16, #tpu.memory_space<vmem>>, vector<128x72xbf16>
    %9 = vector.extract_strided_slice %3 {offsets = [0, 0], sizes = [128, 1], strides = [1, 1]} : vector<128x8xf32> to vector<128x1xf32>
    %10 = vector.extract_strided_slice %5 {offsets = [0, 0], sizes = [1, 128], strides = [1, 1]} : vector<8x128xf32> to vector<1x128xf32>
    %11 = vector.broadcast %9 : vector<128x1xf32> to vector<128x128xf32>
    %12 = vector.broadcast %10 : vector<1x128xf32> to vector<128x128xf32>
    %13 = arith.addf %11, %12 : vector<128x128xf32>
    %cst = arith.constant 2.000000e-01 : f32
    %14 = vector.broadcast %cst : f32 to vector<128x128xf32>
    %15 = arith.mulf %14, %13 : vector<128x128xf32>
    %16 = arith.maximumf %13, %15 : vector<128x128xf32>
    %17 = vector.extract_strided_slice %4 {offsets = [0, 0], sizes = [128, 1], strides = [1, 1]} : vector<128x8xf32> to vector<128x1xf32>
    %18 = vector.broadcast %17 : vector<128x1xf32> to vector<128x128xf32>
    %19 = arith.subf %16, %18 : vector<128x128xf32>
    %20 = math.exp %19 : vector<128x128xf32>
    %21 = arith.mulf %20, %7 : vector<128x128xf32>
    %22 = arith.truncf %21 : vector<128x128xf32> to vector<128x128xbf16>
    %23 = vector.extract_strided_slice %8 {offsets = [0, 0], sizes = [128, 9], strides = [1, 1]} : vector<128x72xbf16> to vector<128x9xbf16>
    %cst_10 = arith.constant dense<0.000000e+00> : vector<128x9xf32>
    %24 = tpu.matmul %22, %23, %cst_10 {dimension_numbers = #tpu.dot_dimension_numbers<[1], [0], [0], [1], [0, 0, 1, 1], [], []>} : vector<128x128xbf16>, vector<128x9xbf16>, vector<128x9xf32> -> vector<128x9xf32>
    %25 = vector.extract_strided_slice %3 {offsets = [0, 1], sizes = [128, 1], strides = [1, 1]} : vector<128x8xf32> to vector<128x1xf32>
    %26 = vector.extract_strided_slice %5 {offsets = [1, 0], sizes = [1, 128], strides = [1, 1]} : vector<8x128xf32> to vector<1x128xf32>
    %27 = vector.broadcast %25 : vector<128x1xf32> to vector<128x128xf32>
    %28 = vector.broadcast %26 : vector<1x128xf32> to vector<128x128xf32>
    %29 = arith.addf %27, %28 : vector<128x128xf32>
    %cst_11 = arith.constant 2.000000e-01 : f32
    %30 = vector.broadcast %cst_11 : f32 to vector<128x128xf32>
    %31 = arith.mulf %30, %29 : vector<128x128xf32>
    %32 = arith.maximumf %29, %31 : vector<128x128xf32>
    %33 = vector.extract_strided_slice %4 {offsets = [0, 1], sizes = [128, 1], strides = [1, 1]} : vector<128x8xf32> to vector<128x1xf32>
    %34 = vector.broadcast %33 : vector<128x1xf32> to vector<128x128xf32>
    %35 = arith.subf %32, %34 : vector<128x128xf32>
    %36 = math.exp %35 : vector<128x128xf32>
    %37 = arith.mulf %36, %7 : vector<128x128xf32>
    %38 = arith.truncf %37 : vector<128x128xf32> to vector<128x128xbf16>
    %39 = vector.extract_strided_slice %8 {offsets = [0, 9], sizes = [128, 9], strides = [1, 1]} : vector<128x72xbf16> to vector<128x9xbf16>
    %cst_12 = arith.constant dense<0.000000e+00> : vector<128x9xf32>
    %40 = tpu.matmul %38, %39, %cst_12 {dimension_numbers = #tpu.dot_dimension_numbers<[1], [0], [0], [1], [0, 0, 1, 1], [], []>} : vector<128x128xbf16>, vector<128x9xbf16>, vector<128x9xf32> -> vector<128x9xf32>
    %41 = vector.extract_strided_slice %3 {offsets = [0, 2], sizes = [128, 1], strides = [1, 1]} : vector<128x8xf32> to vector<128x1xf32>
    %42 = vector.extract_strided_slice %5 {offsets = [2, 0], sizes = [1, 128], strides = [1, 1]} : vector<8x128xf32> to vector<1x128xf32>
    %43 = vector.broadcast %41 : vector<128x1xf32> to vector<128x128xf32>
    %44 = vector.broadcast %42 : vector<1x128xf32> to vector<128x128xf32>
    %45 = arith.addf %43, %44 : vector<128x128xf32>
    %cst_13 = arith.constant 2.000000e-01 : f32
    %46 = vector.broadcast %cst_13 : f32 to vector<128x128xf32>
    %47 = arith.mulf %46, %45 : vector<128x128xf32>
    %48 = arith.maximumf %45, %47 : vector<128x128xf32>
    %49 = vector.extract_strided_slice %4 {offsets = [0, 2], sizes = [128, 1], strides = [1, 1]} : vector<128x8xf32> to vector<128x1xf32>
    %50 = vector.broadcast %49 : vector<128x1xf32> to vector<128x128xf32>
    %51 = arith.subf %48, %50 : vector<128x128xf32>
    %52 = math.exp %51 : vector<128x128xf32>
    %53 = arith.mulf %52, %7 : vector<128x128xf32>
    %54 = arith.truncf %53 : vector<128x128xf32> to vector<128x128xbf16>
    %55 = vector.extract_strided_slice %8 {offsets = [0, 18], sizes = [128, 9], strides = [1, 1]} : vector<128x72xbf16> to vector<128x9xbf16>
    %cst_14 = arith.constant dense<0.000000e+00> : vector<128x9xf32>
    %56 = tpu.matmul %54, %55, %cst_14 {dimension_numbers = #tpu.dot_dimension_numbers<[1], [0], [0], [1], [0, 0, 1, 1], [], []>} : vector<128x128xbf16>, vector<128x9xbf16>, vector<128x9xf32> -> vector<128x9xf32>
    %57 = vector.extract_strided_slice %3 {offsets = [0, 3], sizes = [128, 1], strides = [1, 1]} : vector<128x8xf32> to vector<128x1xf32>
    %58 = vector.extract_strided_slice %5 {offsets = [3, 0], sizes = [1, 128], strides = [1, 1]} : vector<8x128xf32> to vector<1x128xf32>
    %59 = vector.broadcast %57 : vector<128x1xf32> to vector<128x128xf32>
    %60 = vector.broadcast %58 : vector<1x128xf32> to vector<128x128xf32>
    %61 = arith.addf %59, %60 : vector<128x128xf32>
    %cst_15 = arith.constant 2.000000e-01 : f32
    %62 = vector.broadcast %cst_15 : f32 to vector<128x128xf32>
    %63 = arith.mulf %62, %61 : vector<128x128xf32>
    %64 = arith.maximumf %61, %63 : vector<128x128xf32>
    %65 = vector.extract_strided_slice %4 {offsets = [0, 3], sizes = [128, 1], strides = [1, 1]} : vector<128x8xf32> to vector<128x1xf32>
    %66 = vector.broadcast %65 : vector<128x1xf32> to vector<128x128xf32>
    %67 = arith.subf %64, %66 : vector<128x128xf32>
    %68 = math.exp %67 : vector<128x128xf32>
    %69 = arith.mulf %68, %7 : vector<128x128xf32>
    %70 = arith.truncf %69 : vector<128x128xf32> to vector<128x128xbf16>
    %71 = vector.extract_strided_slice %8 {offsets = [0, 27], sizes = [128, 9], strides = [1, 1]} : vector<128x72xbf16> to vector<128x9xbf16>
    %cst_16 = arith.constant dense<0.000000e+00> : vector<128x9xf32>
    %72 = tpu.matmul %70, %71, %cst_16 {dimension_numbers = #tpu.dot_dimension_numbers<[1], [0], [0], [1], [0, 0, 1, 1], [], []>} : vector<128x128xbf16>, vector<128x9xbf16>, vector<128x9xf32> -> vector<128x9xf32>
    %73 = vector.extract_strided_slice %3 {offsets = [0, 4], sizes = [128, 1], strides = [1, 1]} : vector<128x8xf32> to vector<128x1xf32>
    %74 = vector.extract_strided_slice %5 {offsets = [4, 0], sizes = [1, 128], strides = [1, 1]} : vector<8x128xf32> to vector<1x128xf32>
    %75 = vector.broadcast %73 : vector<128x1xf32> to vector<128x128xf32>
    %76 = vector.broadcast %74 : vector<1x128xf32> to vector<128x128xf32>
    %77 = arith.addf %75, %76 : vector<128x128xf32>
    %cst_17 = arith.constant 2.000000e-01 : f32
    %78 = vector.broadcast %cst_17 : f32 to vector<128x128xf32>
    %79 = arith.mulf %78, %77 : vector<128x128xf32>
    %80 = arith.maximumf %77, %79 : vector<128x128xf32>
    %81 = vector.extract_strided_slice %4 {offsets = [0, 4], sizes = [128, 1], strides = [1, 1]} : vector<128x8xf32> to vector<128x1xf32>
    %82 = vector.broadcast %81 : vector<128x1xf32> to vector<128x128xf32>
    %83 = arith.subf %80, %82 : vector<128x128xf32>
    %84 = math.exp %83 : vector<128x128xf32>
    %85 = arith.mulf %84, %7 : vector<128x128xf32>
    %86 = arith.truncf %85 : vector<128x128xf32> to vector<128x128xbf16>
    %87 = vector.extract_strided_slice %8 {offsets = [0, 36], sizes = [128, 9], strides = [1, 1]} : vector<128x72xbf16> to vector<128x9xbf16>
    %cst_18 = arith.constant dense<0.000000e+00> : vector<128x9xf32>
    %88 = tpu.matmul %86, %87, %cst_18 {dimension_numbers = #tpu.dot_dimension_numbers<[1], [0], [0], [1], [0, 0, 1, 1], [], []>} : vector<128x128xbf16>, vector<128x9xbf16>, vector<128x9xf32> -> vector<128x9xf32>
    %89 = vector.extract_strided_slice %3 {offsets = [0, 5], sizes = [128, 1], strides = [1, 1]} : vector<128x8xf32> to vector<128x1xf32>
    %90 = vector.extract_strided_slice %5 {offsets = [5, 0], sizes = [1, 128], strides = [1, 1]} : vector<8x128xf32> to vector<1x128xf32>
    %91 = vector.broadcast %89 : vector<128x1xf32> to vector<128x128xf32>
    %92 = vector.broadcast %90 : vector<1x128xf32> to vector<128x128xf32>
    %93 = arith.addf %91, %92 : vector<128x128xf32>
    %cst_19 = arith.constant 2.000000e-01 : f32
    %94 = vector.broadcast %cst_19 : f32 to vector<128x128xf32>
    %95 = arith.mulf %94, %93 : vector<128x128xf32>
    %96 = arith.maximumf %93, %95 : vector<128x128xf32>
    %97 = vector.extract_strided_slice %4 {offsets = [0, 5], sizes = [128, 1], strides = [1, 1]} : vector<128x8xf32> to vector<128x1xf32>
    %98 = vector.broadcast %97 : vector<128x1xf32> to vector<128x128xf32>
    %99 = arith.subf %96, %98 : vector<128x128xf32>
    %100 = math.exp %99 : vector<128x128xf32>
    %101 = arith.mulf %100, %7 : vector<128x128xf32>
    %102 = arith.truncf %101 : vector<128x128xf32> to vector<128x128xbf16>
    %103 = vector.extract_strided_slice %8 {offsets = [0, 45], sizes = [128, 9], strides = [1, 1]} : vector<128x72xbf16> to vector<128x9xbf16>
    %cst_20 = arith.constant dense<0.000000e+00> : vector<128x9xf32>
    %104 = tpu.matmul %102, %103, %cst_20 {dimension_numbers = #tpu.dot_dimension_numbers<[1], [0], [0], [1], [0, 0, 1, 1], [], []>} : vector<128x128xbf16>, vector<128x9xbf16>, vector<128x9xf32> -> vector<128x9xf32>
    %105 = vector.extract_strided_slice %3 {offsets = [0, 6], sizes = [128, 1], strides = [1, 1]} : vector<128x8xf32> to vector<128x1xf32>
    %106 = vector.extract_strided_slice %5 {offsets = [6, 0], sizes = [1, 128], strides = [1, 1]} : vector<8x128xf32> to vector<1x128xf32>
    %107 = vector.broadcast %105 : vector<128x1xf32> to vector<128x128xf32>
    %108 = vector.broadcast %106 : vector<1x128xf32> to vector<128x128xf32>
    %109 = arith.addf %107, %108 : vector<128x128xf32>
    %cst_21 = arith.constant 2.000000e-01 : f32
    %110 = vector.broadcast %cst_21 : f32 to vector<128x128xf32>
    %111 = arith.mulf %110, %109 : vector<128x128xf32>
    %112 = arith.maximumf %109, %111 : vector<128x128xf32>
    %113 = vector.extract_strided_slice %4 {offsets = [0, 6], sizes = [128, 1], strides = [1, 1]} : vector<128x8xf32> to vector<128x1xf32>
    %114 = vector.broadcast %113 : vector<128x1xf32> to vector<128x128xf32>
    %115 = arith.subf %112, %114 : vector<128x128xf32>
    %116 = math.exp %115 : vector<128x128xf32>
    %117 = arith.mulf %116, %7 : vector<128x128xf32>
    %118 = arith.truncf %117 : vector<128x128xf32> to vector<128x128xbf16>
    %119 = vector.extract_strided_slice %8 {offsets = [0, 54], sizes = [128, 9], strides = [1, 1]} : vector<128x72xbf16> to vector<128x9xbf16>
    %cst_22 = arith.constant dense<0.000000e+00> : vector<128x9xf32>
    %120 = tpu.matmul %118, %119, %cst_22 {dimension_numbers = #tpu.dot_dimension_numbers<[1], [0], [0], [1], [0, 0, 1, 1], [], []>} : vector<128x128xbf16>, vector<128x9xbf16>, vector<128x9xf32> -> vector<128x9xf32>
    %121 = vector.extract_strided_slice %3 {offsets = [0, 7], sizes = [128, 1], strides = [1, 1]} : vector<128x8xf32> to vector<128x1xf32>
    %122 = vector.extract_strided_slice %5 {offsets = [7, 0], sizes = [1, 128], strides = [1, 1]} : vector<8x128xf32> to vector<1x128xf32>
    %123 = vector.broadcast %121 : vector<128x1xf32> to vector<128x128xf32>
    %124 = vector.broadcast %122 : vector<1x128xf32> to vector<128x128xf32>
    %125 = arith.addf %123, %124 : vector<128x128xf32>
    %cst_23 = arith.constant 2.000000e-01 : f32
    %126 = vector.broadcast %cst_23 : f32 to vector<128x128xf32>
    %127 = arith.mulf %126, %125 : vector<128x128xf32>
    %128 = arith.maximumf %125, %127 : vector<128x128xf32>
    %129 = vector.extract_strided_slice %4 {offsets = [0, 7], sizes = [128, 1], strides = [1, 1]} : vector<128x8xf32> to vector<128x1xf32>
    %130 = vector.broadcast %129 : vector<128x1xf32> to vector<128x128xf32>
    %131 = arith.subf %128, %130 : vector<128x128xf32>
    %132 = math.exp %131 : vector<128x128xf32>
    %133 = arith.mulf %132, %7 : vector<128x128xf32>
    %134 = arith.truncf %133 : vector<128x128xf32> to vector<128x128xbf16>
    %135 = vector.extract_strided_slice %8 {offsets = [0, 63], sizes = [128, 9], strides = [1, 1]} : vector<128x72xbf16> to vector<128x9xbf16>
    %cst_24 = arith.constant dense<0.000000e+00> : vector<128x9xf32>
    %136 = tpu.matmul %134, %135, %cst_24 {dimension_numbers = #tpu.dot_dimension_numbers<[1], [0], [0], [1], [0, 0, 1, 1], [], []>} : vector<128x128xbf16>, vector<128x9xbf16>, vector<128x9xf32> -> vector<128x9xf32>
    %c0_25 = arith.constant 0 : index
    %c0_26 = arith.constant 0 : index
    %137 = vector.load %arg9[%c0_25, %c0_26] : memref<128x72xf32, #tpu.memory_space<vmem>>, vector<128x72xf32>
    %138 = tpu.concatenate %24, %40, %56, %72, %88, %104, %120, %136 in 1 : vector<128x9xf32>, vector<128x9xf32>, vector<128x9xf32>, vector<128x9xf32>, vector<128x9xf32>, vector<128x9xf32>, vector<128x9xf32>, vector<128x9xf32> -> vector<128x72xf32>
    %139 = arith.addf %137, %138 : vector<128x72xf32>
    %c0_27 = arith.constant 0 : index
    %c0_28 = arith.constant 0 : index
    %140 = vector.load %arg9[%c0_27, %c0_28] : memref<128x72xf32, #tpu.memory_space<vmem>>, vector<128x72xf32>
    tpu.vector_store %arg9[%c0_27, %c0_28], %139 {strides = array<i32>} : memref<128x72xf32, #tpu.memory_space<vmem>>, vector<128x72xf32>,
    %c0_i32_29 = arith.constant 0 : i32
    %141 = arith.cmpi eq, %arg1, %c0_i32_29 : i32
    %142 = arith.extui %141 : i1 to i32
    %c0_i32_30 = arith.constant 0 : i32
    %143 = arith.cmpi ne, %142, %c0_i32_30 : i32
    scf.if %143 {
      %c0_31 = arith.constant 0 : index
      %c0_32 = arith.constant 0 : index
      %144 = vector.load %arg9[%c0_31, %c0_32] : memref<128x72xf32, #tpu.memory_space<vmem>>, vector<128x72xf32>
      %145 = vector.extract_strided_slice %144 {offsets = [0, 0], sizes = [128, 8], strides = [1, 1]} : vector<128x72xf32> to vector<128x8xf32>
      %146 = vector.extract_strided_slice %144 {offsets = [0, 8], sizes = [128, 1], strides = [1, 1]} : vector<128x72xf32> to vector<128x1xf32>
      %cst_33 = arith.constant 1.000000e-30 : f32
      %147 = vector.broadcast %cst_33 : f32 to vector<128x1xf32>
      %148 = arith.maximumf %146, %147 : vector<128x1xf32>
      %149 = tpu.reciprocal %148 {approx = true} : vector<128x1xf32> -> vector<128x1xf32>
      %150 = vector.broadcast %149 : vector<128x1xf32> to vector<128x8xf32>
      %151 = arith.mulf %145, %150 : vector<128x8xf32>
      %152 = vector.extract_strided_slice %144 {offsets = [0, 9], sizes = [128, 8], strides = [1, 1]} : vector<128x72xf32> to vector<128x8xf32>
      %153 = vector.extract_strided_slice %144 {offsets = [0, 17], sizes = [128, 1], strides = [1, 1]} : vector<128x72xf32> to vector<128x1xf32>
      %cst_34 = arith.constant 1.000000e-30 : f32
      %154 = vector.broadcast %cst_34 : f32 to vector<128x1xf32>
      %155 = arith.maximumf %153, %154 : vector<128x1xf32>
      %156 = tpu.reciprocal %155 {approx = true} : vector<128x1xf32> -> vector<128x1xf32>
      %157 = vector.broadcast %156 : vector<128x1xf32> to vector<128x8xf32>
      %158 = arith.mulf %152, %157 : vector<128x8xf32>
      %159 = vector.extract_strided_slice %144 {offsets = [0, 18], sizes = [128, 8], strides = [1, 1]} : vector<128x72xf32> to vector<128x8xf32>
      %160 = vector.extract_strided_slice %144 {offsets = [0, 26], sizes = [128, 1], strides = [1, 1]} : vector<128x72xf32> to vector<128x1xf32>
      %cst_35 = arith.constant 1.000000e-30 : f32
      %161 = vector.broadcast %cst_35 : f32 to vector<128x1xf32>
      %162 = arith.maximumf %160, %161 : vector<128x1xf32>
      %163 = tpu.reciprocal %162 {approx = true} : vector<128x1xf32> -> vector<128x1xf32>
      %164 = vector.broadcast %163 : vector<128x1xf32> to vector<128x8xf32>
      %165 = arith.mulf %159, %164 : vector<128x8xf32>
      %166 = vector.extract_strided_slice %144 {offsets = [0, 27], sizes = [128, 8], strides = [1, 1]} : vector<128x72xf32> to vector<128x8xf32>
      %167 = vector.extract_strided_slice %144 {offsets = [0, 35], sizes = [128, 1], strides = [1, 1]} : vector<128x72xf32> to vector<128x1xf32>
      %cst_36 = arith.constant 1.000000e-30 : f32
      %168 = vector.broadcast %cst_36 : f32 to vector<128x1xf32>
      %169 = arith.maximumf %167, %168 : vector<128x1xf32>
      %170 = tpu.reciprocal %169 {approx = true} : vector<128x1xf32> -> vector<128x1xf32>
      %171 = vector.broadcast %170 : vector<128x1xf32> to vector<128x8xf32>
      %172 = arith.mulf %166, %171 : vector<128x8xf32>
      %173 = vector.extract_strided_slice %144 {offsets = [0, 36], sizes = [128, 8], strides = [1, 1]} : vector<128x72xf32> to vector<128x8xf32>
      %174 = vector.extract_strided_slice %144 {offsets = [0, 44], sizes = [128, 1], strides = [1, 1]} : vector<128x72xf32> to vector<128x1xf32>
      %cst_37 = arith.constant 1.000000e-30 : f32
      %175 = vector.broadcast %cst_37 : f32 to vector<128x1xf32>
      %176 = arith.maximumf %174, %175 : vector<128x1xf32>
      %177 = tpu.reciprocal %176 {approx = true} : vector<128x1xf32> -> vector<128x1xf32>
      %178 = vector.broadcast %177 : vector<128x1xf32> to vector<128x8xf32>
      %179 = arith.mulf %173, %178 : vector<128x8xf32>
      %180 = vector.extract_strided_slice %144 {offsets = [0, 45], sizes = [128, 8], strides = [1, 1]} : vector<128x72xf32> to vector<128x8xf32>
      %181 = vector.extract_strided_slice %144 {offsets = [0, 53], sizes = [128, 1], strides = [1, 1]} : vector<128x72xf32> to vector<128x1xf32>
      %cst_38 = arith.constant 1.000000e-30 : f32
      %182 = vector.broadcast %cst_38 : f32 to vector<128x1xf32>
      %183 = arith.maximumf %181, %182 : vector<128x1xf32>
      %184 = tpu.reciprocal %183 {approx = true} : vector<128x1xf32> -> vector<128x1xf32>
      %185 = vector.broadcast %184 : vector<128x1xf32> to vector<128x8xf32>
      %186 = arith.mulf %180, %185 : vector<128x8xf32>
      %187 = vector.extract_strided_slice %144 {offsets = [0, 54], sizes = [128, 8], strides = [1, 1]} : vector<128x72xf32> to vector<128x8xf32>
      %188 = vector.extract_strided_slice %144 {offsets = [0, 62], sizes = [128, 1], strides = [1, 1]} : vector<128x72xf32> to vector<128x1xf32>
      %cst_39 = arith.constant 1.000000e-30 : f32
      %189 = vector.broadcast %cst_39 : f32 to vector<128x1xf32>
      %190 = arith.maximumf %188, %189 : vector<128x1xf32>
      %191 = tpu.reciprocal %190 {approx = true} : vector<128x1xf32> -> vector<128x1xf32>
      %192 = vector.broadcast %191 : vector<128x1xf32> to vector<128x8xf32>
      %193 = arith.mulf %187, %192 : vector<128x8xf32>
      %194 = vector.extract_strided_slice %144 {offsets = [0, 63], sizes = [128, 8], strides = [1, 1]} : vector<128x72xf32> to vector<128x8xf32>
      %195 = vector.extract_strided_slice %144 {offsets = [0, 71], sizes = [128, 1], strides = [1, 1]} : vector<128x72xf32> to vector<128x1xf32>
      %cst_40 = arith.constant 1.000000e-30 : f32
      %196 = vector.broadcast %cst_40 : f32 to vector<128x1xf32>
      %197 = arith.maximumf %195, %196 : vector<128x1xf32>
      %198 = tpu.reciprocal %197 {approx = true} : vector<128x1xf32> -> vector<128x1xf32>
      %199 = vector.broadcast %198 : vector<128x1xf32> to vector<128x8xf32>
      %200 = arith.mulf %194, %199 : vector<128x8xf32>
      %c0_41 = arith.constant 0 : index
      %c0_42 = arith.constant 0 : index
      %201 = vector.load %arg7[%c0_41, %c0_42] : memref<1x64xf32, #tpu.memory_space<vmem>>, vector<1x64xf32>
      %202 = tpu.concatenate %151, %158, %165, %172, %179, %186, %193, %200 in 1 : vector<128x8xf32>, vector<128x8xf32>, vector<128x8xf32>, vector<128x8xf32>, vector<128x8xf32>, vector<128x8xf32>, vector<128x8xf32>, vector<128x8xf32> -> vector<128x64xf32>
      %203 = vector.broadcast %201 : vector<1x64xf32> to vector<128x64xf32>
      %204 = arith.addf %202, %203 : vector<128x64xf32>
      %cst_43 = arith.constant 0.000000e+00 : f32
      %205 = vector.broadcast %cst_43 : f32 to vector<128x64xf32>
      %206 = arith.cmpf ogt, %204, %205 : vector<128x64xf32>
      %cst_44 = arith.constant 0.000000e+00 : f32
      %207 = vector.broadcast %cst_44 : f32 to vector<128x64xf32>
      %208 = arith.minimumf %204, %207 : vector<128x64xf32>
      %209 = math.exp %208 : vector<128x64xf32>
      %cst_45 = arith.constant 1.000000e+00 : f32
      %210 = vector.broadcast %cst_45 : f32 to vector<128x64xf32>
      %211 = arith.subf %209, %210 : vector<128x64xf32>
      %212 = arith.select %206, %204, %211 : vector<128x64xi1>, vector<128x64xf32>
      %213 = arith.truncf %212 : vector<128x64xf32> to vector<128x64xbf16>
      %c0_46 = arith.constant 0 : index
      %c0_47 = arith.constant 0 : index
      %214 = vector.load %arg8[%c0_46, %c0_47] : memref<128x64xbf16, #tpu.memory_space<vmem>>, vector<128x64xbf16>
      tpu.vector_store %arg8[%c0_46, %c0_47], %213 {strides = array<i32>} : memref<128x64xbf16, #tpu.memory_space<vmem>>, vector<128x64xbf16>,
    } else {
    }
    return
  }
  func.func @transform_0(%arg0: i32, %arg1: i32) -> (i32, i32) {
    %c0_i32 = arith.constant 0 : i32
    return %arg0, %arg1 : i32, i32
  }
  func.func @transform_1(%arg0: i32, %arg1: i32) -> (i32, i32) {
    %c0_i32 = arith.constant 0 : i32
    %c0_i32_0 = arith.constant 0 : i32
    return %arg0, %c0_i32 : i32, i32
  }
  func.func @transform_2(%arg0: i32, %arg1: i32) -> (i32, i32) {
    %c0_i32 = arith.constant 0 : i32
    %c0_i32_0 = arith.constant 0 : i32
    return %arg0, %c0_i32 : i32, i32
  }
  func.func @transform_3(%arg0: i32, %arg1: i32) -> (i32, i32) {
    %c0_i32 = arith.constant 0 : i32
    %c0_i32_0 = arith.constant 0 : i32
    return %c0_i32, %arg1 : i32, i32
  }
  func.func @transform_4(%arg0: i32, %arg1: i32) -> (i32, i32) {
    %c0_i32 = arith.constant 0 : i32
    %c0_i32_0 = arith.constant 0 : i32
    return %arg1, %c0_i32 : i32, i32
  }
  func.func @transform_5(%arg0: i32, %arg1: i32) -> (i32, i32) {
    %c0_i32 = arith.constant 0 : i32
    %c0_i32_0 = arith.constant 0 : i32
    %c0_i32_1 = arith.constant 0 : i32
    return %c0_i32, %c0_i32_0 : i32, i32
  }
  func.func @transform_6(%arg0: i32, %arg1: i32) -> (i32, i32) {
    %c0_i32 = arith.constant 0 : i32
    %c0_i32_0 = arith.constant 0 : i32
    return %arg0, %c0_i32 : i32, i32
  }
}

module attributes {stable_mosaic.version = 11 : i64} {
  func.func @_gat_transform_kernel(%arg0: i32, %arg1: memref<128x64xbf16, #tpu.memory_space<vmem>>, %arg2: memref<64x4xbf16, #tpu.memory_space<vmem>>, %arg3: memref<4x2xf32, #tpu.memory_space<vmem>>, %arg4: memref<128x4xbf16, #tpu.memory_space<vmem>>, %arg5: memref<128x2xf32, #tpu.memory_space<vmem>>) attributes {dimension_semantics = [#tpu.dimension_semantics<parallel>], iteration_bounds = array<i64: 1>, scalar_prefetch = 0 : i64, scratch_operands = 0 : i64, tpu.core_type = #tpu.core_type<tc>, window_params = [{transform_indices = @transform_0, window_bounds = array<i64: 128, 64>}, {pipeline_mode = #tpu.pipeline_mode<synchronous>, transform_indices = @transform_1, window_bounds = array<i64: 64, 4>}, {pipeline_mode = #tpu.pipeline_mode<synchronous>, transform_indices = @transform_2, window_bounds = array<i64: 4, 2>}, {transform_indices = @transform_3, window_bounds = array<i64: 128, 4>}, {transform_indices = @transform_4, window_bounds = array<i64: 128, 2>}]} {
    %c0 = arith.constant 0 : index
    %c0_0 = arith.constant 0 : index
    %0 = vector.load %arg1[%c0, %c0_0] : memref<128x64xbf16, #tpu.memory_space<vmem>>, vector<128x64xbf16>
    %c0_1 = arith.constant 0 : index
    %c0_2 = arith.constant 0 : index
    %1 = vector.load %arg2[%c0_1, %c0_2] : memref<64x4xbf16, #tpu.memory_space<vmem>>, vector<64x4xbf16>
    %cst = arith.constant dense<0.000000e+00> : vector<128x4xf32>
    %2 = tpu.matmul %0, %1, %cst {dimension_numbers = #tpu.dot_dimension_numbers<[1], [0], [0], [1], [0, 0, 1, 1], [], []>} : vector<128x64xbf16>, vector<64x4xbf16>, vector<128x4xf32> -> vector<128x4xf32>
    %c0_3 = arith.constant 0 : index
    %c0_4 = arith.constant 0 : index
    %3 = vector.load %arg3[%c0_3, %c0_4] : memref<4x2xf32, #tpu.memory_space<vmem>>, vector<4x2xf32>
    %cst_5 = arith.constant dense<0.000000e+00> : vector<128x2xf32>
    %4 = tpu.matmul %2, %3, %cst_5 {dimension_numbers = #tpu.dot_dimension_numbers<[1], [0], [0], [1], [0, 0, 1, 1], [], []>} : vector<128x4xf32>, vector<4x2xf32>, vector<128x2xf32> -> vector<128x2xf32>
    %c0_6 = arith.constant 0 : index
    %c0_7 = arith.constant 0 : index
    %5 = vector.load %arg5[%c0_6, %c0_7] : memref<128x2xf32, #tpu.memory_space<vmem>>, vector<128x2xf32>
    tpu.vector_store %arg5[%c0_6, %c0_7], %4 {strides = array<i32>} : memref<128x2xf32, #tpu.memory_space<vmem>>, vector<128x2xf32>,
    %6 = arith.truncf %2 : vector<128x4xf32> to vector<128x4xbf16>
    %c0_8 = arith.constant 0 : index
    %c0_9 = arith.constant 0 : index
    %7 = vector.load %arg4[%c0_8, %c0_9] : memref<128x4xbf16, #tpu.memory_space<vmem>>, vector<128x4xbf16>
    tpu.vector_store %arg4[%c0_8, %c0_9], %6 {strides = array<i32>} : memref<128x4xbf16, #tpu.memory_space<vmem>>, vector<128x4xbf16>,
    return
  }
  func.func @transform_0(%arg0: i32) -> (i32, i32) {
    %c0_i32 = arith.constant 0 : i32
    %c0_i32_0 = arith.constant 0 : i32
    return %arg0, %c0_i32 : i32, i32
  }
  func.func @transform_1(%arg0: i32) -> (i32, i32) {
    %c0_i32 = arith.constant 0 : i32
    %c0_i32_0 = arith.constant 0 : i32
    %c0_i32_1 = arith.constant 0 : i32
    return %c0_i32, %c0_i32_0 : i32, i32
  }
  func.func @transform_2(%arg0: i32) -> (i32, i32) {
    %c0_i32 = arith.constant 0 : i32
    %c0_i32_0 = arith.constant 0 : i32
    %c0_i32_1 = arith.constant 0 : i32
    return %c0_i32, %c0_i32_0 : i32, i32
  }
  func.func @transform_3(%arg0: i32) -> (i32, i32) {
    %c0_i32 = arith.constant 0 : i32
    %c0_i32_0 = arith.constant 0 : i32
    return %arg0, %c0_i32 : i32, i32
  }
  func.func @transform_4(%arg0: i32) -> (i32, i32) {
    %c0_i32 = arith.constant 0 : i32
    %c0_i32_0 = arith.constant 0 : i32
    return %arg0, %c0_i32 : i32, i32
  }
}

module attributes {stable_mosaic.version = 11 : i64} {
  func.func @_gat_attention_kernel(%arg0: i32, %arg1: i32, %arg2: memref<128x128xi8, #tpu.memory_space<vmem>>, %arg3: memref<128x1xf32, #tpu.memory_space<vmem>>, %arg4: memref<128x1xf32, #tpu.memory_space<vmem>>, %arg5: memref<1x128xf32, #tpu.memory_space<vmem>>, %arg6: memref<128x5xbf16, #tpu.memory_space<vmem>>, %arg7: memref<1x4xf32, #tpu.memory_space<vmem>>, %arg8: memref<128x4xf32, #tpu.memory_space<vmem>>, %arg9: memref<128x5xf32, #tpu.memory_space<vmem>>) attributes {dimension_semantics = [#tpu.dimension_semantics<parallel>, #tpu.dimension_semantics<arbitrary>], iteration_bounds = array<i64: 1, 1>, scalar_prefetch = 0 : i64, scratch_operands = 1 : i64, tpu.core_type = #tpu.core_type<tc>, window_params = [{transform_indices = @transform_0, window_bounds = array<i64: 128, 128>}, {transform_indices = @transform_1, window_bounds = array<i64: 128, 1>}, {transform_indices = @transform_2, window_bounds = array<i64: 128, 1>}, {transform_indices = @transform_3, window_bounds = array<i64: 1, 128>}, {transform_indices = @transform_4, window_bounds = array<i64: 128, 5>}, {pipeline_mode = #tpu.pipeline_mode<synchronous>, transform_indices = @transform_5, window_bounds = array<i64: 1, 4>}, {transform_indices = @transform_6, window_bounds = array<i64: 128, 4>}]} {
    %c0_i32 = arith.constant 0 : i32
    %0 = arith.cmpi eq, %arg1, %c0_i32 : i32
    %1 = arith.extui %0 : i1 to i32
    %c0_i32_0 = arith.constant 0 : i32
    %2 = arith.cmpi ne, %1, %c0_i32_0 : i32
    scf.if %2 {
      %cst_17 = arith.constant 0.000000e+00 : f32
      %27 = vector.broadcast %cst_17 : f32 to vector<128x5xf32>
      %c0_18 = arith.constant 0 : index
      %c0_19 = arith.constant 0 : index
      %28 = vector.load %arg9[%c0_18, %c0_19] : memref<128x5xf32, #tpu.memory_space<vmem>>, vector<128x5xf32>
      tpu.vector_store %arg9[%c0_18, %c0_19], %27 {strides = array<i32>} : memref<128x5xf32, #tpu.memory_space<vmem>>, vector<128x5xf32>,
    } else {
    }
    %c0 = arith.constant 0 : index
    %c0_1 = arith.constant 0 : index
    %3 = vector.load %arg3[%c0, %c0_1] : memref<128x1xf32, #tpu.memory_space<vmem>>, vector<128x1xf32>
    %c0_2 = arith.constant 0 : index
    %c0_3 = arith.constant 0 : index
    %4 = vector.load %arg4[%c0_2, %c0_3] : memref<128x1xf32, #tpu.memory_space<vmem>>, vector<128x1xf32>
    %c0_4 = arith.constant 0 : index
    %c0_5 = arith.constant 0 : index
    %5 = vector.load %arg5[%c0_4, %c0_5] : memref<1x128xf32, #tpu.memory_space<vmem>>, vector<1x128xf32>
    %c0_6 = arith.constant 0 : index
    %c0_7 = arith.constant 0 : index
    %6 = vector.load %arg2[%c0_6, %c0_7] : memref<128x128xi8, #tpu.memory_space<vmem>>, vector<128x128xi8>
    %7 = arith.sitofp %6 : vector<128x128xi8> to vector<128x128xf32>
    %c0_8 = arith.constant 0 : index
    %c0_9 = arith.constant 0 : index
    %8 = vector.load %arg6[%c0_8, %c0_9] : memref<128x5xbf16, #tpu.memory_space<vmem>>, vector<128x5xbf16>
    %9 = vector.broadcast %3 : vector<128x1xf32> to vector<128x128xf32>
    %10 = vector.broadcast %5 : vector<1x128xf32> to vector<128x128xf32>
    %11 = arith.addf %9, %10 : vector<128x128xf32>
    %cst = arith.constant 2.000000e-01 : f32
    %12 = vector.broadcast %cst : f32 to vector<128x128xf32>
    %13 = arith.mulf %12, %11 : vector<128x128xf32>
    %14 = arith.maximumf %11, %13 : vector<128x128xf32>
    %15 = vector.broadcast %4 : vector<128x1xf32> to vector<128x128xf32>
    %16 = arith.subf %14, %15 : vector<128x128xf32>
    %17 = math.exp %16 : vector<128x128xf32>
    %18 = arith.mulf %17, %7 : vector<128x128xf32>
    %19 = arith.truncf %18 : vector<128x128xf32> to vector<128x128xbf16>
    %cst_10 = arith.constant dense<0.000000e+00> : vector<128x5xf32>
    %20 = tpu.matmul %19, %8, %cst_10 {dimension_numbers = #tpu.dot_dimension_numbers<[1], [0], [0], [1], [0, 0, 1, 1], [], []>} : vector<128x128xbf16>, vector<128x5xbf16>, vector<128x5xf32> -> vector<128x5xf32>
    %c0_11 = arith.constant 0 : index
    %c0_12 = arith.constant 0 : index
    %21 = vector.load %arg9[%c0_11, %c0_12] : memref<128x5xf32, #tpu.memory_space<vmem>>, vector<128x5xf32>
    %22 = arith.addf %21, %20 : vector<128x5xf32>
    %c0_13 = arith.constant 0 : index
    %c0_14 = arith.constant 0 : index
    %23 = vector.load %arg9[%c0_13, %c0_14] : memref<128x5xf32, #tpu.memory_space<vmem>>, vector<128x5xf32>
    tpu.vector_store %arg9[%c0_13, %c0_14], %22 {strides = array<i32>} : memref<128x5xf32, #tpu.memory_space<vmem>>, vector<128x5xf32>,
    %c0_i32_15 = arith.constant 0 : i32
    %24 = arith.cmpi eq, %arg1, %c0_i32_15 : i32
    %25 = arith.extui %24 : i1 to i32
    %c0_i32_16 = arith.constant 0 : i32
    %26 = arith.cmpi ne, %25, %c0_i32_16 : i32
    scf.if %26 {
      %c0_17 = arith.constant 0 : index
      %c0_18 = arith.constant 0 : index
      %27 = vector.load %arg9[%c0_17, %c0_18] : memref<128x5xf32, #tpu.memory_space<vmem>>, vector<128x5xf32>
      %28 = vector.extract_strided_slice %27 {offsets = [0, 0], sizes = [128, 4], strides = [1, 1]} : vector<128x5xf32> to vector<128x4xf32>
      %29 = vector.extract_strided_slice %27 {offsets = [0, 4], sizes = [128, 1], strides = [1, 1]} : vector<128x5xf32> to vector<128x1xf32>
      %cst_19 = arith.constant 1.000000e-30 : f32
      %30 = vector.broadcast %cst_19 : f32 to vector<128x1xf32>
      %31 = arith.maximumf %29, %30 : vector<128x1xf32>
      %32 = tpu.reciprocal %31 {approx = true} : vector<128x1xf32> -> vector<128x1xf32>
      %33 = vector.broadcast %32 : vector<128x1xf32> to vector<128x4xf32>
      %34 = arith.mulf %28, %33 : vector<128x4xf32>
      %c0_20 = arith.constant 0 : index
      %c0_21 = arith.constant 0 : index
      %35 = vector.load %arg7[%c0_20, %c0_21] : memref<1x4xf32, #tpu.memory_space<vmem>>, vector<1x4xf32>
      %cst_22 = arith.constant 1.000000e+00 : f32
      %36 = vector.broadcast %cst_22 : f32 to vector<128x4xf32>
      %37 = arith.mulf %34, %36 : vector<128x4xf32>
      %38 = vector.broadcast %35 : vector<1x4xf32> to vector<128x4xf32>
      %39 = arith.addf %37, %38 : vector<128x4xf32>
      %c0_23 = arith.constant 0 : index
      %c0_24 = arith.constant 0 : index
      %40 = vector.load %arg8[%c0_23, %c0_24] : memref<128x4xf32, #tpu.memory_space<vmem>>, vector<128x4xf32>
      tpu.vector_store %arg8[%c0_23, %c0_24], %39 {strides = array<i32>} : memref<128x4xf32, #tpu.memory_space<vmem>>, vector<128x4xf32>,
    } else {
    }
    return
  }
  func.func @transform_0(%arg0: i32, %arg1: i32) -> (i32, i32) {
    %c0_i32 = arith.constant 0 : i32
    return %arg0, %arg1 : i32, i32
  }
  func.func @transform_1(%arg0: i32, %arg1: i32) -> (i32, i32) {
    %c0_i32 = arith.constant 0 : i32
    %c0_i32_0 = arith.constant 0 : i32
    return %arg0, %c0_i32 : i32, i32
  }
  func.func @transform_2(%arg0: i32, %arg1: i32) -> (i32, i32) {
    %c0_i32 = arith.constant 0 : i32
    %c0_i32_0 = arith.constant 0 : i32
    return %arg0, %c0_i32 : i32, i32
  }
  func.func @transform_3(%arg0: i32, %arg1: i32) -> (i32, i32) {
    %c0_i32 = arith.constant 0 : i32
    %c0_i32_0 = arith.constant 0 : i32
    return %c0_i32, %arg1 : i32, i32
  }
  func.func @transform_4(%arg0: i32, %arg1: i32) -> (i32, i32) {
    %c0_i32 = arith.constant 0 : i32
    %c0_i32_0 = arith.constant 0 : i32
    return %arg1, %c0_i32 : i32, i32
  }
  func.func @transform_5(%arg0: i32, %arg1: i32) -> (i32, i32) {
    %c0_i32 = arith.constant 0 : i32
    %c0_i32_0 = arith.constant 0 : i32
    %c0_i32_1 = arith.constant 0 : i32
    return %c0_i32, %c0_i32_0 : i32, i32
  }
  func.func @transform_6(%arg0: i32, %arg1: i32) -> (i32, i32) {
    %c0_i32 = arith.constant 0 : i32
    %c0_i32_0 = arith.constant 0 : i32
    return %arg0, %c0_i32 : i32, i32
  }
}

</mosaic_0001>

<llo_original>
// kernel: gat_forward.4
$region0: #{gat_forward.4}
  #allocation0 [shape = 'u32[]', space=smem, size = 0x4, offset = 0x4, fixed_abs, tag = 'smem constant byte address 0x4 - core index']
  #allocation1 [shape = 'u32[144,128]{1,0:T(1,128)}', space=vmem, size = 0x12000, scoped, tag = 'internal scratch']
  %s0 = inlined_call_operand.vmem [shape: bf16[128,16], index: 0, kind: input, shape index: {}]
  %s1 = inlined_call_operand.vmem [shape: bf16[16,64], index: 1, kind: input, shape index: {}]
  %s2 = inlined_call_operand.vmem [shape: f32[64,16], index: 2, kind: input, shape index: {}]
  %s3 = inlined_call_operand.vmem [shape: bf16[128,64], index: 3, kind: output, shape index: {0}]
  %s4 = inlined_call_operand.vmem [shape: f32[128,16], index: 4, kind: output, shape index: {1}]
  %5 = xla_tuple %s3, %s4
  %s6 = sld [smem:[#allocation0]]
  $region30: #{gat_forward.4} parent=0
    _
  %s8 = ssub.s32 1, %s6
  %s9 = scalar_select 0, %s8, %s6
  // Predicated region
  $region2: #{gat_forward.4} parent=0 // pred_check
    _
  $region3: #{gat_forward.4} parent=0 // pred_check_branch
    %11 = sbr.rel (0) target = $region5
  $region4: #{gat_forward.4} parent=0 // pred_region
    _
  $region5: #{gat_forward.4} parent=0 // pred_fallthru
    _
  // Predicated region
  $region6: #{gat_forward.4} parent=0 // pred_check
    _
  $region7: #{gat_forward.4} parent=0 // pred_check_branch
    %13 = sbr.rel (0) target = $region9
  $region8: #{gat_forward.4} parent=0 // pred_region
    _
  $region9: #{gat_forward.4} parent=0 // pred_fallthru
    _
  // Predicated region
  $region10: #{gat_forward.4} parent=0 // pred_check
    _
  $region11: #{gat_forward.4} parent=0 // pred_check_branch
    %15 = sbr.rel (0) target = $region13
  $region12: #{gat_forward.4} parent=0 // pred_region
    _
  $region13: #{gat_forward.4} parent=0 // pred_fallthru
    _
  %v17 = vld [vmem:[%s0] sm:$0xf]
  %v18 = vld [vmem:[%s0 + $0x4] sm:$0xf]
  %v19 = vld [vmem:[%s0 + $0x8] sm:$0xf]
  %v20 = vld [vmem:[%s0 + $0xc] sm:$0xf]
  %v21 = vld [vmem:[%s0 + $0x10] sm:$0xf]
  %v22 = vld [vmem:[%s0 + $0x14] sm:$0xf]
  %v23 = vld [vmem:[%s0 + $0x18] sm:$0xf]
  %v24 = vld [vmem:[%s0 + $0x1c] sm:$0xf]
  %v25 = vld [vmem:[%s0 + $0x20] sm:$0xf]
  %v26 = vld [vmem:[%s0 + $0x24] sm:$0xf]
  %v27 = vld [vmem:[%s0 + $0x28] sm:$0xf]
  %v28 = vld [vmem:[%s0 + $0x2c] sm:$0xf]
  %v29 = vld [vmem:[%s0 + $0x30] sm:$0xf]
  %v30 = vld [vmem:[%s0 + $0x34] sm:$0xf]
  %v31 = vld [vmem:[%s0 + $0x38] sm:$0xf]
  %v32 = vld [vmem:[%s0 + $0x3c] sm:$0xf]
  %v33 = vld [vmem:[%s1] sm:$0xf]
  %v34 = vld [vmem:[%s1 + $0x4] sm:$0xf]
  %v51 = vunpack.c.l.b16 %v17
  %v52 = vunpack.c.l.b16 %v18
  %v53 = vunpack.c.l.b16 %v19
  %v54 = vunpack.c.l.b16 %v20
  %v55 = vunpack.c.l.b16 %v21
  %v56 = vunpack.c.l.b16 %v22
  %v57 = vunpack.c.l.b16 %v23
  %v58 = vunpack.c.l.b16 %v24
  %v59 = vunpack.c.l.b16 %v25
  %v60 = vunpack.c.l.b16 %v26
  %v61 = vunpack.c.l.b16 %v27
  %v62 = vunpack.c.l.b16 %v28
  %v63 = vunpack.c.l.b16 %v29
  %v64 = vunpack.c.l.b16 %v30
  %v65 = vunpack.c.l.b16 %v31
  %v66 = vunpack.c.l.b16 %v32
  %v67 = vpack.c.b16 %v52, %v51
  %v68 = vpack.c.b16 %v54, %v53
  %v69 = vpack.c.b16 %v56, %v55
  %v70 = vpack.c.b16 %v58, %v57
  %v71 = vpack.c.b16 %v60, %v59
  %v72 = vpack.c.b16 %v62, %v61
  %v73 = vpack.c.b16 %v64, %v63
  %v74 = vpack.c.b16 %v66, %v65
  %v77 = vunpack.c.l.b16 %v33
  %v78 = vunpack.c.l.b16 %v34
  %v79 = vpack.c.b16 %v78, %v77
  %vm81 = vcmask 130048
  %v83 = vsel %vm81, %v67, 0
  %v86 = vsel %vm81, %v68, 0
  %v89 = vsel %vm81, %v69, 0
  %v92 = vsel %vm81, %v70, 0
  %v95 = vsel %vm81, %v71, 0
  %v98 = vsel %vm81, %v72, 0
  %v101 = vsel %vm81, %v73, 0
  %v104 = vsel %vm81, %v74, 0
  %106 = vmatprep.subr.bf16.mxu0 0
  %107 = vmatpush1.bf16.msra.mxu0 %v79
  %108 = vmatprep.subr.bf16.mxu0 0
  %109 = vmatpush1.bf16.msra.mxu0 0
  %110 = vmatprep.subr.bf16.mxu0 0
  %111 = vmatpush1.bf16.msra.mxu0 0
  %112 = vmatprep.subr.bf16.mxu0 0
  %113 = vmatpush1.bf16.msra.mxu0 0
  %114 = vmatprep.subr.bf16.mxu0 0
  %115 = vmatpush1.bf16.msra.mxu0 0
  %116 = vmatprep.subr.bf16.mxu0 0
  %117 = vmatpush1.bf16.msra.mxu0 0
  %118 = vmatprep.subr.bf16.mxu0 0
  %119 = vmatpush1.bf16.msra.mxu0 0
  %120 = vmatprep.subr.bf16.mxu0 0
  %121 = vmatpush1.bf16.msra.mxu0 0
  %122 = vmatprep.subr.bf16.mxu0 0
  %123 = vmatpush1.bf16.msra.mxu0 0
  %124 = vmatprep.subr.bf16.mxu0 0
  %125 = vmatpush1.bf16.msra.mxu0 0
  %126 = vmatprep.subr.bf16.mxu0 0
  %127 = vmatpush1.bf16.msra.mxu0 0
  %128 = vmatprep.subr.bf16.mxu0 0
  %129 = vmatpush1.bf16.msra.mxu0 0
  %130 = vmatprep.subr.bf16.mxu0 0
  %131 = vmatpush1.bf16.msra.mxu0 0
  %132 = vmatprep.subr.bf16.mxu0 0
  %133 = vmatpush1.bf16.msra.mxu0 0
  %134 = vmatprep.subr.bf16.mxu0 0
  %135 = vmatpush1.bf16.msra.mxu0 0
  %136 = vmatprep.subr.bf16.mxu0 0
  %137 = vmatpush1.bf16.msra.mxu0 0
  %138 = vmatprep.mubr.bf16.mxu0 0
  %139 = vmatmul.mubr.bf16.gmra.mrb[0].mxu0 %v83
  %v140 = vpop.f32.mrb[0].mxu0
  %v141 = vadd.f32 0.0, %v140
  %v142 = vpop.f32.mrb[0].mxu0
  %v143 = vpop.f32.mrb[0].mxu0
  %v144 = vadd.f32 0.0, %v143
  %v145 = vpop.f32.mrb[0].mxu0
  %146 = vmatprep.mubr.bf16.mxu0 0
  %147 = vmatmul.mubr.bf16.gmra.mrb[0].mxu0 %v86
  %v148 = vpop.f32.mrb[0].mxu0
  %v149 = vadd.f32 0.0, %v148
  %v150 = vpop.f32.mrb[0].mxu0
  %v151 = vpop.f32.mrb[0].mxu0
  %v152 = vadd.f32 0.0, %v151
  %v153 = vpop.f32.mrb[0].mxu0
  %154 = vmatprep.mubr.bf16.mxu0 0
  %155 = vmatmul.mubr.bf16.gmra.mrb[0].mxu0 %v89
  %v156 = vpop.f32.mrb[0].mxu0
  %v157 = vadd.f32 0.0, %v156
  %v158 = vpop.f32.mrb[0].mxu0
  %v159 = vpop.f32.mrb[0].mxu0
  %v160 = vadd.f32 0.0, %v159
  %v161 = vpop.f32.mrb[0].mxu0
  %162 = vmatprep.mubr.bf16.mxu0 0
  %163 = vmatmul.mubr.bf16.gmra.mrb[0].mxu0 %v92
  %v164 = vpop.f32.mrb[0].mxu0
  %v165 = vadd.f32 0.0, %v164
  %v166 = vpop.f32.mrb[0].mxu0
  %v167 = vpop.f32.mrb[0].mxu0
  %v168 = vadd.f32 0.0, %v167
  %v169 = vpop.f32.mrb[0].mxu0
  %170 = vmatprep.mubr.bf16.mxu0 0
  %171 = vmatmul.mubr.bf16.gmra.mrb[0].mxu0 %v95
  %v172 = vpop.f32.mrb[0].mxu0
  %v173 = vadd.f32 0.0, %v172
  %v174 = vpop.f32.mrb[0].mxu0
  %v175 = vpop.f32.mrb[0].mxu0
  %v176 = vadd.f32 0.0, %v175
  %v177 = vpop.f32.mrb[0].mxu0
  %178 = vmatprep.mubr.bf16.mxu0 0
  %179 = vmatmul.mubr.bf16.gmra.mrb[0].mxu0 %v98
  %v180 = vpop.f32.mrb[0].mxu0
  %v181 = vadd.f32 0.0, %v180
  %v182 = vpop.f32.mrb[0].mxu0
  %v183 = vpop.f32.mrb[0].mxu0
  %v184 = vadd.f32 0.0, %v183
  %v185 = vpop.f32.mrb[0].mxu0
  %186 = vmatprep.mubr.bf16.mxu0 0
  %187 = vmatmul.mubr.bf16.gmra.mrb[0].mxu0 %v101
  %v188 = vpop.f32.mrb[0].mxu0
  %v189 = vadd.f32 0.0, %v188
  %v190 = vpop.f32.mrb[0].mxu0
  %v191 = vpop.f32.mrb[0].mxu0
  %v192 = vadd.f32 0.0, %v191
  %v193 = vpop.f32.mrb[0].mxu0
  %194 = vmatprep.mubr.bf16.mxu0 0
  %195 = vmatmul.mubr.bf16.gmra.mrb[0].mxu0 %v104
  %v196 = vpop.f32.mrb[0].mxu0
  %v197 = vadd.f32 0.0, %v196
  %v198 = vpop.f32.mrb[0].mxu0
  %v199 = vpop.f32.mrb[0].mxu0
  %v200 = vadd.f32 0.0, %v199
  %v201 = vpop.f32.mrb[0].mxu0
  %202 = vdwg.mxu0
  %v203 = vld [vmem:[%s2] sm:$0xff]
  %v204 = vld [vmem:[%s2 + $0x8] sm:$0xff]
  %v205 = vld [vmem:[%s2 + $0x10] sm:$0xff]
  %v206 = vld [vmem:[%s2 + $0x18] sm:$0xff]
  %v207 = vld [vmem:[%s2 + $0x20] sm:$0xff]
  %v208 = vld [vmem:[%s2 + $0x28] sm:$0xff]
  %v209 = vld [vmem:[%s2 + $0x30] sm:$0xff]
  %v210 = vld [vmem:[%s2 + $0x38] sm:$0xff]
  %vm211 = vcmask 523264
  %v213 = vsel %vm211, %v141, 0
  %v216 = vsel %vm211, %v144, 0
  %v219 = vsel %vm211, %v149, 0
  %v222 = vsel %vm211, %v152, 0
  %v225 = vsel %vm211, %v157, 0
  %v228 = vsel %vm211, %v160, 0
  %v231 = vsel %vm211, %v165, 0
  %v234 = vsel %vm211, %v168, 0
  %v237 = vsel %vm211, %v173, 0
  %v240 = vsel %vm211, %v176, 0
  %v243 = vsel %vm211, %v181, 0
  %v246 = vsel %vm211, %v184, 0
  %v249 = vsel %vm211, %v189, 0
  %v252 = vsel %vm211, %v192, 0
  %v255 = vsel %vm211, %v197, 0
  %v258 = vsel %vm211, %v200, 0
  %260 = vmatprep.subr.mxu0 0.0
  %261 = vmatpush1.msra.mxu0 %v203
  %262 = vmatprep.subr.mxu0 0.0
  %263 = vmatpush1.msra.mxu0 %v204
  %264 = vmatprep.subr.mxu0 0.0
  %265 = vmatpush1.msra.mxu0 %v205
  %266 = vmatprep.subr.mxu0 0.0
  %267 = vmatpush1.msra.mxu0 %v206
  %268 = vmatprep.subr.mxu0 0.0
  %269 = vmatpush1.msra.mxu0 %v207
  %270 = vmatprep.subr.mxu0 0.0
  %271 = vmatpush1.msra.mxu0 %v208
  %272 = vmatprep.subr.mxu0 0.0
  %273 = vmatpush1.msra.mxu0 %v209
  %274 = vmatprep.subr.mxu0 0.0
  %275 = vmatpush1.msra.mxu0 %v210
  %276 = vmatprep.subr.mxu0 0.0
  %277 = vmatpush1.msra.mxu0 0.0
  %278 = vmatprep.subr.mxu0 0.0
  %279 = vmatpush1.msra.mxu0 0.0
  %280 = vmatprep.subr.mxu0 0.0
  %281 = vmatpush1.msra.mxu0 0.0
  %282 = vmatprep.subr.mxu0 0.0
  %283 = vmatpush1.msra.mxu0 0.0
  %284 = vmatprep.subr.mxu0 0.0
  %285 = vmatpush1.msra.mxu0 0.0
  %286 = vmatprep.subr.mxu0 0.0
  %287 = vmatpush1.msra.mxu0 0.0
  %288 = vmatprep.subr.mxu0 0.0
  %289 = vmatpush1.msra.mxu0 0.0
  %290 = vmatprep.subr.mxu0 0.0
  %291 = vmatpush1.msra.mxu0 0.0
  %292 = vmatprep.subr.mxu0 0.0
  %293 = vmatpush1.msra.mxu0 0.0
  %294 = vmatprep.subr.mxu0 0.0
  %295 = vmatpush1.msra.mxu0 0.0
  %296 = vmatprep.subr.mxu0 0.0
  %297 = vmatpush1.msra.mxu0 0.0
  %298 = vmatprep.subr.mxu0 0.0
  %299 = vmatpush1.msra.mxu0 0.0
  %300 = vmatprep.subr.mxu0 0.0
  %301 = vmatpush1.msra.mxu0 0.0
  %302 = vmatprep.subr.mxu0 0.0
  %303 = vmatpush1.msra.mxu0 0.0
  %304 = vmatprep.subr.mxu0 0.0
  %305 = vmatpush1.msra.mxu0 0.0
  %306 = vmatprep.subr.mxu0 0.0
  %307 = vmatpush1.msra.mxu0 0.0
  %308 = vmatprep.subr.mxu0 0.0
  %309 = vmatpush1.msra.mxu0 0.0
  %310 = vmatprep.subr.mxu0 0.0
  %311 = vmatpush1.msra.mxu0 0.0
  %312 = vmatprep.subr.mxu0 0.0
  %313 = vmatpush1.msra.mxu0 0.0
  %314 = vmatprep.subr.mxu0 0.0
  %315 = vmatpush1.msra.mxu0 0.0
  %316 = vmatprep.subr.mxu0 0.0
  %317 = vmatpush1.msra.mxu0 0.0
  %318 = vmatprep.subr.mxu0 0.0
  %319 = vmatpush1.msra.mxu0 0.0
  %320 = vmatprep.subr.mxu0 0.0
  %321 = vmatpush1.msra.mxu0 0.0
  %322 = vmatprep.subr.mxu0 0.0
  %323 = vmatpush1.msra.mxu0 0.0
  %324 = vmatprep.mubr.f32.mxu0 0.0
  %325 = vmatmul.mubr.f32.gmra.mrb[0].mxu0 %v213
  %v326 = vpop.f32.mrb[0].mxu0
  %v327 = vadd.f32 0.0, %v326
  %v328 = vpop.f32.mrb[0].mxu0
  %329 = vmatprep.mubr.f32.mxu0 0.0
  %330 = vmatmul.mubr.f32.gmra.mrb[0].mxu0 %v216
  %v331 = vpop.f32.mrb[0].mxu0
  %v332 = vadd.f32 0.0, %v331
  %v333 = vpop.f32.mrb[0].mxu0
  %334 = vmatprep.mubr.f32.mxu0 0.0
  %335 = vmatmul.mubr.f32.gmra.mrb[0].mxu0 %v219
  %v336 = vpop.f32.mrb[0].mxu0
  %v337 = vadd.f32 0.0, %v336
  %v338 = vpop.f32.mrb[0].mxu0
  %339 = vmatprep.mubr.f32.mxu0 0.0
  %340 = vmatmul.mubr.f32.gmra.mrb[0].mxu0 %v222
  %v341 = vpop.f32.mrb[0].mxu0
  %v342 = vadd.f32 0.0, %v341
  %v343 = vpop.f32.mrb[0].mxu0
  %344 = vmatprep.mubr.f32.mxu0 0.0
  %345 = vmatmul.mubr.f32.gmra.mrb[0].mxu0 %v225
  %v346 = vpop.f32.mrb[0].mxu0
  %v347 = vadd.f32 0.0, %v346
  %v348 = vpop.f32.mrb[0].mxu0
  %349 = vmatprep.mubr.f32.mxu0 0.0
  %350 = vmatmul.mubr.f32.gmra.mrb[0].mxu0 %v228
  %v351 = vpop.f32.mrb[0].mxu0
  %v352 = vadd.f32 0.0, %v351
  %v353 = vpop.f32.mrb[0].mxu0
  %354 = vmatprep.mubr.f32.mxu0 0.0
  %355 = vmatmul.mubr.f32.gmra.mrb[0].mxu0 %v231
  %v356 = vpop.f32.mrb[0].mxu0
  %v357 = vadd.f32 0.0, %v356
  %v358 = vpop.f32.mrb[0].mxu0
  %359 = vmatprep.mubr.f32.mxu0 0.0
  %360 = vmatmul.mubr.f32.gmra.mrb[0].mxu0 %v234
  %v361 = vpop.f32.mrb[0].mxu0
  %v362 = vadd.f32 0.0, %v361
  %v363 = vpop.f32.mrb[0].mxu0
  %364 = vmatprep.mubr.f32.mxu0 0.0
  %365 = vmatmul.mubr.f32.gmra.mrb[0].mxu0 %v237
  %v366 = vpop.f32.mrb[0].mxu0
  %v367 = vadd.f32 0.0, %v366
  %v368 = vpop.f32.mrb[0].mxu0
  %369 = vmatprep.mubr.f32.mxu0 0.0
  %370 = vmatmul.mubr.f32.gmra.mrb[0].mxu0 %v240
  %v371 = vpop.f32.mrb[0].mxu0
  %v372 = vadd.f32 0.0, %v371
  %v373 = vpop.f32.mrb[0].mxu0
  %374 = vmatprep.mubr.f32.mxu0 0.0
  %375 = vmatmul.mubr.f32.gmra.mrb[0].mxu0 %v243
  %v376 = vpop.f32.mrb[0].mxu0
  %v377 = vadd.f32 0.0, %v376
  %v378 = vpop.f32.mrb[0].mxu0
  %379 = vmatprep.mubr.f32.mxu0 0.0
  %380 = vmatmul.mubr.f32.gmra.mrb[0].mxu0 %v246
  %v381 = vpop.f32.mrb[0].mxu0
  %v382 = vadd.f32 0.0, %v381
  %v383 = vpop.f32.mrb[0].mxu0
  %384 = vmatprep.mubr.f32.mxu0 0.0
  %385 = vmatmul.mubr.f32.gmra.mrb[0].mxu0 %v249
  %v386 = vpop.f32.mrb[0].mxu0
  %v387 = vadd.f32 0.0, %v386
  %v388 = vpop.f32.mrb[0].mxu0
  %389 = vmatprep.mubr.f32.mxu0 0.0
  %390 = vmatmul.mubr.f32.gmra.mrb[0].mxu0 %v252
  %v391 = vpop.f32.mrb[0].mxu0
  %v392 = vadd.f32 0.0, %v391
  %v393 = vpop.f32.mrb[0].mxu0
  %394 = vmatprep.mubr.f32.mxu0 0.0
  %395 = vmatmul.mubr.f32.gmra.mrb[0].mxu0 %v255
  %v396 = vpop.f32.mrb[0].mxu0
  %v397 = vadd.f32 0.0, %v396
  %v398 = vpop.f32.mrb[0].mxu0
  %399 = vmatprep.mubr.f32.mxu0 0.0
  %400 = vmatmul.mubr.f32.gmra.mrb[0].mxu0 %v258
  %v401 = vpop.f32.mrb[0].mxu0
  %v402 = vadd.f32 0.0, %v401
  %v403 = vpop.f32.mrb[0].mxu0
  %404 = vdwg.mxu0
  %405 = vst.msk [vmem:[%s4] sm:$0xff] %vm81, %v327
  %406 = vst.msk [vmem:[%s4 + $0x8] sm:$0xff] %vm81, %v332
  %407 = vst.msk [vmem:[%s4 + $0x10] sm:$0xff] %vm81, %v337
  %408 = vst.msk [vmem:[%s4 + $0x18] sm:$0xff] %vm81, %v342
  %409 = vst.msk [vmem:[%s4 + $0x20] sm:$0xff] %vm81, %v347
  %410 = vst.msk [vmem:[%s4 + $0x28] sm:$0xff] %vm81, %v352
  %411 = vst.msk [vmem:[%s4 + $0x30] sm:$0xff] %vm81, %v357
  %412 = vst.msk [vmem:[%s4 + $0x38] sm:$0xff] %vm81, %v362
  %413 = vst.msk [vmem:[%s4 + $0x40] sm:$0xff] %vm81, %v367
  %414 = vst.msk [vmem:[%s4 + $0x48] sm:$0xff] %vm81, %v372
  %415 = vst.msk [vmem:[%s4 + $0x50] sm:$0xff] %vm81, %v377
  %416 = vst.msk [vmem:[%s4 + $0x58] sm:$0xff] %vm81, %v382
  %417 = vst.msk [vmem:[%s4 + $0x60] sm:$0xff] %vm81, %v387
  %418 = vst.msk [vmem:[%s4 + $0x68] sm:$0xff] %vm81, %v392
  %419 = vst.msk [vmem:[%s4 + $0x70] sm:$0xff] %vm81, %v397
  %420 = vst.msk [vmem:[%s4 + $0x78] sm:$0xff] %vm81, %v402
  %v421 = vpack.c.bf16 %v144, %v141
  %v422 = vpack.c.bf16 %v152, %v149
  %v423 = vpack.c.bf16 %v160, %v157
  %v424 = vpack.c.bf16 %v168, %v165
  %v425 = vpack.c.bf16 %v176, %v173
  %v426 = vpack.c.bf16 %v184, %v181
  %v427 = vpack.c.bf16 %v192, %v189
  %v428 = vpack.c.bf16 %v200, %v197
  %v437 = vunpack.c.l.b16 %v421
  %v438 = vunpack.c.h.b16 %v421
  %v439 = vunpack.c.l.b16 %v422
  %v440 = vunpack.c.h.b16 %v422
  %v441 = vunpack.c.l.b16 %v423
  %v442 = vunpack.c.h.b16 %v423
  %v443 = vunpack.c.l.b16 %v424
  %v444 = vunpack.c.h.b16 %v424
  %v445 = vunpack.c.l.b16 %v425
  %v446 = vunpack.c.h.b16 %v425
  %v447 = vunpack.c.l.b16 %v426
  %v448 = vunpack.c.h.b16 %v426
  %v449 = vunpack.c.l.b16 %v427
  %v450 = vunpack.c.h.b16 %v427
  %v451 = vunpack.c.l.b16 %v428
  %v452 = vunpack.c.h.b16 %v428
  %v453 = vpack.c.b16 %v437, %v437
  %v454 = vpack.c.b16 %v438, %v438
  %v455 = vpack.c.b16 %v439, %v439
  %v456 = vpack.c.b16 %v440, %v440
  %v457 = vpack.c.b16 %v441, %v441
  %v458 = vpack.c.b16 %v442, %v442
  %v459 = vpack.c.b16 %v443, %v443
  %v460 = vpack.c.b16 %v444, %v444
  %v461 = vpack.c.b16 %v445, %v445
  %v462 = vpack.c.b16 %v446, %v446
  %v463 = vpack.c.b16 %v447, %v447
  %v464 = vpack.c.b16 %v448, %v448
  %v465 = vpack.c.b16 %v449, %v449
  %v466 = vpack.c.b16 %v450, %v450
  %v467 = vpack.c.b16 %v451, %v451
  %v468 = vpack.c.b16 %v452, %v452
  %vm485 = vcmask 519168
  %486 = vst.msk [vmem:[%s3] sm:$0xf] %vm485, %v453
  %487 = vst.msk [vmem:[%s3 + $0x4] sm:$0xf] %vm485, %v454
  %488 = vst.msk [vmem:[%s3 + $0x8] sm:$0xf] %vm485, %v455
  %489 = vst.msk [vmem:[%s3 + $0xc] sm:$0xf] %vm485, %v456
  %490 = vst.msk [vmem:[%s3 + $0x10] sm:$0xf] %vm485, %v457
  %491 = vst.msk [vmem:[%s3 + $0x14] sm:$0xf] %vm485, %v458
  %492 = vst.msk [vmem:[%s3 + $0x18] sm:$0xf] %vm485, %v459
  %493 = vst.msk [vmem:[%s3 + $0x1c] sm:$0xf] %vm485, %v460
  %494 = vst.msk [vmem:[%s3 + $0x20] sm:$0xf] %vm485, %v461
  %495 = vst.msk [vmem:[%s3 + $0x24] sm:$0xf] %vm485, %v462
  %496 = vst.msk [vmem:[%s3 + $0x28] sm:$0xf] %vm485, %v463
  %497 = vst.msk [vmem:[%s3 + $0x2c] sm:$0xf] %vm485, %v464
  %498 = vst.msk [vmem:[%s3 + $0x30] sm:$0xf] %vm485, %v465
  %499 = vst.msk [vmem:[%s3 + $0x34] sm:$0xf] %vm485, %v466
  %500 = vst.msk [vmem:[%s3 + $0x38] sm:$0xf] %vm485, %v467
  %501 = vst.msk [vmem:[%s3 + $0x3c] sm:$0xf] %vm485, %v468
  // Predicated region
  $region14: #{gat_forward.4} parent=0 // pred_check
    _
  $region15: #{gat_forward.4} parent=0 // pred_check_branch
    %503 = sbr.rel (0) target = $region17
  $region16: #{gat_forward.4} parent=0 // pred_region
    _
  $region17: #{gat_forward.4} parent=0 // pred_fallthru
    _
  // Predicated region
  $region18: #{gat_forward.4} parent=0 // pred_check
    _
  $region19: #{gat_forward.4} parent=0 // pred_check_branch
    %505 = sbr.rel (0) target = $region21
  $region20: #{gat_forward.4} parent=0 // pred_region
    _
  $region21: #{gat_forward.4} parent=0 // pred_fallthru
    _
  // Predicated region
  $region22: #{gat_forward.4} parent=0 // pred_check
    _
  $region23: #{gat_forward.4} parent=0 // pred_check_branch
    %507 = sbr.rel (0) target = $region25
  $region24: #{gat_forward.4} parent=0 // pred_region
    _
  $region25: #{gat_forward.4} parent=0 // pred_fallthru
    _
  // Predicated region
  $region26: #{gat_forward.4} parent=0 // pred_check
    _
  $region27: #{gat_forward.4} parent=0 // pred_check_branch
    %509 = sbr.rel (0) target = $region29
  $region28: #{gat_forward.4} parent=0 // pred_region
    _
  $region29: #{gat_forward.4} parent=0 // pred_fallthru
    _

// kernel: gat_forward.6
$region0: #{gat_forward.6}
  #allocation0 [shape = 'u32[]', space=smem, size = 0x4, offset = 0x4, fixed_abs, tag = 'smem constant byte address 0x4 - core index']
  #allocation1 [shape = 'u32[144,128]{1,0:T(1,128)}', space=vmem, size = 0x12000, scoped, tag = 'internal scratch']
  %s0 = inlined_call_operand.vmem [shape: bf16[128,64], index: 0, kind: input, shape index: {}]
  %s1 = inlined_call_operand.vmem [shape: bf16[64,4], index: 1, kind: input, shape index: {}]
  %s2 = inlined_call_operand.vmem [shape: f32[4,2], index: 2, kind: input, shape index: {}]
  %s3 = inlined_call_operand.vmem [shape: bf16[128,4], index: 3, kind: output, shape index: {0}]
  %s4 = inlined_call_operand.vmem [shape: f32[128,2], index: 4, kind: output, shape index: {1}]
  %5 = xla_tuple %s3, %s4
  %s6 = sld [smem:[#allocation0]]
  $region30: #{gat_forward.6} parent=0
    _
  %s8 = ssub.s32 1, %s6
  %s9 = scalar_select 0, %s8, %s6
  // Predicated region
  $region2: #{gat_forward.6} parent=0 // pred_check
    _
  $region3: #{gat_forward.6} parent=0 // pred_check_branch
    %11 = sbr.rel (0) target = $region5
  $region4: #{gat_forward.6} parent=0 // pred_region
    _
  $region5: #{gat_forward.6} parent=0 // pred_fallthru
    _
  // Predicated region
  $region6: #{gat_forward.6} parent=0 // pred_check
    _
  $region7: #{gat_forward.6} parent=0 // pred_check_branch
    %13 = sbr.rel (0) target = $region9
  $region8: #{gat_forward.6} parent=0 // pred_region
    _
  $region9: #{gat_forward.6} parent=0 // pred_fallthru
    _
  // Predicated region
  $region10: #{gat_forward.6} parent=0 // pred_check
    _
  $region11: #{gat_forward.6} parent=0 // pred_check_branch
    %15 = sbr.rel (0) target = $region13
  $region12: #{gat_forward.6} parent=0 // pred_region
    _
  $region13: #{gat_forward.6} parent=0 // pred_fallthru
    _
  %v17 = vld [vmem:[%s0] sm:$0xf]
  %v18 = vld [vmem:[%s0 + $0x4] sm:$0xf]
  %v19 = vld [vmem:[%s0 + $0x8] sm:$0xf]
  %v20 = vld [vmem:[%s0 + $0xc] sm:$0xf]
  %v21 = vld [vmem:[%s0 + $0x10] sm:$0xf]
  %v22 = vld [vmem:[%s0 + $0x14] sm:$0xf]
  %v23 = vld [vmem:[%s0 + $0x18] sm:$0xf]
  %v24 = vld [vmem:[%s0 + $0x1c] sm:$0xf]
  %v25 = vld [vmem:[%s0 + $0x20] sm:$0xf]
  %v26 = vld [vmem:[%s0 + $0x24] sm:$0xf]
  %v27 = vld [vmem:[%s0 + $0x28] sm:$0xf]
  %v28 = vld [vmem:[%s0 + $0x2c] sm:$0xf]
  %v29 = vld [vmem:[%s0 + $0x30] sm:$0xf]
  %v30 = vld [vmem:[%s0 + $0x34] sm:$0xf]
  %v31 = vld [vmem:[%s0 + $0x38] sm:$0xf]
  %v32 = vld [vmem:[%s0 + $0x3c] sm:$0xf]
  %v33 = vld [vmem:[%s1] sm:$0xf]
  %v34 = vld [vmem:[%s1 + $0x4] sm:$0xf]
  %v35 = vld [vmem:[%s1 + $0x8] sm:$0xf]
  %v36 = vld [vmem:[%s1 + $0xc] sm:$0xf]
  %v37 = vld [vmem:[%s1 + $0x10] sm:$0xf]
  %v38 = vld [vmem:[%s1 + $0x14] sm:$0xf]
  %v39 = vld [vmem:[%s1 + $0x18] sm:$0xf]
  %v40 = vld [vmem:[%s1 + $0x1c] sm:$0xf]
  %v57 = vunpack.c.l.b16 %v17
  %v58 = vunpack.c.l.b16 %v18
  %v59 = vunpack.c.l.b16 %v19
  %v60 = vunpack.c.l.b16 %v20
  %v61 = vunpack.c.l.b16 %v21
  %v62 = vunpack.c.l.b16 %v22
  %v63 = vunpack.c.l.b16 %v23
  %v64 = vunpack.c.l.b16 %v24
  %v65 = vunpack.c.l.b16 %v25
  %v66 = vunpack.c.l.b16 %v26
  %v67 = vunpack.c.l.b16 %v27
  %v68 = vunpack.c.l.b16 %v28
  %v69 = vunpack.c.l.b16 %v29
  %v70 = vunpack.c.l.b16 %v30
  %v71 = vunpack.c.l.b16 %v31
  %v72 = vunpack.c.l.b16 %v32
  %v73 = vpack.c.b16 %v58, %v57
  %v74 = vpack.c.b16 %v60, %v59
  %v75 = vpack.c.b16 %v62, %v61
  %v76 = vpack.c.b16 %v64, %v63
  %v77 = vpack.c.b16 %v66, %v65
  %v78 = vpack.c.b16 %v68, %v67
  %v79 = vpack.c.b16 %v70, %v69
  %v80 = vpack.c.b16 %v72, %v71
  %v89 = vunpack.c.l.b16 %v33
  %v90 = vunpack.c.l.b16 %v34
  %v91 = vunpack.c.l.b16 %v35
  %v92 = vunpack.c.l.b16 %v36
  %v93 = vunpack.c.l.b16 %v37
  %v94 = vunpack.c.l.b16 %v38
  %v95 = vunpack.c.l.b16 %v39
  %v96 = vunpack.c.l.b16 %v40
  %v97 = vpack.c.b16 %v90, %v89
  %v98 = vpack.c.b16 %v92, %v91
  %v99 = vpack.c.b16 %v94, %v93
  %v100 = vpack.c.b16 %v96, %v95
  %vm105 = vcmask 523264
  %v107 = vsel %vm105, %v73, 0
  %v110 = vsel %vm105, %v74, 0
  %v113 = vsel %vm105, %v75, 0
  %v116 = vsel %vm105, %v76, 0
  %v119 = vsel %vm105, %v77, 0
  %v122 = vsel %vm105, %v78, 0
  %v125 = vsel %vm105, %v79, 0
  %v128 = vsel %vm105, %v80, 0
  %130 = vmatprep.subr.bf16.mxu0 0
  %131 = vmatpush1.bf16.msra.mxu0 %v97
  %132 = vmatprep.subr.bf16.mxu0 0
  %133 = vmatpush1.bf16.msra.mxu0 %v98
  %134 = vmatprep.subr.bf16.mxu0 0
  %135 = vmatpush1.bf16.msra.mxu0 %v99
  %136 = vmatprep.subr.bf16.mxu0 0
  %137 = vmatpush1.bf16.msra.mxu0 %v100
  %138 = vmatprep.subr.bf16.mxu0 0
  %139 = vmatpush1.bf16.msra.mxu0 0
  %140 = vmatprep.subr.bf16.mxu0 0
  %141 = vmatpush1.bf16.msra.mxu0 0
  %142 = vmatprep.subr.bf16.mxu0 0
  %143 = vmatpush1.bf16.msra.mxu0 0
  %144 = vmatprep.subr.bf16.mxu0 0
  %145 = vmatpush1.bf16.msra.mxu0 0
  %146 = vmatprep.subr.bf16.mxu0 0
  %147 = vmatpush1.bf16.msra.mxu0 0
  %148 = vmatprep.subr.bf16.mxu0 0
  %149 = vmatpush1.bf16.msra.mxu0 0
  %150 = vmatprep.subr.bf16.mxu0 0
  %151 = vmatpush1.bf16.msra.mxu0 0
  %152 = vmatprep.subr.bf16.mxu0 0
  %153 = vmatpush1.bf16.msra.mxu0 0
  %154 = vmatprep.subr.bf16.mxu0 0
  %155 = vmatpush1.bf16.msra.mxu0 0
  %156 = vmatprep.subr.bf16.mxu0 0
  %157 = vmatpush1.bf16.msra.mxu0 0
  %158 = vmatprep.subr.bf16.mxu0 0
  %159 = vmatpush1.bf16.msra.mxu0 0
  %160 = vmatprep.subr.bf16.mxu0 0
  %161 = vmatpush1.bf16.msra.mxu0 0
  %162 = vmatprep.mubr.bf16.mxu0 0
  %163 = vmatmul.mubr.bf16.gmra.mrb[0].mxu0 %v107
  %v164 = vpop.f32.mrb[0].mxu0
  %v165 = vadd.f32 0.0, %v164
  %v166 = vpop.f32.mrb[0].mxu0
  %v167 = vpop.f32.mrb[0].mxu0
  %v168 = vadd.f32 0.0, %v167
  %v169 = vpop.f32.mrb[0].mxu0
  %170 = vmatprep.mubr.bf16.mxu0 0
  %171 = vmatmul.mubr.bf16.gmra.mrb[0].mxu0 %v110
  %v172 = vpop.f32.mrb[0].mxu0
  %v173 = vadd.f32 0.0, %v172
  %v174 = vpop.f32.mrb[0].mxu0
  %v175 = vpop.f32.mrb[0].mxu0
  %v176 = vadd.f32 0.0, %v175
  %v177 = vpop.f32.mrb[0].mxu0
  %178 = vmatprep.mubr.bf16.mxu0 0
  %179 = vmatmul.mubr.bf16.gmra.mrb[0].mxu0 %v113
  %v180 = vpop.f32.mrb[0].mxu0
  %v181 = vadd.f32 0.0, %v180
  %v182 = vpop.f32.mrb[0].mxu0
  %v183 = vpop.f32.mrb[0].mxu0
  %v184 = vadd.f32 0.0, %v183
  %v185 = vpop.f32.mrb[0].mxu0
  %186 = vmatprep.mubr.bf16.mxu0 0
  %187 = vmatmul.mubr.bf16.gmra.mrb[0].mxu0 %v116
  %v188 = vpop.f32.mrb[0].mxu0
  %v189 = vadd.f32 0.0, %v188
  %v190 = vpop.f32.mrb[0].mxu0
  %v191 = vpop.f32.mrb[0].mxu0
  %v192 = vadd.f32 0.0, %v191
  %v193 = vpop.f32.mrb[0].mxu0
  %194 = vmatprep.mubr.bf16.mxu0 0
  %195 = vmatmul.mubr.bf16.gmra.mrb[0].mxu0 %v119
  %v196 = vpop.f32.mrb[0].mxu0
  %v197 = vadd.f32 0.0, %v196
  %v198 = vpop.f32.mrb[0].mxu0
  %v199 = vpop.f32.mrb[0].mxu0
  %v200 = vadd.f32 0.0, %v199
  %v201 = vpop.f32.mrb[0].mxu0
  %202 = vmatprep.mubr.bf16.mxu0 0
  %203 = vmatmul.mubr.bf16.gmra.mrb[0].mxu0 %v122
  %v204 = vpop.f32.mrb[0].mxu0
  %v205 = vadd.f32 0.0, %v204
  %v206 = vpop.f32.mrb[0].mxu0
  %v207 = vpop.f32.mrb[0].mxu0
  %v208 = vadd.f32 0.0, %v207
  %v209 = vpop.f32.mrb[0].mxu0
  %210 = vmatprep.mubr.bf16.mxu0 0
  %211 = vmatmul.mubr.bf16.gmra.mrb[0].mxu0 %v125
  %v212 = vpop.f32.mrb[0].mxu0
  %v213 = vadd.f32 0.0, %v212
  %v214 = vpop.f32.mrb[0].mxu0
  %v215 = vpop.f32.mrb[0].mxu0
  %v216 = vadd.f32 0.0, %v215
  %v217 = vpop.f32.mrb[0].mxu0
  %218 = vmatprep.mubr.bf16.mxu0 0
  %219 = vmatmul.mubr.bf16.gmra.mrb[0].mxu0 %v128
  %v220 = vpop.f32.mrb[0].mxu0
  %v221 = vadd.f32 0.0, %v220
  %v222 = vpop.f32.mrb[0].mxu0
  %v223 = vpop.f32.mrb[0].mxu0
  %v224 = vadd.f32 0.0, %v223
  %v225 = vpop.f32.mrb[0].mxu0
  %226 = vdwg.mxu0
  %v227 = vld [vmem:[%s2] sm:$0xf]
  %vm228 = vcmask 31744
  %v230 = vsel %vm228, %v165, 0
  %v233 = vsel %vm228, %v168, 0
  %v236 = vsel %vm228, %v173, 0
  %v239 = vsel %vm228, %v176, 0
  %v242 = vsel %vm228, %v181, 0
  %v245 = vsel %vm228, %v184, 0
  %v248 = vsel %vm228, %v189, 0
  %v251 = vsel %vm228, %v192, 0
  %v254 = vsel %vm228, %v197, 0
  %v257 = vsel %vm228, %v200, 0
  %v260 = vsel %vm228, %v205, 0
  %v263 = vsel %vm228, %v208, 0
  %v266 = vsel %vm228, %v213, 0
  %v269 = vsel %vm228, %v216, 0
  %v272 = vsel %vm228, %v221, 0
  %v275 = vsel %vm228, %v224, 0
  %vm277 = vcmask 1043456
  %v279 = vsel %vm277, %v227, 0
  %281 = vmatprep.subr.mxu0 0.0
  %282 = vmatpush1.msra.mxu0 %v279
  %283 = vmatprep.subr.mxu0 0.0
  %284 = vmatpush1.msra.mxu0 0.0
  %285 = vmatprep.subr.mxu0 0.0
  %286 = vmatpush1.msra.mxu0 0.0
  %287 = vmatprep.subr.mxu0 0.0
  %288 = vmatpush1.msra.mxu0 0.0
  %289 = vmatprep.subr.mxu0 0.0
  %290 = vmatpush1.msra.mxu0 0.0
  %291 = vmatprep.subr.mxu0 0.0
  %292 = vmatpush1.msra.mxu0 0.0
  %293 = vmatprep.subr.mxu0 0.0
  %294 = vmatpush1.msra.mxu0 0.0
  %295 = vmatprep.subr.mxu0 0.0
  %296 = vmatpush1.msra.mxu0 0.0
  %297 = vmatprep.subr.mxu0 0.0
  %298 = vmatpush1.msra.mxu0 0.0
  %299 = vmatprep.subr.mxu0 0.0
  %300 = vmatpush1.msra.mxu0 0.0
  %301 = vmatprep.subr.mxu0 0.0
  %302 = vmatpush1.msra.mxu0 0.0
  %303 = vmatprep.subr.mxu0 0.0
  %304 = vmatpush1.msra.mxu0 0.0
  %305 = vmatprep.subr.mxu0 0.0
  %306 = vmatpush1.msra.mxu0 0.0
  %307 = vmatprep.subr.mxu0 0.0
  %308 = vmatpush1.msra.mxu0 0.0
  %309 = vmatprep.subr.mxu0 0.0
  %310 = vmatpush1.msra.mxu0 0.0
  %311 = vmatprep.subr.mxu0 0.0
  %312 = vmatpush1.msra.mxu0 0.0
  %313 = vmatprep.subr.mxu0 0.0
  %314 = vmatpush1.msra.mxu0 0.0
  %315 = vmatprep.subr.mxu0 0.0
  %316 = vmatpush1.msra.mxu0 0.0
  %317 = vmatprep.subr.mxu0 0.0
  %318 = vmatpush1.msra.mxu0 0.0
  %319 = vmatprep.subr.mxu0 0.0
  %320 = vmatpush1.msra.mxu0 0.0
  %321 = vmatprep.subr.mxu0 0.0
  %322 = vmatpush1.msra.mxu0 0.0
  %323 = vmatprep.subr.mxu0 0.0
  %324 = vmatpush1.msra.mxu0 0.0
  %325 = vmatprep.subr.mxu0 0.0
  %326 = vmatpush1.msra.mxu0 0.0
  %327 = vmatprep.subr.mxu0 0.0
  %328 = vmatpush1.msra.mxu0 0.0
  %329 = vmatprep.subr.mxu0 0.0
  %330 = vmatpush1.msra.mxu0 0.0
  %331 = vmatprep.subr.mxu0 0.0
  %332 = vmatpush1.msra.mxu0 0.0
  %333 = vmatprep.subr.mxu0 0.0
  %334 = vmatpush1.msra.mxu0 0.0
  %335 = vmatprep.subr.mxu0 0.0
  %336 = vmatpush1.msra.mxu0 0.0
  %337 = vmatprep.subr.mxu0 0.0
  %338 = vmatpush1.msra.mxu0 0.0
  %339 = vmatprep.subr.mxu0 0.0
  %340 = vmatpush1.msra.mxu0 0.0
  %341 = vmatprep.subr.mxu0 0.0
  %342 = vmatpush1.msra.mxu0 0.0
  %343 = vmatprep.subr.mxu0 0.0
  %344 = vmatpush1.msra.mxu0 0.0
  %345 = vmatprep.mubr.f32.mxu0 0.0
  %346 = vmatmul.mubr.f32.gmra.mrb[0].mxu0 %v230
  %v347 = vpop.f32.mrb[0].mxu0
  %v348 = vadd.f32 0.0, %v347
  %v349 = vpop.f32.mrb[0].mxu0
  %350 = vmatprep.mubr.f32.mxu0 0.0
  %351 = vmatmul.mubr.f32.gmra.mrb[0].mxu0 %v233
  %v352 = vpop.f32.mrb[0].mxu0
  %v353 = vadd.f32 0.0, %v352
  %v354 = vpop.f32.mrb[0].mxu0
  %355 = vmatprep.mubr.f32.mxu0 0.0
  %356 = vmatmul.mubr.f32.gmra.mrb[0].mxu0 %v236
  %v357 = vpop.f32.mrb[0].mxu0
  %v358 = vadd.f32 0.0, %v357
  %v359 = vpop.f32.mrb[0].mxu0
  %360 = vmatprep.mubr.f32.mxu0 0.0
  %361 = vmatmul.mubr.f32.gmra.mrb[0].mxu0 %v239
  %v362 = vpop.f32.mrb[0].mxu0
  %v363 = vadd.f32 0.0, %v362
  %v364 = vpop.f32.mrb[0].mxu0
  %365 = vmatprep.mubr.f32.mxu0 0.0
  %366 = vmatmul.mubr.f32.gmra.mrb[0].mxu0 %v242
  %v367 = vpop.f32.mrb[0].mxu0
  %v368 = vadd.f32 0.0, %v367
  %v369 = vpop.f32.mrb[0].mxu0
  %370 = vmatprep.mubr.f32.mxu0 0.0
  %371 = vmatmul.mubr.f32.gmra.mrb[0].mxu0 %v245
  %v372 = vpop.f32.mrb[0].mxu0
  %v373 = vadd.f32 0.0, %v372
  %v374 = vpop.f32.mrb[0].mxu0
  %375 = vmatprep.mubr.f32.mxu0 0.0
  %376 = vmatmul.mubr.f32.gmra.mrb[0].mxu0 %v248
  %v377 = vpop.f32.mrb[0].mxu0
  %v378 = vadd.f32 0.0, %v377
  %v379 = vpop.f32.mrb[0].mxu0
  %380 = vmatprep.mubr.f32.mxu0 0.0
  %381 = vmatmul.mubr.f32.gmra.mrb[0].mxu0 %v251
  %v382 = vpop.f32.mrb[0].mxu0
  %v383 = vadd.f32 0.0, %v382
  %v384 = vpop.f32.mrb[0].mxu0
  %385 = vmatprep.mubr.f32.mxu0 0.0
  %386 = vmatmul.mubr.f32.gmra.mrb[0].mxu0 %v254
  %v387 = vpop.f32.mrb[0].mxu0
  %v388 = vadd.f32 0.0, %v387
  %v389 = vpop.f32.mrb[0].mxu0
  %390 = vmatprep.mubr.f32.mxu0 0.0
  %391 = vmatmul.mubr.f32.gmra.mrb[0].mxu0 %v257
  %v392 = vpop.f32.mrb[0].mxu0
  %v393 = vadd.f32 0.0, %v392
  %v394 = vpop.f32.mrb[0].mxu0
  %395 = vmatprep.mubr.f32.mxu0 0.0
  %396 = vmatmul.mubr.f32.gmra.mrb[0].mxu0 %v260
  %v397 = vpop.f32.mrb[0].mxu0
  %v398 = vadd.f32 0.0, %v397
  %v399 = vpop.f32.mrb[0].mxu0
  %400 = vmatprep.mubr.f32.mxu0 0.0
  %401 = vmatmul.mubr.f32.gmra.mrb[0].mxu0 %v263
  %v402 = vpop.f32.mrb[0].mxu0
  %v403 = vadd.f32 0.0, %v402
  %v404 = vpop.f32.mrb[0].mxu0
  %405 = vmatprep.mubr.f32.mxu0 0.0
  %406 = vmatmul.mubr.f32.gmra.mrb[0].mxu0 %v266
  %v407 = vpop.f32.mrb[0].mxu0
  %v408 = vadd.f32 0.0, %v407
  %v409 = vpop.f32.mrb[0].mxu0
  %410 = vmatprep.mubr.f32.mxu0 0.0
  %411 = vmatmul.mubr.f32.gmra.mrb[0].mxu0 %v269
  %v412 = vpop.f32.mrb[0].mxu0
  %v413 = vadd.f32 0.0, %v412
  %v414 = vpop.f32.mrb[0].mxu0
  %415 = vmatprep.mubr.f32.mxu0 0.0
  %416 = vmatmul.mubr.f32.gmra.mrb[0].mxu0 %v272
  %v417 = vpop.f32.mrb[0].mxu0
  %v418 = vadd.f32 0.0, %v417
  %v419 = vpop.f32.mrb[0].mxu0
  %420 = vmatprep.mubr.f32.mxu0 0.0
  %421 = vmatmul.mubr.f32.gmra.mrb[0].mxu0 %v275
  %v422 = vpop.f32.mrb[0].mxu0
  %v423 = vadd.f32 0.0, %v422
  %v424 = vpop.f32.mrb[0].mxu0
  %425 = vdwg.mxu0
  %vm426 = vcmask 15360
  %427 = vst.msk [vmem:[%s4] sm:$0xff] %vm426, %v348
  %428 = vst.msk [vmem:[%s4 + $0x8] sm:$0xff] %vm426, %v353
  %429 = vst.msk [vmem:[%s4 + $0x10] sm:$0xff] %vm426, %v358
  %430 = vst.msk [vmem:[%s4 + $0x18] sm:$0xff] %vm426, %v363
  %431 = vst.msk [vmem:[%s4 + $0x20] sm:$0xff] %vm426, %v368
  %432 = vst.msk [vmem:[%s4 + $0x28] sm:$0xff] %vm426, %v373
  %433 = vst.msk [vmem:[%s4 + $0x30] sm:$0xff] %vm426, %v378
  %434 = vst.msk [vmem:[%s4 + $0x38] sm:$0xff] %vm426, %v383
  %435 = vst.msk [vmem:[%s4 + $0x40] sm:$0xff] %vm426, %v388
  %436 = vst.msk [vmem:[%s4 + $0x48] sm:$0xff] %vm426, %v393
  %437 = vst.msk [vmem:[%s4 + $0x50] sm:$0xff] %vm426, %v398
  %438 = vst.msk [vmem:[%s4 + $0x58] sm:$0xff] %vm426, %v403
  %439 = vst.msk [vmem:[%s4 + $0x60] sm:$0xff] %vm426, %v408
  %440 = vst.msk [vmem:[%s4 + $0x68] sm:$0xff] %vm426, %v413
  %441 = vst.msk [vmem:[%s4 + $0x70] sm:$0xff] %vm426, %v418
  %442 = vst.msk [vmem:[%s4 + $0x78] sm:$0xff] %vm426, %v423
  %v443 = vpack.c.bf16 %v168, %v165
  %v444 = vpack.c.bf16 %v176, %v173
  %v445 = vpack.c.bf16 %v184, %v181
  %v446 = vpack.c.bf16 %v192, %v189
  %v447 = vpack.c.bf16 %v200, %v197
  %v448 = vpack.c.bf16 %v208, %v205
  %v449 = vpack.c.bf16 %v216, %v213
  %v450 = vpack.c.bf16 %v224, %v221
  %v459 = vunpack.c.l.b16 %v443
  %v460 = vunpack.c.h.b16 %v443
  %v461 = vunpack.c.l.b16 %v444
  %v462 = vunpack.c.h.b16 %v444
  %v463 = vunpack.c.l.b16 %v445
  %v464 = vunpack.c.h.b16 %v445
  %v465 = vunpack.c.l.b16 %v446
  %v466 = vunpack.c.h.b16 %v446
  %v467 = vunpack.c.l.b16 %v447
  %v468 = vunpack.c.h.b16 %v447
  %v469 = vunpack.c.l.b16 %v448
  %v470 = vunpack.c.h.b16 %v448
  %v471 = vunpack.c.l.b16 %v449
  %v472 = vunpack.c.h.b16 %v449
  %v473 = vunpack.c.l.b16 %v450
  %v474 = vunpack.c.h.b16 %v450
  %v475 = vpack.c.b16 %v459, %v459
  %v476 = vpack.c.b16 %v460, %v460
  %v477 = vpack.c.b16 %v461, %v461
  %v478 = vpack.c.b16 %v462, %v462
  %v479 = vpack.c.b16 %v463, %v463
  %v480 = vpack.c.b16 %v464, %v464
  %v481 = vpack.c.b16 %v465, %v465
  %v482 = vpack.c.b16 %v466, %v466
  %v483 = vpack.c.b16 %v467, %v467
  %v484 = vpack.c.b16 %v468, %v468
  %v485 = vpack.c.b16 %v469, %v469
  %v486 = vpack.c.b16 %v470, %v470
  %v487 = vpack.c.b16 %v471, %v471
  %v488 = vpack.c.b16 %v472, %v472
  %v489 = vpack.c.b16 %v473, %v473
  %v490 = vpack.c.b16 %v474, %v474
  %vm507 = vcmask 27648
  %508 = vst.msk [vmem:[%s3] sm:$0xf] %vm507, %v475
  %509 = vst.msk [vmem:[%s3 + $0x4] sm:$0xf] %vm507, %v476
  %510 = vst.msk [vmem:[%s3 + $0x8] sm:$0xf] %vm507, %v477
  %511 = vst.msk [vmem:[%s3 + $0xc] sm:$0xf] %vm507, %v478
  %512 = vst.msk [vmem:[%s3 + $0x10] sm:$0xf] %vm507, %v479
  %513 = vst.msk [vmem:[%s3 + $0x14] sm:$0xf] %vm507, %v480
  %514 = vst.msk [vmem:[%s3 + $0x18] sm:$0xf] %vm507, %v481
  %515 = vst.msk [vmem:[%s3 + $0x1c] sm:$0xf] %vm507, %v482
  %516 = vst.msk [vmem:[%s3 + $0x20] sm:$0xf] %vm507, %v483
  %517 = vst.msk [vmem:[%s3 + $0x24] sm:$0xf] %vm507, %v484
  %518 = vst.msk [vmem:[%s3 + $0x28] sm:$0xf] %vm507, %v485
  %519 = vst.msk [vmem:[%s3 + $0x2c] sm:$0xf] %vm507, %v486
  %520 = vst.msk [vmem:[%s3 + $0x30] sm:$0xf] %vm507, %v487
  %521 = vst.msk [vmem:[%s3 + $0x34] sm:$0xf] %vm507, %v488
  %522 = vst.msk [vmem:[%s3 + $0x38] sm:$0xf] %vm507, %v489
  %523 = vst.msk [vmem:[%s3 + $0x3c] sm:$0xf] %vm507, %v490
  // Predicated region
  $region14: #{gat_forward.6} parent=0 // pred_check
    _
  $region15: #{gat_forward.6} parent=0 // pred_check_branch
    %525 = sbr.rel (0) target = $region17
  $region16: #{gat_forward.6} parent=0 // pred_region
    _
  $region17: #{gat_forward.6} parent=0 // pred_fallthru
    _
  // Predicated region
  $region18: #{gat_forward.6} parent=0 // pred_check
    _
  $region19: #{gat_forward.6} parent=0 // pred_check_branch
    %527 = sbr.rel (0) target = $region21
  $region20: #{gat_forward.6} parent=0 // pred_region
    _
  $region21: #{gat_forward.6} parent=0 // pred_fallthru
    _
  // Predicated region
  $region22: #{gat_forward.6} parent=0 // pred_check
    _
  $region23: #{gat_forward.6} parent=0 // pred_check_branch
    %529 = sbr.rel (0) target = $region25
  $region24: #{gat_forward.6} parent=0 // pred_region
    _
  $region25: #{gat_forward.6} parent=0 // pred_fallthru
    _
  // Predicated region
  $region26: #{gat_forward.6} parent=0 // pred_check
    _
  $region27: #{gat_forward.6} parent=0 // pred_check_branch
    %531 = sbr.rel (0) target = $region29
  $region28: #{gat_forward.6} parent=0 // pred_region
    _
  $region29: #{gat_forward.6} parent=0 // pred_fallthru
    _

// kernel: gat_forward.7
$region0: #{gat_forward.7}
  #allocation0 [shape = 'u32[]', space=smem, size = 0x4, offset = 0x4, fixed_abs, tag = 'smem constant byte address 0x4 - core index']
  #allocation1 [shape = 'u32[144,128]{1,0:T(1,128)}', space=vmem, size = 0x12000, scoped, tag = 'internal scratch']
  #allocation2 [shape = 'f32[128,5]{1,0:T(8,128)}', space=vmem, size = 0x10000, scoped, tag = 'scratch operand']
  %s0 = inlined_call_operand.vmem [shape: s8[128,128], index: 0, kind: input, shape index: {}]
  %s1 = inlined_call_operand.vmem [shape: f32[128,1], index: 1, kind: input, shape index: {}]
  %s2 = inlined_call_operand.vmem [shape: f32[128,1], index: 2, kind: input, shape index: {}]
  %s3 = inlined_call_operand.vmem [shape: f32[1,128], index: 3, kind: input, shape index: {}]
  %s4 = inlined_call_operand.vmem [shape: bf16[128,5], index: 4, kind: input, shape index: {}]
  %s5 = inlined_call_operand.vmem [shape: f32[1,4], index: 5, kind: input, shape index: {}]
  %s6 = inlined_call_operand.vmem [shape: f32[128,4], index: 6, kind: output, shape index: {}]
  %s7 = sld [smem:[#allocation0]]
  $region42: #{gat_forward.7} parent=0
    _
  %s9 = ssub.s32 1, %s7
  %s10 = scalar_select 0, %s9, %s7
  // Predicated region
  $region2: #{gat_forward.7} parent=0 // pred_check
    _
  $region3: #{gat_forward.7} parent=0 // pred_check_branch
    %12 = sbr.rel (0) target = $region5
  $region4: #{gat_forward.7} parent=0 // pred_region
    _
  $region5: #{gat_forward.7} parent=0 // pred_fallthru
    _
  // Predicated region
  $region6: #{gat_forward.7} parent=0 // pred_check
    _
  $region7: #{gat_forward.7} parent=0 // pred_check_branch
    %14 = sbr.rel (0) target = $region9
  $region8: #{gat_forward.7} parent=0 // pred_region
    _
  $region9: #{gat_forward.7} parent=0 // pred_fallthru
    _
  // Predicated region
  $region10: #{gat_forward.7} parent=0 // pred_check
    _
  $region11: #{gat_forward.7} parent=0 // pred_check_branch
    %16 = sbr.rel (0) target = $region13
  $region12: #{gat_forward.7} parent=0 // pred_region
    _
  $region13: #{gat_forward.7} parent=0 // pred_fallthru
    _
  // Predicated region
  $region14: #{gat_forward.7} parent=0 // pred_check
    _
  $region15: #{gat_forward.7} parent=0 // pred_check_branch
    %18 = sbr.rel (0) target = $region17
  $region16: #{gat_forward.7} parent=0 // pred_region
    _
  $region17: #{gat_forward.7} parent=0 // pred_fallthru
    _
  // Predicated region
  $region18: #{gat_forward.7} parent=0 // pred_check
    _
  $region19: #{gat_forward.7} parent=0 // pred_check_branch
    %20 = sbr.rel (0) target = $region21
  $region20: #{gat_forward.7} parent=0 // pred_region
    _
  $region21: #{gat_forward.7} parent=0 // pred_fallthru
    _
  // Predicated region
  $region22: #{gat_forward.7} parent=0 // pred_check
    _
  $region23: #{gat_forward.7} parent=0 // pred_check_branch
    %22 = sbr.rel (0) target = $region25
  $region24: #{gat_forward.7} parent=0 // pred_region
    _
  $region25: #{gat_forward.7} parent=0 // pred_fallthru
    _
  %p24 = scmp.eq.s32.totalorder 0, 0
  // Predicated region
  $region26: #{gat_forward.7} parent=0 // pred_check
    %p25 = pneg %p24
  $region27: #{gat_forward.7} parent=0 // pred_check_branch
    %27 = sbr.rel (%p25) target = $region29
  $region28: #{gat_forward.7} parent=0 // pred_region
    %vm28 = vcmask 39936
    %29 = vst.msk [vmem:[#allocation2] sm:$0xff] %vm28, 0.0
    %30 = vst.msk [vmem:[#allocation2 + $0x8] sm:$0xff] %vm28, 0.0
    %31 = vst.msk [vmem:[#allocation2 + $0x10] sm:$0xff] %vm28, 0.0
    %32 = vst.msk [vmem:[#allocation2 + $0x18] sm:$0xff] %vm28, 0.0
    %33 = vst.msk [vmem:[#allocation2 + $0x20] sm:$0xff] %vm28, 0.0
    %34 = vst.msk [vmem:[#allocation2 + $0x28] sm:$0xff] %vm28, 0.0
    %35 = vst.msk [vmem:[#allocation2 + $0x30] sm:$0xff] %vm28, 0.0
    %36 = vst.msk [vmem:[#allocation2 + $0x38] sm:$0xff] %vm28, 0.0
    %37 = vst.msk [vmem:[#allocation2 + $0x40] sm:$0xff] %vm28, 0.0
    %38 = vst.msk [vmem:[#allocation2 + $0x48] sm:$0xff] %vm28, 0.0
    %39 = vst.msk [vmem:[#allocation2 + $0x50] sm:$0xff] %vm28, 0.0
    %40 = vst.msk [vmem:[#allocation2 + $0x58] sm:$0xff] %vm28, 0.0
    %41 = vst.msk [vmem:[#allocation2 + $0x60] sm:$0xff] %vm28, 0.0
    %42 = vst.msk [vmem:[#allocation2 + $0x68] sm:$0xff] %vm28, 0.0
    %43 = vst.msk [vmem:[#allocation2 + $0x70] sm:$0xff] %vm28, 0.0
    %44 = vst.msk [vmem:[#allocation2 + $0x78] sm:$0xff] %vm28, 0.0
  $region29: #{gat_forward.7} parent=0 // pred_fallthru
    _
  %v45 = vld [vmem:[%s1] sm:$0xff]
  %v46 = vld [vmem:[%s1 + $0x8] sm:$0xff]
  %v47 = vld [vmem:[%s1 + $0x10] sm:$0xff]
  %v48 = vld [vmem:[%s1 + $0x18] sm:$0xff]
  %v49 = vld [vmem:[%s1 + $0x20] sm:$0xff]
  %v50 = vld [vmem:[%s1 + $0x28] sm:$0xff]
  %v51 = vld [vmem:[%s1 + $0x30] sm:$0xff]
  %v52 = vld [vmem:[%s1 + $0x38] sm:$0xff]
  %v53 = vld [vmem:[%s1 + $0x40] sm:$0xff]
  %v54 = vld [vmem:[%s1 + $0x48] sm:$0xff]
  %v55 = vld [vmem:[%s1 + $0x50] sm:$0xff]
  %v56 = vld [vmem:[%s1 + $0x58] sm:$0xff]
  %v57 = vld [vmem:[%s1 + $0x60] sm:$0xff]
  %v58 = vld [vmem:[%s1 + $0x68] sm:$0xff]
  %v59 = vld [vmem:[%s1 + $0x70] sm:$0xff]
  %v60 = vld [vmem:[%s1 + $0x78] sm:$0xff]
  %v61 = vld [vmem:[%s2] sm:$0xff]
  %v62 = vld [vmem:[%s2 + $0x8] sm:$0xff]
  %v63 = vld [vmem:[%s2 + $0x10] sm:$0xff]
  %v64 = vld [vmem:[%s2 + $0x18] sm:$0xff]
  %v65 = vld [vmem:[%s2 + $0x20] sm:$0xff]
  %v66 = vld [vmem:[%s2 + $0x28] sm:$0xff]
  %v67 = vld [vmem:[%s2 + $0x30] sm:$0xff]
  %v68 = vld [vmem:[%s2 + $0x38] sm:$0xff]
  %v69 = vld [vmem:[%s2 + $0x40] sm:$0xff]
  %v70 = vld [vmem:[%s2 + $0x48] sm:$0xff]
  %v71 = vld [vmem:[%s2 + $0x50] sm:$0xff]
  %v72 = vld [vmem:[%s2 + $0x58] sm:$0xff]
  %v73 = vld [vmem:[%s2 + $0x60] sm:$0xff]
  %v74 = vld [vmem:[%s2 + $0x68] sm:$0xff]
  %v75 = vld [vmem:[%s2 + $0x70] sm:$0xff]
  %v76 = vld [vmem:[%s2 + $0x78] sm:$0xff]
  %v77 = vld [vmem:[%s3] sm:$0x1]
  %v78 = vld [vmem:[%s0] sm:$0xff]
  %v79 = vld [vmem:[%s0 + $0x8] sm:$0xff]
  %v80 = vld [vmem:[%s0 + $0x10] sm:$0xff]
  %v81 = vld [vmem:[%s0 + $0x18] sm:$0xff]
  %v82 = vunpack.c.0.s8 %v78
  %v83 = vunpack.c.1.s8 %v78
  %v84 = vunpack.c.2.s8 %v78
  %v85 = vunpack.c.3.s8 %v78
  %v86 = vunpack.c.0.s8 %v79
  %v87 = vunpack.c.1.s8 %v79
  %v88 = vunpack.c.2.s8 %v79
  %v89 = vunpack.c.3.s8 %v79
  %v90 = vunpack.c.0.s8 %v80
  %v91 = vunpack.c.1.s8 %v80
  %v92 = vunpack.c.2.s8 %v80
  %v93 = vunpack.c.3.s8 %v80
  %v94 = vunpack.c.0.s8 %v81
  %v95 = vunpack.c.1.s8 %v81
  %v96 = vunpack.c.2.s8 %v81
  %v97 = vunpack.c.3.s8 %v81
  %v98 = vcvt.s32.f32 %v82
  %v99 = vcvt.s32.f32 %v83
  %v100 = vcvt.s32.f32 %v84
  %v101 = vcvt.s32.f32 %v85
  %v102 = vcvt.s32.f32 %v86
  %v103 = vcvt.s32.f32 %v87
  %v104 = vcvt.s32.f32 %v88
  %v105 = vcvt.s32.f32 %v89
  %v106 = vcvt.s32.f32 %v90
  %v107 = vcvt.s32.f32 %v91
  %v108 = vcvt.s32.f32 %v92
  %v109 = vcvt.s32.f32 %v93
  %v110 = vcvt.s32.f32 %v94
  %v111 = vcvt.s32.f32 %v95
  %v112 = vcvt.s32.f32 %v96
  %v113 = vcvt.s32.f32 %v97
  %v114 = vld [vmem:[%s4] sm:$0xf]
  %v115 = vld [vmem:[%s4 + $0x4] sm:$0xf]
  %v116 = vld [vmem:[%s4 + $0x8] sm:$0xf]
  %v117 = vld [vmem:[%s4 + $0xc] sm:$0xf]
  %v118 = vld [vmem:[%s4 + $0x10] sm:$0xf]
  %v119 = vld [vmem:[%s4 + $0x14] sm:$0xf]
  %v120 = vld [vmem:[%s4 + $0x18] sm:$0xf]
  %v121 = vld [vmem:[%s4 + $0x1c] sm:$0xf]
  %v122 = vld [vmem:[%s4 + $0x20] sm:$0xf]
  %v123 = vld [vmem:[%s4 + $0x24] sm:$0xf]
  %v124 = vld [vmem:[%s4 + $0x28] sm:$0xf]
  %v125 = vld [vmem:[%s4 + $0x2c] sm:$0xf]
  %v126 = vld [vmem:[%s4 + $0x30] sm:$0xf]
  %v127 = vld [vmem:[%s4 + $0x34] sm:$0xf]
  %v128 = vld [vmem:[%s4 + $0x38] sm:$0xf]
  %v129 = vld [vmem:[%s4 + $0x3c] sm:$0xf]
  %131 = vset.pattern.permute.xlu0 0
  %132 = vperm.xlu0 %131, %v45
  %v133 = vpop.permute.xlu0 %132
  %136 = vset.pattern.permute.xlu0 0
  %137 = vperm.xlu0 %136, %v46
  %v138 = vpop.permute.xlu0 %137
  %141 = vset.pattern.permute.xlu0 0
  %142 = vperm.xlu0 %141, %v47
  %v143 = vpop.permute.xlu0 %142
  %146 = vset.pattern.permute.xlu0 0
  %147 = vperm.xlu0 %146, %v48
  %v148 = vpop.permute.xlu0 %147
  %151 = vset.pattern.permute.xlu0 0
  %152 = vperm.xlu0 %151, %v49
  %v153 = vpop.permute.xlu0 %152
  %156 = vset.pattern.permute.xlu0 0
  %157 = vperm.xlu0 %156, %v50
  %v158 = vpop.permute.xlu0 %157
  %161 = vset.pattern.permute.xlu0 0
  %162 = vperm.xlu0 %161, %v51
  %v163 = vpop.permute.xlu0 %162
  %166 = vset.pattern.permute.xlu0 0
  %167 = vperm.xlu0 %166, %v52
  %v168 = vpop.permute.xlu0 %167
  %171 = vset.pattern.permute.xlu0 0
  %172 = vperm.xlu0 %171, %v53
  %v173 = vpop.permute.xlu0 %172
  %176 = vset.pattern.permute.xlu0 0
  %177 = vperm.xlu0 %176, %v54
  %v178 = vpop.permute.xlu0 %177
  %181 = vset.pattern.permute.xlu0 0
  %182 = vperm.xlu0 %181, %v55
  %v183 = vpop.permute.xlu0 %182
  %186 = vset.pattern.permute.xlu0 0
  %187 = vperm.xlu0 %186, %v56
  %v188 = vpop.permute.xlu0 %187
  %191 = vset.pattern.permute.xlu0 0
  %192 = vperm.xlu0 %191, %v57
  %v193 = vpop.permute.xlu0 %192
  %196 = vset.pattern.permute.xlu0 0
  %197 = vperm.xlu0 %196, %v58
  %v198 = vpop.permute.xlu0 %197
  %201 = vset.pattern.permute.xlu0 0
  %202 = vperm.xlu0 %201, %v59
  %v203 = vpop.permute.xlu0 %202
  %206 = vset.pattern.permute.xlu0 0
  %207 = vperm.xlu0 %206, %v60
  %v208 = vpop.permute.xlu0 %207
  %v211 = vlaneseq
  %v212 = vshrl.u32 %v211, 7
  %v213 = vsub.s32 0, %v212
  %v214 = vrot.slane %v77, %v213
  %v216 = vadd.f32 %v133, %v214
  %v217 = vadd.f32 %v138, %v214
  %v218 = vadd.f32 %v143, %v214
  %v219 = vadd.f32 %v148, %v214
  %v220 = vadd.f32 %v153, %v214
  %v221 = vadd.f32 %v158, %v214
  %v222 = vadd.f32 %v163, %v214
  %v223 = vadd.f32 %v168, %v214
  %v224 = vadd.f32 %v173, %v214
  %v225 = vadd.f32 %v178, %v214
  %v226 = vadd.f32 %v183, %v214
  %v227 = vadd.f32 %v188, %v214
  %v228 = vadd.f32 %v193, %v214
  %v229 = vadd.f32 %v198, %v214
  %v230 = vadd.f32 %v203, %v214
  %v231 = vadd.f32 %v208, %v214
  %v232 = vmul.f32 %v216, 0.2
  %v233 = vmul.f32 %v217, 0.2
  %v234 = vmul.f32 %v218, 0.2
  %v235 = vmul.f32 %v219, 0.2
  %v236 = vmul.f32 %v220, 0.2
  %v237 = vmul.f32 %v221, 0.2
  %v238 = vmul.f32 %v222, 0.2
  %v239 = vmul.f32 %v223, 0.2
  %v240 = vmul.f32 %v224, 0.2
  %v241 = vmul.f32 %v225, 0.2
  %v242 = vmul.f32 %v226, 0.2
  %v243 = vmul.f32 %v227, 0.2
  %v244 = vmul.f32 %v228, 0.2
  %v245 = vmul.f32 %v229, 0.2
  %v246 = vmul.f32 %v230, 0.2
  %v247 = vmul.f32 %v231, 0.2
  %v248 = vmax.f32 %v216, %v232
  %v249 = vmax.f32 %v217, %v233
  %v250 = vmax.f32 %v218, %v234
  %v251 = vmax.f32 %v219, %v235
  %v252 = vmax.f32 %v220, %v236
  %v253 = vmax.f32 %v221, %v237
  %v254 = vmax.f32 %v222, %v238
  %v255 = vmax.f32 %v223, %v239
  %v256 = vmax.f32 %v224, %v240
  %v257 = vmax.f32 %v225, %v241
  %v258 = vmax.f32 %v226, %v242
  %v259 = vmax.f32 %v227, %v243
  %v260 = vmax.f32 %v228, %v244
  %v261 = vmax.f32 %v229, %v245
  %v262 = vmax.f32 %v230, %v246
  %v263 = vmax.f32 %v231, %v247
  %265 = vset.pattern.permute.xlu0 0
  %266 = vperm.xlu0 %265, %v61
  %v267 = vpop.permute.xlu0 %266
  %270 = vset.pattern.permute.xlu0 0
  %271 = vperm.xlu0 %270, %v62
  %v272 = vpop.permute.xlu0 %271
  %275 = vset.pattern.permute.xlu0 0
  %276 = vperm.xlu0 %275, %v63
  %v277 = vpop.permute.xlu0 %276
  %280 = vset.pattern.permute.xlu0 0
  %281 = vperm.xlu0 %280, %v64
  %v282 = vpop.permute.xlu0 %281
  %285 = vset.pattern.permute.xlu0 0
  %286 = vperm.xlu0 %285, %v65
  %v287 = vpop.permute.xlu0 %286
  %290 = vset.pattern.permute.xlu0 0
  %291 = vperm.xlu0 %290, %v66
  %v292 = vpop.permute.xlu0 %291
  %295 = vset.pattern.permute.xlu0 0
  %296 = vperm.xlu0 %295, %v67
  %v297 = vpop.permute.xlu0 %296
  %300 = vset.pattern.permute.xlu0 0
  %301 = vperm.xlu0 %300, %v68
  %v302 = vpop.permute.xlu0 %301
  %305 = vset.pattern.permute.xlu0 0
  %306 = vperm.xlu0 %305, %v69
  %v307 = vpop.permute.xlu0 %306
  %310 = vset.pattern.permute.xlu0 0
  %311 = vperm.xlu0 %310, %v70
  %v312 = vpop.permute.xlu0 %311
  %315 = vset.pattern.permute.xlu0 0
  %316 = vperm.xlu0 %315, %v71
  %v317 = vpop.permute.xlu0 %316
  %320 = vset.pattern.permute.xlu0 0
  %321 = vperm.xlu0 %320, %v72
  %v322 = vpop.permute.xlu0 %321
  %325 = vset.pattern.permute.xlu0 0
  %326 = vperm.xlu0 %325, %v73
  %v327 = vpop.permute.xlu0 %326
  %330 = vset.pattern.permute.xlu0 0
  %331 = vperm.xlu0 %330, %v74
  %v332 = vpop.permute.xlu0 %331
  %335 = vset.pattern.permute.xlu0 0
  %336 = vperm.xlu0 %335, %v75
  %v337 = vpop.permute.xlu0 %336
  %340 = vset.pattern.permute.xlu0 0
  %341 = vperm.xlu0 %340, %v76
  %v342 = vpop.permute.xlu0 %341
  %v344 = vsub.f32 %v248, %v267
  %v345 = vsub.f32 %v249, %v272
  %v346 = vsub.f32 %v250, %v277
  %v347 = vsub.f32 %v251, %v282
  %v348 = vsub.f32 %v252, %v287
  %v349 = vsub.f32 %v253, %v292
  %v350 = vsub.f32 %v254, %v297
  %v351 = vsub.f32 %v255, %v302
  %v352 = vsub.f32 %v256, %v307
  %v353 = vsub.f32 %v257, %v312
  %v354 = vsub.f32 %v258, %v317
  %v355 = vsub.f32 %v259, %v322
  %v356 = vsub.f32 %v260, %v327
  %v357 = vsub.f32 %v261, %v332
  %v358 = vsub.f32 %v262, %v337
  %v359 = vsub.f32 %v263, %v342
  %v360 = vmul.f32 %v344, 1.442695
  %v361 = vpow.pop %v360
  %v362 = vmul.f32 %v345, 1.442695
  %v363 = vpow.pop %v362
  %v364 = vmul.f32 %v346, 1.442695
  %v365 = vpow.pop %v364
  %v366 = vmul.f32 %v347, 1.442695
  %v367 = vpow.pop %v366
  %v368 = vmul.f32 %v348, 1.442695
  %v369 = vpow.pop %v368
  %v370 = vmul.f32 %v349, 1.442695
  %v371 = vpow.pop %v370
  %v372 = vmul.f32 %v350, 1.442695
  %v373 = vpow.pop %v372
  %v374 = vmul.f32 %v351, 1.442695
  %v375 = vpow.pop %v374
  %v376 = vmul.f32 %v352, 1.442695
  %v377 = vpow.pop %v376
  %v378 = vmul.f32 %v353, 1.442695
  %v379 = vpow.pop %v378
  %v380 = vmul.f32 %v354, 1.442695
  %v381 = vpow.pop %v380
  %v382 = vmul.f32 %v355, 1.442695
  %v383 = vpow.pop %v382
  %v384 = vmul.f32 %v356, 1.442695
  %v385 = vpow.pop %v384
  %v386 = vmul.f32 %v357, 1.442695
  %v387 = vpow.pop %v386
  %v388 = vmul.f32 %v358, 1.442695
  %v389 = vpow.pop %v388
  %v390 = vmul.f32 %v359, 1.442695
  %v391 = vpow.pop %v390
  %v392 = vmul.f32 %v361, %v98
  %v393 = vmul.f32 %v363, %v99
  %v394 = vmul.f32 %v365, %v100
  %v395 = vmul.f32 %v367, %v101
  %v396 = vmul.f32 %v369, %v102
  %v397 = vmul.f32 %v371, %v103
  %v398 = vmul.f32 %v373, %v104
  %v399 = vmul.f32 %v375, %v105
  %v400 = vmul.f32 %v377, %v106
  %v401 = vmul.f32 %v379, %v107
  %v402 = vmul.f32 %v381, %v108
  %v403 = vmul.f32 %v383, %v109
  %v404 = vmul.f32 %v385, %v110
  %v405 = vmul.f32 %v387, %v111
  %v406 = vmul.f32 %v389, %v112
  %v407 = vmul.f32 %v391, %v113
  %v408 = vpack.c.bf16 %v393, %v392
  %v409 = vpack.c.bf16 %v395, %v394
  %v410 = vpack.c.bf16 %v397, %v396
  %v411 = vpack.c.bf16 %v399, %v398
  %v412 = vpack.c.bf16 %v401, %v400
  %v413 = vpack.c.bf16 %v403, %v402
  %v414 = vpack.c.bf16 %v405, %v404
  %v415 = vpack.c.bf16 %v407, %v406
  %v432 = vunpack.c.l.b16 %v114
  %v433 = vunpack.c.l.b16 %v115
  %v434 = vunpack.c.l.b16 %v116
  %v435 = vunpack.c.l.b16 %v117
  %v436 = vunpack.c.l.b16 %v118
  %v437 = vunpack.c.l.b16 %v119
  %v438 = vunpack.c.l.b16 %v120
  %v439 = vunpack.c.l.b16 %v121
  %v440 = vunpack.c.l.b16 %v122
  %v441 = vunpack.c.l.b16 %v123
  %v442 = vunpack.c.l.b16 %v124
  %v443 = vunpack.c.l.b16 %v125
  %v444 = vunpack.c.l.b16 %v126
  %v445 = vunpack.c.l.b16 %v127
  %v446 = vunpack.c.l.b16 %v128
  %v447 = vunpack.c.l.b16 %v129
  %v448 = vpack.c.b16 %v433, %v432
  %v449 = vpack.c.b16 %v435, %v434
  %v450 = vpack.c.b16 %v437, %v436
  %v451 = vpack.c.b16 %v439, %v438
  %v452 = vpack.c.b16 %v441, %v440
  %v453 = vpack.c.b16 %v443, %v442
  %v454 = vpack.c.b16 %v445, %v444
  %v455 = vpack.c.b16 %v447, %v446
  %464 = vmatprep.subr.bf16.mxu0 0
  %465 = vmatpush1.bf16.msra.mxu0 %v448
  %466 = vmatprep.subr.bf16.mxu0 0
  %467 = vmatpush1.bf16.msra.mxu0 %v449
  %468 = vmatprep.subr.bf16.mxu0 0
  %469 = vmatpush1.bf16.msra.mxu0 %v450
  %470 = vmatprep.subr.bf16.mxu0 0
  %471 = vmatpush1.bf16.msra.mxu0 %v451
  %472 = vmatprep.subr.bf16.mxu0 0
  %473 = vmatpush1.bf16.msra.mxu0 %v452
  %474 = vmatprep.subr.bf16.mxu0 0
  %475 = vmatpush1.bf16.msra.mxu0 %v453
  %476 = vmatprep.subr.bf16.mxu0 0
  %477 = vmatpush1.bf16.msra.mxu0 %v454
  %478 = vmatprep.subr.bf16.mxu0 0
  %479 = vmatpush1.bf16.msra.mxu0 %v455
  %480 = vmatprep.subr.bf16.mxu0 0
  %481 = vmatpush1.bf16.msra.mxu0 0
  %482 = vmatprep.subr.bf16.mxu0 0
  %483 = vmatpush1.bf16.msra.mxu0 0
  %484 = vmatprep.subr.bf16.mxu0 0
  %485 = vmatpush1.bf16.msra.mxu0 0
  %486 = vmatprep.subr.bf16.mxu0 0
  %487 = vmatpush1.bf16.msra.mxu0 0
  %488 = vmatprep.subr.bf16.mxu0 0
  %489 = vmatpush1.bf16.msra.mxu0 0
  %490 = vmatprep.subr.bf16.mxu0 0
  %491 = vmatpush1.bf16.msra.mxu0 0
  %492 = vmatprep.subr.bf16.mxu0 0
  %493 = vmatpush1.bf16.msra.mxu0 0
  %494 = vmatprep.subr.bf16.mxu0 0
  %495 = vmatpush1.bf16.msra.mxu0 0
  %496 = vmatprep.mubr.bf16.mxu0 0
  %497 = vmatmul.mubr.bf16.gmra.mrb[0].mxu0 %v408
  %v498 = vpop.f32.mrb[0].mxu0
  %v499 = vadd.f32 0.0, %v498
  %v500 = vpop.f32.mrb[0].mxu0
  %v501 = vpop.f32.mrb[0].mxu0
  %v502 = vadd.f32 0.0, %v501
  %v503 = vpop.f32.mrb[0].mxu0
  %504 = vmatprep.mubr.bf16.mxu0 0
  %505 = vmatmul.mubr.bf16.gmra.mrb[0].mxu0 %v409
  %v506 = vpop.f32.mrb[0].mxu0
  %v507 = vadd.f32 0.0, %v506
  %v508 = vpop.f32.mrb[0].mxu0
  %v509 = vpop.f32.mrb[0].mxu0
  %v510 = vadd.f32 0.0, %v509
  %v511 = vpop.f32.mrb[0].mxu0
  %512 = vmatprep.mubr.bf16.mxu0 0
  %513 = vmatmul.mubr.bf16.gmra.mrb[0].mxu0 %v410
  %v514 = vpop.f32.mrb[0].mxu0
  %v515 = vadd.f32 0.0, %v514
  %v516 = vpop.f32.mrb[0].mxu0
  %v517 = vpop.f32.mrb[0].mxu0
  %v518 = vadd.f32 0.0, %v517
  %v519 = vpop.f32.mrb[0].mxu0
  %520 = vmatprep.mubr.bf16.mxu0 0
  %521 = vmatmul.mubr.bf16.gmra.mrb[0].mxu0 %v411
  %v522 = vpop.f32.mrb[0].mxu0
  %v523 = vadd.f32 0.0, %v522
  %v524 = vpop.f32.mrb[0].mxu0
  %v525 = vpop.f32.mrb[0].mxu0
  %v526 = vadd.f32 0.0, %v525
  %v527 = vpop.f32.mrb[0].mxu0
  %528 = vmatprep.mubr.bf16.mxu0 0
  %529 = vmatmul.mubr.bf16.gmra.mrb[0].mxu0 %v412
  %v530 = vpop.f32.mrb[0].mxu0
  %v531 = vadd.f32 0.0, %v530
  %v532 = vpop.f32.mrb[0].mxu0
  %v533 = vpop.f32.mrb[0].mxu0
  %v534 = vadd.f32 0.0, %v533
  %v535 = vpop.f32.mrb[0].mxu0
  %536 = vmatprep.mubr.bf16.mxu0 0
  %537 = vmatmul.mubr.bf16.gmra.mrb[0].mxu0 %v413
  %v538 = vpop.f32.mrb[0].mxu0
  %v539 = vadd.f32 0.0, %v538
  %v540 = vpop.f32.mrb[0].mxu0
  %v541 = vpop.f32.mrb[0].mxu0
  %v542 = vadd.f32 0.0, %v541
  %v543 = vpop.f32.mrb[0].mxu0
  %544 = vmatprep.mubr.bf16.mxu0 0
  %545 = vmatmul.mubr.bf16.gmra.mrb[0].mxu0 %v414
  %v546 = vpop.f32.mrb[0].mxu0
  %v547 = vadd.f32 0.0, %v546
  %v548 = vpop.f32.mrb[0].mxu0
  %v549 = vpop.f32.mrb[0].mxu0
  %v550 = vadd.f32 0.0, %v549
  %v551 = vpop.f32.mrb[0].mxu0
  %552 = vmatprep.mubr.bf16.mxu0 0
  %553 = vmatmul.mubr.bf16.gmra.mrb[0].mxu0 %v415
  %v554 = vpop.f32.mrb[0].mxu0
  %v555 = vadd.f32 0.0, %v554
  %v556 = vpop.f32.mrb[0].mxu0
  %v557 = vpop.f32.mrb[0].mxu0
  %v558 = vadd.f32 0.0, %v557
  %v559 = vpop.f32.mrb[0].mxu0
  %560 = vdwg.mxu0
  %v561 = vld [vmem:[#allocation2] sm:$0xff]
  %v562 = vld [vmem:[#allocation2 + $0x8] sm:$0xff]
  %v563 = vld [vmem:[#allocation2 + $0x10] sm:$0xff]
  %v564 = vld [vmem:[#allocation2 + $0x18] sm:$0xff]
  %v565 = vld [vmem:[#allocation2 + $0x20] sm:$0xff]
  %v566 = vld [vmem:[#allocation2 + $0x28] sm:$0xff]
  %v567 = vld [vmem:[#allocation2 + $0x30] sm:$0xff]
  %v568 = vld [vmem:[#allocation2 + $0x38] sm:$0xff]
  %v569 = vld [vmem:[#allocation2 + $0x40] sm:$0xff]
  %v570 = vld [vmem:[#allocation2 + $0x48] sm:$0xff]
  %v571 = vld [vmem:[#allocation2 + $0x50] sm:$0xff]
  %v572 = vld [vmem:[#allocation2 + $0x58] sm:$0xff]
  %v573 = vld [vmem:[#allocation2 + $0x60] sm:$0xff]
  %v574 = vld [vmem:[#allocation2 + $0x68] sm:$0xff]
  %v575 = vld [vmem:[#allocation2 + $0x70] sm:$0xff]
  %v576 = vld [vmem:[#allocation2 + $0x78] sm:$0xff]
  %v577 = vadd.f32 %v561, %v499
  %v578 = vadd.f32 %v562, %v502
  %v579 = vadd.f32 %v563, %v507
  %v580 = vadd.f32 %v564, %v510
  %v581 = vadd.f32 %v565, %v515
  %v582 = vadd.f32 %v566, %v518
  %v583 = vadd.f32 %v567, %v523
  %v584 = vadd.f32 %v568, %v526
  %v585 = vadd.f32 %v569, %v531
  %v586 = vadd.f32 %v570, %v534
  %v587 = vadd.f32 %v571, %v539
  %v588 = vadd.f32 %v572, %v542
  %v589 = vadd.f32 %v573, %v547
  %v590 = vadd.f32 %v574, %v550
  %v591 = vadd.f32 %v575, %v555
  %v592 = vadd.f32 %v576, %v558
  %vm593 = vcmask 39936
  %594 = vst.msk [vmem:[#allocation2] sm:$0xff] %vm593, %v577
  %595 = vst.msk [vmem:[#allocation2 + $0x8] sm:$0xff] %vm593, %v578
  %596 = vst.msk [vmem:[#allocation2 + $0x10] sm:$0xff] %vm593, %v579
  %597 = vst.msk [vmem:[#allocation2 + $0x18] sm:$0xff] %vm593, %v580
  %598 = vst.msk [vmem:[#allocation2 + $0x20] sm:$0xff] %vm593, %v581
  %599 = vst.msk [vmem:[#allocation2 + $0x28] sm:$0xff] %vm593, %v582
  %600 = vst.msk [vmem:[#allocation2 + $0x30] sm:$0xff] %vm593, %v583
  %601 = vst.msk [vmem:[#allocation2 + $0x38] sm:$0xff] %vm593, %v584
  %602 = vst.msk [vmem:[#allocation2 + $0x40] sm:$0xff] %vm593, %v585
  %603 = vst.msk [vmem:[#allocation2 + $0x48] sm:$0xff] %vm593, %v586
  %604 = vst.msk [vmem:[#allocation2 + $0x50] sm:$0xff] %vm593, %v587
  %605 = vst.msk [vmem:[#allocation2 + $0x58] sm:$0xff] %vm593, %v588
  %606 = vst.msk [vmem:[#allocation2 + $0x60] sm:$0xff] %vm593, %v589
  %607 = vst.msk [vmem:[#allocation2 + $0x68] sm:$0xff] %vm593, %v590
  %608 = vst.msk [vmem:[#allocation2 + $0x70] sm:$0xff] %vm593, %v591
  %609 = vst.msk [vmem:[#allocation2 + $0x78] sm:$0xff] %vm593, %v592
  // Predicated region
  $region30: #{gat_forward.7} parent=0 // pred_check
    %p610 = pneg %p24
  $region31: #{gat_forward.7} parent=0 // pred_check_branch
    %612 = sbr.rel (%p610) target = $region33
  $region32: #{gat_forward.7} parent=0 // pred_region
    %v613 = vld [vmem:[#allocation2] sm:$0xff]
    %v614 = vld [vmem:[#allocation2 + $0x8] sm:$0xff]
    %v615 = vld [vmem:[#allocation2 + $0x10] sm:$0xff]
    %v616 = vld [vmem:[#allocation2 + $0x18] sm:$0xff]
    %v617 = vld [vmem:[#allocation2 + $0x20] sm:$0xff]
    %v618 = vld [vmem:[#allocation2 + $0x28] sm:$0xff]
    %v619 = vld [vmem:[#allocation2 + $0x30] sm:$0xff]
    %v620 = vld [vmem:[#allocation2 + $0x38] sm:$0xff]
    %v621 = vld [vmem:[#allocation2 + $0x40] sm:$0xff]
    %v622 = vld [vmem:[#allocation2 + $0x48] sm:$0xff]
    %v623 = vld [vmem:[#allocation2 + $0x50] sm:$0xff]
    %v624 = vld [vmem:[#allocation2 + $0x58] sm:$0xff]
    %v625 = vld [vmem:[#allocation2 + $0x60] sm:$0xff]
    %v626 = vld [vmem:[#allocation2 + $0x68] sm:$0xff]
    %v627 = vld [vmem:[#allocation2 + $0x70] sm:$0xff]
    %v628 = vld [vmem:[#allocation2 + $0x78] sm:$0xff]
    %v629 = vmax.f32 %v613, 1e-30
    %v630 = vmax.f32 %v614, 1e-30
    %v631 = vmax.f32 %v615, 1e-30
    %v632 = vmax.f32 %v616, 1e-30
    %v633 = vmax.f32 %v617, 1e-30
    %v634 = vmax.f32 %v618, 1e-30
    %v635 = vmax.f32 %v619, 1e-30
    %v636 = vmax.f32 %v620, 1e-30
    %v637 = vmax.f32 %v621, 1e-30
    %v638 = vmax.f32 %v622, 1e-30
    %v639 = vmax.f32 %v623, 1e-30
    %v640 = vmax.f32 %v624, 1e-30
    %v641 = vmax.f32 %v625, 1e-30
    %v642 = vmax.f32 %v626, 1e-30
    %v643 = vmax.f32 %v627, 1e-30
    %v644 = vmax.f32 %v628, 1e-30
    %v645 = vrcp.pop %v629
    %v646 = vrcp.pop %v630
    %v647 = vrcp.pop %v631
    %v648 = vrcp.pop %v632
    %v649 = vrcp.pop %v633
    %v650 = vrcp.pop %v634
    %v651 = vrcp.pop %v635
    %v652 = vrcp.pop %v636
    %v653 = vrcp.pop %v637
    %v654 = vrcp.pop %v638
    %v655 = vrcp.pop %v639
    %v656 = vrcp.pop %v640
    %v657 = vrcp.pop %v641
    %v658 = vrcp.pop %v642
    %v659 = vrcp.pop %v643
    %v660 = vrcp.pop %v644
    %662 = vset.pattern.permute.xlu0 4
    %663 = vperm.xlu0 %662, %v645
    %v664 = vpop.permute.xlu0 %663
    %667 = vset.pattern.permute.xlu0 4
    %668 = vperm.xlu0 %667, %v646
    %v669 = vpop.permute.xlu0 %668
    %672 = vset.pattern.permute.xlu0 4
    %673 = vperm.xlu0 %672, %v647
    %v674 = vpop.permute.xlu0 %673
    %677 = vset.pattern.permute.xlu0 4
    %678 = vperm.xlu0 %677, %v648
    %v679 = vpop.permute.xlu0 %678
    %682 = vset.pattern.permute.xlu0 4
    %683 = vperm.xlu0 %682, %v649
    %v684 = vpop.permute.xlu0 %683
    %687 = vset.pattern.permute.xlu0 4
    %688 = vperm.xlu0 %687, %v650
    %v689 = vpop.permute.xlu0 %688
    %692 = vset.pattern.permute.xlu0 4
    %693 = vperm.xlu0 %692, %v651
    %v694 = vpop.permute.xlu0 %693
    %697 = vset.pattern.permute.xlu0 4
    %698 = vperm.xlu0 %697, %v652
    %v699 = vpop.permute.xlu0 %698
    %702 = vset.pattern.permute.xlu0 4
    %703 = vperm.xlu0 %702, %v653
    %v704 = vpop.permute.xlu0 %703
    %707 = vset.pattern.permute.xlu0 4
    %708 = vperm.xlu0 %707, %v654
    %v709 = vpop.permute.xlu0 %708
    %712 = vset.pattern.permute.xlu0 4
    %713 = vperm.xlu0 %712, %v655
    %v714 = vpop.permute.xlu0 %713
    %717 = vset.pattern.permute.xlu0 4
    %718 = vperm.xlu0 %717, %v656
    %v719 = vpop.permute.xlu0 %718
    %722 = vset.pattern.permute.xlu0 4
    %723 = vperm.xlu0 %722, %v657
    %v724 = vpop.permute.xlu0 %723
    %727 = vset.pattern.permute.xlu0 4
    %728 = vperm.xlu0 %727, %v658
    %v729 = vpop.permute.xlu0 %728
    %732 = vset.pattern.permute.xlu0 4
    %733 = vperm.xlu0 %732, %v659
    %v734 = vpop.permute.xlu0 %733
    %737 = vset.pattern.permute.xlu0 4
    %738 = vperm.xlu0 %737, %v660
    %v739 = vpop.permute.xlu0 %738
    %v741 = vmul.f32 %v613, %v664
    %v742 = vmul.f32 %v614, %v669
    %v743 = vmul.f32 %v615, %v674
    %v744 = vmul.f32 %v616, %v679
    %v745 = vmul.f32 %v617, %v684
    %v746 = vmul.f32 %v618, %v689
    %v747 = vmul.f32 %v619, %v694
    %v748 = vmul.f32 %v620, %v699
    %v749 = vmul.f32 %v621, %v704
    %v750 = vmul.f32 %v622, %v709
    %v751 = vmul.f32 %v623, %v714
    %v752 = vmul.f32 %v624, %v719
    %v753 = vmul.f32 %v625, %v724
    %v754 = vmul.f32 %v626, %v729
    %v755 = vmul.f32 %v627, %v734
    %v756 = vmul.f32 %v628, %v739
    %v757 = vld [vmem:[%s5] sm:$0x1]
    %v759 = vlaneseq
    %v760 = vshrl.u32 %v759, 7
    %v761 = vsub.s32 0, %v760
    %v762 = vrot.slane %v757, %v761
    %v764 = vadd.f32 %v741, %v762
    %v765 = vadd.f32 %v742, %v762
    %v766 = vadd.f32 %v743, %v762
    %v767 = vadd.f32 %v744, %v762
    %v768 = vadd.f32 %v745, %v762
    %v769 = vadd.f32 %v746, %v762
    %v770 = vadd.f32 %v747, %v762
    %v771 = vadd.f32 %v748, %v762
    %v772 = vadd.f32 %v749, %v762
    %v773 = vadd.f32 %v750, %v762
    %v774 = vadd.f32 %v751, %v762
    %v775 = vadd.f32 %v752, %v762
    %v776 = vadd.f32 %v753, %v762
    %v777 = vadd.f32 %v754, %v762
    %v778 = vadd.f32 %v755, %v762
    %v779 = vadd.f32 %v756, %v762
    %vm780 = vcmask 31744
    %781 = vst.msk [vmem:[%s6] sm:$0xff] %vm780, %v764
    %782 = vst.msk [vmem:[%s6 + $0x8] sm:$0xff] %vm780, %v765
    %783 = vst.msk [vmem:[%s6 + $0x10] sm:$0xff] %vm780, %v766
    %784 = vst.msk [vmem:[%s6 + $0x18] sm:$0xff] %vm780, %v767
    %785 = vst.msk [vmem:[%s6 + $0x20] sm:$0xff] %vm780, %v768
    %786 = vst.msk [vmem:[%s6 + $0x28] sm:$0xff] %vm780, %v769
    %787 = vst.msk [vmem:[%s6 + $0x30] sm:$0xff] %vm780, %v770
    %788 = vst.msk [vmem:[%s6 + $0x38] sm:$0xff] %vm780, %v771
    %789 = vst.msk [vmem:[%s6 + $0x40] sm:$0xff] %vm780, %v772
    %790 = vst.msk [vmem:[%s6 + $0x48] sm:$0xff] %vm780, %v773
    %791 = vst.msk [vmem:[%s6 + $0x50] sm:$0xff] %vm780, %v774
    %792 = vst.msk [vmem:[%s6 + $0x58] sm:$0xff] %vm780, %v775
    %793 = vst.msk [vmem:[%s6 + $0x60] sm:$0xff] %vm780, %v776
    %794 = vst.msk [vmem:[%s6 + $0x68] sm:$0xff] %vm780, %v777
    %795 = vst.msk [vmem:[%s6 + $0x70] sm:$0xff] %vm780, %v778
    %796 = vst.msk [vmem:[%s6 + $0x78] sm:$0xff] %vm780, %v779
  $region33: #{gat_forward.7} parent=0 // pred_fallthru
    _
  // Predicated region
  $region34: #{gat_forward.7} parent=0 // pred_check
    _
  $region35: #{gat_forward.7} parent=0 // pred_check_branch
    %798 = sbr.rel (0) target = $region37
  $region36: #{gat_forward.7} parent=0 // pred_region
    _
  $region37: #{gat_forward.7} parent=0 // pred_fallthru
    _
  // Predicated region
  $region38: #{gat_forward.7} parent=0 // pred_check
    _
  $region39: #{gat_forward.7} parent=0 // pred_check_branch
    %800 = sbr.rel (0) target = $region41
  $region40: #{gat_forward.7} parent=0 // pred_region
    _
  $region41: #{gat_forward.7} parent=0 // pred_fallthru
    _

// kernel: gat_forward.5
$region0: #{gat_forward.5}
  #allocation0 [shape = 'u32[]', space=smem, size = 0x4, offset = 0x4, fixed_abs, tag = 'smem constant byte address 0x4 - core index']
  #allocation1 [shape = 'u32[144,128]{1,0:T(1,128)}', space=vmem, size = 0x12000, scoped, tag = 'internal scratch']
  #allocation2 [shape = 'f32[128,72]{1,0:T(8,128)}', space=vmem, size = 0x10000, scoped, tag = 'scratch operand']
  %s0 = inlined_call_operand.vmem [shape: s8[128,128], index: 0, kind: input, shape index: {}]
  %s1 = inlined_call_operand.vmem [shape: f32[128,8], index: 1, kind: input, shape index: {}]
  %s2 = inlined_call_operand.vmem [shape: f32[128,8], index: 2, kind: input, shape index: {}]
  %s3 = inlined_call_operand.vmem [shape: f32[8,128], index: 3, kind: input, shape index: {}]
  %s4 = inlined_call_operand.vmem [shape: bf16[128,72], index: 4, kind: input, shape index: {}]
  %s5 = inlined_call_operand.vmem [shape: f32[1,64], index: 5, kind: input, shape index: {}]
  %s6 = inlined_call_operand.vmem [shape: bf16[128,64], index: 6, kind: output, shape index: {}]
  %s7 = sld [smem:[#allocation0]]
  $region42: #{gat_forward.5} parent=0
    _
  %s9 = ssub.s32 1, %s7
  %s10 = scalar_select 0, %s9, %s7
  // Predicated region
  $region2: #{gat_forward.5} parent=0 // pred_check
    _
  $region3: #{gat_forward.5} parent=0 // pred_check_branch
    %12 = sbr.rel (0) target = $region5
  $region4: #{gat_forward.5} parent=0 // pred_region
    _
  $region5: #{gat_forward.5} parent=0 // pred_fallthru
    _
  // Predicated region
  $region6: #{gat_forward.5} parent=0 // pred_check
    _
  $region7: #{gat_forward.5} parent=0 // pred_check_branch
    %14 = sbr.rel (0) target = $region9
  $region8: #{gat_forward.5} parent=0 // pred_region
    _
  $region9: #{gat_forward.5} parent=0 // pred_fallthru
    _
  // Predicated region
  $region10: #{gat_forward.5} parent=0 // pred_check
    _
  $region11: #{gat_forward.5} parent=0 // pred_check_branch
    %16 = sbr.rel (0) target = $region13
  $region12: #{gat_forward.5} parent=0 // pred_region
    _
  $region13: #{gat_forward.5} parent=0 // pred_fallthru
    _
  // Predicated region
  $region14: #{gat_forward.5} parent=0 // pred_check
    _
  $region15: #{gat_forward.5} parent=0 // pred_check_branch
    %18 = sbr.rel (0) target = $region17
  $region16: #{gat_forward.5} parent=0 // pred_region
    _
  $region17: #{gat_forward.5} parent=0 // pred_fallthru
    _
  // Predicated region
  $region18: #{gat_forward.5} parent=0 // pred_check
    _
  $region19: #{gat_forward.5} parent=0 // pred_check_branch
    %20 = sbr.rel (0) target = $region21
  $region20: #{gat_forward.5} parent=0 // pred_region
    _
  $region21: #{gat_forward.5} parent=0 // pred_fallthru
    _
  // Predicated region
  $region22: #{gat_forward.5} parent=0 // pred_check
    _
  $region23: #{gat_forward.5} parent=0 // pred_check_branch
    %22 = sbr.rel (0) target = $region25
  $region24: #{gat_forward.5} parent=0 // pred_region
    _
  $region25: #{gat_forward.5} parent=0 // pred_fallthru
    _
  %p24 = scmp.eq.s32.totalorder 0, 0
  // Predicated region
  $region26: #{gat_forward.5} parent=0 // pred_check
    %p25 = pneg %p24
  $region27: #{gat_forward.5} parent=0 // pred_check_branch
    %27 = sbr.rel (%p25) target = $region29
  $region28: #{gat_forward.5} parent=0 // pred_region
    %vm28 = vcmask 588800
    %29 = vst.msk [vmem:[#allocation2] sm:$0xff] %vm28, 0.0
    %30 = vst.msk [vmem:[#allocation2 + $0x8] sm:$0xff] %vm28, 0.0
    %31 = vst.msk [vmem:[#allocation2 + $0x10] sm:$0xff] %vm28, 0.0
    %32 = vst.msk [vmem:[#allocation2 + $0x18] sm:$0xff] %vm28, 0.0
    %33 = vst.msk [vmem:[#allocation2 + $0x20] sm:$0xff] %vm28, 0.0
    %34 = vst.msk [vmem:[#allocation2 + $0x28] sm:$0xff] %vm28, 0.0
    %35 = vst.msk [vmem:[#allocation2 + $0x30] sm:$0xff] %vm28, 0.0
    %36 = vst.msk [vmem:[#allocation2 + $0x38] sm:$0xff] %vm28, 0.0
    %37 = vst.msk [vmem:[#allocation2 + $0x40] sm:$0xff] %vm28, 0.0
    %38 = vst.msk [vmem:[#allocation2 + $0x48] sm:$0xff] %vm28, 0.0
    %39 = vst.msk [vmem:[#allocation2 + $0x50] sm:$0xff] %vm28, 0.0
    %40 = vst.msk [vmem:[#allocation2 + $0x58] sm:$0xff] %vm28, 0.0
    %41 = vst.msk [vmem:[#allocation2 + $0x60] sm:$0xff] %vm28, 0.0
    %42 = vst.msk [vmem:[#allocation2 + $0x68] sm:$0xff] %vm28, 0.0
    %43 = vst.msk [vmem:[#allocation2 + $0x70] sm:$0xff] %vm28, 0.0
    %44 = vst.msk [vmem:[#allocation2 + $0x78] sm:$0xff] %vm28, 0.0
  $region29: #{gat_forward.5} parent=0 // pred_fallthru
    _
  %v45 = vld [vmem:[%s1] sm:$0xff]
  %v46 = vld [vmem:[%s1 + $0x8] sm:$0xff]
  %v47 = vld [vmem:[%s1 + $0x10] sm:$0xff]
  %v48 = vld [vmem:[%s1 + $0x18] sm:$0xff]
  %v49 = vld [vmem:[%s1 + $0x20] sm:$0xff]
  %v50 = vld [vmem:[%s1 + $0x28] sm:$0xff]
  %v51 = vld [vmem:[%s1 + $0x30] sm:$0xff]
  %v52 = vld [vmem:[%s1 + $0x38] sm:$0xff]
  %v53 = vld [vmem:[%s1 + $0x40] sm:$0xff]
  %v54 = vld [vmem:[%s1 + $0x48] sm:$0xff]
  %v55 = vld [vmem:[%s1 + $0x50] sm:$0xff]
  %v56 = vld [vmem:[%s1 + $0x58] sm:$0xff]
  %v57 = vld [vmem:[%s1 + $0x60] sm:$0xff]
  %v58 = vld [vmem:[%s1 + $0x68] sm:$0xff]
  %v59 = vld [vmem:[%s1 + $0x70] sm:$0xff]
  %v60 = vld [vmem:[%s1 + $0x78] sm:$0xff]
  %v61 = vld [vmem:[%s2] sm:$0xff]
  %v62 = vld [vmem:[%s2 + $0x8] sm:$0xff]
  %v63 = vld [vmem:[%s2 + $0x10] sm:$0xff]
  %v64 = vld [vmem:[%s2 + $0x18] sm:$0xff]
  %v65 = vld [vmem:[%s2 + $0x20] sm:$0xff]
  %v66 = vld [vmem:[%s2 + $0x28] sm:$0xff]
  %v67 = vld [vmem:[%s2 + $0x30] sm:$0xff]
  %v68 = vld [vmem:[%s2 + $0x38] sm:$0xff]
  %v69 = vld [vmem:[%s2 + $0x40] sm:$0xff]
  %v70 = vld [vmem:[%s2 + $0x48] sm:$0xff]
  %v71 = vld [vmem:[%s2 + $0x50] sm:$0xff]
  %v72 = vld [vmem:[%s2 + $0x58] sm:$0xff]
  %v73 = vld [vmem:[%s2 + $0x60] sm:$0xff]
  %v74 = vld [vmem:[%s2 + $0x68] sm:$0xff]
  %v75 = vld [vmem:[%s2 + $0x70] sm:$0xff]
  %v76 = vld [vmem:[%s2 + $0x78] sm:$0xff]
  %v77 = vld [vmem:[%s3] sm:$0xff]
  %v78 = vld [vmem:[%s0] sm:$0xff]
  %v79 = vld [vmem:[%s0 + $0x8] sm:$0xff]
  %v80 = vld [vmem:[%s0 + $0x10] sm:$0xff]
  %v81 = vld [vmem:[%s0 + $0x18] sm:$0xff]
  %v82 = vunpack.c.0.s8 %v78
  %v83 = vunpack.c.1.s8 %v78
  %v84 = vunpack.c.2.s8 %v78
  %v85 = vunpack.c.3.s8 %v78
  %v86 = vunpack.c.0.s8 %v79
  %v87 = vunpack.c.1.s8 %v79
  %v88 = vunpack.c.2.s8 %v79
  %v89 = vunpack.c.3.s8 %v79
  %v90 = vunpack.c.0.s8 %v80
  %v91 = vunpack.c.1.s8 %v80
  %v92 = vunpack.c.2.s8 %v80
  %v93 = vunpack.c.3.s8 %v80
  %v94 = vunpack.c.0.s8 %v81
  %v95 = vunpack.c.1.s8 %v81
  %v96 = vunpack.c.2.s8 %v81
  %v97 = vunpack.c.3.s8 %v81
  %v98 = vcvt.s32.f32 %v82
  %v99 = vcvt.s32.f32 %v83
  %v100 = vcvt.s32.f32 %v84
  %v101 = vcvt.s32.f32 %v85
  %v102 = vcvt.s32.f32 %v86
  %v103 = vcvt.s32.f32 %v87
  %v104 = vcvt.s32.f32 %v88
  %v105 = vcvt.s32.f32 %v89
  %v106 = vcvt.s32.f32 %v90
  %v107 = vcvt.s32.f32 %v91
  %v108 = vcvt.s32.f32 %v92
  %v109 = vcvt.s32.f32 %v93
  %v110 = vcvt.s32.f32 %v94
  %v111 = vcvt.s32.f32 %v95
  %v112 = vcvt.s32.f32 %v96
  %v113 = vcvt.s32.f32 %v97
  %v114 = vld [vmem:[%s4] sm:$0xf]
  %v115 = vld [vmem:[%s4 + $0x4] sm:$0xf]
  %v116 = vld [vmem:[%s4 + $0x8] sm:$0xf]
  %v117 = vld [vmem:[%s4 + $0xc] sm:$0xf]
  %v118 = vld [vmem:[%s4 + $0x10] sm:$0xf]
  %v119 = vld [vmem:[%s4 + $0x14] sm:$0xf]
  %v120 = vld [vmem:[%s4 + $0x18] sm:$0xf]
  %v121 = vld [vmem:[%s4 + $0x1c] sm:$0xf]
  %v122 = vld [vmem:[%s4 + $0x20] sm:$0xf]
  %v123 = vld [vmem:[%s4 + $0x24] sm:$0xf]
  %v124 = vld [vmem:[%s4 + $0x28] sm:$0xf]
  %v125 = vld [vmem:[%s4 + $0x2c] sm:$0xf]
  %v126 = vld [vmem:[%s4 + $0x30] sm:$0xf]
  %v127 = vld [vmem:[%s4 + $0x34] sm:$0xf]
  %v128 = vld [vmem:[%s4 + $0x38] sm:$0xf]
  %v129 = vld [vmem:[%s4 + $0x3c] sm:$0xf]
  %131 = vset.pattern.permute.xlu0 0
  %132 = vperm.xlu0 %131, %v45
  %v133 = vpop.permute.xlu0 %132
  %136 = vset.pattern.permute.xlu0 0
  %137 = vperm.xlu0 %136, %v46
  %v138 = vpop.permute.xlu0 %137
  %141 = vset.pattern.permute.xlu0 0
  %142 = vperm.xlu0 %141, %v47
  %v143 = vpop.permute.xlu0 %142
  %146 = vset.pattern.permute.xlu0 0
  %147 = vperm.xlu0 %146, %v48
  %v148 = vpop.permute.xlu0 %147
  %151 = vset.pattern.permute.xlu0 0
  %152 = vperm.xlu0 %151, %v49
  %v153 = vpop.permute.xlu0 %152
  %156 = vset.pattern.permute.xlu0 0
  %157 = vperm.xlu0 %156, %v50
  %v158 = vpop.permute.xlu0 %157
  %161 = vset.pattern.permute.xlu0 0
  %162 = vperm.xlu0 %161, %v51
  %v163 = vpop.permute.xlu0 %162
  %166 = vset.pattern.permute.xlu0 0
  %167 = vperm.xlu0 %166, %v52
  %v168 = vpop.permute.xlu0 %167
  %171 = vset.pattern.permute.xlu0 0
  %172 = vperm.xlu0 %171, %v53
  %v173 = vpop.permute.xlu0 %172
  %176 = vset.pattern.permute.xlu0 0
  %177 = vperm.xlu0 %176, %v54
  %v178 = vpop.permute.xlu0 %177
  %181 = vset.pattern.permute.xlu0 0
  %182 = vperm.xlu0 %181, %v55
  %v183 = vpop.permute.xlu0 %182
  %186 = vset.pattern.permute.xlu0 0
  %187 = vperm.xlu0 %186, %v56
  %v188 = vpop.permute.xlu0 %187
  %191 = vset.pattern.permute.xlu0 0
  %192 = vperm.xlu0 %191, %v57
  %v193 = vpop.permute.xlu0 %192
  %196 = vset.pattern.permute.xlu0 0
  %197 = vperm.xlu0 %196, %v58
  %v198 = vpop.permute.xlu0 %197
  %201 = vset.pattern.permute.xlu0 0
  %202 = vperm.xlu0 %201, %v59
  %v203 = vpop.permute.xlu0 %202
  %206 = vset.pattern.permute.xlu0 0
  %207 = vperm.xlu0 %206, %v60
  %v208 = vpop.permute.xlu0 %207
  %v210 = vlaneseq
  %v211 = vshrl.u32 %v210, 7
  %v212 = vsub.s32 0, %v211
  %v213 = vrot.slane %v77, %v212
  %v214 = vadd.f32 %v133, %v213
  %v215 = vadd.f32 %v138, %v213
  %v216 = vadd.f32 %v143, %v213
  %v217 = vadd.f32 %v148, %v213
  %v218 = vadd.f32 %v153, %v213
  %v219 = vadd.f32 %v158, %v213
  %v220 = vadd.f32 %v163, %v213
  %v221 = vadd.f32 %v168, %v213
  %v222 = vadd.f32 %v173, %v213
  %v223 = vadd.f32 %v178, %v213
  %v224 = vadd.f32 %v183, %v213
  %v225 = vadd.f32 %v188, %v213
  %v226 = vadd.f32 %v193, %v213
  %v227 = vadd.f32 %v198, %v213
  %v228 = vadd.f32 %v203, %v213
  %v229 = vadd.f32 %v208, %v213
  %v230 = vmul.f32 %v214, 0.2
  %v231 = vmul.f32 %v215, 0.2
  %v232 = vmul.f32 %v216, 0.2
  %v233 = vmul.f32 %v217, 0.2
  %v234 = vmul.f32 %v218, 0.2
  %v235 = vmul.f32 %v219, 0.2
  %v236 = vmul.f32 %v220, 0.2
  %v237 = vmul.f32 %v221, 0.2
  %v238 = vmul.f32 %v222, 0.2
  %v239 = vmul.f32 %v223, 0.2
  %v240 = vmul.f32 %v224, 0.2
  %v241 = vmul.f32 %v225, 0.2
  %v242 = vmul.f32 %v226, 0.2
  %v243 = vmul.f32 %v227, 0.2
  %v244 = vmul.f32 %v228, 0.2
  %v245 = vmul.f32 %v229, 0.2
  %v246 = vmax.f32 %v214, %v230
  %v247 = vmax.f32 %v215, %v231
  %v248 = vmax.f32 %v216, %v232
  %v249 = vmax.f32 %v217, %v233
  %v250 = vmax.f32 %v218, %v234
  %v251 = vmax.f32 %v219, %v235
  %v252 = vmax.f32 %v220, %v236
  %v253 = vmax.f32 %v221, %v237
  %v254 = vmax.f32 %v222, %v238
  %v255 = vmax.f32 %v223, %v239
  %v256 = vmax.f32 %v224, %v240
  %v257 = vmax.f32 %v225, %v241
  %v258 = vmax.f32 %v226, %v242
  %v259 = vmax.f32 %v227, %v243
  %v260 = vmax.f32 %v228, %v244
  %v261 = vmax.f32 %v229, %v245
  %263 = vset.pattern.permute.xlu0 0
  %264 = vperm.xlu0 %263, %v61
  %v265 = vpop.permute.xlu0 %264
  %268 = vset.pattern.permute.xlu0 0
  %269 = vperm.xlu0 %268, %v62
  %v270 = vpop.permute.xlu0 %269
  %273 = vset.pattern.permute.xlu0 0
  %274 = vperm.xlu0 %273, %v63
  %v275 = vpop.permute.xlu0 %274
  %278 = vset.pattern.permute.xlu0 0
  %279 = vperm.xlu0 %278, %v64
  %v280 = vpop.permute.xlu0 %279
  %283 = vset.pattern.permute.xlu0 0
  %284 = vperm.xlu0 %283, %v65
  %v285 = vpop.permute.xlu0 %284
  %288 = vset.pattern.permute.xlu0 0
  %289 = vperm.xlu0 %288, %v66
  %v290 = vpop.permute.xlu0 %289
  %293 = vset.pattern.permute.xlu0 0
  %294 = vperm.xlu0 %293, %v67
  %v295 = vpop.permute.xlu0 %294
  %298 = vset.pattern.permute.xlu0 0
  %299 = vperm.xlu0 %298, %v68
  %v300 = vpop.permute.xlu0 %299
  %303 = vset.pattern.permute.xlu0 0
  %304 = vperm.xlu0 %303, %v69
  %v305 = vpop.permute.xlu0 %304
  %308 = vset.pattern.permute.xlu0 0
  %309 = vperm.xlu0 %308, %v70
  %v310 = vpop.permute.xlu0 %309
  %313 = vset.pattern.permute.xlu0 0
  %314 = vperm.xlu0 %313, %v71
  %v315 = vpop.permute.xlu0 %314
  %318 = vset.pattern.permute.xlu0 0
  %319 = vperm.xlu0 %318, %v72
  %v320 = vpop.permute.xlu0 %319
  %323 = vset.pattern.permute.xlu0 0
  %324 = vperm.xlu0 %323, %v73
  %v325 = vpop.permute.xlu0 %324
  %328 = vset.pattern.permute.xlu0 0
  %329 = vperm.xlu0 %328, %v74
  %v330 = vpop.permute.xlu0 %329
  %333 = vset.pattern.permute.xlu0 0
  %334 = vperm.xlu0 %333, %v75
  %v335 = vpop.permute.xlu0 %334
  %338 = vset.pattern.permute.xlu0 0
  %339 = vperm.xlu0 %338, %v76
  %v340 = vpop.permute.xlu0 %339
  %v342 = vsub.f32 %v246, %v265
  %v343 = vsub.f32 %v247, %v270
  %v344 = vsub.f32 %v248, %v275
  %v345 = vsub.f32 %v249, %v280
  %v346 = vsub.f32 %v250, %v285
  %v347 = vsub.f32 %v251, %v290
  %v348 = vsub.f32 %v252, %v295
  %v349 = vsub.f32 %v253, %v300
  %v350 = vsub.f32 %v254, %v305
  %v351 = vsub.f32 %v255, %v310
  %v352 = vsub.f32 %v256, %v315
  %v353 = vsub.f32 %v257, %v320
  %v354 = vsub.f32 %v258, %v325
  %v355 = vsub.f32 %v259, %v330
  %v356 = vsub.f32 %v260, %v335
  %v357 = vsub.f32 %v261, %v340
  %v358 = vmul.f32 %v342, 1.442695
  %v359 = vpow.pop %v358
  %v360 = vmul.f32 %v343, 1.442695
  %v361 = vpow.pop %v360
  %v362 = vmul.f32 %v344, 1.442695
  %v363 = vpow.pop %v362
  %v364 = vmul.f32 %v345, 1.442695
  %v365 = vpow.pop %v364
  %v366 = vmul.f32 %v346, 1.442695
  %v367 = vpow.pop %v366
  %v368 = vmul.f32 %v347, 1.442695
  %v369 = vpow.pop %v368
  %v370 = vmul.f32 %v348, 1.442695
  %v371 = vpow.pop %v370
  %v372 = vmul.f32 %v349, 1.442695
  %v373 = vpow.pop %v372
  %v374 = vmul.f32 %v350, 1.442695
  %v375 = vpow.pop %v374
  %v376 = vmul.f32 %v351, 1.442695
  %v377 = vpow.pop %v376
  %v378 = vmul.f32 %v352, 1.442695
  %v379 = vpow.pop %v378
  %v380 = vmul.f32 %v353, 1.442695
  %v381 = vpow.pop %v380
  %v382 = vmul.f32 %v354, 1.442695
  %v383 = vpow.pop %v382
  %v384 = vmul.f32 %v355, 1.442695
  %v385 = vpow.pop %v384
  %v386 = vmul.f32 %v356, 1.442695
  %v387 = vpow.pop %v386
  %v388 = vmul.f32 %v357, 1.442695
  %v389 = vpow.pop %v388
  %v390 = vmul.f32 %v359, %v98
  %v391 = vmul.f32 %v361, %v99
  %v392 = vmul.f32 %v363, %v100
  %v393 = vmul.f32 %v365, %v101
  %v394 = vmul.f32 %v367, %v102
  %v395 = vmul.f32 %v369, %v103
  %v396 = vmul.f32 %v371, %v104
  %v397 = vmul.f32 %v373, %v105
  %v398 = vmul.f32 %v375, %v106
  %v399 = vmul.f32 %v377, %v107
  %v400 = vmul.f32 %v379, %v108
  %v401 = vmul.f32 %v381, %v109
  %v402 = vmul.f32 %v383, %v110
  %v403 = vmul.f32 %v385, %v111
  %v404 = vmul.f32 %v387, %v112
  %v405 = vmul.f32 %v389, %v113
  %v406 = vpack.c.bf16 %v391, %v390
  %v407 = vpack.c.bf16 %v393, %v392
  %v408 = vpack.c.bf16 %v395, %v394
  %v409 = vpack.c.bf16 %v397, %v396
  %v410 = vpack.c.bf16 %v399, %v398
  %v411 = vpack.c.bf16 %v401, %v400
  %v412 = vpack.c.bf16 %v403, %v402
  %v413 = vpack.c.bf16 %v405, %v404
  %v430 = vunpack.c.l.b16 %v114
  %v431 = vunpack.c.l.b16 %v115
  %v432 = vunpack.c.l.b16 %v116
  %v433 = vunpack.c.l.b16 %v117
  %v434 = vunpack.c.l.b16 %v118
  %v435 = vunpack.c.l.b16 %v119
  %v436 = vunpack.c.l.b16 %v120
  %v437 = vunpack.c.l.b16 %v121
  %v438 = vunpack.c.l.b16 %v122
  %v439 = vunpack.c.l.b16 %v123
  %v440 = vunpack.c.l.b16 %v124
  %v441 = vunpack.c.l.b16 %v125
  %v442 = vunpack.c.l.b16 %v126
  %v443 = vunpack.c.l.b16 %v127
  %v444 = vunpack.c.l.b16 %v128
  %v445 = vunpack.c.l.b16 %v129
  %v446 = vpack.c.b16 %v431, %v430
  %v447 = vpack.c.b16 %v433, %v432
  %v448 = vpack.c.b16 %v435, %v434
  %v449 = vpack.c.b16 %v437, %v436
  %v450 = vpack.c.b16 %v439, %v438
  %v451 = vpack.c.b16 %v441, %v440
  %v452 = vpack.c.b16 %v443, %v442
  %v453 = vpack.c.b16 %v445, %v444
  %462 = vmatprep.subr.bf16.mxu0 0
  %463 = vmatpush1.bf16.msra.mxu0 %v446
  %464 = vmatprep.subr.bf16.mxu0 0
  %465 = vmatpush1.bf16.msra.mxu0 %v447
  %466 = vmatprep.subr.bf16.mxu0 0
  %467 = vmatpush1.bf16.msra.mxu0 %v448
  %468 = vmatprep.subr.bf16.mxu0 0
  %469 = vmatpush1.bf16.msra.mxu0 %v449
  %470 = vmatprep.subr.bf16.mxu0 0
  %471 = vmatpush1.bf16.msra.mxu0 %v450
  %472 = vmatprep.subr.bf16.mxu0 0
  %473 = vmatpush1.bf16.msra.mxu0 %v451
  %474 = vmatprep.subr.bf16.mxu0 0
  %475 = vmatpush1.bf16.msra.mxu0 %v452
  %476 = vmatprep.subr.bf16.mxu0 0
  %477 = vmatpush1.bf16.msra.mxu0 %v453
  %478 = vmatprep.subr.bf16.mxu0 0
  %479 = vmatpush1.bf16.msra.mxu0 0
  %480 = vmatprep.subr.bf16.mxu0 0
  %481 = vmatpush1.bf16.msra.mxu0 0
  %482 = vmatprep.subr.bf16.mxu0 0
  %483 = vmatpush1.bf16.msra.mxu0 0
  %484 = vmatprep.subr.bf16.mxu0 0
  %485 = vmatpush1.bf16.msra.mxu0 0
  %486 = vmatprep.subr.bf16.mxu0 0
  %487 = vmatpush1.bf16.msra.mxu0 0
  %488 = vmatprep.subr.bf16.mxu0 0
  %489 = vmatpush1.bf16.msra.mxu0 0
  %490 = vmatprep.subr.bf16.mxu0 0
  %491 = vmatpush1.bf16.msra.mxu0 0
  %492 = vmatprep.subr.bf16.mxu0 0
  %493 = vmatpush1.bf16.msra.mxu0 0
  %494 = vmatprep.mubr.bf16.mxu0 0
  %495 = vmatmul.mubr.bf16.gmra.mrb[0].mxu0 %v406
  %v496 = vpop.f32.mrb[0].mxu0
  %v497 = vadd.f32 0.0, %v496
  %v498 = vpop.f32.mrb[0].mxu0
  %v499 = vpop.f32.mrb[0].mxu0
  %v500 = vadd.f32 0.0, %v499
  %v501 = vpop.f32.mrb[0].mxu0
  %502 = vmatprep.mubr.bf16.mxu0 0
  %503 = vmatmul.mubr.bf16.gmra.mrb[0].mxu0 %v407
  %v504 = vpop.f32.mrb[0].mxu0
  %v505 = vadd.f32 0.0, %v504
  %v506 = vpop.f32.mrb[0].mxu0
  %v507 = vpop.f32.mrb[0].mxu0
  %v508 = vadd.f32 0.0, %v507
  %v509 = vpop.f32.mrb[0].mxu0
  %510 = vmatprep.mubr.bf16.mxu0 0
  %511 = vmatmul.mubr.bf16.gmra.mrb[0].mxu0 %v408
  %v512 = vpop.f32.mrb[0].mxu0
  %v513 = vadd.f32 0.0, %v512
  %v514 = vpop.f32.mrb[0].mxu0
  %v515 = vpop.f32.mrb[0].mxu0
  %v516 = vadd.f32 0.0, %v515
  %v517 = vpop.f32.mrb[0].mxu0
  %518 = vmatprep.mubr.bf16.mxu0 0
  %519 = vmatmul.mubr.bf16.gmra.mrb[0].mxu0 %v409
  %v520 = vpop.f32.mrb[0].mxu0
  %v521 = vadd.f32 0.0, %v520
  %v522 = vpop.f32.mrb[0].mxu0
  %v523 = vpop.f32.mrb[0].mxu0
  %v524 = vadd.f32 0.0, %v523
  %v525 = vpop.f32.mrb[0].mxu0
  %526 = vmatprep.mubr.bf16.mxu0 0
  %527 = vmatmul.mubr.bf16.gmra.mrb[0].mxu0 %v410
  %v528 = vpop.f32.mrb[0].mxu0
  %v529 = vadd.f32 0.0, %v528
  %v530 = vpop.f32.mrb[0].mxu0
  %v531 = vpop.f32.mrb[0].mxu0
  %v532 = vadd.f32 0.0, %v531
  %v533 = vpop.f32.mrb[0].mxu0
  %534 = vmatprep.mubr.bf16.mxu0 0
  %535 = vmatmul.mubr.bf16.gmra.mrb[0].mxu0 %v411
  %v536 = vpop.f32.mrb[0].mxu0
  %v537 = vadd.f32 0.0, %v536
  %v538 = vpop.f32.mrb[0].mxu0
  %v539 = vpop.f32.mrb[0].mxu0
  %v540 = vadd.f32 0.0, %v539
  %v541 = vpop.f32.mrb[0].mxu0
  %542 = vmatprep.mubr.bf16.mxu0 0
  %543 = vmatmul.mubr.bf16.gmra.mrb[0].mxu0 %v412
  %v544 = vpop.f32.mrb[0].mxu0
  %v545 = vadd.f32 0.0, %v544
  %v546 = vpop.f32.mrb[0].mxu0
  %v547 = vpop.f32.mrb[0].mxu0
  %v548 = vadd.f32 0.0, %v547
  %v549 = vpop.f32.mrb[0].mxu0
  %550 = vmatprep.mubr.bf16.mxu0 0
  %551 = vmatmul.mubr.bf16.gmra.mrb[0].mxu0 %v413
  %v552 = vpop.f32.mrb[0].mxu0
  %v553 = vadd.f32 0.0, %v552
  %v554 = vpop.f32.mrb[0].mxu0
  %v555 = vpop.f32.mrb[0].mxu0
  %v556 = vadd.f32 0.0, %v555
  %v557 = vpop.f32.mrb[0].mxu0
  %558 = vdwg.mxu0
  %559 = vset.pattern.permute.xlu0 1
  %560 = vperm.xlu0 %559, %v45
  %v561 = vpop.permute.xlu0 %560
  %563 = vset.pattern.permute.xlu0 1
  %564 = vperm.xlu0 %563, %v46
  %v565 = vpop.permute.xlu0 %564
  %567 = vset.pattern.permute.xlu0 1
  %568 = vperm.xlu0 %567, %v47
  %v569 = vpop.permute.xlu0 %568
  %571 = vset.pattern.permute.xlu0 1
  %572 = vperm.xlu0 %571, %v48
  %v573 = vpop.permute.xlu0 %572
  %575 = vset.pattern.permute.xlu0 1
  %576 = vperm.xlu0 %575, %v49
  %v577 = vpop.permute.xlu0 %576
  %579 = vset.pattern.permute.xlu0 1
  %580 = vperm.xlu0 %579, %v50
  %v581 = vpop.permute.xlu0 %580
  %583 = vset.pattern.permute.xlu0 1
  %584 = vperm.xlu0 %583, %v51
  %v585 = vpop.permute.xlu0 %584
  %587 = vset.pattern.permute.xlu0 1
  %588 = vperm.xlu0 %587, %v52
  %v589 = vpop.permute.xlu0 %588
  %591 = vset.pattern.permute.xlu0 1
  %592 = vperm.xlu0 %591, %v53
  %v593 = vpop.permute.xlu0 %592
  %595 = vset.pattern.permute.xlu0 1
  %596 = vperm.xlu0 %595, %v54
  %v597 = vpop.permute.xlu0 %596
  %599 = vset.pattern.permute.xlu0 1
  %600 = vperm.xlu0 %599, %v55
  %v601 = vpop.permute.xlu0 %600
  %603 = vset.pattern.permute.xlu0 1
  %604 = vperm.xlu0 %603, %v56
  %v605 = vpop.permute.xlu0 %604
  %607 = vset.pattern.permute.xlu0 1
  %608 = vperm.xlu0 %607, %v57
  %v609 = vpop.permute.xlu0 %608
  %611 = vset.pattern.permute.xlu0 1
  %612 = vperm.xlu0 %611, %v58
  %v613 = vpop.permute.xlu0 %612
  %615 = vset.pattern.permute.xlu0 1
  %616 = vperm.xlu0 %615, %v59
  %v617 = vpop.permute.xlu0 %616
  %619 = vset.pattern.permute.xlu0 1
  %620 = vperm.xlu0 %619, %v60
  %v621 = vpop.permute.xlu0 %620
  %v623 = vlaneseq
  %v624 = vshrl.u32 %v623, 7
  %v625 = vsub.s32 1, %v624
  %v626 = vrot.slane %v77, %v625
  %v627 = vadd.f32 %v561, %v626
  %v628 = vadd.f32 %v565, %v626
  %v629 = vadd.f32 %v569, %v626
  %v630 = vadd.f32 %v573, %v626
  %v631 = vadd.f32 %v577, %v626
  %v632 = vadd.f32 %v581, %v626
  %v633 = vadd.f32 %v585, %v626
  %v634 = vadd.f32 %v589, %v626
  %v635 = vadd.f32 %v593, %v626
  %v636 = vadd.f32 %v597, %v626
  %v637 = vadd.f32 %v601, %v626
  %v638 = vadd.f32 %v605, %v626
  %v639 = vadd.f32 %v609, %v626
  %v640 = vadd.f32 %v613, %v626
  %v641 = vadd.f32 %v617, %v626
  %v642 = vadd.f32 %v621, %v626
  %v643 = vmul.f32 %v627, 0.2
  %v644 = vmul.f32 %v628, 0.2
  %v645 = vmul.f32 %v629, 0.2
  %v646 = vmul.f32 %v630, 0.2
  %v647 = vmul.f32 %v631, 0.2
  %v648 = vmul.f32 %v632, 0.2
  %v649 = vmul.f32 %v633, 0.2
  %v650 = vmul.f32 %v634, 0.2
  %v651 = vmul.f32 %v635, 0.2
  %v652 = vmul.f32 %v636, 0.2
  %v653 = vmul.f32 %v637, 0.2
  %v654 = vmul.f32 %v638, 0.2
  %v655 = vmul.f32 %v639, 0.2
  %v656 = vmul.f32 %v640, 0.2
  %v657 = vmul.f32 %v641, 0.2
  %v658 = vmul.f32 %v642, 0.2
  %v659 = vmax.f32 %v627, %v643
  %v660 = vmax.f32 %v628, %v644
  %v661 = vmax.f32 %v629, %v645
  %v662 = vmax.f32 %v630, %v646
  %v663 = vmax.f32 %v631, %v647
  %v664 = vmax.f32 %v632, %v648
  %v665 = vmax.f32 %v633, %v649
  %v666 = vmax.f32 %v634, %v650
  %v667 = vmax.f32 %v635, %v651
  %v668 = vmax.f32 %v636, %v652
  %v669 = vmax.f32 %v637, %v653
  %v670 = vmax.f32 %v638, %v654
  %v671 = vmax.f32 %v639, %v655
  %v672 = vmax.f32 %v640, %v656
  %v673 = vmax.f32 %v641, %v657
  %v674 = vmax.f32 %v642, %v658
  %675 = vset.pattern.permute.xlu0 1
  %676 = vperm.xlu0 %675, %v61
  %v677 = vpop.permute.xlu0 %676
  %679 = vset.pattern.permute.xlu0 1
  %680 = vperm.xlu0 %679, %v62
  %v681 = vpop.permute.xlu0 %680
  %683 = vset.pattern.permute.xlu0 1
  %684 = vperm.xlu0 %683, %v63
  %v685 = vpop.permute.xlu0 %684
  %687 = vset.pattern.permute.xlu0 1
  %688 = vperm.xlu0 %687, %v64
  %v689 = vpop.permute.xlu0 %688
  %691 = vset.pattern.permute.xlu0 1
  %692 = vperm.xlu0 %691, %v65
  %v693 = vpop.permute.xlu0 %692
  %695 = vset.pattern.permute.xlu0 1
  %696 = vperm.xlu0 %695, %v66
  %v697 = vpop.permute.xlu0 %696
  %699 = vset.pattern.permute.xlu0 1
  %700 = vperm.xlu0 %699, %v67
  %v701 = vpop.permute.xlu0 %700
  %703 = vset.pattern.permute.xlu0 1
  %704 = vperm.xlu0 %703, %v68
  %v705 = vpop.permute.xlu0 %704
  %707 = vset.pattern.permute.xlu0 1
  %708 = vperm.xlu0 %707, %v69
  %v709 = vpop.permute.xlu0 %708
  %711 = vset.pattern.permute.xlu0 1
  %712 = vperm.xlu0 %711, %v70
  %v713 = vpop.permute.xlu0 %712
  %715 = vset.pattern.permute.xlu0 1
  %716 = vperm.xlu0 %715, %v71
  %v717 = vpop.permute.xlu0 %716
  %719 = vset.pattern.permute.xlu0 1
  %720 = vperm.xlu0 %719, %v72
  %v721 = vpop.permute.xlu0 %720
  %723 = vset.pattern.permute.xlu0 1
  %724 = vperm.xlu0 %723, %v73
  %v725 = vpop.permute.xlu0 %724
  %727 = vset.pattern.permute.xlu0 1
  %728 = vperm.xlu0 %727, %v74
  %v729 = vpop.permute.xlu0 %728
  %731 = vset.pattern.permute.xlu0 1
  %732 = vperm.xlu0 %731, %v75
  %v733 = vpop.permute.xlu0 %732
  %735 = vset.pattern.permute.xlu0 1
  %736 = vperm.xlu0 %735, %v76
  %v737 = vpop.permute.xlu0 %736
  %v739 = vsub.f32 %v659, %v677
  %v740 = vsub.f32 %v660, %v681
  %v741 = vsub.f32 %v661, %v685
  %v742 = vsub.f32 %v662, %v689
  %v743 = vsub.f32 %v663, %v693
  %v744 = vsub.f32 %v664, %v697
  %v745 = vsub.f32 %v665, %v701
  %v746 = vsub.f32 %v666, %v705
  %v747 = vsub.f32 %v667, %v709
  %v748 = vsub.f32 %v668, %v713
  %v749 = vsub.f32 %v669, %v717
  %v750 = vsub.f32 %v670, %v721
  %v751 = vsub.f32 %v671, %v725
  %v752 = vsub.f32 %v672, %v729
  %v753 = vsub.f32 %v673, %v733
  %v754 = vsub.f32 %v674, %v737
  %v755 = vmul.f32 %v739, 1.442695
  %v756 = vpow.pop %v755
  %v757 = vmul.f32 %v740, 1.442695
  %v758 = vpow.pop %v757
  %v759 = vmul.f32 %v741, 1.442695
  %v760 = vpow.pop %v759
  %v761 = vmul.f32 %v742, 1.442695
  %v762 = vpow.pop %v761
  %v763 = vmul.f32 %v743, 1.442695
  %v764 = vpow.pop %v763
  %v765 = vmul.f32 %v744, 1.442695
  %v766 = vpow.pop %v765
  %v767 = vmul.f32 %v745, 1.442695
  %v768 = vpow.pop %v767
  %v769 = vmul.f32 %v746, 1.442695
  %v770 = vpow.pop %v769
  %v771 = vmul.f32 %v747, 1.442695
  %v772 = vpow.pop %v771
  %v773 = vmul.f32 %v748, 1.442695
  %v774 = vpow.pop %v773
  %v775 = vmul.f32 %v749, 1.442695
  %v776 = vpow.pop %v775
  %v777 = vmul.f32 %v750, 1.442695
  %v778 = vpow.pop %v777
  %v779 = vmul.f32 %v751, 1.442695
  %v780 = vpow.pop %v779
  %v781 = vmul.f32 %v752, 1.442695
  %v782 = vpow.pop %v781
  %v783 = vmul.f32 %v753, 1.442695
  %v784 = vpow.pop %v783
  %v785 = vmul.f32 %v754, 1.442695
  %v786 = vpow.pop %v785
  %v787 = vmul.f32 %v756, %v98
  %v788 = vmul.f32 %v758, %v99
  %v789 = vmul.f32 %v760, %v100
  %v790 = vmul.f32 %v762, %v101
  %v791 = vmul.f32 %v764, %v102
  %v792 = vmul.f32 %v766, %v103
  %v793 = vmul.f32 %v768, %v104
  %v794 = vmul.f32 %v770, %v105
  %v795 = vmul.f32 %v772, %v106
  %v796 = vmul.f32 %v774, %v107
  %v797 = vmul.f32 %v776, %v108
  %v798 = vmul.f32 %v778, %v109
  %v799 = vmul.f32 %v780, %v110
  %v800 = vmul.f32 %v782, %v111
  %v801 = vmul.f32 %v784, %v112
  %v802 = vmul.f32 %v786, %v113
  %v803 = vpack.c.bf16 %v788, %v787
  %v804 = vpack.c.bf16 %v790, %v789
  %v805 = vpack.c.bf16 %v792, %v791
  %v806 = vpack.c.bf16 %v794, %v793
  %v807 = vpack.c.bf16 %v796, %v795
  %v808 = vpack.c.bf16 %v798, %v797
  %v809 = vpack.c.bf16 %v800, %v799
  %v810 = vpack.c.bf16 %v802, %v801
  %811 = vrot.lane.b32.xlu0 %v446, 119
  %v812 = vpop.permute.xlu0 %811
  %813 = vrot.lane.b32.xlu0 %v447, 119
  %v814 = vpop.permute.xlu0 %813
  %815 = vrot.lane.b32.xlu0 %v448, 119
  %v816 = vpop.permute.xlu0 %815
  %817 = vrot.lane.b32.xlu0 %v449, 119
  %v818 = vpop.permute.xlu0 %817
  %819 = vrot.lane.b32.xlu0 %v450, 119
  %v820 = vpop.permute.xlu0 %819
  %821 = vrot.lane.b32.xlu0 %v451, 119
  %v822 = vpop.permute.xlu0 %821
  %823 = vrot.lane.b32.xlu0 %v452, 119
  %v824 = vpop.permute.xlu0 %823
  %825 = vrot.lane.b32.xlu0 %v453, 119
  %v826 = vpop.permute.xlu0 %825
  %835 = vmatprep.subr.bf16.mxu0 0
  %836 = vmatpush1.bf16.msra.mxu0 %v812
  %837 = vmatprep.subr.bf16.mxu0 0
  %838 = vmatpush1.bf16.msra.mxu0 %v814
  %839 = vmatprep.subr.bf16.mxu0 0
  %840 = vmatpush1.bf16.msra.mxu0 %v816
  %841 = vmatprep.subr.bf16.mxu0 0
  %842 = vmatpush1.bf16.msra.mxu0 %v818
  %843 = vmatprep.subr.bf16.mxu0 0
  %844 = vmatpush1.bf16.msra.mxu0 %v820
  %845 = vmatprep.subr.bf16.mxu0 0
  %846 = vmatpush1.bf16.msra.mxu0 %v822
  %847 = vmatprep.subr.bf16.mxu0 0
  %848 = vmatpush1.bf16.msra.mxu0 %v824
  %849 = vmatprep.subr.bf16.mxu0 0
  %850 = vmatpush1.bf16.msra.mxu0 %v826
  %851 = vmatprep.subr.bf16.mxu0 0
  %852 = vmatpush1.bf16.msra.mxu0 0
  %853 = vmatprep.subr.bf16.mxu0 0
  %854 = vmatpush1.bf16.msra.mxu0 0
  %855 = vmatprep.subr.bf16.mxu0 0
  %856 = vmatpush1.bf16.msra.mxu0 0
  %857 = vmatprep.subr.bf16.mxu0 0
  %858 = vmatpush1.bf16.msra.mxu0 0
  %859 = vmatprep.subr.bf16.mxu0 0
  %860 = vmatpush1.bf16.msra.mxu0 0
  %861 = vmatprep.subr.bf16.mxu0 0
  %862 = vmatpush1.bf16.msra.mxu0 0
  %863 = vmatprep.subr.bf16.mxu0 0
  %864 = vmatpush1.bf16.msra.mxu0 0
  %865 = vmatprep.subr.bf16.mxu0 0
  %866 = vmatpush1.bf16.msra.mxu0 0
  %867 = vmatprep.mubr.bf16.mxu0 0
  %868 = vmatmul.mubr.bf16.gmra.mrb[0].mxu0 %v803
  %v869 = vpop.f32.mrb[0].mxu0
  %v870 = vadd.f32 0.0, %v869
  %v871 = vpop.f32.mrb[0].mxu0
  %v872 = vpop.f32.mrb[0].mxu0
  %v873 = vadd.f32 0.0, %v872
  %v874 = vpop.f32.mrb[0].mxu0
  %875 = vmatprep.mubr.bf16.mxu0 0
  %876 = vmatmul.mubr.bf16.gmra.mrb[0].mxu0 %v804
  %v877 = vpop.f32.mrb[0].mxu0
  %v878 = vadd.f32 0.0, %v877
  %v879 = vpop.f32.mrb[0].mxu0
  %v880 = vpop.f32.mrb[0].mxu0
  %v881 = vadd.f32 0.0, %v880
  %v882 = vpop.f32.mrb[0].mxu0
  %883 = vmatprep.mubr.bf16.mxu0 0
  %884 = vmatmul.mubr.bf16.gmra.mrb[0].mxu0 %v805
  %v885 = vpop.f32.mrb[0].mxu0
  %v886 = vadd.f32 0.0, %v885
  %v887 = vpop.f32.mrb[0].mxu0
  %v888 = vpop.f32.mrb[0].mxu0
  %v889 = vadd.f32 0.0, %v888
  %v890 = vpop.f32.mrb[0].mxu0
  %891 = vmatprep.mubr.bf16.mxu0 0
  %892 = vmatmul.mubr.bf16.gmra.mrb[0].mxu0 %v806
  %v893 = vpop.f32.mrb[0].mxu0
  %v894 = vadd.f32 0.0, %v893
  %v895 = vpop.f32.mrb[0].mxu0
  %v896 = vpop.f32.mrb[0].mxu0
  %v897 = vadd.f32 0.0, %v896
  %v898 = vpop.f32.mrb[0].mxu0
  %899 = vmatprep.mubr.bf16.mxu0 0
  %900 = vmatmul.mubr.bf16.gmra.mrb[0].mxu0 %v807
  %v901 = vpop.f32.mrb[0].mxu0
  %v902 = vadd.f32 0.0, %v901
  %v903 = vpop.f32.mrb[0].mxu0
  %v904 = vpop.f32.mrb[0].mxu0
  %v905 = vadd.f32 0.0, %v904
  %v906 = vpop.f32.mrb[0].mxu0
  %907 = vmatprep.mubr.bf16.mxu0 0
  %908 = vmatmul.mubr.bf16.gmra.mrb[0].mxu0 %v808
  %v909 = vpop.f32.mrb[0].mxu0
  %v910 = vadd.f32 0.0, %v909
  %v911 = vpop.f32.mrb[0].mxu0
  %v912 = vpop.f32.mrb[0].mxu0
  %v913 = vadd.f32 0.0, %v912
  %v914 = vpop.f32.mrb[0].mxu0
  %915 = vmatprep.mubr.bf16.mxu0 0
  %916 = vmatmul.mubr.bf16.gmra.mrb[0].mxu0 %v809
  %v917 = vpop.f32.mrb[0].mxu0
  %v918 = vadd.f32 0.0, %v917
  %v919 = vpop.f32.mrb[0].mxu0
  %v920 = vpop.f32.mrb[0].mxu0
  %v921 = vadd.f32 0.0, %v920
  %v922 = vpop.f32.mrb[0].mxu0
  %923 = vmatprep.mubr.bf16.mxu0 0
  %924 = vmatmul.mubr.bf16.gmra.mrb[0].mxu0 %v810
  %v925 = vpop.f32.mrb[0].mxu0
  %v926 = vadd.f32 0.0, %v925
  %v927 = vpop.f32.mrb[0].mxu0
  %v928 = vpop.f32.mrb[0].mxu0
  %v929 = vadd.f32 0.0, %v928
  %v930 = vpop.f32.mrb[0].mxu0
  %931 = vdwg.mxu0
  %932 = vset.pattern.permute.xlu0 2
  %933 = vperm.xlu0 %932, %v45
  %v934 = vpop.permute.xlu0 %933
  %936 = vset.pattern.permute.xlu0 2
  %937 = vperm.xlu0 %936, %v46
  %v938 = vpop.permute.xlu0 %937
  %940 = vset.pattern.permute.xlu0 2
  %941 = vperm.xlu0 %940, %v47
  %v942 = vpop.permute.xlu0 %941
  %944 = vset.pattern.permute.xlu0 2
  %945 = vperm.xlu0 %944, %v48
  %v946 = vpop.permute.xlu0 %945
  %948 = vset.pattern.permute.xlu0 2
  %949 = vperm.xlu0 %948, %v49
  %v950 = vpop.permute.xlu0 %949
  %952 = vset.pattern.permute.xlu0 2
  %953 = vperm.xlu0 %952, %v50
  %v954 = vpop.permute.xlu0 %953
  %956 = vset.pattern.permute.xlu0 2
  %957 = vperm.xlu0 %956, %v51
  %v958 = vpop.permute.xlu0 %957
  %960 = vset.pattern.permute.xlu0 2
  %961 = vperm.xlu0 %960, %v52
  %v962 = vpop.permute.xlu0 %961
  %964 = vset.pattern.permute.xlu0 2
  %965 = vperm.xlu0 %964, %v53
  %v966 = vpop.permute.xlu0 %965
  %968 = vset.pattern.permute.xlu0 2
  %969 = vperm.xlu0 %968, %v54
  %v970 = vpop.permute.xlu0 %969
  %972 = vset.pattern.permute.xlu0 2
  %973 = vperm.xlu0 %972, %v55
  %v974 = vpop.permute.xlu0 %973
  %976 = vset.pattern.permute.xlu0 2
  %977 = vperm.xlu0 %976, %v56
  %v978 = vpop.permute.xlu0 %977
  %980 = vset.pattern.permute.xlu0 2
  %981 = vperm.xlu0 %980, %v57
  %v982 = vpop.permute.xlu0 %981
  %984 = vset.pattern.permute.xlu0 2
  %985 = vperm.xlu0 %984, %v58
  %v986 = vpop.permute.xlu0 %985
  %988 = vset.pattern.permute.xlu0 2
  %989 = vperm.xlu0 %988, %v59
  %v990 = vpop.permute.xlu0 %989
  %992 = vset.pattern.permute.xlu0 2
  %993 = vperm.xlu0 %992, %v60
  %v994 = vpop.permute.xlu0 %993
  %v996 = vlaneseq
  %v997 = vshrl.u32 %v996, 7
  %v998 = vsub.s32 2, %v997
  %v999 = vrot.slane %v77, %v998
  %v1000 = vadd.f32 %v934, %v999
  %v1001 = vadd.f32 %v938, %v999
  %v1002 = vadd.f32 %v942, %v999
  %v1003 = vadd.f32 %v946, %v999
  %v1004 = vadd.f32 %v950, %v999
  %v1005 = vadd.f32 %v954, %v999
  %v1006 = vadd.f32 %v958, %v999
  %v1007 = vadd.f32 %v962, %v999
  %v1008 = vadd.f32 %v966, %v999
  %v1009 = vadd.f32 %v970, %v999
  %v1010 = vadd.f32 %v974, %v999
  %v1011 = vadd.f32 %v978, %v999
  %v1012 = vadd.f32 %v982, %v999
  %v1013 = vadd.f32 %v986, %v999
  %v1014 = vadd.f32 %v990, %v999
  %v1015 = vadd.f32 %v994, %v999
  %v1016 = vmul.f32 %v1000, 0.2
  %v1017 = vmul.f32 %v1001, 0.2
  %v1018 = vmul.f32 %v1002, 0.2
  %v1019 = vmul.f32 %v1003, 0.2
  %v1020 = vmul.f32 %v1004, 0.2
  %v1021 = vmul.f32 %v1005, 0.2
  %v1022 = vmul.f32 %v1006, 0.2
  %v1023 = vmul.f32 %v1007, 0.2
  %v1024 = vmul.f32 %v1008, 0.2
  %v1025 = vmul.f32 %v1009, 0.2
  %v1026 = vmul.f32 %v1010, 0.2
  %v1027 = vmul.f32 %v1011, 0.2
  %v1028 = vmul.f32 %v1012, 0.2
  %v1029 = vmul.f32 %v1013, 0.2
  %v1030 = vmul.f32 %v1014, 0.2
  %v1031 = vmul.f32 %v1015, 0.2
  %v1032 = vmax.f32 %v1000, %v1016
  %v1033 = vmax.f32 %v1001, %v1017
  %v1034 = vmax.f32 %v1002, %v1018
  %v1035 = vmax.f32 %v1003, %v1019
  %v1036 = vmax.f32 %v1004, %v1020
  %v1037 = vmax.f32 %v1005, %v1021
  %v1038 = vmax.f32 %v1006, %v1022
  %v1039 = vmax.f32 %v1007, %v1023
  %v1040 = vmax.f32 %v1008, %v1024
  %v1041 = vmax.f32 %v1009, %v1025
  %v1042 = vmax.f32 %v1010, %v1026
  %v1043 = vmax.f32 %v1011, %v1027
  %v1044 = vmax.f32 %v1012, %v1028
  %v1045 = vmax.f32 %v1013, %v1029
  %v1046 = vmax.f32 %v1014, %v1030
  %v1047 = vmax.f32 %v1015, %v1031
  %1048 = vset.pattern.permute.xlu0 2
  %1049 = vperm.xlu0 %1048, %v61
  %v1050 = vpop.permute.xlu0 %1049
  %1052 = vset.pattern.permute.xlu0 2
  %1053 = vperm.xlu0 %1052, %v62
  %v1054 = vpop.permute.xlu0 %1053
  %1056 = vset.pattern.permute.xlu0 2
  %1057 = vperm.xlu0 %1056, %v63
  %v1058 = vpop.permute.xlu0 %1057
  %1060 = vset.pattern.permute.xlu0 2
  %1061 = vperm.xlu0 %1060, %v64
  %v1062 = vpop.permute.xlu0 %1061
  %1064 = vset.pattern.permute.xlu0 2
  %1065 = vperm.xlu0 %1064, %v65
  %v1066 = vpop.permute.xlu0 %1065
  %1068 = vset.pattern.permute.xlu0 2
  %1069 = vperm.xlu0 %1068, %v66
  %v1070 = vpop.permute.xlu0 %1069
  %1072 = vset.pattern.permute.xlu0 2
  %1073 = vperm.xlu0 %1072, %v67
  %v1074 = vpop.permute.xlu0 %1073
  %1076 = vset.pattern.permute.xlu0 2
  %1077 = vperm.xlu0 %1076, %v68
  %v1078 = vpop.permute.xlu0 %1077
  %1080 = vset.pattern.permute.xlu0 2
  %1081 = vperm.xlu0 %1080, %v69
  %v1082 = vpop.permute.xlu0 %1081
  %1084 = vset.pattern.permute.xlu0 2
  %1085 = vperm.xlu0 %1084, %v70
  %v1086 = vpop.permute.xlu0 %1085
  %1088 = vset.pattern.permute.xlu0 2
  %1089 = vperm.xlu0 %1088, %v71
  %v1090 = vpop.permute.xlu0 %1089
  %1092 = vset.pattern.permute.xlu0 2
  %1093 = vperm.xlu0 %1092, %v72
  %v1094 = vpop.permute.xlu0 %1093
  %1096 = vset.pattern.permute.xlu0 2
  %1097 = vperm.xlu0 %1096, %v73
  %v1098 = vpop.permute.xlu0 %1097
  %1100 = vset.pattern.permute.xlu0 2
  %1101 = vperm.xlu0 %1100, %v74
  %v1102 = vpop.permute.xlu0 %1101
  %1104 = vset.pattern.permute.xlu0 2
  %1105 = vperm.xlu0 %1104, %v75
  %v1106 = vpop.permute.xlu0 %1105
  %1108 = vset.pattern.permute.xlu0 2
  %1109 = vperm.xlu0 %1108, %v76
  %v1110 = vpop.permute.xlu0 %1109
  %v1112 = vsub.f32 %v1032, %v1050
  %v1113 = vsub.f32 %v1033, %v1054
  %v1114 = vsub.f32 %v1034, %v1058
  %v1115 = vsub.f32 %v1035, %v1062
  %v1116 = vsub.f32 %v1036, %v1066
  %v1117 = vsub.f32 %v1037, %v1070
  %v1118 = vsub.f32 %v1038, %v1074
  %v1119 = vsub.f32 %v1039, %v1078
  %v1120 = vsub.f32 %v1040, %v1082
  %v1121 = vsub.f32 %v1041, %v1086
  %v1122 = vsub.f32 %v1042, %v1090
  %v1123 = vsub.f32 %v1043, %v1094
  %v1124 = vsub.f32 %v1044, %v1098
  %v1125 = vsub.f32 %v1045, %v1102
  %v1126 = vsub.f32 %v1046, %v1106
  %v1127 = vsub.f32 %v1047, %v1110
  %v1128 = vmul.f32 %v1112, 1.442695
  %v1129 = vpow.pop %v1128
  %v1130 = vmul.f32 %v1113, 1.442695
  %v1131 = vpow.pop %v1130
  %v1132 = vmul.f32 %v1114, 1.442695
  %v1133 = vpow.pop %v1132
  %v1134 = vmul.f32 %v1115, 1.442695
  %v1135 = vpow.pop %v1134
  %v1136 = vmul.f32 %v1116, 1.442695
  %v1137 = vpow.pop %v1136
  %v1138 = vmul.f32 %v1117, 1.442695
  %v1139 = vpow.pop %v1138
  %v1140 = vmul.f32 %v1118, 1.442695
  %v1141 = vpow.pop %v1140
  %v1142 = vmul.f32 %v1119, 1.442695
  %v1143 = vpow.pop %v1142
  %v1144 = vmul.f32 %v1120, 1.442695
  %v1145 = vpow.pop %v1144
  %v1146 = vmul.f32 %v1121, 1.442695
  %v1147 = vpow.pop %v1146
  %v1148 = vmul.f32 %v1122, 1.442695
  %v1149 = vpow.pop %v1148
  %v1150 = vmul.f32 %v1123, 1.442695
  %v1151 = vpow.pop %v1150
  %v1152 = vmul.f32 %v1124, 1.442695
  %v1153 = vpow.pop %v1152
  %v1154 = vmul.f32 %v1125, 1.442695
  %v1155 = vpow.pop %v1154
  %v1156 = vmul.f32 %v1126, 1.442695
  %v1157 = vpow.pop %v1156
  %v1158 = vmul.f32 %v1127, 1.442695
  %v1159 = vpow.pop %v1158
  %v1160 = vmul.f32 %v1129, %v98
  %v1161 = vmul.f32 %v1131, %v99
  %v1162 = vmul.f32 %v1133, %v100
  %v1163 = vmul.f32 %v1135, %v101
  %v1164 = vmul.f32 %v1137, %v102
  %v1165 = vmul.f32 %v1139, %v103
  %v1166 = vmul.f32 %v1141, %v104
  %v1167 = vmul.f32 %v1143, %v105
  %v1168 = vmul.f32 %v1145, %v106
  %v1169 = vmul.f32 %v1147, %v107
  %v1170 = vmul.f32 %v1149, %v108
  %v1171 = vmul.f32 %v1151, %v109
  %v1172 = vmul.f32 %v1153, %v110
  %v1173 = vmul.f32 %v1155, %v111
  %v1174 = vmul.f32 %v1157, %v112
  %v1175 = vmul.f32 %v1159, %v113
  %v1176 = vpack.c.bf16 %v1161, %v1160
  %v1177 = vpack.c.bf16 %v1163, %v1162
  %v1178 = vpack.c.bf16 %v1165, %v1164
  %v1179 = vpack.c.bf16 %v1167, %v1166
  %v1180 = vpack.c.bf16 %v1169, %v1168
  %v1181 = vpack.c.bf16 %v1171, %v1170
  %v1182 = vpack.c.bf16 %v1173, %v1172
  %v1183 = vpack.c.bf16 %v1175, %v1174
  %1184 = vrot.lane.b32.xlu0 %v446, 110
  %v1185 = vpop.permute.xlu0 %1184
  %1186 = vrot.lane.b32.xlu0 %v447, 110
  %v1187 = vpop.permute.xlu0 %1186
  %1188 = vrot.lane.b32.xlu0 %v448, 110
  %v1189 = vpop.permute.xlu0 %1188
  %1190 = vrot.lane.b32.xlu0 %v449, 110
  %v1191 = vpop.permute.xlu0 %1190
  %1192 = vrot.lane.b32.xlu0 %v450, 110
  %v1193 = vpop.permute.xlu0 %1192
  %1194 = vrot.lane.b32.xlu0 %v451, 110
  %v1195 = vpop.permute.xlu0 %1194
  %1196 = vrot.lane.b32.xlu0 %v452, 110
  %v1197 = vpop.permute.xlu0 %1196
  %1198 = vrot.lane.b32.xlu0 %v453, 110
  %v1199 = vpop.permute.xlu0 %1198
  %1208 = vmatprep.subr.bf16.mxu0 0
  %1209 = vmatpush1.bf16.msra.mxu0 %v1185
  %1210 = vmatprep.subr.bf16.mxu0 0
  %1211 = vmatpush1.bf16.msra.mxu0 %v1187
  %1212 = vmatprep.subr.bf16.mxu0 0
  %1213 = vmatpush1.bf16.msra.mxu0 %v1189
  %1214 = vmatprep.subr.bf16.mxu0 0
  %1215 = vmatpush1.bf16.msra.mxu0 %v1191
  %1216 = vmatprep.subr.bf16.mxu0 0
  %1217 = vmatpush1.bf16.msra.mxu0 %v1193
  %1218 = vmatprep.subr.bf16.mxu0 0
  %1219 = vmatpush1.bf16.msra.mxu0 %v1195
  %1220 = vmatprep.subr.bf16.mxu0 0
  %1221 = vmatpush1.bf16.msra.mxu0 %v1197
  %1222 = vmatprep.subr.bf16.mxu0 0
  %1223 = vmatpush1.bf16.msra.mxu0 %v1199
  %1224 = vmatprep.subr.bf16.mxu0 0
  %1225 = vmatpush1.bf16.msra.mxu0 0
  %1226 = vmatprep.subr.bf16.mxu0 0
  %1227 = vmatpush1.bf16.msra.mxu0 0
  %1228 = vmatprep.subr.bf16.mxu0 0
  %1229 = vmatpush1.bf16.msra.mxu0 0
  %1230 = vmatprep.subr.bf16.mxu0 0
  %1231 = vmatpush1.bf16.msra.mxu0 0
  %1232 = vmatprep.subr.bf16.mxu0 0
  %1233 = vmatpush1.bf16.msra.mxu0 0
  %1234 = vmatprep.subr.bf16.mxu0 0
  %1235 = vmatpush1.bf16.msra.mxu0 0
  %1236 = vmatprep.subr.bf16.mxu0 0
  %1237 = vmatpush1.bf16.msra.mxu0 0
  %1238 = vmatprep.subr.bf16.mxu0 0
  %1239 = vmatpush1.bf16.msra.mxu0 0
  %1240 = vmatprep.mubr.bf16.mxu0 0
  %1241 = vmatmul.mubr.bf16.gmra.mrb[0].mxu0 %v1176
  %v1242 = vpop.f32.mrb[0].mxu0
  %v1243 = vadd.f32 0.0, %v1242
  %v1244 = vpop.f32.mrb[0].mxu0
  %v1245 = vpop.f32.mrb[0].mxu0
  %v1246 = vadd.f32 0.0, %v1245
  %v1247 = vpop.f32.mrb[0].mxu0
  %1248 = vmatprep.mubr.bf16.mxu0 0
  %1249 = vmatmul.mubr.bf16.gmra.mrb[0].mxu0 %v1177
  %v1250 = vpop.f32.mrb[0].mxu0
  %v1251 = vadd.f32 0.0, %v1250
  %v1252 = vpop.f32.mrb[0].mxu0
  %v1253 = vpop.f32.mrb[0].mxu0
  %v1254 = vadd.f32 0.0, %v1253
  %v1255 = vpop.f32.mrb[0].mxu0
  %1256 = vmatprep.mubr.bf16.mxu0 0
  %1257 = vmatmul.mubr.bf16.gmra.mrb[0].mxu0 %v1178
  %v1258 = vpop.f32.mrb[0].mxu0
  %v1259 = vadd.f32 0.0, %v1258
  %v1260 = vpop.f32.mrb[0].mxu0
  %v1261 = vpop.f32.mrb[0].mxu0
  %v1262 = vadd.f32 0.0, %v1261
  %v1263 = vpop.f32.mrb[0].mxu0
  %1264 = vmatprep.mubr.bf16.mxu0 0
  %1265 = vmatmul.mubr.bf16.gmra.mrb[0].mxu0 %v1179
  %v1266 = vpop.f32.mrb[0].mxu0
  %v1267 = vadd.f32 0.0, %v1266
  %v1268 = vpop.f32.mrb[0].mxu0
  %v1269 = vpop.f32.mrb[0].mxu0
  %v1270 = vadd.f32 0.0, %v1269
  %v1271 = vpop.f32.mrb[0].mxu0
  %1272 = vmatprep.mubr.bf16.mxu0 0
  %1273 = vmatmul.mubr.bf16.gmra.mrb[0].mxu0 %v1180
  %v1274 = vpop.f32.mrb[0].mxu0
  %v1275 = vadd.f32 0.0, %v1274
  %v1276 = vpop.f32.mrb[0].mxu0
  %v1277 = vpop.f32.mrb[0].mxu0
  %v1278 = vadd.f32 0.0, %v1277
  %v1279 = vpop.f32.mrb[0].mxu0
  %1280 = vmatprep.mubr.bf16.mxu0 0
  %1281 = vmatmul.mubr.bf16.gmra.mrb[0].mxu0 %v1181
  %v1282 = vpop.f32.mrb[0].mxu0
  %v1283 = vadd.f32 0.0, %v1282
  %v1284 = vpop.f32.mrb[0].mxu0
  %v1285 = vpop.f32.mrb[0].mxu0
  %v1286 = vadd.f32 0.0, %v1285
  %v1287 = vpop.f32.mrb[0].mxu0
  %1288 = vmatprep.mubr.bf16.mxu0 0
  %1289 = vmatmul.mubr.bf16.gmra.mrb[0].mxu0 %v1182
  %v1290 = vpop.f32.mrb[0].mxu0
  %v1291 = vadd.f32 0.0, %v1290
  %v1292 = vpop.f32.mrb[0].mxu0
  %v1293 = vpop.f32.mrb[0].mxu0
  %v1294 = vadd.f32 0.0, %v1293
  %v1295 = vpop.f32.mrb[0].mxu0
  %1296 = vmatprep.mubr.bf16.mxu0 0
  %1297 = vmatmul.mubr.bf16.gmra.mrb[0].mxu0 %v1183
  %v1298 = vpop.f32.mrb[0].mxu0
  %v1299 = vadd.f32 0.0, %v1298
  %v1300 = vpop.f32.mrb[0].mxu0
  %v1301 = vpop.f32.mrb[0].mxu0
  %v1302 = vadd.f32 0.0, %v1301
  %v1303 = vpop.f32.mrb[0].mxu0
  %1304 = vdwg.mxu0
  %1305 = vset.pattern.permute.xlu0 3
  %1306 = vperm.xlu0 %1305, %v45
  %v1307 = vpop.permute.xlu0 %1306
  %1309 = vset.pattern.permute.xlu0 3
  %1310 = vperm.xlu0 %1309, %v46
  %v1311 = vpop.permute.xlu0 %1310
  %1313 = vset.pattern.permute.xlu0 3
  %1314 = vperm.xlu0 %1313, %v47
  %v1315 = vpop.permute.xlu0 %1314
  %1317 = vset.pattern.permute.xlu0 3
  %1318 = vperm.xlu0 %1317, %v48
  %v1319 = vpop.permute.xlu0 %1318
  %1321 = vset.pattern.permute.xlu0 3
  %1322 = vperm.xlu0 %1321, %v49
  %v1323 = vpop.permute.xlu0 %1322
  %1325 = vset.pattern.permute.xlu0 3
  %1326 = vperm.xlu0 %1325, %v50
  %v1327 = vpop.permute.xlu0 %1326
  %1329 = vset.pattern.permute.xlu0 3
  %1330 = vperm.xlu0 %1329, %v51
  %v1331 = vpop.permute.xlu0 %1330
  %1333 = vset.pattern.permute.xlu0 3
  %1334 = vperm.xlu0 %1333, %v52
  %v1335 = vpop.permute.xlu0 %1334
  %1337 = vset.pattern.permute.xlu0 3
  %1338 = vperm.xlu0 %1337, %v53
  %v1339 = vpop.permute.xlu0 %1338
  %1341 = vset.pattern.permute.xlu0 3
  %1342 = vperm.xlu0 %1341, %v54
  %v1343 = vpop.permute.xlu0 %1342
  %1345 = vset.pattern.permute.xlu0 3
  %1346 = vperm.xlu0 %1345, %v55
  %v1347 = vpop.permute.xlu0 %1346
  %1349 = vset.pattern.permute.xlu0 3
  %1350 = vperm.xlu0 %1349, %v56
  %v1351 = vpop.permute.xlu0 %1350
  %1353 = vset.pattern.permute.xlu0 3
  %1354 = vperm.xlu0 %1353, %v57
  %v1355 = vpop.permute.xlu0 %1354
  %1357 = vset.pattern.permute.xlu0 3
  %1358 = vperm.xlu0 %1357, %v58
  %v1359 = vpop.permute.xlu0 %1358
  %1361 = vset.pattern.permute.xlu0 3
  %1362 = vperm.xlu0 %1361, %v59
  %v1363 = vpop.permute.xlu0 %1362
  %1365 = vset.pattern.permute.xlu0 3
  %1366 = vperm.xlu0 %1365, %v60
  %v1367 = vpop.permute.xlu0 %1366
  %v1369 = vlaneseq
  %v1370 = vshrl.u32 %v1369, 7
  %v1371 = vsub.s32 3, %v1370
  %v1372 = vrot.slane %v77, %v1371
  %v1373 = vadd.f32 %v1307, %v1372
  %v1374 = vadd.f32 %v1311, %v1372
  %v1375 = vadd.f32 %v1315, %v1372
  %v1376 = vadd.f32 %v1319, %v1372
  %v1377 = vadd.f32 %v1323, %v1372
  %v1378 = vadd.f32 %v1327, %v1372
  %v1379 = vadd.f32 %v1331, %v1372
  %v1380 = vadd.f32 %v1335, %v1372
  %v1381 = vadd.f32 %v1339, %v1372
  %v1382 = vadd.f32 %v1343, %v1372
  %v1383 = vadd.f32 %v1347, %v1372
  %v1384 = vadd.f32 %v1351, %v1372
  %v1385 = vadd.f32 %v1355, %v1372
  %v1386 = vadd.f32 %v1359, %v1372
  %v1387 = vadd.f32 %v1363, %v1372
  %v1388 = vadd.f32 %v1367, %v1372
  %v1389 = vmul.f32 %v1373, 0.2
  %v1390 = vmul.f32 %v1374, 0.2
  %v1391 = vmul.f32 %v1375, 0.2
  %v1392 = vmul.f32 %v1376, 0.2
  %v1393 = vmul.f32 %v1377, 0.2
  %v1394 = vmul.f32 %v1378, 0.2
  %v1395 = vmul.f32 %v1379, 0.2
  %v1396 = vmul.f32 %v1380, 0.2
  %v1397 = vmul.f32 %v1381, 0.2
  %v1398 = vmul.f32 %v1382, 0.2
  %v1399 = vmul.f32 %v1383, 0.2
  %v1400 = vmul.f32 %v1384, 0.2
  %v1401 = vmul.f32 %v1385, 0.2
  %v1402 = vmul.f32 %v1386, 0.2
  %v1403 = vmul.f32 %v1387, 0.2
  %v1404 = vmul.f32 %v1388, 0.2
  %v1405 = vmax.f32 %v1373, %v1389
  %v1406 = vmax.f32 %v1374, %v1390
  %v1407 = vmax.f32 %v1375, %v1391
  %v1408 = vmax.f32 %v1376, %v1392
  %v1409 = vmax.f32 %v1377, %v1393
  %v1410 = vmax.f32 %v1378, %v1394
  %v1411 = vmax.f32 %v1379, %v1395
  %v1412 = vmax.f32 %v1380, %v1396
  %v1413 = vmax.f32 %v1381, %v1397
  %v1414 = vmax.f32 %v1382, %v1398
  %v1415 = vmax.f32 %v1383, %v1399
  %v1416 = vmax.f32 %v1384, %v1400
  %v1417 = vmax.f32 %v1385, %v1401
  %v1418 = vmax.f32 %v1386, %v1402
  %v1419 = vmax.f32 %v1387, %v1403
  %v1420 = vmax.f32 %v1388, %v1404
  %1421 = vset.pattern.permute.xlu0 3
  %1422 = vperm.xlu0 %1421, %v61
  %v1423 = vpop.permute.xlu0 %1422
  %1425 = vset.pattern.permute.xlu0 3
  %1426 = vperm.xlu0 %1425, %v62
  %v1427 = vpop.permute.xlu0 %1426
  %1429 = vset.pattern.permute.xlu0 3
  %1430 = vperm.xlu0 %1429, %v63
  %v1431 = vpop.permute.xlu0 %1430
  %1433 = vset.pattern.permute.xlu0 3
  %1434 = vperm.xlu0 %1433, %v64
  %v1435 = vpop.permute.xlu0 %1434
  %1437 = vset.pattern.permute.xlu0 3
  %1438 = vperm.xlu0 %1437, %v65
  %v1439 = vpop.permute.xlu0 %1438
  %1441 = vset.pattern.permute.xlu0 3
  %1442 = vperm.xlu0 %1441, %v66
  %v1443 = vpop.permute.xlu0 %1442
  %1445 = vset.pattern.permute.xlu0 3
  %1446 = vperm.xlu0 %1445, %v67
  %v1447 = vpop.permute.xlu0 %1446
  %1449 = vset.pattern.permute.xlu0 3
  %1450 = vperm.xlu0 %1449, %v68
  %v1451 = vpop.permute.xlu0 %1450
  %1453 = vset.pattern.permute.xlu0 3
  %1454 = vperm.xlu0 %1453, %v69
  %v1455 = vpop.permute.xlu0 %1454
  %1457 = vset.pattern.permute.xlu0 3
  %1458 = vperm.xlu0 %1457, %v70
  %v1459 = vpop.permute.xlu0 %1458
  %1461 = vset.pattern.permute.xlu0 3
  %1462 = vperm.xlu0 %1461, %v71
  %v1463 = vpop.permute.xlu0 %1462
  %1465 = vset.pattern.permute.xlu0 3
  %1466 = vperm.xlu0 %1465, %v72
  %v1467 = vpop.permute.xlu0 %1466
  %1469 = vset.pattern.permute.xlu0 3
  %1470 = vperm.xlu0 %1469, %v73
  %v1471 = vpop.permute.xlu0 %1470
  %1473 = vset.pattern.permute.xlu0 3
  %1474 = vperm.xlu0 %1473, %v74
  %v1475 = vpop.permute.xlu0 %1474
  %1477 = vset.pattern.permute.xlu0 3
  %1478 = vperm.xlu0 %1477, %v75
  %v1479 = vpop.permute.xlu0 %1478
  %1481 = vset.pattern.permute.xlu0 3
  %1482 = vperm.xlu0 %1481, %v76
  %v1483 = vpop.permute.xlu0 %1482
  %v1485 = vsub.f32 %v1405, %v1423
  %v1486 = vsub.f32 %v1406, %v1427
  %v1487 = vsub.f32 %v1407, %v1431
  %v1488 = vsub.f32 %v1408, %v1435
  %v1489 = vsub.f32 %v1409, %v1439
  %v1490 = vsub.f32 %v1410, %v1443
  %v1491 = vsub.f32 %v1411, %v1447
  %v1492 = vsub.f32 %v1412, %v1451
  %v1493 = vsub.f32 %v1413, %v1455
  %v1494 = vsub.f32 %v1414, %v1459
  %v1495 = vsub.f32 %v1415, %v1463
  %v1496 = vsub.f32 %v1416, %v1467
  %v1497 = vsub.f32 %v1417, %v1471
  %v1498 = vsub.f32 %v1418, %v1475
  %v1499 = vsub.f32 %v1419, %v1479
  %v1500 = vsub.f32 %v1420, %v1483
  %v1501 = vmul.f32 %v1485, 1.442695
  %v1502 = vpow.pop %v1501
  %v1503 = vmul.f32 %v1486, 1.442695
  %v1504 = vpow.pop %v1503
  %v1505 = vmul.f32 %v1487, 1.442695
  %v1506 = vpow.pop %v1505
  %v1507 = vmul.f32 %v1488, 1.442695
  %v1508 = vpow.pop %v1507
  %v1509 = vmul.f32 %v1489, 1.442695
  %v1510 = vpow.pop %v1509
  %v1511 = vmul.f32 %v1490, 1.442695
  %v1512 = vpow.pop %v1511
  %v1513 = vmul.f32 %v1491, 1.442695
  %v1514 = vpow.pop %v1513
  %v1515 = vmul.f32 %v1492, 1.442695
  %v1516 = vpow.pop %v1515
  %v1517 = vmul.f32 %v1493, 1.442695
  %v1518 = vpow.pop %v1517
  %v1519 = vmul.f32 %v1494, 1.442695
  %v1520 = vpow.pop %v1519
  %v1521 = vmul.f32 %v1495, 1.442695
  %v1522 = vpow.pop %v1521
  %v1523 = vmul.f32 %v1496, 1.442695
  %v1524 = vpow.pop %v1523
  %v1525 = vmul.f32 %v1497, 1.442695
  %v1526 = vpow.pop %v1525
  %v1527 = vmul.f32 %v1498, 1.442695
  %v1528 = vpow.pop %v1527
  %v1529 = vmul.f32 %v1499, 1.442695
  %v1530 = vpow.pop %v1529
  %v1531 = vmul.f32 %v1500, 1.442695
  %v1532 = vpow.pop %v1531
  %v1533 = vmul.f32 %v1502, %v98
  %v1534 = vmul.f32 %v1504, %v99
  %v1535 = vmul.f32 %v1506, %v100
  %v1536 = vmul.f32 %v1508, %v101
  %v1537 = vmul.f32 %v1510, %v102
  %v1538 = vmul.f32 %v1512, %v103
  %v1539 = vmul.f32 %v1514, %v104
  %v1540 = vmul.f32 %v1516, %v105
  %v1541 = vmul.f32 %v1518, %v106
  %v1542 = vmul.f32 %v1520, %v107
  %v1543 = vmul.f32 %v1522, %v108
  %v1544 = vmul.f32 %v1524, %v109
  %v1545 = vmul.f32 %v1526, %v110
  %v1546 = vmul.f32 %v1528, %v111
  %v1547 = vmul.f32 %v1530, %v112
  %v1548 = vmul.f32 %v1532, %v113
  %v1549 = vpack.c.bf16 %v1534, %v1533
  %v1550 = vpack.c.bf16 %v1536, %v1535
  %v1551 = vpack.c.bf16 %v1538, %v1537
  %v1552 = vpack.c.bf16 %v1540, %v1539
  %v1553 = vpack.c.bf16 %v1542, %v1541
  %v1554 = vpack.c.bf16 %v1544, %v1543
  %v1555 = vpack.c.bf16 %v1546, %v1545
  %v1556 = vpack.c.bf16 %v1548, %v1547
  %1557 = vrot.lane.b32.xlu0 %v446, 101
  %v1558 = vpop.permute.xlu0 %1557
  %1559 = vrot.lane.b32.xlu0 %v447, 101
  %v1560 = vpop.permute.xlu0 %1559
  %1561 = vrot.lane.b32.xlu0 %v448, 101
  %v1562 = vpop.permute.xlu0 %1561
  %1563 = vrot.lane.b32.xlu0 %v449, 101
  %v1564 = vpop.permute.xlu0 %1563
  %1565 = vrot.lane.b32.xlu0 %v450, 101
  %v1566 = vpop.permute.xlu0 %1565
  %1567 = vrot.lane.b32.xlu0 %v451, 101
  %v1568 = vpop.permute.xlu0 %1567
  %1569 = vrot.lane.b32.xlu0 %v452, 101
  %v1570 = vpop.permute.xlu0 %1569
  %1571 = vrot.lane.b32.xlu0 %v453, 101
  %v1572 = vpop.permute.xlu0 %1571
  %1581 = vmatprep.subr.bf16.mxu0 0
  %1582 = vmatpush1.bf16.msra.mxu0 %v1558
  %1583 = vmatprep.subr.bf16.mxu0 0
  %1584 = vmatpush1.bf16.msra.mxu0 %v1560
  %1585 = vmatprep.subr.bf16.mxu0 0
  %1586 = vmatpush1.bf16.msra.mxu0 %v1562
  %1587 = vmatprep.subr.bf16.mxu0 0
  %1588 = vmatpush1.bf16.msra.mxu0 %v1564
  %1589 = vmatprep.subr.bf16.mxu0 0
  %1590 = vmatpush1.bf16.msra.mxu0 %v1566
  %1591 = vmatprep.subr.bf16.mxu0 0
  %1592 = vmatpush1.bf16.msra.mxu0 %v1568
  %1593 = vmatprep.subr.bf16.mxu0 0
  %1594 = vmatpush1.bf16.msra.mxu0 %v1570
  %1595 = vmatprep.subr.bf16.mxu0 0
  %1596 = vmatpush1.bf16.msra.mxu0 %v1572
  %1597 = vmatprep.subr.bf16.mxu0 0
  %1598 = vmatpush1.bf16.msra.mxu0 0
  %1599 = vmatprep.subr.bf16.mxu0 0
  %1600 = vmatpush1.bf16.msra.mxu0 0
  %1601 = vmatprep.subr.bf16.mxu0 0
  %1602 = vmatpush1.bf16.msra.mxu0 0
  %1603 = vmatprep.subr.bf16.mxu0 0
  %1604 = vmatpush1.bf16.msra.mxu0 0
  %1605 = vmatprep.subr.bf16.mxu0 0
  %1606 = vmatpush1.bf16.msra.mxu0 0
  %1607 = vmatprep.subr.bf16.mxu0 0
  %1608 = vmatpush1.bf16.msra.mxu0 0
  %1609 = vmatprep.subr.bf16.mxu0 0
  %1610 = vmatpush1.bf16.msra.mxu0 0
  %1611 = vmatprep.subr.bf16.mxu0 0
  %1612 = vmatpush1.bf16.msra.mxu0 0
  %1613 = vmatprep.mubr.bf16.mxu0 0
  %1614 = vmatmul.mubr.bf16.gmra.mrb[0].mxu0 %v1549
  %v1615 = vpop.f32.mrb[0].mxu0
  %v1616 = vadd.f32 0.0, %v1615
  %v1617 = vpop.f32.mrb[0].mxu0
  %v1618 = vpop.f32.mrb[0].mxu0
  %v1619 = vadd.f32 0.0, %v1618
  %v1620 = vpop.f32.mrb[0].mxu0
  %1621 = vmatprep.mubr.bf16.mxu0 0
  %1622 = vmatmul.mubr.bf16.gmra.mrb[0].mxu0 %v1550
  %v1623 = vpop.f32.mrb[0].mxu0
  %v1624 = vadd.f32 0.0, %v1623
  %v1625 = vpop.f32.mrb[0].mxu0
  %v1626 = vpop.f32.mrb[0].mxu0
  %v1627 = vadd.f32 0.0, %v1626
  %v1628 = vpop.f32.mrb[0].mxu0
  %1629 = vmatprep.mubr.bf16.mxu0 0
  %1630 = vmatmul.mubr.bf16.gmra.mrb[0].mxu0 %v1551
  %v1631 = vpop.f32.mrb[0].mxu0
  %v1632 = vadd.f32 0.0, %v1631
  %v1633 = vpop.f32.mrb[0].mxu0
  %v1634 = vpop.f32.mrb[0].mxu0
  %v1635 = vadd.f32 0.0, %v1634
  %v1636 = vpop.f32.mrb[0].mxu0
  %1637 = vmatprep.mubr.bf16.mxu0 0
  %1638 = vmatmul.mubr.bf16.gmra.mrb[0].mxu0 %v1552
  %v1639 = vpop.f32.mrb[0].mxu0
  %v1640 = vadd.f32 0.0, %v1639
  %v1641 = vpop.f32.mrb[0].mxu0
  %v1642 = vpop.f32.mrb[0].mxu0
  %v1643 = vadd.f32 0.0, %v1642
  %v1644 = vpop.f32.mrb[0].mxu0
  %1645 = vmatprep.mubr.bf16.mxu0 0
  %1646 = vmatmul.mubr.bf16.gmra.mrb[0].mxu0 %v1553
  %v1647 = vpop.f32.mrb[0].mxu0
  %v1648 = vadd.f32 0.0, %v1647
  %v1649 = vpop.f32.mrb[0].mxu0
  %v1650 = vpop.f32.mrb[0].mxu0
  %v1651 = vadd.f32 0.0, %v1650
  %v1652 = vpop.f32.mrb[0].mxu0
  %1653 = vmatprep.mubr.bf16.mxu0 0
  %1654 = vmatmul.mubr.bf16.gmra.mrb[0].mxu0 %v1554
  %v1655 = vpop.f32.mrb[0].mxu0
  %v1656 = vadd.f32 0.0, %v1655
  %v1657 = vpop.f32.mrb[0].mxu0
  %v1658 = vpop.f32.mrb[0].mxu0
  %v1659 = vadd.f32 0.0, %v1658
  %v1660 = vpop.f32.mrb[0].mxu0
  %1661 = vmatprep.mubr.bf16.mxu0 0
  %1662 = vmatmul.mubr.bf16.gmra.mrb[0].mxu0 %v1555
  %v1663 = vpop.f32.mrb[0].mxu0
  %v1664 = vadd.f32 0.0, %v1663
  %v1665 = vpop.f32.mrb[0].mxu0
  %v1666 = vpop.f32.mrb[0].mxu0
  %v1667 = vadd.f32 0.0, %v1666
  %v1668 = vpop.f32.mrb[0].mxu0
  %1669 = vmatprep.mubr.bf16.mxu0 0
  %1670 = vmatmul.mubr.bf16.gmra.mrb[0].mxu0 %v1556
  %v1671 = vpop.f32.mrb[0].mxu0
  %v1672 = vadd.f32 0.0, %v1671
  %v1673 = vpop.f32.mrb[0].mxu0
  %v1674 = vpop.f32.mrb[0].mxu0
  %v1675 = vadd.f32 0.0, %v1674
  %v1676 = vpop.f32.mrb[0].mxu0
  %1677 = vdwg.mxu0
  %1678 = vset.pattern.permute.xlu0 4
  %1679 = vperm.xlu0 %1678, %v45
  %v1680 = vpop.permute.xlu0 %1679
  %1682 = vset.pattern.permute.xlu0 4
  %1683 = vperm.xlu0 %1682, %v46
  %v1684 = vpop.permute.xlu0 %1683
  %1686 = vset.pattern.permute.xlu0 4
  %1687 = vperm.xlu0 %1686, %v47
  %v1688 = vpop.permute.xlu0 %1687
  %1690 = vset.pattern.permute.xlu0 4
  %1691 = vperm.xlu0 %1690, %v48
  %v1692 = vpop.permute.xlu0 %1691
  %1694 = vset.pattern.permute.xlu0 4
  %1695 = vperm.xlu0 %1694, %v49
  %v1696 = vpop.permute.xlu0 %1695
  %1698 = vset.pattern.permute.xlu0 4
  %1699 = vperm.xlu0 %1698, %v50
  %v1700 = vpop.permute.xlu0 %1699
  %1702 = vset.pattern.permute.xlu0 4
  %1703 = vperm.xlu0 %1702, %v51
  %v1704 = vpop.permute.xlu0 %1703
  %1706 = vset.pattern.permute.xlu0 4
  %1707 = vperm.xlu0 %1706, %v52
  %v1708 = vpop.permute.xlu0 %1707
  %1710 = vset.pattern.permute.xlu0 4
  %1711 = vperm.xlu0 %1710, %v53
  %v1712 = vpop.permute.xlu0 %1711
  %1714 = vset.pattern.permute.xlu0 4
  %1715 = vperm.xlu0 %1714, %v54
  %v1716 = vpop.permute.xlu0 %1715
  %1718 = vset.pattern.permute.xlu0 4
  %1719 = vperm.xlu0 %1718, %v55
  %v1720 = vpop.permute.xlu0 %1719
  %1722 = vset.pattern.permute.xlu0 4
  %1723 = vperm.xlu0 %1722, %v56
  %v1724 = vpop.permute.xlu0 %1723
  %1726 = vset.pattern.permute.xlu0 4
  %1727 = vperm.xlu0 %1726, %v57
  %v1728 = vpop.permute.xlu0 %1727
  %1730 = vset.pattern.permute.xlu0 4
  %1731 = vperm.xlu0 %1730, %v58
  %v1732 = vpop.permute.xlu0 %1731
  %1734 = vset.pattern.permute.xlu0 4
  %1735 = vperm.xlu0 %1734, %v59
  %v1736 = vpop.permute.xlu0 %1735
  %1738 = vset.pattern.permute.xlu0 4
  %1739 = vperm.xlu0 %1738, %v60
  %v1740 = vpop.permute.xlu0 %1739
  %v1742 = vlaneseq
  %v1743 = vshrl.u32 %v1742, 7
  %v1744 = vsub.s32 4, %v1743
  %v1745 = vrot.slane %v77, %v1744
  %v1746 = vadd.f32 %v1680, %v1745
  %v1747 = vadd.f32 %v1684, %v1745
  %v1748 = vadd.f32 %v1688, %v1745
  %v1749 = vadd.f32 %v1692, %v1745
  %v1750 = vadd.f32 %v1696, %v1745
  %v1751 = vadd.f32 %v1700, %v1745
  %v1752 = vadd.f32 %v1704, %v1745
  %v1753 = vadd.f32 %v1708, %v1745
  %v1754 = vadd.f32 %v1712, %v1745
  %v1755 = vadd.f32 %v1716, %v1745
  %v1756 = vadd.f32 %v1720, %v1745
  %v1757 = vadd.f32 %v1724, %v1745
  %v1758 = vadd.f32 %v1728, %v1745
  %v1759 = vadd.f32 %v1732, %v1745
  %v1760 = vadd.f32 %v1736, %v1745
  %v1761 = vadd.f32 %v1740, %v1745
  %v1762 = vmul.f32 %v1746, 0.2
  %v1763 = vmul.f32 %v1747, 0.2
  %v1764 = vmul.f32 %v1748, 0.2
  %v1765 = vmul.f32 %v1749, 0.2
  %v1766 = vmul.f32 %v1750, 0.2
  %v1767 = vmul.f32 %v1751, 0.2
  %v1768 = vmul.f32 %v1752, 0.2
  %v1769 = vmul.f32 %v1753, 0.2
  %v1770 = vmul.f32 %v1754, 0.2
  %v1771 = vmul.f32 %v1755, 0.2
  %v1772 = vmul.f32 %v1756, 0.2
  %v1773 = vmul.f32 %v1757, 0.2
  %v1774 = vmul.f32 %v1758, 0.2
  %v1775 = vmul.f32 %v1759, 0.2
  %v1776 = vmul.f32 %v1760, 0.2
  %v1777 = vmul.f32 %v1761, 0.2
  %v1778 = vmax.f32 %v1746, %v1762
  %v1779 = vmax.f32 %v1747, %v1763
  %v1780 = vmax.f32 %v1748, %v1764
  %v1781 = vmax.f32 %v1749, %v1765
  %v1782 = vmax.f32 %v1750, %v1766
  %v1783 = vmax.f32 %v1751, %v1767
  %v1784 = vmax.f32 %v1752, %v1768
  %v1785 = vmax.f32 %v1753, %v1769
  %v1786 = vmax.f32 %v1754, %v1770
  %v1787 = vmax.f32 %v1755, %v1771
  %v1788 = vmax.f32 %v1756, %v1772
  %v1789 = vmax.f32 %v1757, %v1773
  %v1790 = vmax.f32 %v1758, %v1774
  %v1791 = vmax.f32 %v1759, %v1775
  %v1792 = vmax.f32 %v1760, %v1776
  %v1793 = vmax.f32 %v1761, %v1777
  %1794 = vset.pattern.permute.xlu0 4
  %1795 = vperm.xlu0 %1794, %v61
  %v1796 = vpop.permute.xlu0 %1795
  %1798 = vset.pattern.permute.xlu0 4
  %1799 = vperm.xlu0 %1798, %v62
  %v1800 = vpop.permute.xlu0 %1799
  %1802 = vset.pattern.permute.xlu0 4
  %1803 = vperm.xlu0 %1802, %v63
  %v1804 = vpop.permute.xlu0 %1803
  %1806 = vset.pattern.permute.xlu0 4
  %1807 = vperm.xlu0 %1806, %v64
  %v1808 = vpop.permute.xlu0 %1807
  %1810 = vset.pattern.permute.xlu0 4
  %1811 = vperm.xlu0 %1810, %v65
  %v1812 = vpop.permute.xlu0 %1811
  %1814 = vset.pattern.permute.xlu0 4
  %1815 = vperm.xlu0 %1814, %v66
  %v1816 = vpop.permute.xlu0 %1815
  %1818 = vset.pattern.permute.xlu0 4
  %1819 = vperm.xlu0 %1818, %v67
  %v1820 = vpop.permute.xlu0 %1819
  %1822 = vset.pattern.permute.xlu0 4
  %1823 = vperm.xlu0 %1822, %v68
  %v1824 = vpop.permute.xlu0 %1823
  %1826 = vset.pattern.permute.xlu0 4
  %1827 = vperm.xlu0 %1826, %v69
  %v1828 = vpop.permute.xlu0 %1827
  %1830 = vset.pattern.permute.xlu0 4
  %1831 = vperm.xlu0 %1830, %v70
  %v1832 = vpop.permute.xlu0 %1831
  %1834 = vset.pattern.permute.xlu0 4
  %1835 = vperm.xlu0 %1834, %v71
  %v1836 = vpop.permute.xlu0 %1835
  %1838 = vset.pattern.permute.xlu0 4
  %1839 = vperm.xlu0 %1838, %v72
  %v1840 = vpop.permute.xlu0 %1839
  %1842 = vset.pattern.permute.xlu0 4
  %1843 = vperm.xlu0 %1842, %v73
  %v1844 = vpop.permute.xlu0 %1843
  %1846 = vset.pattern.permute.xlu0 4
  %1847 = vperm.xlu0 %1846, %v74
  %v1848 = vpop.permute.xlu0 %1847
  %1850 = vset.pattern.permute.xlu0 4
  %1851 = vperm.xlu0 %1850, %v75
  %v1852 = vpop.permute.xlu0 %1851
  %1854 = vset.pattern.permute.xlu0 4
  %1855 = vperm.xlu0 %1854, %v76
  %v1856 = vpop.permute.xlu0 %1855
  %v1858 = vsub.f32 %v1778, %v1796
  %v1859 = vsub.f32 %v1779, %v1800
  %v1860 = vsub.f32 %v1780, %v1804
  %v1861 = vsub.f32 %v1781, %v1808
  %v1862 = vsub.f32 %v1782, %v1812
  %v1863 = vsub.f32 %v1783, %v1816
  %v1864 = vsub.f32 %v1784, %v1820
  %v1865 = vsub.f32 %v1785, %v1824
  %v1866 = vsub.f32 %v1786, %v1828
  %v1867 = vsub.f32 %v1787, %v1832
  %v1868 = vsub.f32 %v1788, %v1836
  %v1869 = vsub.f32 %v1789, %v1840
  %v1870 = vsub.f32 %v1790, %v1844
  %v1871 = vsub.f32 %v1791, %v1848
  %v1872 = vsub.f32 %v1792, %v1852
  %v1873 = vsub.f32 %v1793, %v1856
  %v1874 = vmul.f32 %v1858, 1.442695
  %v1875 = vpow.pop %v1874
  %v1876 = vmul.f32 %v1859, 1.442695
  %v1877 = vpow.pop %v1876
  %v1878 = vmul.f32 %v1860, 1.442695
  %v1879 = vpow.pop %v1878
  %v1880 = vmul.f32 %v1861, 1.442695
  %v1881 = vpow.pop %v1880
  %v1882 = vmul.f32 %v1862, 1.442695
  %v1883 = vpow.pop %v1882
  %v1884 = vmul.f32 %v1863, 1.442695
  %v1885 = vpow.pop %v1884
  %v1886 = vmul.f32 %v1864, 1.442695
  %v1887 = vpow.pop %v1886
  %v1888 = vmul.f32 %v1865, 1.442695
  %v1889 = vpow.pop %v1888
  %v1890 = vmul.f32 %v1866, 1.442695
  %v1891 = vpow.pop %v1890
  %v1892 = vmul.f32 %v1867, 1.442695
  %v1893 = vpow.pop %v1892
  %v1894 = vmul.f32 %v1868, 1.442695
  %v1895 = vpow.pop %v1894
  %v1896 = vmul.f32 %v1869, 1.442695
  %v1897 = vpow.pop %v1896
  %v1898 = vmul.f32 %v1870, 1.442695
  %v1899 = vpow.pop %v1898
  %v1900 = vmul.f32 %v1871, 1.442695
  %v1901 = vpow.pop %v1900
  %v1902 = vmul.f32 %v1872, 1.442695
  %v1903 = vpow.pop %v1902
  %v1904 = vmul.f32 %v1873, 1.442695
  %v1905 = vpow.pop %v1904
  %v1906 = vmul.f32 %v1875, %v98
  %v1907 = vmul.f32 %v1877, %v99
  %v1908 = vmul.f32 %v1879, %v100
  %v1909 = vmul.f32 %v1881, %v101
  %v1910 = vmul.f32 %v1883, %v102
  %v1911 = vmul.f32 %v1885, %v103
  %v1912 = vmul.f32 %v1887, %v104
  %v1913 = vmul.f32 %v1889, %v105
  %v1914 = vmul.f32 %v1891, %v106
  %v1915 = vmul.f32 %v1893, %v107
  %v1916 = vmul.f32 %v1895, %v108
  %v1917 = vmul.f32 %v1897, %v109
  %v1918 = vmul.f32 %v1899, %v110
  %v1919 = vmul.f32 %v1901, %v111
  %v1920 = vmul.f32 %v1903, %v112
  %v1921 = vmul.f32 %v1905, %v113
  %v1922 = vpack.c.bf16 %v1907, %v1906
  %v1923 = vpack.c.bf16 %v1909, %v1908
  %v1924 = vpack.c.bf16 %v1911, %v1910
  %v1925 = vpack.c.bf16 %v1913, %v1912
  %v1926 = vpack.c.bf16 %v1915, %v1914
  %v1927 = vpack.c.bf16 %v1917, %v1916
  %v1928 = vpack.c.bf16 %v1919, %v1918
  %v1929 = vpack.c.bf16 %v1921, %v1920
  %1930 = vrot.lane.b32.xlu0 %v446, 92
  %v1931 = vpop.permute.xlu0 %1930
  %1932 = vrot.lane.b32.xlu0 %v447, 92
  %v1933 = vpop.permute.xlu0 %1932
  %1934 = vrot.lane.b32.xlu0 %v448, 92
  %v1935 = vpop.permute.xlu0 %1934
  %1936 = vrot.lane.b32.xlu0 %v449, 92
  %v1937 = vpop.permute.xlu0 %1936
  %1938 = vrot.lane.b32.xlu0 %v450, 92
  %v1939 = vpop.permute.xlu0 %1938
  %1940 = vrot.lane.b32.xlu0 %v451, 92
  %v1941 = vpop.permute.xlu0 %1940
  %1942 = vrot.lane.b32.xlu0 %v452, 92
  %v1943 = vpop.permute.xlu0 %1942
  %1944 = vrot.lane.b32.xlu0 %v453, 92
  %v1945 = vpop.permute.xlu0 %1944
  %1954 = vmatprep.subr.bf16.mxu0 0
  %1955 = vmatpush1.bf16.msra.mxu0 %v1931
  %1956 = vmatprep.subr.bf16.mxu0 0
  %1957 = vmatpush1.bf16.msra.mxu0 %v1933
  %1958 = vmatprep.subr.bf16.mxu0 0
  %1959 = vmatpush1.bf16.msra.mxu0 %v1935
  %1960 = vmatprep.subr.bf16.mxu0 0
  %1961 = vmatpush1.bf16.msra.mxu0 %v1937
  %1962 = vmatprep.subr.bf16.mxu0 0
  %1963 = vmatpush1.bf16.msra.mxu0 %v1939
  %1964 = vmatprep.subr.bf16.mxu0 0
  %1965 = vmatpush1.bf16.msra.mxu0 %v1941
  %1966 = vmatprep.subr.bf16.mxu0 0
  %1967 = vmatpush1.bf16.msra.mxu0 %v1943
  %1968 = vmatprep.subr.bf16.mxu0 0
  %1969 = vmatpush1.bf16.msra.mxu0 %v1945
  %1970 = vmatprep.subr.bf16.mxu0 0
  %1971 = vmatpush1.bf16.msra.mxu0 0
  %1972 = vmatprep.subr.bf16.mxu0 0
  %1973 = vmatpush1.bf16.msra.mxu0 0
  %1974 = vmatprep.subr.bf16.mxu0 0
  %1975 = vmatpush1.bf16.msra.mxu0 0
  %1976 = vmatprep.subr.bf16.mxu0 0
  %1977 = vmatpush1.bf16.msra.mxu0 0
  %1978 = vmatprep.subr.bf16.mxu0 0
  %1979 = vmatpush1.bf16.msra.mxu0 0
  %1980 = vmatprep.subr.bf16.mxu0 0
  %1981 = vmatpush1.bf16.msra.mxu0 0
  %1982 = vmatprep.subr.bf16.mxu0 0
  %1983 = vmatpush1.bf16.msra.mxu0 0
  %1984 = vmatprep.subr.bf16.mxu0 0
  %1985 = vmatpush1.bf16.msra.mxu0 0
  %1986 = vmatprep.mubr.bf16.mxu0 0
  %1987 = vmatmul.mubr.bf16.gmra.mrb[0].mxu0 %v1922
  %v1988 = vpop.f32.mrb[0].mxu0
  %v1989 = vadd.f32 0.0, %v1988
  %v1990 = vpop.f32.mrb[0].mxu0
  %v1991 = vpop.f32.mrb[0].mxu0
  %v1992 = vadd.f32 0.0, %v1991
  %v1993 = vpop.f32.mrb[0].mxu0
  %1994 = vmatprep.mubr.bf16.mxu0 0
  %1995 = vmatmul.mubr.bf16.gmra.mrb[0].mxu0 %v1923
  %v1996 = vpop.f32.mrb[0].mxu0
  %v1997 = vadd.f32 0.0, %v1996
  %v1998 = vpop.f32.mrb[0].mxu0
  %v1999 = vpop.f32.mrb[0].mxu0
  %v2000 = vadd.f32 0.0, %v1999
  %v2001 = vpop.f32.mrb[0].mxu0
  %2002 = vmatprep.mubr.bf16.mxu0 0
  %2003 = vmatmul.mubr.bf16.gmra.mrb[0].mxu0 %v1924
  %v2004 = vpop.f32.mrb[0].mxu0
  %v2005 = vadd.f32 0.0, %v2004
  %v2006 = vpop.f32.mrb[0].mxu0
  %v2007 = vpop.f32.mrb[0].mxu0
  %v2008 = vadd.f32 0.0, %v2007
  %v2009 = vpop.f32.mrb[0].mxu0
  %2010 = vmatprep.mubr.bf16.mxu0 0
  %2011 = vmatmul.mubr.bf16.gmra.mrb[0].mxu0 %v1925
  %v2012 = vpop.f32.mrb[0].mxu0
  %v2013 = vadd.f32 0.0, %v2012
  %v2014 = vpop.f32.mrb[0].mxu0
  %v2015 = vpop.f32.mrb[0].mxu0
  %v2016 = vadd.f32 0.0, %v2015
  %v2017 = vpop.f32.mrb[0].mxu0
  %2018 = vmatprep.mubr.bf16.mxu0 0
  %2019 = vmatmul.mubr.bf16.gmra.mrb[0].mxu0 %v1926
  %v2020 = vpop.f32.mrb[0].mxu0
  %v2021 = vadd.f32 0.0, %v2020
  %v2022 = vpop.f32.mrb[0].mxu0
  %v2023 = vpop.f32.mrb[0].mxu0
  %v2024 = vadd.f32 0.0, %v2023
  %v2025 = vpop.f32.mrb[0].mxu0
  %2026 = vmatprep.mubr.bf16.mxu0 0
  %2027 = vmatmul.mubr.bf16.gmra.mrb[0].mxu0 %v1927
  %v2028 = vpop.f32.mrb[0].mxu0
  %v2029 = vadd.f32 0.0, %v2028
  %v2030 = vpop.f32.mrb[0].mxu0
  %v2031 = vpop.f32.mrb[0].mxu0
  %v2032 = vadd.f32 0.0, %v2031
  %v2033 = vpop.f32.mrb[0].mxu0
  %2034 = vmatprep.mubr.bf16.mxu0 0
  %2035 = vmatmul.mubr.bf16.gmra.mrb[0].mxu0 %v1928
  %v2036 = vpop.f32.mrb[0].mxu0
  %v2037 = vadd.f32 0.0, %v2036
  %v2038 = vpop.f32.mrb[0].mxu0
  %v2039 = vpop.f32.mrb[0].mxu0
  %v2040 = vadd.f32 0.0, %v2039
  %v2041 = vpop.f32.mrb[0].mxu0
  %2042 = vmatprep.mubr.bf16.mxu0 0
  %2043 = vmatmul.mubr.bf16.gmra.mrb[0].mxu0 %v1929
  %v2044 = vpop.f32.mrb[0].mxu0
  %v2045 = vadd.f32 0.0, %v2044
  %v2046 = vpop.f32.mrb[0].mxu0
  %v2047 = vpop.f32.mrb[0].mxu0
  %v2048 = vadd.f32 0.0, %v2047
  %v2049 = vpop.f32.mrb[0].mxu0
  %2050 = vdwg.mxu0
  %2051 = vset.pattern.permute.xlu0 5
  %2052 = vperm.xlu0 %2051, %v45
  %v2053 = vpop.permute.xlu0 %2052
  %2055 = vset.pattern.permute.xlu0 5
  %2056 = vperm.xlu0 %2055, %v46
  %v2057 = vpop.permute.xlu0 %2056
  %2059 = vset.pattern.permute.xlu0 5
  %2060 = vperm.xlu0 %2059, %v47
  %v2061 = vpop.permute.xlu0 %2060
  %2063 = vset.pattern.permute.xlu0 5
  %2064 = vperm.xlu0 %2063, %v48
  %v2065 = vpop.permute.xlu0 %2064
  %2067 = vset.pattern.permute.xlu0 5
  %2068 = vperm.xlu0 %2067, %v49
  %v2069 = vpop.permute.xlu0 %2068
  %2071 = vset.pattern.permute.xlu0 5
  %2072 = vperm.xlu0 %2071, %v50
  %v2073 = vpop.permute.xlu0 %2072
  %2075 = vset.pattern.permute.xlu0 5
  %2076 = vperm.xlu0 %2075, %v51
  %v2077 = vpop.permute.xlu0 %2076
  %2079 = vset.pattern.permute.xlu0 5
  %2080 = vperm.xlu0 %2079, %v52
  %v2081 = vpop.permute.xlu0 %2080
  %2083 = vset.pattern.permute.xlu0 5
  %2084 = vperm.xlu0 %2083, %v53
  %v2085 = vpop.permute.xlu0 %2084
  %2087 = vset.pattern.permute.xlu0 5
  %2088 = vperm.xlu0 %2087, %v54
  %v2089 = vpop.permute.xlu0 %2088
  %2091 = vset.pattern.permute.xlu0 5
  %2092 = vperm.xlu0 %2091, %v55
  %v2093 = vpop.permute.xlu0 %2092
  %2095 = vset.pattern.permute.xlu0 5
  %2096 = vperm.xlu0 %2095, %v56
  %v2097 = vpop.permute.xlu0 %2096
  %2099 = vset.pattern.permute.xlu0 5
  %2100 = vperm.xlu0 %2099, %v57
  %v2101 = vpop.permute.xlu0 %2100
  %2103 = vset.pattern.permute.xlu0 5
  %2104 = vperm.xlu0 %2103, %v58
  %v2105 = vpop.permute.xlu0 %2104
  %2107 = vset.pattern.permute.xlu0 5
  %2108 = vperm.xlu0 %2107, %v59
  %v2109 = vpop.permute.xlu0 %2108
  %2111 = vset.pattern.permute.xlu0 5
  %2112 = vperm.xlu0 %2111, %v60
  %v2113 = vpop.permute.xlu0 %2112
  %v2115 = vlaneseq
  %v2116 = vshrl.u32 %v2115, 7
  %v2117 = vsub.s32 5, %v2116
  %v2118 = vrot.slane %v77, %v2117
  %v2119 = vadd.f32 %v2053, %v2118
  %v2120 = vadd.f32 %v2057, %v2118
  %v2121 = vadd.f32 %v2061, %v2118
  %v2122 = vadd.f32 %v2065, %v2118
  %v2123 = vadd.f32 %v2069, %v2118
  %v2124 = vadd.f32 %v2073, %v2118
  %v2125 = vadd.f32 %v2077, %v2118
  %v2126 = vadd.f32 %v2081, %v2118
  %v2127 = vadd.f32 %v2085, %v2118
  %v2128 = vadd.f32 %v2089, %v2118
  %v2129 = vadd.f32 %v2093, %v2118
  %v2130 = vadd.f32 %v2097, %v2118
  %v2131 = vadd.f32 %v2101, %v2118
  %v2132 = vadd.f32 %v2105, %v2118
  %v2133 = vadd.f32 %v2109, %v2118
  %v2134 = vadd.f32 %v2113, %v2118
  %v2135 = vmul.f32 %v2119, 0.2
  %v2136 = vmul.f32 %v2120, 0.2
  %v2137 = vmul.f32 %v2121, 0.2
  %v2138 = vmul.f32 %v2122, 0.2
  %v2139 = vmul.f32 %v2123, 0.2
  %v2140 = vmul.f32 %v2124, 0.2
  %v2141 = vmul.f32 %v2125, 0.2
  %v2142 = vmul.f32 %v2126, 0.2
  %v2143 = vmul.f32 %v2127, 0.2
  %v2144 = vmul.f32 %v2128, 0.2
  %v2145 = vmul.f32 %v2129, 0.2
  %v2146 = vmul.f32 %v2130, 0.2
  %v2147 = vmul.f32 %v2131, 0.2
  %v2148 = vmul.f32 %v2132, 0.2
  %v2149 = vmul.f32 %v2133, 0.2
  %v2150 = vmul.f32 %v2134, 0.2
  %v2151 = vmax.f32 %v2119, %v2135
  %v2152 = vmax.f32 %v2120, %v2136
  %v2153 = vmax.f32 %v2121, %v2137
  %v2154 = vmax.f32 %v2122, %v2138
  %v2155 = vmax.f32 %v2123, %v2139
  %v2156 = vmax.f32 %v2124, %v2140
  %v2157 = vmax.f32 %v2125, %v2141
  %v2158 = vmax.f32 %v2126, %v2142
  %v2159 = vmax.f32 %v2127, %v2143
  %v2160 = vmax.f32 %v2128, %v2144
  %v2161 = vmax.f32 %v2129, %v2145
  %v2162 = vmax.f32 %v2130, %v2146
  %v2163 = vmax.f32 %v2131, %v2147
  %v2164 = vmax.f32 %v2132, %v2148
  %v2165 = vmax.f32 %v2133, %v2149
  %v2166 = vmax.f32 %v2134, %v2150
  %2167 = vset.pattern.permute.xlu0 5
  %2168 = vperm.xlu0 %2167, %v61
  %v2169 = vpop.permute.xlu0 %2168
  %2171 = vset.pattern.permute.xlu0 5
  %2172 = vperm.xlu0 %2171, %v62
  %v2173 = vpop.permute.xlu0 %2172
  %2175 = vset.pattern.permute.xlu0 5
  %2176 = vperm.xlu0 %2175, %v63
  %v2177 = vpop.permute.xlu0 %2176
  %2179 = vset.pattern.permute.xlu0 5
  %2180 = vperm.xlu0 %2179, %v64
  %v2181 = vpop.permute.xlu0 %2180
  %2183 = vset.pattern.permute.xlu0 5
  %2184 = vperm.xlu0 %2183, %v65
  %v2185 = vpop.permute.xlu0 %2184
  %2187 = vset.pattern.permute.xlu0 5
  %2188 = vperm.xlu0 %2187, %v66
  %v2189 = vpop.permute.xlu0 %2188
  %2191 = vset.pattern.permute.xlu0 5
  %2192 = vperm.xlu0 %2191, %v67
  %v2193 = vpop.permute.xlu0 %2192
  %2195 = vset.pattern.permute.xlu0 5
  %2196 = vperm.xlu0 %2195, %v68
  %v2197 = vpop.permute.xlu0 %2196
  %2199 = vset.pattern.permute.xlu0 5
  %2200 = vperm.xlu0 %2199, %v69
  %v2201 = vpop.permute.xlu0 %2200
  %2203 = vset.pattern.permute.xlu0 5
  %2204 = vperm.xlu0 %2203, %v70
  %v2205 = vpop.permute.xlu0 %2204
  %2207 = vset.pattern.permute.xlu0 5
  %2208 = vperm.xlu0 %2207, %v71
  %v2209 = vpop.permute.xlu0 %2208
  %2211 = vset.pattern.permute.xlu0 5
  %2212 = vperm.xlu0 %2211, %v72
  %v2213 = vpop.permute.xlu0 %2212
  %2215 = vset.pattern.permute.xlu0 5
  %2216 = vperm.xlu0 %2215, %v73
  %v2217 = vpop.permute.xlu0 %2216
  %2219 = vset.pattern.permute.xlu0 5
  %2220 = vperm.xlu0 %2219, %v74
  %v2221 = vpop.permute.xlu0 %2220
  %2223 = vset.pattern.permute.xlu0 5
  %2224 = vperm.xlu0 %2223, %v75
  %v2225 = vpop.permute.xlu0 %2224
  %2227 = vset.pattern.permute.xlu0 5
  %2228 = vperm.xlu0 %2227, %v76
  %v2229 = vpop.permute.xlu0 %2228
  %v2231 = vsub.f32 %v2151, %v2169
  %v2232 = vsub.f32 %v2152, %v2173
  %v2233 = vsub.f32 %v2153, %v2177
  %v2234 = vsub.f32 %v2154, %v2181
  %v2235 = vsub.f32 %v2155, %v2185
  %v2236 = vsub.f32 %v2156, %v2189
  %v2237 = vsub.f32 %v2157, %v2193
  %v2238 = vsub.f32 %v2158, %v2197
  %v2239 = vsub.f32 %v2159, %v2201
  %v2240 = vsub.f32 %v2160, %v2205
  %v2241 = vsub.f32 %v2161, %v2209
  %v2242 = vsub.f32 %v2162, %v2213
  %v2243 = vsub.f32 %v2163, %v2217
  %v2244 = vsub.f32 %v2164, %v2221
  %v2245 = vsub.f32 %v2165, %v2225
  %v2246 = vsub.f32 %v2166, %v2229
  %v2247 = vmul.f32 %v2231, 1.442695
  %v2248 = vpow.pop %v2247
  %v2249 = vmul.f32 %v2232, 1.442695
  %v2250 = vpow.pop %v2249
  %v2251 = vmul.f32 %v2233, 1.442695
  %v2252 = vpow.pop %v2251
  %v2253 = vmul.f32 %v2234, 1.442695
  %v2254 = vpow.pop %v2253
  %v2255 = vmul.f32 %v2235, 1.442695
  %v2256 = vpow.pop %v2255
  %v2257 = vmul.f32 %v2236, 1.442695
  %v2258 = vpow.pop %v2257
  %v2259 = vmul.f32 %v2237, 1.442695
  %v2260 = vpow.pop %v2259
  %v2261 = vmul.f32 %v2238, 1.442695
  %v2262 = vpow.pop %v2261
  %v2263 = vmul.f32 %v2239, 1.442695
  %v2264 = vpow.pop %v2263
  %v2265 = vmul.f32 %v2240, 1.442695
  %v2266 = vpow.pop %v2265
  %v2267 = vmul.f32 %v2241, 1.442695
  %v2268 = vpow.pop %v2267
  %v2269 = vmul.f32 %v2242, 1.442695
  %v2270 = vpow.pop %v2269
  %v2271 = vmul.f32 %v2243, 1.442695
  %v2272 = vpow.pop %v2271
  %v2273 = vmul.f32 %v2244, 1.442695
  %v2274 = vpow.pop %v2273
  %v2275 = vmul.f32 %v2245, 1.442695
  %v2276 = vpow.pop %v2275
  %v2277 = vmul.f32 %v2246, 1.442695
  %v2278 = vpow.pop %v2277
  %v2279 = vmul.f32 %v2248, %v98
  %v2280 = vmul.f32 %v2250, %v99
  %v2281 = vmul.f32 %v2252, %v100
  %v2282 = vmul.f32 %v2254, %v101
  %v2283 = vmul.f32 %v2256, %v102
  %v2284 = vmul.f32 %v2258, %v103
  %v2285 = vmul.f32 %v2260, %v104
  %v2286 = vmul.f32 %v2262, %v105
  %v2287 = vmul.f32 %v2264, %v106
  %v2288 = vmul.f32 %v2266, %v107
  %v2289 = vmul.f32 %v2268, %v108
  %v2290 = vmul.f32 %v2270, %v109
  %v2291 = vmul.f32 %v2272, %v110
  %v2292 = vmul.f32 %v2274, %v111
  %v2293 = vmul.f32 %v2276, %v112
  %v2294 = vmul.f32 %v2278, %v113
  %v2295 = vpack.c.bf16 %v2280, %v2279
  %v2296 = vpack.c.bf16 %v2282, %v2281
  %v2297 = vpack.c.bf16 %v2284, %v2283
  %v2298 = vpack.c.bf16 %v2286, %v2285
  %v2299 = vpack.c.bf16 %v2288, %v2287
  %v2300 = vpack.c.bf16 %v2290, %v2289
  %v2301 = vpack.c.bf16 %v2292, %v2291
  %v2302 = vpack.c.bf16 %v2294, %v2293
  %2303 = vrot.lane.b32.xlu0 %v446, 83
  %v2304 = vpop.permute.xlu0 %2303
  %2305 = vrot.lane.b32.xlu0 %v447, 83
  %v2306 = vpop.permute.xlu0 %2305
  %2307 = vrot.lane.b32.xlu0 %v448, 83
  %v2308 = vpop.permute.xlu0 %2307
  %2309 = vrot.lane.b32.xlu0 %v449, 83
  %v2310 = vpop.permute.xlu0 %2309
  %2311 = vrot.lane.b32.xlu0 %v450, 83
  %v2312 = vpop.permute.xlu0 %2311
  %2313 = vrot.lane.b32.xlu0 %v451, 83
  %v2314 = vpop.permute.xlu0 %2313
  %2315 = vrot.lane.b32.xlu0 %v452, 83
  %v2316 = vpop.permute.xlu0 %2315
  %2317 = vrot.lane.b32.xlu0 %v453, 83
  %v2318 = vpop.permute.xlu0 %2317
  %2327 = vmatprep.subr.bf16.mxu0 0
  %2328 = vmatpush1.bf16.msra.mxu0 %v2304
  %2329 = vmatprep.subr.bf16.mxu0 0
  %2330 = vmatpush1.bf16.msra.mxu0 %v2306
  %2331 = vmatprep.subr.bf16.mxu0 0
  %2332 = vmatpush1.bf16.msra.mxu0 %v2308
  %2333 = vmatprep.subr.bf16.mxu0 0
  %2334 = vmatpush1.bf16.msra.mxu0 %v2310
  %2335 = vmatprep.subr.bf16.mxu0 0
  %2336 = vmatpush1.bf16.msra.mxu0 %v2312
  %2337 = vmatprep.subr.bf16.mxu0 0
  %2338 = vmatpush1.bf16.msra.mxu0 %v2314
  %2339 = vmatprep.subr.bf16.mxu0 0
  %2340 = vmatpush1.bf16.msra.mxu0 %v2316
  %2341 = vmatprep.subr.bf16.mxu0 0
  %2342 = vmatpush1.bf16.msra.mxu0 %v2318
  %2343 = vmatprep.subr.bf16.mxu0 0
  %2344 = vmatpush1.bf16.msra.mxu0 0
  %2345 = vmatprep.subr.bf16.mxu0 0
  %2346 = vmatpush1.bf16.msra.mxu0 0
  %2347 = vmatprep.subr.bf16.mxu0 0
  %2348 = vmatpush1.bf16.msra.mxu0 0
  %2349 = vmatprep.subr.bf16.mxu0 0
  %2350 = vmatpush1.bf16.msra.mxu0 0
  %2351 = vmatprep.subr.bf16.mxu0 0
  %2352 = vmatpush1.bf16.msra.mxu0 0
  %2353 = vmatprep.subr.bf16.mxu0 0
  %2354 = vmatpush1.bf16.msra.mxu0 0
  %2355 = vmatprep.subr.bf16.mxu0 0
  %2356 = vmatpush1.bf16.msra.mxu0 0
  %2357 = vmatprep.subr.bf16.mxu0 0
  %2358 = vmatpush1.bf16.msra.mxu0 0
  %2359 = vmatprep.mubr.bf16.mxu0 0
  %2360 = vmatmul.mubr.bf16.gmra.mrb[0].mxu0 %v2295
  %v2361 = vpop.f32.mrb[0].mxu0
  %v2362 = vadd.f32 0.0, %v2361
  %v2363 = vpop.f32.mrb[0].mxu0
  %v2364 = vpop.f32.mrb[0].mxu0
  %v2365 = vadd.f32 0.0, %v2364
  %v2366 = vpop.f32.mrb[0].mxu0
  %2367 = vmatprep.mubr.bf16.mxu0 0
  %2368 = vmatmul.mubr.bf16.gmra.mrb[0].mxu0 %v2296
  %v2369 = vpop.f32.mrb[0].mxu0
  %v2370 = vadd.f32 0.0, %v2369
  %v2371 = vpop.f32.mrb[0].mxu0
  %v2372 = vpop.f32.mrb[0].mxu0
  %v2373 = vadd.f32 0.0, %v2372
  %v2374 = vpop.f32.mrb[0].mxu0
  %2375 = vmatprep.mubr.bf16.mxu0 0
  %2376 = vmatmul.mubr.bf16.gmra.mrb[0].mxu0 %v2297
  %v2377 = vpop.f32.mrb[0].mxu0
  %v2378 = vadd.f32 0.0, %v2377
  %v2379 = vpop.f32.mrb[0].mxu0
  %v2380 = vpop.f32.mrb[0].mxu0
  %v2381 = vadd.f32 0.0, %v2380
  %v2382 = vpop.f32.mrb[0].mxu0
  %2383 = vmatprep.mubr.bf16.mxu0 0
  %2384 = vmatmul.mubr.bf16.gmra.mrb[0].mxu0 %v2298
  %v2385 = vpop.f32.mrb[0].mxu0
  %v2386 = vadd.f32 0.0, %v2385
  %v2387 = vpop.f32.mrb[0].mxu0
  %v2388 = vpop.f32.mrb[0].mxu0
  %v2389 = vadd.f32 0.0, %v2388
  %v2390 = vpop.f32.mrb[0].mxu0
  %2391 = vmatprep.mubr.bf16.mxu0 0
  %2392 = vmatmul.mubr.bf16.gmra.mrb[0].mxu0 %v2299
  %v2393 = vpop.f32.mrb[0].mxu0
  %v2394 = vadd.f32 0.0, %v2393
  %v2395 = vpop.f32.mrb[0].mxu0
  %v2396 = vpop.f32.mrb[0].mxu0
  %v2397 = vadd.f32 0.0, %v2396
  %v2398 = vpop.f32.mrb[0].mxu0
  %2399 = vmatprep.mubr.bf16.mxu0 0
  %2400 = vmatmul.mubr.bf16.gmra.mrb[0].mxu0 %v2300
  %v2401 = vpop.f32.mrb[0].mxu0
  %v2402 = vadd.f32 0.0, %v2401
  %v2403 = vpop.f32.mrb[0].mxu0
  %v2404 = vpop.f32.mrb[0].mxu0
  %v2405 = vadd.f32 0.0, %v2404
  %v2406 = vpop.f32.mrb[0].mxu0
  %2407 = vmatprep.mubr.bf16.mxu0 0
  %2408 = vmatmul.mubr.bf16.gmra.mrb[0].mxu0 %v2301
  %v2409 = vpop.f32.mrb[0].mxu0
  %v2410 = vadd.f32 0.0, %v2409
  %v2411 = vpop.f32.mrb[0].mxu0
  %v2412 = vpop.f32.mrb[0].mxu0
  %v2413 = vadd.f32 0.0, %v2412
  %v2414 = vpop.f32.mrb[0].mxu0
  %2415 = vmatprep.mubr.bf16.mxu0 0
  %2416 = vmatmul.mubr.bf16.gmra.mrb[0].mxu0 %v2302
  %v2417 = vpop.f32.mrb[0].mxu0
  %v2418 = vadd.f32 0.0, %v2417
  %v2419 = vpop.f32.mrb[0].mxu0
  %v2420 = vpop.f32.mrb[0].mxu0
  %v2421 = vadd.f32 0.0, %v2420
  %v2422 = vpop.f32.mrb[0].mxu0
  %2423 = vdwg.mxu0
  %2424 = vset.pattern.permute.xlu0 6
  %2425 = vperm.xlu0 %2424, %v45
  %v2426 = vpop.permute.xlu0 %2425
  %2428 = vset.pattern.permute.xlu0 6
  %2429 = vperm.xlu0 %2428, %v46
  %v2430 = vpop.permute.xlu0 %2429
  %2432 = vset.pattern.permute.xlu0 6
  %2433 = vperm.xlu0 %2432, %v47
  %v2434 = vpop.permute.xlu0 %2433
  %2436 = vset.pattern.permute.xlu0 6
  %2437 = vperm.xlu0 %2436, %v48
  %v2438 = vpop.permute.xlu0 %2437
  %2440 = vset.pattern.permute.xlu0 6
  %2441 = vperm.xlu0 %2440, %v49
  %v2442 = vpop.permute.xlu0 %2441
  %2444 = vset.pattern.permute.xlu0 6
  %2445 = vperm.xlu0 %2444, %v50
  %v2446 = vpop.permute.xlu0 %2445
  %2448 = vset.pattern.permute.xlu0 6
  %2449 = vperm.xlu0 %2448, %v51
  %v2450 = vpop.permute.xlu0 %2449
  %2452 = vset.pattern.permute.xlu0 6
  %2453 = vperm.xlu0 %2452, %v52
  %v2454 = vpop.permute.xlu0 %2453
  %2456 = vset.pattern.permute.xlu0 6
  %2457 = vperm.xlu0 %2456, %v53
  %v2458 = vpop.permute.xlu0 %2457
  %2460 = vset.pattern.permute.xlu0 6
  %2461 = vperm.xlu0 %2460, %v54
  %v2462 = vpop.permute.xlu0 %2461
  %2464 = vset.pattern.permute.xlu0 6
  %2465 = vperm.xlu0 %2464, %v55
  %v2466 = vpop.permute.xlu0 %2465
  %2468 = vset.pattern.permute.xlu0 6
  %2469 = vperm.xlu0 %2468, %v56
  %v2470 = vpop.permute.xlu0 %2469
  %2472 = vset.pattern.permute.xlu0 6
  %2473 = vperm.xlu0 %2472, %v57
  %v2474 = vpop.permute.xlu0 %2473
  %2476 = vset.pattern.permute.xlu0 6
  %2477 = vperm.xlu0 %2476, %v58
  %v2478 = vpop.permute.xlu0 %2477
  %2480 = vset.pattern.permute.xlu0 6
  %2481 = vperm.xlu0 %2480, %v59
  %v2482 = vpop.permute.xlu0 %2481
  %2484 = vset.pattern.permute.xlu0 6
  %2485 = vperm.xlu0 %2484, %v60
  %v2486 = vpop.permute.xlu0 %2485
  %v2488 = vlaneseq
  %v2489 = vshrl.u32 %v2488, 7
  %v2490 = vsub.s32 6, %v2489
  %v2491 = vrot.slane %v77, %v2490
  %v2492 = vadd.f32 %v2426, %v2491
  %v2493 = vadd.f32 %v2430, %v2491
  %v2494 = vadd.f32 %v2434, %v2491
  %v2495 = vadd.f32 %v2438, %v2491
  %v2496 = vadd.f32 %v2442, %v2491
  %v2497 = vadd.f32 %v2446, %v2491
  %v2498 = vadd.f32 %v2450, %v2491
  %v2499 = vadd.f32 %v2454, %v2491
  %v2500 = vadd.f32 %v2458, %v2491
  %v2501 = vadd.f32 %v2462, %v2491
  %v2502 = vadd.f32 %v2466, %v2491
  %v2503 = vadd.f32 %v2470, %v2491
  %v2504 = vadd.f32 %v2474, %v2491
  %v2505 = vadd.f32 %v2478, %v2491
  %v2506 = vadd.f32 %v2482, %v2491
  %v2507 = vadd.f32 %v2486, %v2491
  %v2508 = vmul.f32 %v2492, 0.2
  %v2509 = vmul.f32 %v2493, 0.2
  %v2510 = vmul.f32 %v2494, 0.2
  %v2511 = vmul.f32 %v2495, 0.2
  %v2512 = vmul.f32 %v2496, 0.2
  %v2513 = vmul.f32 %v2497, 0.2
  %v2514 = vmul.f32 %v2498, 0.2
  %v2515 = vmul.f32 %v2499, 0.2
  %v2516 = vmul.f32 %v2500, 0.2
  %v2517 = vmul.f32 %v2501, 0.2
  %v2518 = vmul.f32 %v2502, 0.2
  %v2519 = vmul.f32 %v2503, 0.2
  %v2520 = vmul.f32 %v2504, 0.2
  %v2521 = vmul.f32 %v2505, 0.2
  %v2522 = vmul.f32 %v2506, 0.2
  %v2523 = vmul.f32 %v2507, 0.2
  %v2524 = vmax.f32 %v2492, %v2508
  %v2525 = vmax.f32 %v2493, %v2509
  %v2526 = vmax.f32 %v2494, %v2510
  %v2527 = vmax.f32 %v2495, %v2511
  %v2528 = vmax.f32 %v2496, %v2512
  %v2529 = vmax.f32 %v2497, %v2513
  %v2530 = vmax.f32 %v2498, %v2514
  %v2531 = vmax.f32 %v2499, %v2515
  %v2532 = vmax.f32 %v2500, %v2516
  %v2533 = vmax.f32 %v2501, %v2517
  %v2534 = vmax.f32 %v2502, %v2518
  %v2535 = vmax.f32 %v2503, %v2519
  %v2536 = vmax.f32 %v2504, %v2520
  %v2537 = vmax.f32 %v2505, %v2521
  %v2538 = vmax.f32 %v2506, %v2522
  %v2539 = vmax.f32 %v2507, %v2523
  %2540 = vset.pattern.permute.xlu0 6
  %2541 = vperm.xlu0 %2540, %v61
  %v2542 = vpop.permute.xlu0 %2541
  %2544 = vset.pattern.permute.xlu0 6
  %2545 = vperm.xlu0 %2544, %v62
  %v2546 = vpop.permute.xlu0 %2545
  %2548 = vset.pattern.permute.xlu0 6
  %2549 = vperm.xlu0 %2548, %v63
  %v2550 = vpop.permute.xlu0 %2549
  %2552 = vset.pattern.permute.xlu0 6
  %2553 = vperm.xlu0 %2552, %v64
  %v2554 = vpop.permute.xlu0 %2553
  %2556 = vset.pattern.permute.xlu0 6
  %2557 = vperm.xlu0 %2556, %v65
  %v2558 = vpop.permute.xlu0 %2557
  %2560 = vset.pattern.permute.xlu0 6
  %2561 = vperm.xlu0 %2560, %v66
  %v2562 = vpop.permute.xlu0 %2561
  %2564 = vset.pattern.permute.xlu0 6
  %2565 = vperm.xlu0 %2564, %v67
  %v2566 = vpop.permute.xlu0 %2565
  %2568 = vset.pattern.permute.xlu0 6
  %2569 = vperm.xlu0 %2568, %v68
  %v2570 = vpop.permute.xlu0 %2569
  %2572 = vset.pattern.permute.xlu0 6
  %2573 = vperm.xlu0 %2572, %v69
  %v2574 = vpop.permute.xlu0 %2573
  %2576 = vset.pattern.permute.xlu0 6
  %2577 = vperm.xlu0 %2576, %v70
  %v2578 = vpop.permute.xlu0 %2577
  %2580 = vset.pattern.permute.xlu0 6
  %2581 = vperm.xlu0 %2580, %v71
  %v2582 = vpop.permute.xlu0 %2581
  %2584 = vset.pattern.permute.xlu0 6
  %2585 = vperm.xlu0 %2584, %v72
  %v2586 = vpop.permute.xlu0 %2585
  %2588 = vset.pattern.permute.xlu0 6
  %2589 = vperm.xlu0 %2588, %v73
  %v2590 = vpop.permute.xlu0 %2589
  %2592 = vset.pattern.permute.xlu0 6
  %2593 = vperm.xlu0 %2592, %v74
  %v2594 = vpop.permute.xlu0 %2593
  %2596 = vset.pattern.permute.xlu0 6
  %2597 = vperm.xlu0 %2596, %v75
  %v2598 = vpop.permute.xlu0 %2597
  %2600 = vset.pattern.permute.xlu0 6
  %2601 = vperm.xlu0 %2600, %v76
  %v2602 = vpop.permute.xlu0 %2601
  %v2604 = vsub.f32 %v2524, %v2542
  %v2605 = vsub.f32 %v2525, %v2546
  %v2606 = vsub.f32 %v2526, %v2550
  %v2607 = vsub.f32 %v2527, %v2554
  %v2608 = vsub.f32 %v2528, %v2558
  %v2609 = vsub.f32 %v2529, %v2562
  %v2610 = vsub.f32 %v2530, %v2566
  %v2611 = vsub.f32 %v2531, %v2570
  %v2612 = vsub.f32 %v2532, %v2574
  %v2613 = vsub.f32 %v2533, %v2578
  %v2614 = vsub.f32 %v2534, %v2582
  %v2615 = vsub.f32 %v2535, %v2586
  %v2616 = vsub.f32 %v2536, %v2590
  %v2617 = vsub.f32 %v2537, %v2594
  %v2618 = vsub.f32 %v2538, %v2598
  %v2619 = vsub.f32 %v2539, %v2602
  %v2620 = vmul.f32 %v2604, 1.442695
  %v2621 = vpow.pop %v2620
  %v2622 = vmul.f32 %v2605, 1.442695
  %v2623 = vpow.pop %v2622
  %v2624 = vmul.f32 %v2606, 1.442695
  %v2625 = vpow.pop %v2624
  %v2626 = vmul.f32 %v2607, 1.442695
  %v2627 = vpow.pop %v2626
  %v2628 = vmul.f32 %v2608, 1.442695
  %v2629 = vpow.pop %v2628
  %v2630 = vmul.f32 %v2609, 1.442695
  %v2631 = vpow.pop %v2630
  %v2632 = vmul.f32 %v2610, 1.442695
  %v2633 = vpow.pop %v2632
  %v2634 = vmul.f32 %v2611, 1.442695
  %v2635 = vpow.pop %v2634
  %v2636 = vmul.f32 %v2612, 1.442695
  %v2637 = vpow.pop %v2636
  %v2638 = vmul.f32 %v2613, 1.442695
  %v2639 = vpow.pop %v2638
  %v2640 = vmul.f32 %v2614, 1.442695
  %v2641 = vpow.pop %v2640
  %v2642 = vmul.f32 %v2615, 1.442695
  %v2643 = vpow.pop %v2642
  %v2644 = vmul.f32 %v2616, 1.442695
  %v2645 = vpow.pop %v2644
  %v2646 = vmul.f32 %v2617, 1.442695
  %v2647 = vpow.pop %v2646
  %v2648 = vmul.f32 %v2618, 1.442695
  %v2649 = vpow.pop %v2648
  %v2650 = vmul.f32 %v2619, 1.442695
  %v2651 = vpow.pop %v2650
  %v2652 = vmul.f32 %v2621, %v98
  %v2653 = vmul.f32 %v2623, %v99
  %v2654 = vmul.f32 %v2625, %v100
  %v2655 = vmul.f32 %v2627, %v101
  %v2656 = vmul.f32 %v2629, %v102
  %v2657 = vmul.f32 %v2631, %v103
  %v2658 = vmul.f32 %v2633, %v104
  %v2659 = vmul.f32 %v2635, %v105
  %v2660 = vmul.f32 %v2637, %v106
  %v2661 = vmul.f32 %v2639, %v107
  %v2662 = vmul.f32 %v2641, %v108
  %v2663 = vmul.f32 %v2643, %v109
  %v2664 = vmul.f32 %v2645, %v110
  %v2665 = vmul.f32 %v2647, %v111
  %v2666 = vmul.f32 %v2649, %v112
  %v2667 = vmul.f32 %v2651, %v113
  %v2668 = vpack.c.bf16 %v2653, %v2652
  %v2669 = vpack.c.bf16 %v2655, %v2654
  %v2670 = vpack.c.bf16 %v2657, %v2656
  %v2671 = vpack.c.bf16 %v2659, %v2658
  %v2672 = vpack.c.bf16 %v2661, %v2660
  %v2673 = vpack.c.bf16 %v2663, %v2662
  %v2674 = vpack.c.bf16 %v2665, %v2664
  %v2675 = vpack.c.bf16 %v2667, %v2666
  %2676 = vrot.lane.b32.xlu0 %v446, 74
  %v2677 = vpop.permute.xlu0 %2676
  %2678 = vrot.lane.b32.xlu0 %v447, 74
  %v2679 = vpop.permute.xlu0 %2678
  %2680 = vrot.lane.b32.xlu0 %v448, 74
  %v2681 = vpop.permute.xlu0 %2680
  %2682 = vrot.lane.b32.xlu0 %v449, 74
  %v2683 = vpop.permute.xlu0 %2682
  %2684 = vrot.lane.b32.xlu0 %v450, 74
  %v2685 = vpop.permute.xlu0 %2684
  %2686 = vrot.lane.b32.xlu0 %v451, 74
  %v2687 = vpop.permute.xlu0 %2686
  %2688 = vrot.lane.b32.xlu0 %v452, 74
  %v2689 = vpop.permute.xlu0 %2688
  %2690 = vrot.lane.b32.xlu0 %v453, 74
  %v2691 = vpop.permute.xlu0 %2690
  %2700 = vmatprep.subr.bf16.mxu0 0
  %2701 = vmatpush1.bf16.msra.mxu0 %v2677
  %2702 = vmatprep.subr.bf16.mxu0 0
  %2703 = vmatpush1.bf16.msra.mxu0 %v2679
  %2704 = vmatprep.subr.bf16.mxu0 0
  %2705 = vmatpush1.bf16.msra.mxu0 %v2681
  %2706 = vmatprep.subr.bf16.mxu0 0
  %2707 = vmatpush1.bf16.msra.mxu0 %v2683
  %2708 = vmatprep.subr.bf16.mxu0 0
  %2709 = vmatpush1.bf16.msra.mxu0 %v2685
  %2710 = vmatprep.subr.bf16.mxu0 0
  %2711 = vmatpush1.bf16.msra.mxu0 %v2687
  %2712 = vmatprep.subr.bf16.mxu0 0
  %2713 = vmatpush1.bf16.msra.mxu0 %v2689
  %2714 = vmatprep.subr.bf16.mxu0 0
  %2715 = vmatpush1.bf16.msra.mxu0 %v2691
  %2716 = vmatprep.subr.bf16.mxu0 0
  %2717 = vmatpush1.bf16.msra.mxu0 0
  %2718 = vmatprep.subr.bf16.mxu0 0
  %2719 = vmatpush1.bf16.msra.mxu0 0
  %2720 = vmatprep.subr.bf16.mxu0 0
  %2721 = vmatpush1.bf16.msra.mxu0 0
  %2722 = vmatprep.subr.bf16.mxu0 0
  %2723 = vmatpush1.bf16.msra.mxu0 0
  %2724 = vmatprep.subr.bf16.mxu0 0
  %2725 = vmatpush1.bf16.msra.mxu0 0
  %2726 = vmatprep.subr.bf16.mxu0 0
  %2727 = vmatpush1.bf16.msra.mxu0 0
  %2728 = vmatprep.subr.bf16.mxu0 0
  %2729 = vmatpush1.bf16.msra.mxu0 0
  %2730 = vmatprep.subr.bf16.mxu0 0
  %2731 = vmatpush1.bf16.msra.mxu0 0
  %2732 = vmatprep.mubr.bf16.mxu0 0
  %2733 = vmatmul.mubr.bf16.gmra.mrb[0].mxu0 %v2668
  %v2734 = vpop.f32.mrb[0].mxu0
  %v2735 = vadd.f32 0.0, %v2734
  %v2736 = vpop.f32.mrb[0].mxu0
  %v2737 = vpop.f32.mrb[0].mxu0
  %v2738 = vadd.f32 0.0, %v2737
  %v2739 = vpop.f32.mrb[0].mxu0
  %2740 = vmatprep.mubr.bf16.mxu0 0
  %2741 = vmatmul.mubr.bf16.gmra.mrb[0].mxu0 %v2669
  %v2742 = vpop.f32.mrb[0].mxu0
  %v2743 = vadd.f32 0.0, %v2742
  %v2744 = vpop.f32.mrb[0].mxu0
  %v2745 = vpop.f32.mrb[0].mxu0
  %v2746 = vadd.f32 0.0, %v2745
  %v2747 = vpop.f32.mrb[0].mxu0
  %2748 = vmatprep.mubr.bf16.mxu0 0
  %2749 = vmatmul.mubr.bf16.gmra.mrb[0].mxu0 %v2670
  %v2750 = vpop.f32.mrb[0].mxu0
  %v2751 = vadd.f32 0.0, %v2750
  %v2752 = vpop.f32.mrb[0].mxu0
  %v2753 = vpop.f32.mrb[0].mxu0
  %v2754 = vadd.f32 0.0, %v2753
  %v2755 = vpop.f32.mrb[0].mxu0
  %2756 = vmatprep.mubr.bf16.mxu0 0
  %2757 = vmatmul.mubr.bf16.gmra.mrb[0].mxu0 %v2671
  %v2758 = vpop.f32.mrb[0].mxu0
  %v2759 = vadd.f32 0.0, %v2758
  %v2760 = vpop.f32.mrb[0].mxu0
  %v2761 = vpop.f32.mrb[0].mxu0
  %v2762 = vadd.f32 0.0, %v2761
  %v2763 = vpop.f32.mrb[0].mxu0
  %2764 = vmatprep.mubr.bf16.mxu0 0
  %2765 = vmatmul.mubr.bf16.gmra.mrb[0].mxu0 %v2672
  %v2766 = vpop.f32.mrb[0].mxu0
  %v2767 = vadd.f32 0.0, %v2766
  %v2768 = vpop.f32.mrb[0].mxu0
  %v2769 = vpop.f32.mrb[0].mxu0
  %v2770 = vadd.f32 0.0, %v2769
  %v2771 = vpop.f32.mrb[0].mxu0
  %2772 = vmatprep.mubr.bf16.mxu0 0
  %2773 = vmatmul.mubr.bf16.gmra.mrb[0].mxu0 %v2673
  %v2774 = vpop.f32.mrb[0].mxu0
  %v2775 = vadd.f32 0.0, %v2774
  %v2776 = vpop.f32.mrb[0].mxu0
  %v2777 = vpop.f32.mrb[0].mxu0
  %v2778 = vadd.f32 0.0, %v2777
  %v2779 = vpop.f32.mrb[0].mxu0
  %2780 = vmatprep.mubr.bf16.mxu0 0
  %2781 = vmatmul.mubr.bf16.gmra.mrb[0].mxu0 %v2674
  %v2782 = vpop.f32.mrb[0].mxu0
  %v2783 = vadd.f32 0.0, %v2782
  %v2784 = vpop.f32.mrb[0].mxu0
  %v2785 = vpop.f32.mrb[0].mxu0
  %v2786 = vadd.f32 0.0, %v2785
  %v2787 = vpop.f32.mrb[0].mxu0
  %2788 = vmatprep.mubr.bf16.mxu0 0
  %2789 = vmatmul.mubr.bf16.gmra.mrb[0].mxu0 %v2675
  %v2790 = vpop.f32.mrb[0].mxu0
  %v2791 = vadd.f32 0.0, %v2790
  %v2792 = vpop.f32.mrb[0].mxu0
  %v2793 = vpop.f32.mrb[0].mxu0
  %v2794 = vadd.f32 0.0, %v2793
  %v2795 = vpop.f32.mrb[0].mxu0
  %2796 = vdwg.mxu0
  %2797 = vset.pattern.permute.xlu0 7
  %2798 = vperm.xlu0 %2797, %v45
  %v2799 = vpop.permute.xlu0 %2798
  %2801 = vset.pattern.permute.xlu0 7
  %2802 = vperm.xlu0 %2801, %v46
  %v2803 = vpop.permute.xlu0 %2802
  %2805 = vset.pattern.permute.xlu0 7
  %2806 = vperm.xlu0 %2805, %v47
  %v2807 = vpop.permute.xlu0 %2806
  %2809 = vset.pattern.permute.xlu0 7
  %2810 = vperm.xlu0 %2809, %v48
  %v2811 = vpop.permute.xlu0 %2810
  %2813 = vset.pattern.permute.xlu0 7
  %2814 = vperm.xlu0 %2813, %v49
  %v2815 = vpop.permute.xlu0 %2814
  %2817 = vset.pattern.permute.xlu0 7
  %2818 = vperm.xlu0 %2817, %v50
  %v2819 = vpop.permute.xlu0 %2818
  %2821 = vset.pattern.permute.xlu0 7
  %2822 = vperm.xlu0 %2821, %v51
  %v2823 = vpop.permute.xlu0 %2822
  %2825 = vset.pattern.permute.xlu0 7
  %2826 = vperm.xlu0 %2825, %v52
  %v2827 = vpop.permute.xlu0 %2826
  %2829 = vset.pattern.permute.xlu0 7
  %2830 = vperm.xlu0 %2829, %v53
  %v2831 = vpop.permute.xlu0 %2830
  %2833 = vset.pattern.permute.xlu0 7
  %2834 = vperm.xlu0 %2833, %v54
  %v2835 = vpop.permute.xlu0 %2834
  %2837 = vset.pattern.permute.xlu0 7
  %2838 = vperm.xlu0 %2837, %v55
  %v2839 = vpop.permute.xlu0 %2838
  %2841 = vset.pattern.permute.xlu0 7
  %2842 = vperm.xlu0 %2841, %v56
  %v2843 = vpop.permute.xlu0 %2842
  %2845 = vset.pattern.permute.xlu0 7
  %2846 = vperm.xlu0 %2845, %v57
  %v2847 = vpop.permute.xlu0 %2846
  %2849 = vset.pattern.permute.xlu0 7
  %2850 = vperm.xlu0 %2849, %v58
  %v2851 = vpop.permute.xlu0 %2850
  %2853 = vset.pattern.permute.xlu0 7
  %2854 = vperm.xlu0 %2853, %v59
  %v2855 = vpop.permute.xlu0 %2854
  %2857 = vset.pattern.permute.xlu0 7
  %2858 = vperm.xlu0 %2857, %v60
  %v2859 = vpop.permute.xlu0 %2858
  %v2861 = vlaneseq
  %v2862 = vshrl.u32 %v2861, 7
  %v2863 = vsub.s32 7, %v2862
  %v2864 = vrot.slane %v77, %v2863
  %v2865 = vadd.f32 %v2799, %v2864
  %v2866 = vadd.f32 %v2803, %v2864
  %v2867 = vadd.f32 %v2807, %v2864
  %v2868 = vadd.f32 %v2811, %v2864
  %v2869 = vadd.f32 %v2815, %v2864
  %v2870 = vadd.f32 %v2819, %v2864
  %v2871 = vadd.f32 %v2823, %v2864
  %v2872 = vadd.f32 %v2827, %v2864
  %v2873 = vadd.f32 %v2831, %v2864
  %v2874 = vadd.f32 %v2835, %v2864
  %v2875 = vadd.f32 %v2839, %v2864
  %v2876 = vadd.f32 %v2843, %v2864
  %v2877 = vadd.f32 %v2847, %v2864
  %v2878 = vadd.f32 %v2851, %v2864
  %v2879 = vadd.f32 %v2855, %v2864
  %v2880 = vadd.f32 %v2859, %v2864
  %v2881 = vmul.f32 %v2865, 0.2
  %v2882 = vmul.f32 %v2866, 0.2
  %v2883 = vmul.f32 %v2867, 0.2
  %v2884 = vmul.f32 %v2868, 0.2
  %v2885 = vmul.f32 %v2869, 0.2
  %v2886 = vmul.f32 %v2870, 0.2
  %v2887 = vmul.f32 %v2871, 0.2
  %v2888 = vmul.f32 %v2872, 0.2
  %v2889 = vmul.f32 %v2873, 0.2
  %v2890 = vmul.f32 %v2874, 0.2
  %v2891 = vmul.f32 %v2875, 0.2
  %v2892 = vmul.f32 %v2876, 0.2
  %v2893 = vmul.f32 %v2877, 0.2
  %v2894 = vmul.f32 %v2878, 0.2
  %v2895 = vmul.f32 %v2879, 0.2
  %v2896 = vmul.f32 %v2880, 0.2
  %v2897 = vmax.f32 %v2865, %v2881
  %v2898 = vmax.f32 %v2866, %v2882
  %v2899 = vmax.f32 %v2867, %v2883
  %v2900 = vmax.f32 %v2868, %v2884
  %v2901 = vmax.f32 %v2869, %v2885
  %v2902 = vmax.f32 %v2870, %v2886
  %v2903 = vmax.f32 %v2871, %v2887
  %v2904 = vmax.f32 %v2872, %v2888
  %v2905 = vmax.f32 %v2873, %v2889
  %v2906 = vmax.f32 %v2874, %v2890
  %v2907 = vmax.f32 %v2875, %v2891
  %v2908 = vmax.f32 %v2876, %v2892
  %v2909 = vmax.f32 %v2877, %v2893
  %v2910 = vmax.f32 %v2878, %v2894
  %v2911 = vmax.f32 %v2879, %v2895
  %v2912 = vmax.f32 %v2880, %v2896
  %2913 = vset.pattern.permute.xlu0 7
  %2914 = vperm.xlu0 %2913, %v61
  %v2915 = vpop.permute.xlu0 %2914
  %2917 = vset.pattern.permute.xlu0 7
  %2918 = vperm.xlu0 %2917, %v62
  %v2919 = vpop.permute.xlu0 %2918
  %2921 = vset.pattern.permute.xlu0 7
  %2922 = vperm.xlu0 %2921, %v63
  %v2923 = vpop.permute.xlu0 %2922
  %2925 = vset.pattern.permute.xlu0 7
  %2926 = vperm.xlu0 %2925, %v64
  %v2927 = vpop.permute.xlu0 %2926
  %2929 = vset.pattern.permute.xlu0 7
  %2930 = vperm.xlu0 %2929, %v65
  %v2931 = vpop.permute.xlu0 %2930
  %2933 = vset.pattern.permute.xlu0 7
  %2934 = vperm.xlu0 %2933, %v66
  %v2935 = vpop.permute.xlu0 %2934
  %2937 = vset.pattern.permute.xlu0 7
  %2938 = vperm.xlu0 %2937, %v67
  %v2939 = vpop.permute.xlu0 %2938
  %2941 = vset.pattern.permute.xlu0 7
  %2942 = vperm.xlu0 %2941, %v68
  %v2943 = vpop.permute.xlu0 %2942
  %2945 = vset.pattern.permute.xlu0 7
  %2946 = vperm.xlu0 %2945, %v69
  %v2947 = vpop.permute.xlu0 %2946
  %2949 = vset.pattern.permute.xlu0 7
  %2950 = vperm.xlu0 %2949, %v70
  %v2951 = vpop.permute.xlu0 %2950
  %2953 = vset.pattern.permute.xlu0 7
  %2954 = vperm.xlu0 %2953, %v71
  %v2955 = vpop.permute.xlu0 %2954
  %2957 = vset.pattern.permute.xlu0 7
  %2958 = vperm.xlu0 %2957, %v72
  %v2959 = vpop.permute.xlu0 %2958
  %2961 = vset.pattern.permute.xlu0 7
  %2962 = vperm.xlu0 %2961, %v73
  %v2963 = vpop.permute.xlu0 %2962
  %2965 = vset.pattern.permute.xlu0 7
  %2966 = vperm.xlu0 %2965, %v74
  %v2967 = vpop.permute.xlu0 %2966
  %2969 = vset.pattern.permute.xlu0 7
  %2970 = vperm.xlu0 %2969, %v75
  %v2971 = vpop.permute.xlu0 %2970
  %2973 = vset.pattern.permute.xlu0 7
  %2974 = vperm.xlu0 %2973, %v76
  %v2975 = vpop.permute.xlu0 %2974
  %v2977 = vsub.f32 %v2897, %v2915
  %v2978 = vsub.f32 %v2898, %v2919
  %v2979 = vsub.f32 %v2899, %v2923
  %v2980 = vsub.f32 %v2900, %v2927
  %v2981 = vsub.f32 %v2901, %v2931
  %v2982 = vsub.f32 %v2902, %v2935
  %v2983 = vsub.f32 %v2903, %v2939
  %v2984 = vsub.f32 %v2904, %v2943
  %v2985 = vsub.f32 %v2905, %v2947
  %v2986 = vsub.f32 %v2906, %v2951
  %v2987 = vsub.f32 %v2907, %v2955
  %v2988 = vsub.f32 %v2908, %v2959
  %v2989 = vsub.f32 %v2909, %v2963
  %v2990 = vsub.f32 %v2910, %v2967
  %v2991 = vsub.f32 %v2911, %v2971
  %v2992 = vsub.f32 %v2912, %v2975
  %v2993 = vmul.f32 %v2977, 1.442695
  %v2994 = vpow.pop %v2993
  %v2995 = vmul.f32 %v2978, 1.442695
  %v2996 = vpow.pop %v2995
  %v2997 = vmul.f32 %v2979, 1.442695
  %v2998 = vpow.pop %v2997
  %v2999 = vmul.f32 %v2980, 1.442695
  %v3000 = vpow.pop %v2999
  %v3001 = vmul.f32 %v2981, 1.442695
  %v3002 = vpow.pop %v3001
  %v3003 = vmul.f32 %v2982, 1.442695
  %v3004 = vpow.pop %v3003
  %v3005 = vmul.f32 %v2983, 1.442695
  %v3006 = vpow.pop %v3005
  %v3007 = vmul.f32 %v2984, 1.442695
  %v3008 = vpow.pop %v3007
  %v3009 = vmul.f32 %v2985, 1.442695
  %v3010 = vpow.pop %v3009
  %v3011 = vmul.f32 %v2986, 1.442695
  %v3012 = vpow.pop %v3011
  %v3013 = vmul.f32 %v2987, 1.442695
  %v3014 = vpow.pop %v3013
  %v3015 = vmul.f32 %v2988, 1.442695
  %v3016 = vpow.pop %v3015
  %v3017 = vmul.f32 %v2989, 1.442695
  %v3018 = vpow.pop %v3017
  %v3019 = vmul.f32 %v2990, 1.442695
  %v3020 = vpow.pop %v3019
  %v3021 = vmul.f32 %v2991, 1.442695
  %v3022 = vpow.pop %v3021
  %v3023 = vmul.f32 %v2992, 1.442695
  %v3024 = vpow.pop %v3023
  %v3025 = vmul.f32 %v2994, %v98
  %v3026 = vmul.f32 %v2996, %v99
  %v3027 = vmul.f32 %v2998, %v100
  %v3028 = vmul.f32 %v3000, %v101
  %v3029 = vmul.f32 %v3002, %v102
  %v3030 = vmul.f32 %v3004, %v103
  %v3031 = vmul.f32 %v3006, %v104
  %v3032 = vmul.f32 %v3008, %v105
  %v3033 = vmul.f32 %v3010, %v106
  %v3034 = vmul.f32 %v3012, %v107
  %v3035 = vmul.f32 %v3014, %v108
  %v3036 = vmul.f32 %v3016, %v109
  %v3037 = vmul.f32 %v3018, %v110
  %v3038 = vmul.f32 %v3020, %v111
  %v3039 = vmul.f32 %v3022, %v112
  %v3040 = vmul.f32 %v3024, %v113
  %v3041 = vpack.c.bf16 %v3026, %v3025
  %v3042 = vpack.c.bf16 %v3028, %v3027
  %v3043 = vpack.c.bf16 %v3030, %v3029
  %v3044 = vpack.c.bf16 %v3032, %v3031
  %v3045 = vpack.c.bf16 %v3034, %v3033
  %v3046 = vpack.c.bf16 %v3036, %v3035
  %v3047 = vpack.c.bf16 %v3038, %v3037
  %v3048 = vpack.c.bf16 %v3040, %v3039
  %3049 = vrot.lane.b32.xlu0 %v446, 65
  %v3050 = vpop.permute.xlu0 %3049
  %3051 = vrot.lane.b32.xlu0 %v447, 65
  %v3052 = vpop.permute.xlu0 %3051
  %3053 = vrot.lane.b32.xlu0 %v448, 65
  %v3054 = vpop.permute.xlu0 %3053
  %3055 = vrot.lane.b32.xlu0 %v449, 65
  %v3056 = vpop.permute.xlu0 %3055
  %3057 = vrot.lane.b32.xlu0 %v450, 65
  %v3058 = vpop.permute.xlu0 %3057
  %3059 = vrot.lane.b32.xlu0 %v451, 65
  %v3060 = vpop.permute.xlu0 %3059
  %3061 = vrot.lane.b32.xlu0 %v452, 65
  %v3062 = vpop.permute.xlu0 %3061
  %3063 = vrot.lane.b32.xlu0 %v453, 65
  %v3064 = vpop.permute.xlu0 %3063
  %3073 = vmatprep.subr.bf16.mxu0 0
  %3074 = vmatpush1.bf16.msra.mxu0 %v3050
  %3075 = vmatprep.subr.bf16.mxu0 0
  %3076 = vmatpush1.bf16.msra.mxu0 %v3052
  %3077 = vmatprep.subr.bf16.mxu0 0
  %3078 = vmatpush1.bf16.msra.mxu0 %v3054
  %3079 = vmatprep.subr.bf16.mxu0 0
  %3080 = vmatpush1.bf16.msra.mxu0 %v3056
  %3081 = vmatprep.subr.bf16.mxu0 0
  %3082 = vmatpush1.bf16.msra.mxu0 %v3058
  %3083 = vmatprep.subr.bf16.mxu0 0
  %3084 = vmatpush1.bf16.msra.mxu0 %v3060
  %3085 = vmatprep.subr.bf16.mxu0 0
  %3086 = vmatpush1.bf16.msra.mxu0 %v3062
  %3087 = vmatprep.subr.bf16.mxu0 0
  %3088 = vmatpush1.bf16.msra.mxu0 %v3064
  %3089 = vmatprep.subr.bf16.mxu0 0
  %3090 = vmatpush1.bf16.msra.mxu0 0
  %3091 = vmatprep.subr.bf16.mxu0 0
  %3092 = vmatpush1.bf16.msra.mxu0 0
  %3093 = vmatprep.subr.bf16.mxu0 0
  %3094 = vmatpush1.bf16.msra.mxu0 0
  %3095 = vmatprep.subr.bf16.mxu0 0
  %3096 = vmatpush1.bf16.msra.mxu0 0
  %3097 = vmatprep.subr.bf16.mxu0 0
  %3098 = vmatpush1.bf16.msra.mxu0 0
  %3099 = vmatprep.subr.bf16.mxu0 0
  %3100 = vmatpush1.bf16.msra.mxu0 0
  %3101 = vmatprep.subr.bf16.mxu0 0
  %3102 = vmatpush1.bf16.msra.mxu0 0
  %3103 = vmatprep.subr.bf16.mxu0 0
  %3104 = vmatpush1.bf16.msra.mxu0 0
  %3105 = vmatprep.mubr.bf16.mxu0 0
  %3106 = vmatmul.mubr.bf16.gmra.mrb[0].mxu0 %v3041
  %v3107 = vpop.f32.mrb[0].mxu0
  %v3108 = vadd.f32 0.0, %v3107
  %v3109 = vpop.f32.mrb[0].mxu0
  %v3110 = vpop.f32.mrb[0].mxu0
  %v3111 = vadd.f32 0.0, %v3110
  %v3112 = vpop.f32.mrb[0].mxu0
  %3113 = vmatprep.mubr.bf16.mxu0 0
  %3114 = vmatmul.mubr.bf16.gmra.mrb[0].mxu0 %v3042
  %v3115 = vpop.f32.mrb[0].mxu0
  %v3116 = vadd.f32 0.0, %v3115
  %v3117 = vpop.f32.mrb[0].mxu0
  %v3118 = vpop.f32.mrb[0].mxu0
  %v3119 = vadd.f32 0.0, %v3118
  %v3120 = vpop.f32.mrb[0].mxu0
  %3121 = vmatprep.mubr.bf16.mxu0 0
  %3122 = vmatmul.mubr.bf16.gmra.mrb[0].mxu0 %v3043
  %v3123 = vpop.f32.mrb[0].mxu0
  %v3124 = vadd.f32 0.0, %v3123
  %v3125 = vpop.f32.mrb[0].mxu0
  %v3126 = vpop.f32.mrb[0].mxu0
  %v3127 = vadd.f32 0.0, %v3126
  %v3128 = vpop.f32.mrb[0].mxu0
  %3129 = vmatprep.mubr.bf16.mxu0 0
  %3130 = vmatmul.mubr.bf16.gmra.mrb[0].mxu0 %v3044
  %v3131 = vpop.f32.mrb[0].mxu0
  %v3132 = vadd.f32 0.0, %v3131
  %v3133 = vpop.f32.mrb[0].mxu0
  %v3134 = vpop.f32.mrb[0].mxu0
  %v3135 = vadd.f32 0.0, %v3134
  %v3136 = vpop.f32.mrb[0].mxu0
  %3137 = vmatprep.mubr.bf16.mxu0 0
  %3138 = vmatmul.mubr.bf16.gmra.mrb[0].mxu0 %v3045
  %v3139 = vpop.f32.mrb[0].mxu0
  %v3140 = vadd.f32 0.0, %v3139
  %v3141 = vpop.f32.mrb[0].mxu0
  %v3142 = vpop.f32.mrb[0].mxu0
  %v3143 = vadd.f32 0.0, %v3142
  %v3144 = vpop.f32.mrb[0].mxu0
  %3145 = vmatprep.mubr.bf16.mxu0 0
  %3146 = vmatmul.mubr.bf16.gmra.mrb[0].mxu0 %v3046
  %v3147 = vpop.f32.mrb[0].mxu0
  %v3148 = vadd.f32 0.0, %v3147
  %v3149 = vpop.f32.mrb[0].mxu0
  %v3150 = vpop.f32.mrb[0].mxu0
  %v3151 = vadd.f32 0.0, %v3150
  %v3152 = vpop.f32.mrb[0].mxu0
  %3153 = vmatprep.mubr.bf16.mxu0 0
  %3154 = vmatmul.mubr.bf16.gmra.mrb[0].mxu0 %v3047
  %v3155 = vpop.f32.mrb[0].mxu0
  %v3156 = vadd.f32 0.0, %v3155
  %v3157 = vpop.f32.mrb[0].mxu0
  %v3158 = vpop.f32.mrb[0].mxu0
  %v3159 = vadd.f32 0.0, %v3158
  %v3160 = vpop.f32.mrb[0].mxu0
  %3161 = vmatprep.mubr.bf16.mxu0 0
  %3162 = vmatmul.mubr.bf16.gmra.mrb[0].mxu0 %v3048
  %v3163 = vpop.f32.mrb[0].mxu0
  %v3164 = vadd.f32 0.0, %v3163
  %v3165 = vpop.f32.mrb[0].mxu0
  %v3166 = vpop.f32.mrb[0].mxu0
  %v3167 = vadd.f32 0.0, %v3166
  %v3168 = vpop.f32.mrb[0].mxu0
  %3169 = vdwg.mxu0
  %v3170 = vld [vmem:[#allocation2] sm:$0xff]
  %v3171 = vld [vmem:[#allocation2 + $0x8] sm:$0xff]
  %v3172 = vld [vmem:[#allocation2 + $0x10] sm:$0xff]
  %v3173 = vld [vmem:[#allocation2 + $0x18] sm:$0xff]
  %v3174 = vld [vmem:[#allocation2 + $0x20] sm:$0xff]
  %v3175 = vld [vmem:[#allocation2 + $0x28] sm:$0xff]
  %v3176 = vld [vmem:[#allocation2 + $0x30] sm:$0xff]
  %v3177 = vld [vmem:[#allocation2 + $0x38] sm:$0xff]
  %v3178 = vld [vmem:[#allocation2 + $0x40] sm:$0xff]
  %v3179 = vld [vmem:[#allocation2 + $0x48] sm:$0xff]
  %v3180 = vld [vmem:[#allocation2 + $0x50] sm:$0xff]
  %v3181 = vld [vmem:[#allocation2 + $0x58] sm:$0xff]
  %v3182 = vld [vmem:[#allocation2 + $0x60] sm:$0xff]
  %v3183 = vld [vmem:[#allocation2 + $0x68] sm:$0xff]
  %v3184 = vld [vmem:[#allocation2 + $0x70] sm:$0xff]
  %v3185 = vld [vmem:[#allocation2 + $0x78] sm:$0xff]
  %3202 = vrot.lane.b32.xlu0 %v870, 9
  %v3203 = vpop.permute.xlu0 %3202
  %3204 = vrot.lane.b32.xlu0 %v873, 9
  %v3205 = vpop.permute.xlu0 %3204
  %3206 = vrot.lane.b32.xlu0 %v878, 9
  %v3207 = vpop.permute.xlu0 %3206
  %3208 = vrot.lane.b32.xlu0 %v881, 9
  %v3209 = vpop.permute.xlu0 %3208
  %3210 = vrot.lane.b32.xlu0 %v886, 9
  %v3211 = vpop.permute.xlu0 %3210
  %3212 = vrot.lane.b32.xlu0 %v889, 9
  %v3213 = vpop.permute.xlu0 %3212
  %3214 = vrot.lane.b32.xlu0 %v894, 9
  %v3215 = vpop.permute.xlu0 %3214
  %3216 = vrot.lane.b32.xlu0 %v897, 9
  %v3217 = vpop.permute.xlu0 %3216
  %3218 = vrot.lane.b32.xlu0 %v902, 9
  %v3219 = vpop.permute.xlu0 %3218
  %3220 = vrot.lane.b32.xlu0 %v905, 9
  %v3221 = vpop.permute.xlu0 %3220
  %3222 = vrot.lane.b32.xlu0 %v910, 9
  %v3223 = vpop.permute.xlu0 %3222
  %3224 = vrot.lane.b32.xlu0 %v913, 9
  %v3225 = vpop.permute.xlu0 %3224
  %3226 = vrot.lane.b32.xlu0 %v918, 9
  %v3227 = vpop.permute.xlu0 %3226
  %3228 = vrot.lane.b32.xlu0 %v921, 9
  %v3229 = vpop.permute.xlu0 %3228
  %3230 = vrot.lane.b32.xlu0 %v926, 9
  %v3231 = vpop.permute.xlu0 %3230
  %3232 = vrot.lane.b32.xlu0 %v929, 9
  %v3233 = vpop.permute.xlu0 %3232
  %3266 = vrot.lane.b32.xlu0 %v1243, 18
  %v3267 = vpop.permute.xlu0 %3266
  %3268 = vrot.lane.b32.xlu0 %v1246, 18
  %v3269 = vpop.permute.xlu0 %3268
  %3270 = vrot.lane.b32.xlu0 %v1251, 18
  %v3271 = vpop.permute.xlu0 %3270
  %3272 = vrot.lane.b32.xlu0 %v1254, 18
  %v3273 = vpop.permute.xlu0 %3272
  %3274 = vrot.lane.b32.xlu0 %v1259, 18
  %v3275 = vpop.permute.xlu0 %3274
  %3276 = vrot.lane.b32.xlu0 %v1262, 18
  %v3277 = vpop.permute.xlu0 %3276
  %3278 = vrot.lane.b32.xlu0 %v1267, 18
  %v3279 = vpop.permute.xlu0 %3278
  %3280 = vrot.lane.b32.xlu0 %v1270, 18
  %v3281 = vpop.permute.xlu0 %3280
  %3282 = vrot.lane.b32.xlu0 %v1275, 18
  %v3283 = vpop.permute.xlu0 %3282
  %3284 = vrot.lane.b32.xlu0 %v1278, 18
  %v3285 = vpop.permute.xlu0 %3284
  %3286 = vrot.lane.b32.xlu0 %v1283, 18
  %v3287 = vpop.permute.xlu0 %3286
  %3288 = vrot.lane.b32.xlu0 %v1286, 18
  %v3289 = vpop.permute.xlu0 %3288
  %3290 = vrot.lane.b32.xlu0 %v1291, 18
  %v3291 = vpop.permute.xlu0 %3290
  %3292 = vrot.lane.b32.xlu0 %v1294, 18
  %v3293 = vpop.permute.xlu0 %3292
  %3294 = vrot.lane.b32.xlu0 %v1299, 18
  %v3295 = vpop.permute.xlu0 %3294
  %3296 = vrot.lane.b32.xlu0 %v1302, 18
  %v3297 = vpop.permute.xlu0 %3296
  %3330 = vrot.lane.b32.xlu0 %v1616, 27
  %v3331 = vpop.permute.xlu0 %3330
  %3332 = vrot.lane.b32.xlu0 %v1619, 27
  %v3333 = vpop.permute.xlu0 %3332
  %3334 = vrot.lane.b32.xlu0 %v1624, 27
  %v3335 = vpop.permute.xlu0 %3334
  %3336 = vrot.lane.b32.xlu0 %v1627, 27
  %v3337 = vpop.permute.xlu0 %3336
  %3338 = vrot.lane.b32.xlu0 %v1632, 27
  %v3339 = vpop.permute.xlu0 %3338
  %3340 = vrot.lane.b32.xlu0 %v1635, 27
  %v3341 = vpop.permute.xlu0 %3340
  %3342 = vrot.lane.b32.xlu0 %v1640, 27
  %v3343 = vpop.permute.xlu0 %3342
  %3344 = vrot.lane.b32.xlu0 %v1643, 27
  %v3345 = vpop.permute.xlu0 %3344
  %3346 = vrot.lane.b32.xlu0 %v1648, 27
  %v3347 = vpop.permute.xlu0 %3346
  %3348 = vrot.lane.b32.xlu0 %v1651, 27
  %v3349 = vpop.permute.xlu0 %3348
  %3350 = vrot.lane.b32.xlu0 %v1656, 27
  %v3351 = vpop.permute.xlu0 %3350
  %3352 = vrot.lane.b32.xlu0 %v1659, 27
  %v3353 = vpop.permute.xlu0 %3352
  %3354 = vrot.lane.b32.xlu0 %v1664, 27
  %v3355 = vpop.permute.xlu0 %3354
  %3356 = vrot.lane.b32.xlu0 %v1667, 27
  %v3357 = vpop.permute.xlu0 %3356
  %3358 = vrot.lane.b32.xlu0 %v1672, 27
  %v3359 = vpop.permute.xlu0 %3358
  %3360 = vrot.lane.b32.xlu0 %v1675, 27
  %v3361 = vpop.permute.xlu0 %3360
  %3394 = vrot.lane.b32.xlu0 %v1989, 36
  %v3395 = vpop.permute.xlu0 %3394
  %3396 = vrot.lane.b32.xlu0 %v1992, 36
  %v3397 = vpop.permute.xlu0 %3396
  %3398 = vrot.lane.b32.xlu0 %v1997, 36
  %v3399 = vpop.permute.xlu0 %3398
  %3400 = vrot.lane.b32.xlu0 %v2000, 36
  %v3401 = vpop.permute.xlu0 %3400
  %3402 = vrot.lane.b32.xlu0 %v2005, 36
  %v3403 = vpop.permute.xlu0 %3402
  %3404 = vrot.lane.b32.xlu0 %v2008, 36
  %v3405 = vpop.permute.xlu0 %3404
  %3406 = vrot.lane.b32.xlu0 %v2013, 36
  %v3407 = vpop.permute.xlu0 %3406
  %3408 = vrot.lane.b32.xlu0 %v2016, 36
  %v3409 = vpop.permute.xlu0 %3408
  %3410 = vrot.lane.b32.xlu0 %v2021, 36
  %v3411 = vpop.permute.xlu0 %3410
  %3412 = vrot.lane.b32.xlu0 %v2024, 36
  %v3413 = vpop.permute.xlu0 %3412
  %3414 = vrot.lane.b32.xlu0 %v2029, 36
  %v3415 = vpop.permute.xlu0 %3414
  %3416 = vrot.lane.b32.xlu0 %v2032, 36
  %v3417 = vpop.permute.xlu0 %3416
  %3418 = vrot.lane.b32.xlu0 %v2037, 36
  %v3419 = vpop.permute.xlu0 %3418
  %3420 = vrot.lane.b32.xlu0 %v2040, 36
  %v3421 = vpop.permute.xlu0 %3420
  %3422 = vrot.lane.b32.xlu0 %v2045, 36
  %v3423 = vpop.permute.xlu0 %3422
  %3424 = vrot.lane.b32.xlu0 %v2048, 36
  %v3425 = vpop.permute.xlu0 %3424
  %3458 = vrot.lane.b32.xlu0 %v2362, 45
  %v3459 = vpop.permute.xlu0 %3458
  %3460 = vrot.lane.b32.xlu0 %v2365, 45
  %v3461 = vpop.permute.xlu0 %3460
  %3462 = vrot.lane.b32.xlu0 %v2370, 45
  %v3463 = vpop.permute.xlu0 %3462
  %3464 = vrot.lane.b32.xlu0 %v2373, 45
  %v3465 = vpop.permute.xlu0 %3464
  %3466 = vrot.lane.b32.xlu0 %v2378, 45
  %v3467 = vpop.permute.xlu0 %3466
  %3468 = vrot.lane.b32.xlu0 %v2381, 45
  %v3469 = vpop.permute.xlu0 %3468
  %3470 = vrot.lane.b32.xlu0 %v2386, 45
  %v3471 = vpop.permute.xlu0 %3470
  %3472 = vrot.lane.b32.xlu0 %v2389, 45
  %v3473 = vpop.permute.xlu0 %3472
  %3474 = vrot.lane.b32.xlu0 %v2394, 45
  %v3475 = vpop.permute.xlu0 %3474
  %3476 = vrot.lane.b32.xlu0 %v2397, 45
  %v3477 = vpop.permute.xlu0 %3476
  %3478 = vrot.lane.b32.xlu0 %v2402, 45
  %v3479 = vpop.permute.xlu0 %3478
  %3480 = vrot.lane.b32.xlu0 %v2405, 45
  %v3481 = vpop.permute.xlu0 %3480
  %3482 = vrot.lane.b32.xlu0 %v2410, 45
  %v3483 = vpop.permute.xlu0 %3482
  %3484 = vrot.lane.b32.xlu0 %v2413, 45
  %v3485 = vpop.permute.xlu0 %3484
  %3486 = vrot.lane.b32.xlu0 %v2418, 45
  %v3487 = vpop.permute.xlu0 %3486
  %3488 = vrot.lane.b32.xlu0 %v2421, 45
  %v3489 = vpop.permute.xlu0 %3488
  %3522 = vrot.lane.b32.xlu0 %v2735, 54
  %v3523 = vpop.permute.xlu0 %3522
  %3524 = vrot.lane.b32.xlu0 %v2738, 54
  %v3525 = vpop.permute.xlu0 %3524
  %3526 = vrot.lane.b32.xlu0 %v2743, 54
  %v3527 = vpop.permute.xlu0 %3526
  %3528 = vrot.lane.b32.xlu0 %v2746, 54
  %v3529 = vpop.permute.xlu0 %3528
  %3530 = vrot.lane.b32.xlu0 %v2751, 54
  %v3531 = vpop.permute.xlu0 %3530
  %3532 = vrot.lane.b32.xlu0 %v2754, 54
  %v3533 = vpop.permute.xlu0 %3532
  %3534 = vrot.lane.b32.xlu0 %v2759, 54
  %v3535 = vpop.permute.xlu0 %3534
  %3536 = vrot.lane.b32.xlu0 %v2762, 54
  %v3537 = vpop.permute.xlu0 %3536
  %3538 = vrot.lane.b32.xlu0 %v2767, 54
  %v3539 = vpop.permute.xlu0 %3538
  %3540 = vrot.lane.b32.xlu0 %v2770, 54
  %v3541 = vpop.permute.xlu0 %3540
  %3542 = vrot.lane.b32.xlu0 %v2775, 54
  %v3543 = vpop.permute.xlu0 %3542
  %3544 = vrot.lane.b32.xlu0 %v2778, 54
  %v3545 = vpop.permute.xlu0 %3544
  %3546 = vrot.lane.b32.xlu0 %v2783, 54
  %v3547 = vpop.permute.xlu0 %3546
  %3548 = vrot.lane.b32.xlu0 %v2786, 54
  %v3549 = vpop.permute.xlu0 %3548
  %3550 = vrot.lane.b32.xlu0 %v2791, 54
  %v3551 = vpop.permute.xlu0 %3550
  %3552 = vrot.lane.b32.xlu0 %v2794, 54
  %v3553 = vpop.permute.xlu0 %3552
  %3586 = vrot.lane.b32.xlu0 %v3108, 63
  %v3587 = vpop.permute.xlu0 %3586
  %3588 = vrot.lane.b32.xlu0 %v3111, 63
  %v3589 = vpop.permute.xlu0 %3588
  %3590 = vrot.lane.b32.xlu0 %v3116, 63
  %v3591 = vpop.permute.xlu0 %3590
  %3592 = vrot.lane.b32.xlu0 %v3119, 63
  %v3593 = vpop.permute.xlu0 %3592
  %3594 = vrot.lane.b32.xlu0 %v3124, 63
  %v3595 = vpop.permute.xlu0 %3594
  %3596 = vrot.lane.b32.xlu0 %v3127, 63
  %v3597 = vpop.permute.xlu0 %3596
  %3598 = vrot.lane.b32.xlu0 %v3132, 63
  %v3599 = vpop.permute.xlu0 %3598
  %3600 = vrot.lane.b32.xlu0 %v3135, 63
  %v3601 = vpop.permute.xlu0 %3600
  %3602 = vrot.lane.b32.xlu0 %v3140, 63
  %v3603 = vpop.permute.xlu0 %3602
  %3604 = vrot.lane.b32.xlu0 %v3143, 63
  %v3605 = vpop.permute.xlu0 %3604
  %3606 = vrot.lane.b32.xlu0 %v3148, 63
  %v3607 = vpop.permute.xlu0 %3606
  %3608 = vrot.lane.b32.xlu0 %v3151, 63
  %v3609 = vpop.permute.xlu0 %3608
  %3610 = vrot.lane.b32.xlu0 %v3156, 63
  %v3611 = vpop.permute.xlu0 %3610
  %3612 = vrot.lane.b32.xlu0 %v3159, 63
  %v3613 = vpop.permute.xlu0 %3612
  %3614 = vrot.lane.b32.xlu0 %v3164, 63
  %v3615 = vpop.permute.xlu0 %3614
  %3616 = vrot.lane.b32.xlu0 %v3167, 63
  %v3617 = vpop.permute.xlu0 %3616
  %vm3634 = vcmask 72704
  %v3635 = vsel %vm3634, %v497, %v3203
  %v3636 = vsel %vm3634, %v500, %v3205
  %v3637 = vsel %vm3634, %v505, %v3207
  %v3638 = vsel %vm3634, %v508, %v3209
  %v3639 = vsel %vm3634, %v513, %v3211
  %v3640 = vsel %vm3634, %v516, %v3213
  %v3641 = vsel %vm3634, %v521, %v3215
  %v3642 = vsel %vm3634, %v524, %v3217
  %v3643 = vsel %vm3634, %v529, %v3219
  %v3644 = vsel %vm3634, %v532, %v3221
  %v3645 = vsel %vm3634, %v537, %v3223
  %v3646 = vsel %vm3634, %v540, %v3225
  %v3647 = vsel %vm3634, %v545, %v3227
  %v3648 = vsel %vm3634, %v548, %v3229
  %v3649 = vsel %vm3634, %v553, %v3231
  %v3650 = vsel %vm3634, %v556, %v3233
  %vm3651 = vcmask 146432
  %v3652 = vsel %vm3651, %v3635, %v3267
  %v3653 = vsel %vm3651, %v3636, %v3269
  %v3654 = vsel %vm3651, %v3637, %v3271
  %v3655 = vsel %vm3651, %v3638, %v3273
  %v3656 = vsel %vm3651, %v3639, %v3275
  %v3657 = vsel %vm3651, %v3640, %v3277
  %v3658 = vsel %vm3651, %v3641, %v3279
  %v3659 = vsel %vm3651, %v3642, %v3281
  %v3660 = vsel %vm3651, %v3643, %v3283
  %v3661 = vsel %vm3651, %v3644, %v3285
  %v3662 = vsel %vm3651, %v3645, %v3287
  %v3663 = vsel %vm3651, %v3646, %v3289
  %v3664 = vsel %vm3651, %v3647, %v3291
  %v3665 = vsel %vm3651, %v3648, %v3293
  %v3666 = vsel %vm3651, %v3649, %v3295
  %v3667 = vsel %vm3651, %v3650, %v3297
  %vm3668 = vcmask 220160
  %v3669 = vsel %vm3668, %v3652, %v3331
  %v3670 = vsel %vm3668, %v3653, %v3333
  %v3671 = vsel %vm3668, %v3654, %v3335
  %v3672 = vsel %vm3668, %v3655, %v3337
  %v3673 = vsel %vm3668, %v3656, %v3339
  %v3674 = vsel %vm3668, %v3657, %v3341
  %v3675 = vsel %vm3668, %v3658, %v3343
  %v3676 = vsel %vm3668, %v3659, %v3345
  %v3677 = vsel %vm3668, %v3660, %v3347
  %v3678 = vsel %vm3668, %v3661, %v3349
  %v3679 = vsel %vm3668, %v3662, %v3351
  %v3680 = vsel %vm3668, %v3663, %v3353
  %v3681 = vsel %vm3668, %v3664, %v3355
  %v3682 = vsel %vm3668, %v3665, %v3357
  %v3683 = vsel %vm3668, %v3666, %v3359
  %v3684 = vsel %vm3668, %v3667, %v3361
  %vm3685 = vcmask 293888
  %v3686 = vsel %vm3685, %v3669, %v3395
  %v3687 = vsel %vm3685, %v3670, %v3397
  %v3688 = vsel %vm3685, %v3671, %v3399
  %v3689 = vsel %vm3685, %v3672, %v3401
  %v3690 = vsel %vm3685, %v3673, %v3403
  %v3691 = vsel %vm3685, %v3674, %v3405
  %v3692 = vsel %vm3685, %v3675, %v3407
  %v3693 = vsel %vm3685, %v3676, %v3409
  %v3694 = vsel %vm3685, %v3677, %v3411
  %v3695 = vsel %vm3685, %v3678, %v3413
  %v3696 = vsel %vm3685, %v3679, %v3415
  %v3697 = vsel %vm3685, %v3680, %v3417
  %v3698 = vsel %vm3685, %v3681, %v3419
  %v3699 = vsel %vm3685, %v3682, %v3421
  %v3700 = vsel %vm3685, %v3683, %v3423
  %v3701 = vsel %vm3685, %v3684, %v3425
  %vm3702 = vcmask 367616
  %v3703 = vsel %vm3702, %v3686, %v3459
  %v3704 = vsel %vm3702, %v3687, %v3461
  %v3705 = vsel %vm3702, %v3688, %v3463
  %v3706 = vsel %vm3702, %v3689, %v3465
  %v3707 = vsel %vm3702, %v3690, %v3467
  %v3708 = vsel %vm3702, %v3691, %v3469
  %v3709 = vsel %vm3702, %v3692, %v3471
  %v3710 = vsel %vm3702, %v3693, %v3473
  %v3711 = vsel %vm3702, %v3694, %v3475
  %v3712 = vsel %vm3702, %v3695, %v3477
  %v3713 = vsel %vm3702, %v3696, %v3479
  %v3714 = vsel %vm3702, %v3697, %v3481
  %v3715 = vsel %vm3702, %v3698, %v3483
  %v3716 = vsel %vm3702, %v3699, %v3485
  %v3717 = vsel %vm3702, %v3700, %v3487
  %v3718 = vsel %vm3702, %v3701, %v3489
  %vm3719 = vcmask 441344
  %v3720 = vsel %vm3719, %v3703, %v3523
  %v3721 = vsel %vm3719, %v3704, %v3525
  %v3722 = vsel %vm3719, %v3705, %v3527
  %v3723 = vsel %vm3719, %v3706, %v3529
  %v3724 = vsel %vm3719, %v3707, %v3531
  %v3725 = vsel %vm3719, %v3708, %v3533
  %v3726 = vsel %vm3719, %v3709, %v3535
  %v3727 = vsel %vm3719, %v3710, %v3537
  %v3728 = vsel %vm3719, %v3711, %v3539
  %v3729 = vsel %vm3719, %v3712, %v3541
  %v3730 = vsel %vm3719, %v3713, %v3543
  %v3731 = vsel %vm3719, %v3714, %v3545
  %v3732 = vsel %vm3719, %v3715, %v3547
  %v3733 = vsel %vm3719, %v3716, %v3549
  %v3734 = vsel %vm3719, %v3717, %v3551
  %v3735 = vsel %vm3719, %v3718, %v3553
  %vm3736 = vcmask 515072
  %v3737 = vsel %vm3736, %v3720, %v3587
  %v3738 = vsel %vm3736, %v3721, %v3589
  %v3739 = vsel %vm3736, %v3722, %v3591
  %v3740 = vsel %vm3736, %v3723, %v3593
  %v3741 = vsel %vm3736, %v3724, %v3595
  %v3742 = vsel %vm3736, %v3725, %v3597
  %v3743 = vsel %vm3736, %v3726, %v3599
  %v3744 = vsel %vm3736, %v3727, %v3601
  %v3745 = vsel %vm3736, %v3728, %v3603
  %v3746 = vsel %vm3736, %v3729, %v3605
  %v3747 = vsel %vm3736, %v3730, %v3607
  %v3748 = vsel %vm3736, %v3731, %v3609
  %v3749 = vsel %vm3736, %v3732, %v3611
  %v3750 = vsel %vm3736, %v3733, %v3613
  %v3751 = vsel %vm3736, %v3734, %v3615
  %v3752 = vsel %vm3736, %v3735, %v3617
  %v3753 = vadd.f32 %v3170, %v3737
  %v3754 = vadd.f32 %v3171, %v3738
  %v3755 = vadd.f32 %v3172, %v3739
  %v3756 = vadd.f32 %v3173, %v3740
  %v3757 = vadd.f32 %v3174, %v3741
  %v3758 = vadd.f32 %v3175, %v3742
  %v3759 = vadd.f32 %v3176, %v3743
  %v3760 = vadd.f32 %v3177, %v3744
  %v3761 = vadd.f32 %v3178, %v3745
  %v3762 = vadd.f32 %v3179, %v3746
  %v3763 = vadd.f32 %v3180, %v3747
  %v3764 = vadd.f32 %v3181, %v3748
  %v3765 = vadd.f32 %v3182, %v3749
  %v3766 = vadd.f32 %v3183, %v3750
  %v3767 = vadd.f32 %v3184, %v3751
  %v3768 = vadd.f32 %v3185, %v3752
  %vm3769 = vcmask 588800
  %3770 = vst.msk [vmem:[#allocation2] sm:$0xff] %vm3769, %v3753
  %3771 = vst.msk [vmem:[#allocation2 + $0x8] sm:$0xff] %vm3769, %v3754
  %3772 = vst.msk [vmem:[#allocation2 + $0x10] sm:$0xff] %vm3769, %v3755
  %3773 = vst.msk [vmem:[#allocation2 + $0x18] sm:$0xff] %vm3769, %v3756
  %3774 = vst.msk [vmem:[#allocation2 + $0x20] sm:$0xff] %vm3769, %v3757
  %3775 = vst.msk [vmem:[#allocation2 + $0x28] sm:$0xff] %vm3769, %v3758
  %3776 = vst.msk [vmem:[#allocation2 + $0x30] sm:$0xff] %vm3769, %v3759
  %3777 = vst.msk [vmem:[#allocation2 + $0x38] sm:$0xff] %vm3769, %v3760
  %3778 = vst.msk [vmem:[#allocation2 + $0x40] sm:$0xff] %vm3769, %v3761
  %3779 = vst.msk [vmem:[#allocation2 + $0x48] sm:$0xff] %vm3769, %v3762
  %3780 = vst.msk [vmem:[#allocation2 + $0x50] sm:$0xff] %vm3769, %v3763
  %3781 = vst.msk [vmem:[#allocation2 + $0x58] sm:$0xff] %vm3769, %v3764
  %3782 = vst.msk [vmem:[#allocation2 + $0x60] sm:$0xff] %vm3769, %v3765
  %3783 = vst.msk [vmem:[#allocation2 + $0x68] sm:$0xff] %vm3769, %v3766
  %3784 = vst.msk [vmem:[#allocation2 + $0x70] sm:$0xff] %vm3769, %v3767
  %3785 = vst.msk [vmem:[#allocation2 + $0x78] sm:$0xff] %vm3769, %v3768
  // Predicated region
  $region30: #{gat_forward.5} parent=0 // pred_check
    %p3786 = pneg %p24
  $region31: #{gat_forward.5} parent=0 // pred_check_branch
    %3788 = sbr.rel (%p3786) target = $region33
  $region32: #{gat_forward.5} parent=0 // pred_region
    %v3789 = vld [vmem:[#allocation2] sm:$0xff]
    %v3790 = vld [vmem:[#allocation2 + $0x8] sm:$0xff]
    %v3791 = vld [vmem:[#allocation2 + $0x10] sm:$0xff]
    %v3792 = vld [vmem:[#allocation2 + $0x18] sm:$0xff]
    %v3793 = vld [vmem:[#allocation2 + $0x20] sm:$0xff]
    %v3794 = vld [vmem:[#allocation2 + $0x28] sm:$0xff]
    %v3795 = vld [vmem:[#allocation2 + $0x30] sm:$0xff]
    %v3796 = vld [vmem:[#allocation2 + $0x38] sm:$0xff]
    %v3797 = vld [vmem:[#allocation2 + $0x40] sm:$0xff]
    %v3798 = vld [vmem:[#allocation2 + $0x48] sm:$0xff]
    %v3799 = vld [vmem:[#allocation2 + $0x50] sm:$0xff]
    %v3800 = vld [vmem:[#allocation2 + $0x58] sm:$0xff]
    %v3801 = vld [vmem:[#allocation2 + $0x60] sm:$0xff]
    %v3802 = vld [vmem:[#allocation2 + $0x68] sm:$0xff]
    %v3803 = vld [vmem:[#allocation2 + $0x70] sm:$0xff]
    %v3804 = vld [vmem:[#allocation2 + $0x78] sm:$0xff]
    %v3805 = vmax.f32 %v3789, 1e-30
    %v3806 = vmax.f32 %v3790, 1e-30
    %v3807 = vmax.f32 %v3791, 1e-30
    %v3808 = vmax.f32 %v3792, 1e-30
    %v3809 = vmax.f32 %v3793, 1e-30
    %v3810 = vmax.f32 %v3794, 1e-30
    %v3811 = vmax.f32 %v3795, 1e-30
    %v3812 = vmax.f32 %v3796, 1e-30
    %v3813 = vmax.f32 %v3797, 1e-30
    %v3814 = vmax.f32 %v3798, 1e-30
    %v3815 = vmax.f32 %v3799, 1e-30
    %v3816 = vmax.f32 %v3800, 1e-30
    %v3817 = vmax.f32 %v3801, 1e-30
    %v3818 = vmax.f32 %v3802, 1e-30
    %v3819 = vmax.f32 %v3803, 1e-30
    %v3820 = vmax.f32 %v3804, 1e-30
    %v3821 = vrcp.pop %v3805
    %v3822 = vrcp.pop %v3806
    %v3823 = vrcp.pop %v3807
    %v3824 = vrcp.pop %v3808
    %v3825 = vrcp.pop %v3809
    %v3826 = vrcp.pop %v3810
    %v3827 = vrcp.pop %v3811
    %v3828 = vrcp.pop %v3812
    %v3829 = vrcp.pop %v3813
    %v3830 = vrcp.pop %v3814
    %v3831 = vrcp.pop %v3815
    %v3832 = vrcp.pop %v3816
    %v3833 = vrcp.pop %v3817
    %v3834 = vrcp.pop %v3818
    %v3835 = vrcp.pop %v3819
    %v3836 = vrcp.pop %v3820
    %3838 = vset.pattern.permute.xlu0 8
    %3839 = vperm.xlu0 %3838, %v3821
    %v3840 = vpop.permute.xlu0 %3839
    %3843 = vset.pattern.permute.xlu0 8
    %3844 = vperm.xlu0 %3843, %v3822
    %v3845 = vpop.permute.xlu0 %3844
    %3848 = vset.pattern.permute.xlu0 8
    %3849 = vperm.xlu0 %3848, %v3823
    %v3850 = vpop.permute.xlu0 %3849
    %3853 = vset.pattern.permute.xlu0 8
    %3854 = vperm.xlu0 %3853, %v3824
    %v3855 = vpop.permute.xlu0 %3854
    %3858 = vset.pattern.permute.xlu0 8
    %3859 = vperm.xlu0 %3858, %v3825
    %v3860 = vpop.permute.xlu0 %3859
    %3863 = vset.pattern.permute.xlu0 8
    %3864 = vperm.xlu0 %3863, %v3826
    %v3865 = vpop.permute.xlu0 %3864
    %3868 = vset.pattern.permute.xlu0 8
    %3869 = vperm.xlu0 %3868, %v3827
    %v3870 = vpop.permute.xlu0 %3869
    %3873 = vset.pattern.permute.xlu0 8
    %3874 = vperm.xlu0 %3873, %v3828
    %v3875 = vpop.permute.xlu0 %3874
    %3878 = vset.pattern.permute.xlu0 8
    %3879 = vperm.xlu0 %3878, %v3829
    %v3880 = vpop.permute.xlu0 %3879
    %3883 = vset.pattern.permute.xlu0 8
    %3884 = vperm.xlu0 %3883, %v3830
    %v3885 = vpop.permute.xlu0 %3884
    %3888 = vset.pattern.permute.xlu0 8
    %3889 = vperm.xlu0 %3888, %v3831
    %v3890 = vpop.permute.xlu0 %3889
    %3893 = vset.pattern.permute.xlu0 8
    %3894 = vperm.xlu0 %3893, %v3832
    %v3895 = vpop.permute.xlu0 %3894
    %3898 = vset.pattern.permute.xlu0 8
    %3899 = vperm.xlu0 %3898, %v3833
    %v3900 = vpop.permute.xlu0 %3899
    %3903 = vset.pattern.permute.xlu0 8
    %3904 = vperm.xlu0 %3903, %v3834
    %v3905 = vpop.permute.xlu0 %3904
    %3908 = vset.pattern.permute.xlu0 8
    %3909 = vperm.xlu0 %3908, %v3835
    %v3910 = vpop.permute.xlu0 %3909
    %3913 = vset.pattern.permute.xlu0 8
    %3914 = vperm.xlu0 %3913, %v3836
    %v3915 = vpop.permute.xlu0 %3914
    %v3917 = vmul.f32 %v3789, %v3840
    %v3918 = vmul.f32 %v3790, %v3845
    %v3919 = vmul.f32 %v3791, %v3850
    %v3920 = vmul.f32 %v3792, %v3855
    %v3921 = vmul.f32 %v3793, %v3860
    %v3922 = vmul.f32 %v3794, %v3865
    %v3923 = vmul.f32 %v3795, %v3870
    %v3924 = vmul.f32 %v3796, %v3875
    %v3925 = vmul.f32 %v3797, %v3880
    %v3926 = vmul.f32 %v3798, %v3885
    %v3927 = vmul.f32 %v3799, %v3890
    %v3928 = vmul.f32 %v3800, %v3895
    %v3929 = vmul.f32 %v3801, %v3900
    %v3930 = vmul.f32 %v3802, %v3905
    %v3931 = vmul.f32 %v3803, %v3910
    %v3932 = vmul.f32 %v3804, %v3915
    %3933 = vset.pattern.permute.xlu0 17
    %3934 = vperm.xlu0 %3933, %v3821
    %v3935 = vpop.permute.xlu0 %3934
    %3937 = vset.pattern.permute.xlu0 17
    %3938 = vperm.xlu0 %3937, %v3822
    %v3939 = vpop.permute.xlu0 %3938
    %3941 = vset.pattern.permute.xlu0 17
    %3942 = vperm.xlu0 %3941, %v3823
    %v3943 = vpop.permute.xlu0 %3942
    %3945 = vset.pattern.permute.xlu0 17
    %3946 = vperm.xlu0 %3945, %v3824
    %v3947 = vpop.permute.xlu0 %3946
    %3949 = vset.pattern.permute.xlu0 17
    %3950 = vperm.xlu0 %3949, %v3825
    %v3951 = vpop.permute.xlu0 %3950
    %3953 = vset.pattern.permute.xlu0 17
    %3954 = vperm.xlu0 %3953, %v3826
    %v3955 = vpop.permute.xlu0 %3954
    %3957 = vset.pattern.permute.xlu0 17
    %3958 = vperm.xlu0 %3957, %v3827
    %v3959 = vpop.permute.xlu0 %3958
    %3961 = vset.pattern.permute.xlu0 17
    %3962 = vperm.xlu0 %3961, %v3828
    %v3963 = vpop.permute.xlu0 %3962
    %3965 = vset.pattern.permute.xlu0 17
    %3966 = vperm.xlu0 %3965, %v3829
    %v3967 = vpop.permute.xlu0 %3966
    %3969 = vset.pattern.permute.xlu0 17
    %3970 = vperm.xlu0 %3969, %v3830
    %v3971 = vpop.permute.xlu0 %3970
    %3973 = vset.pattern.permute.xlu0 17
    %3974 = vperm.xlu0 %3973, %v3831
    %v3975 = vpop.permute.xlu0 %3974
    %3977 = vset.pattern.permute.xlu0 17
    %3978 = vperm.xlu0 %3977, %v3832
    %v3979 = vpop.permute.xlu0 %3978
    %3981 = vset.pattern.permute.xlu0 17
    %3982 = vperm.xlu0 %3981, %v3833
    %v3983 = vpop.permute.xlu0 %3982
    %3985 = vset.pattern.permute.xlu0 17
    %3986 = vperm.xlu0 %3985, %v3834
    %v3987 = vpop.permute.xlu0 %3986
    %3989 = vset.pattern.permute.xlu0 17
    %3990 = vperm.xlu0 %3989, %v3835
    %v3991 = vpop.permute.xlu0 %3990
    %3993 = vset.pattern.permute.xlu0 17
    %3994 = vperm.xlu0 %3993, %v3836
    %v3995 = vpop.permute.xlu0 %3994
    %v3997 = vmul.f32 %v3789, %v3935
    %v3998 = vmul.f32 %v3790, %v3939
    %v3999 = vmul.f32 %v3791, %v3943
    %v4000 = vmul.f32 %v3792, %v3947
    %v4001 = vmul.f32 %v3793, %v3951
    %v4002 = vmul.f32 %v3794, %v3955
    %v4003 = vmul.f32 %v3795, %v3959
    %v4004 = vmul.f32 %v3796, %v3963
    %v4005 = vmul.f32 %v3797, %v3967
    %v4006 = vmul.f32 %v3798, %v3971
    %v4007 = vmul.f32 %v3799, %v3975
    %v4008 = vmul.f32 %v3800, %v3979
    %v4009 = vmul.f32 %v3801, %v3983
    %v4010 = vmul.f32 %v3802, %v3987
    %v4011 = vmul.f32 %v3803, %v3991
    %v4012 = vmul.f32 %v3804, %v3995
    %4013 = vset.pattern.permute.xlu0 26
    %4014 = vperm.xlu0 %4013, %v3821
    %v4015 = vpop.permute.xlu0 %4014
    %4017 = vset.pattern.permute.xlu0 26
    %4018 = vperm.xlu0 %4017, %v3822
    %v4019 = vpop.permute.xlu0 %4018
    %4021 = vset.pattern.permute.xlu0 26
    %4022 = vperm.xlu0 %4021, %v3823
    %v4023 = vpop.permute.xlu0 %4022
    %4025 = vset.pattern.permute.xlu0 26
    %4026 = vperm.xlu0 %4025, %v3824
    %v4027 = vpop.permute.xlu0 %4026
    %4029 = vset.pattern.permute.xlu0 26
    %4030 = vperm.xlu0 %4029, %v3825
    %v4031 = vpop.permute.xlu0 %4030
    %4033 = vset.pattern.permute.xlu0 26
    %4034 = vperm.xlu0 %4033, %v3826
    %v4035 = vpop.permute.xlu0 %4034
    %4037 = vset.pattern.permute.xlu0 26
    %4038 = vperm.xlu0 %4037, %v3827
    %v4039 = vpop.permute.xlu0 %4038
    %4041 = vset.pattern.permute.xlu0 26
    %4042 = vperm.xlu0 %4041, %v3828
    %v4043 = vpop.permute.xlu0 %4042
    %4045 = vset.pattern.permute.xlu0 26
    %4046 = vperm.xlu0 %4045, %v3829
    %v4047 = vpop.permute.xlu0 %4046
    %4049 = vset.pattern.permute.xlu0 26
    %4050 = vperm.xlu0 %4049, %v3830
    %v4051 = vpop.permute.xlu0 %4050
    %4053 = vset.pattern.permute.xlu0 26
    %4054 = vperm.xlu0 %4053, %v3831
    %v4055 = vpop.permute.xlu0 %4054
    %4057 = vset.pattern.permute.xlu0 26
    %4058 = vperm.xlu0 %4057, %v3832
    %v4059 = vpop.permute.xlu0 %4058
    %4061 = vset.pattern.permute.xlu0 26
    %4062 = vperm.xlu0 %4061, %v3833
    %v4063 = vpop.permute.xlu0 %4062
    %4065 = vset.pattern.permute.xlu0 26
    %4066 = vperm.xlu0 %4065, %v3834
    %v4067 = vpop.permute.xlu0 %4066
    %4069 = vset.pattern.permute.xlu0 26
    %4070 = vperm.xlu0 %4069, %v3835
    %v4071 = vpop.permute.xlu0 %4070
    %4073 = vset.pattern.permute.xlu0 26
    %4074 = vperm.xlu0 %4073, %v3836
    %v4075 = vpop.permute.xlu0 %4074
    %v4077 = vmul.f32 %v3789, %v4015
    %v4078 = vmul.f32 %v3790, %v4019
    %v4079 = vmul.f32 %v3791, %v4023
    %v4080 = vmul.f32 %v3792, %v4027
    %v4081 = vmul.f32 %v3793, %v4031
    %v4082 = vmul.f32 %v3794, %v4035
    %v4083 = vmul.f32 %v3795, %v4039
    %v4084 = vmul.f32 %v3796, %v4043
    %v4085 = vmul.f32 %v3797, %v4047
    %v4086 = vmul.f32 %v3798, %v4051
    %v4087 = vmul.f32 %v3799, %v4055
    %v4088 = vmul.f32 %v3800, %v4059
    %v4089 = vmul.f32 %v3801, %v4063
    %v4090 = vmul.f32 %v3802, %v4067
    %v4091 = vmul.f32 %v3803, %v4071
    %v4092 = vmul.f32 %v3804, %v4075
    %4093 = vset.pattern.permute.xlu0 35
    %4094 = vperm.xlu0 %4093, %v3821
    %v4095 = vpop.permute.xlu0 %4094
    %4097 = vset.pattern.permute.xlu0 35
    %4098 = vperm.xlu0 %4097, %v3822
    %v4099 = vpop.permute.xlu0 %4098
    %4101 = vset.pattern.permute.xlu0 35
    %4102 = vperm.xlu0 %4101, %v3823
    %v4103 = vpop.permute.xlu0 %4102
    %4105 = vset.pattern.permute.xlu0 35
    %4106 = vperm.xlu0 %4105, %v3824
    %v4107 = vpop.permute.xlu0 %4106
    %4109 = vset.pattern.permute.xlu0 35
    %4110 = vperm.xlu0 %4109, %v3825
    %v4111 = vpop.permute.xlu0 %4110
    %4113 = vset.pattern.permute.xlu0 35
    %4114 = vperm.xlu0 %4113, %v3826
    %v4115 = vpop.permute.xlu0 %4114
    %4117 = vset.pattern.permute.xlu0 35
    %4118 = vperm.xlu0 %4117, %v3827
    %v4119 = vpop.permute.xlu0 %4118
    %4121 = vset.pattern.permute.xlu0 35
    %4122 = vperm.xlu0 %4121, %v3828
    %v4123 = vpop.permute.xlu0 %4122
    %4125 = vset.pattern.permute.xlu0 35
    %4126 = vperm.xlu0 %4125, %v3829
    %v4127 = vpop.permute.xlu0 %4126
    %4129 = vset.pattern.permute.xlu0 35
    %4130 = vperm.xlu0 %4129, %v3830
    %v4131 = vpop.permute.xlu0 %4130
    %4133 = vset.pattern.permute.xlu0 35
    %4134 = vperm.xlu0 %4133, %v3831
    %v4135 = vpop.permute.xlu0 %4134
    %4137 = vset.pattern.permute.xlu0 35
    %4138 = vperm.xlu0 %4137, %v3832
    %v4139 = vpop.permute.xlu0 %4138
    %4141 = vset.pattern.permute.xlu0 35
    %4142 = vperm.xlu0 %4141, %v3833
    %v4143 = vpop.permute.xlu0 %4142
    %4145 = vset.pattern.permute.xlu0 35
    %4146 = vperm.xlu0 %4145, %v3834
    %v4147 = vpop.permute.xlu0 %4146
    %4149 = vset.pattern.permute.xlu0 35
    %4150 = vperm.xlu0 %4149, %v3835
    %v4151 = vpop.permute.xlu0 %4150
    %4153 = vset.pattern.permute.xlu0 35
    %4154 = vperm.xlu0 %4153, %v3836
    %v4155 = vpop.permute.xlu0 %4154
    %v4157 = vmul.f32 %v3789, %v4095
    %v4158 = vmul.f32 %v3790, %v4099
    %v4159 = vmul.f32 %v3791, %v4103
    %v4160 = vmul.f32 %v3792, %v4107
    %v4161 = vmul.f32 %v3793, %v4111
    %v4162 = vmul.f32 %v3794, %v4115
    %v4163 = vmul.f32 %v3795, %v4119
    %v4164 = vmul.f32 %v3796, %v4123
    %v4165 = vmul.f32 %v3797, %v4127
    %v4166 = vmul.f32 %v3798, %v4131
    %v4167 = vmul.f32 %v3799, %v4135
    %v4168 = vmul.f32 %v3800, %v4139
    %v4169 = vmul.f32 %v3801, %v4143
    %v4170 = vmul.f32 %v3802, %v4147
    %v4171 = vmul.f32 %v3803, %v4151
    %v4172 = vmul.f32 %v3804, %v4155
    %4173 = vset.pattern.permute.xlu0 44
    %4174 = vperm.xlu0 %4173, %v3821
    %v4175 = vpop.permute.xlu0 %4174
    %4177 = vset.pattern.permute.xlu0 44
    %4178 = vperm.xlu0 %4177, %v3822
    %v4179 = vpop.permute.xlu0 %4178
    %4181 = vset.pattern.permute.xlu0 44
    %4182 = vperm.xlu0 %4181, %v3823
    %v4183 = vpop.permute.xlu0 %4182
    %4185 = vset.pattern.permute.xlu0 44
    %4186 = vperm.xlu0 %4185, %v3824
    %v4187 = vpop.permute.xlu0 %4186
    %4189 = vset.pattern.permute.xlu0 44
    %4190 = vperm.xlu0 %4189, %v3825
    %v4191 = vpop.permute.xlu0 %4190
    %4193 = vset.pattern.permute.xlu0 44
    %4194 = vperm.xlu0 %4193, %v3826
    %v4195 = vpop.permute.xlu0 %4194
    %4197 = vset.pattern.permute.xlu0 44
    %4198 = vperm.xlu0 %4197, %v3827
    %v4199 = vpop.permute.xlu0 %4198
    %4201 = vset.pattern.permute.xlu0 44
    %4202 = vperm.xlu0 %4201, %v3828
    %v4203 = vpop.permute.xlu0 %4202
    %4205 = vset.pattern.permute.xlu0 44
    %4206 = vperm.xlu0 %4205, %v3829
    %v4207 = vpop.permute.xlu0 %4206
    %4209 = vset.pattern.permute.xlu0 44
    %4210 = vperm.xlu0 %4209, %v3830
    %v4211 = vpop.permute.xlu0 %4210
    %4213 = vset.pattern.permute.xlu0 44
    %4214 = vperm.xlu0 %4213, %v3831
    %v4215 = vpop.permute.xlu0 %4214
    %4217 = vset.pattern.permute.xlu0 44
    %4218 = vperm.xlu0 %4217, %v3832
    %v4219 = vpop.permute.xlu0 %4218
    %4221 = vset.pattern.permute.xlu0 44
    %4222 = vperm.xlu0 %4221, %v3833
    %v4223 = vpop.permute.xlu0 %4222
    %4225 = vset.pattern.permute.xlu0 44
    %4226 = vperm.xlu0 %4225, %v3834
    %v4227 = vpop.permute.xlu0 %4226
    %4229 = vset.pattern.permute.xlu0 44
    %4230 = vperm.xlu0 %4229, %v3835
    %v4231 = vpop.permute.xlu0 %4230
    %4233 = vset.pattern.permute.xlu0 44
    %4234 = vperm.xlu0 %4233, %v3836
    %v4235 = vpop.permute.xlu0 %4234
    %v4237 = vmul.f32 %v3789, %v4175
    %v4238 = vmul.f32 %v3790, %v4179
    %v4239 = vmul.f32 %v3791, %v4183
    %v4240 = vmul.f32 %v3792, %v4187
    %v4241 = vmul.f32 %v3793, %v4191
    %v4242 = vmul.f32 %v3794, %v4195
    %v4243 = vmul.f32 %v3795, %v4199
    %v4244 = vmul.f32 %v3796, %v4203
    %v4245 = vmul.f32 %v3797, %v4207
    %v4246 = vmul.f32 %v3798, %v4211
    %v4247 = vmul.f32 %v3799, %v4215
    %v4248 = vmul.f32 %v3800, %v4219
    %v4249 = vmul.f32 %v3801, %v4223
    %v4250 = vmul.f32 %v3802, %v4227
    %v4251 = vmul.f32 %v3803, %v4231
    %v4252 = vmul.f32 %v3804, %v4235
    %4253 = vset.pattern.permute.xlu0 53
    %4254 = vperm.xlu0 %4253, %v3821
    %v4255 = vpop.permute.xlu0 %4254
    %4257 = vset.pattern.permute.xlu0 53
    %4258 = vperm.xlu0 %4257, %v3822
    %v4259 = vpop.permute.xlu0 %4258
    %4261 = vset.pattern.permute.xlu0 53
    %4262 = vperm.xlu0 %4261, %v3823
    %v4263 = vpop.permute.xlu0 %4262
    %4265 = vset.pattern.permute.xlu0 53
    %4266 = vperm.xlu0 %4265, %v3824
    %v4267 = vpop.permute.xlu0 %4266
    %4269 = vset.pattern.permute.xlu0 53
    %4270 = vperm.xlu0 %4269, %v3825
    %v4271 = vpop.permute.xlu0 %4270
    %4273 = vset.pattern.permute.xlu0 53
    %4274 = vperm.xlu0 %4273, %v3826
    %v4275 = vpop.permute.xlu0 %4274
    %4277 = vset.pattern.permute.xlu0 53
    %4278 = vperm.xlu0 %4277, %v3827
    %v4279 = vpop.permute.xlu0 %4278
    %4281 = vset.pattern.permute.xlu0 53
    %4282 = vperm.xlu0 %4281, %v3828
    %v4283 = vpop.permute.xlu0 %4282
    %4285 = vset.pattern.permute.xlu0 53
    %4286 = vperm.xlu0 %4285, %v3829
    %v4287 = vpop.permute.xlu0 %4286
    %4289 = vset.pattern.permute.xlu0 53
    %4290 = vperm.xlu0 %4289, %v3830
    %v4291 = vpop.permute.xlu0 %4290
    %4293 = vset.pattern.permute.xlu0 53
    %4294 = vperm.xlu0 %4293, %v3831
    %v4295 = vpop.permute.xlu0 %4294
    %4297 = vset.pattern.permute.xlu0 53
    %4298 = vperm.xlu0 %4297, %v3832
    %v4299 = vpop.permute.xlu0 %4298
    %4301 = vset.pattern.permute.xlu0 53
    %4302 = vperm.xlu0 %4301, %v3833
    %v4303 = vpop.permute.xlu0 %4302
    %4305 = vset.pattern.permute.xlu0 53
    %4306 = vperm.xlu0 %4305, %v3834
    %v4307 = vpop.permute.xlu0 %4306
    %4309 = vset.pattern.permute.xlu0 53
    %4310 = vperm.xlu0 %4309, %v3835
    %v4311 = vpop.permute.xlu0 %4310
    %4313 = vset.pattern.permute.xlu0 53
    %4314 = vperm.xlu0 %4313, %v3836
    %v4315 = vpop.permute.xlu0 %4314
    %v4317 = vmul.f32 %v3789, %v4255
    %v4318 = vmul.f32 %v3790, %v4259
    %v4319 = vmul.f32 %v3791, %v4263
    %v4320 = vmul.f32 %v3792, %v4267
    %v4321 = vmul.f32 %v3793, %v4271
    %v4322 = vmul.f32 %v3794, %v4275
    %v4323 = vmul.f32 %v3795, %v4279
    %v4324 = vmul.f32 %v3796, %v4283
    %v4325 = vmul.f32 %v3797, %v4287
    %v4326 = vmul.f32 %v3798, %v4291
    %v4327 = vmul.f32 %v3799, %v4295
    %v4328 = vmul.f32 %v3800, %v4299
    %v4329 = vmul.f32 %v3801, %v4303
    %v4330 = vmul.f32 %v3802, %v4307
    %v4331 = vmul.f32 %v3803, %v4311
    %v4332 = vmul.f32 %v3804, %v4315
    %4333 = vset.pattern.permute.xlu0 62
    %4334 = vperm.xlu0 %4333, %v3821
    %v4335 = vpop.permute.xlu0 %4334
    %4337 = vset.pattern.permute.xlu0 62
    %4338 = vperm.xlu0 %4337, %v3822
    %v4339 = vpop.permute.xlu0 %4338
    %4341 = vset.pattern.permute.xlu0 62
    %4342 = vperm.xlu0 %4341, %v3823
    %v4343 = vpop.permute.xlu0 %4342
    %4345 = vset.pattern.permute.xlu0 62
    %4346 = vperm.xlu0 %4345, %v3824
    %v4347 = vpop.permute.xlu0 %4346
    %4349 = vset.pattern.permute.xlu0 62
    %4350 = vperm.xlu0 %4349, %v3825
    %v4351 = vpop.permute.xlu0 %4350
    %4353 = vset.pattern.permute.xlu0 62
    %4354 = vperm.xlu0 %4353, %v3826
    %v4355 = vpop.permute.xlu0 %4354
    %4357 = vset.pattern.permute.xlu0 62
    %4358 = vperm.xlu0 %4357, %v3827
    %v4359 = vpop.permute.xlu0 %4358
    %4361 = vset.pattern.permute.xlu0 62
    %4362 = vperm.xlu0 %4361, %v3828
    %v4363 = vpop.permute.xlu0 %4362
    %4365 = vset.pattern.permute.xlu0 62
    %4366 = vperm.xlu0 %4365, %v3829
    %v4367 = vpop.permute.xlu0 %4366
    %4369 = vset.pattern.permute.xlu0 62
    %4370 = vperm.xlu0 %4369, %v3830
    %v4371 = vpop.permute.xlu0 %4370
    %4373 = vset.pattern.permute.xlu0 62
    %4374 = vperm.xlu0 %4373, %v3831
    %v4375 = vpop.permute.xlu0 %4374
    %4377 = vset.pattern.permute.xlu0 62
    %4378 = vperm.xlu0 %4377, %v3832
    %v4379 = vpop.permute.xlu0 %4378
    %4381 = vset.pattern.permute.xlu0 62
    %4382 = vperm.xlu0 %4381, %v3833
    %v4383 = vpop.permute.xlu0 %4382
    %4385 = vset.pattern.permute.xlu0 62
    %4386 = vperm.xlu0 %4385, %v3834
    %v4387 = vpop.permute.xlu0 %4386
    %4389 = vset.pattern.permute.xlu0 62
    %4390 = vperm.xlu0 %4389, %v3835
    %v4391 = vpop.permute.xlu0 %4390
    %4393 = vset.pattern.permute.xlu0 62
    %4394 = vperm.xlu0 %4393, %v3836
    %v4395 = vpop.permute.xlu0 %4394
    %v4397 = vmul.f32 %v3789, %v4335
    %v4398 = vmul.f32 %v3790, %v4339
    %v4399 = vmul.f32 %v3791, %v4343
    %v4400 = vmul.f32 %v3792, %v4347
    %v4401 = vmul.f32 %v3793, %v4351
    %v4402 = vmul.f32 %v3794, %v4355
    %v4403 = vmul.f32 %v3795, %v4359
    %v4404 = vmul.f32 %v3796, %v4363
    %v4405 = vmul.f32 %v3797, %v4367
    %v4406 = vmul.f32 %v3798, %v4371
    %v4407 = vmul.f32 %v3799, %v4375
    %v4408 = vmul.f32 %v3800, %v4379
    %v4409 = vmul.f32 %v3801, %v4383
    %v4410 = vmul.f32 %v3802, %v4387
    %v4411 = vmul.f32 %v3803, %v4391
    %v4412 = vmul.f32 %v3804, %v4395
    %4413 = vset.pattern.permute.xlu0 71
    %4414 = vperm.xlu0 %4413, %v3821
    %v4415 = vpop.permute.xlu0 %4414
    %4417 = vset.pattern.permute.xlu0 71
    %4418 = vperm.xlu0 %4417, %v3822
    %v4419 = vpop.permute.xlu0 %4418
    %4421 = vset.pattern.permute.xlu0 71
    %4422 = vperm.xlu0 %4421, %v3823
    %v4423 = vpop.permute.xlu0 %4422
    %4425 = vset.pattern.permute.xlu0 71
    %4426 = vperm.xlu0 %4425, %v3824
    %v4427 = vpop.permute.xlu0 %4426
    %4429 = vset.pattern.permute.xlu0 71
    %4430 = vperm.xlu0 %4429, %v3825
    %v4431 = vpop.permute.xlu0 %4430
    %4433 = vset.pattern.permute.xlu0 71
    %4434 = vperm.xlu0 %4433, %v3826
    %v4435 = vpop.permute.xlu0 %4434
    %4437 = vset.pattern.permute.xlu0 71
    %4438 = vperm.xlu0 %4437, %v3827
    %v4439 = vpop.permute.xlu0 %4438
    %4441 = vset.pattern.permute.xlu0 71
    %4442 = vperm.xlu0 %4441, %v3828
    %v4443 = vpop.permute.xlu0 %4442
    %4445 = vset.pattern.permute.xlu0 71
    %4446 = vperm.xlu0 %4445, %v3829
    %v4447 = vpop.permute.xlu0 %4446
    %4449 = vset.pattern.permute.xlu0 71
    %4450 = vperm.xlu0 %4449, %v3830
    %v4451 = vpop.permute.xlu0 %4450
    %4453 = vset.pattern.permute.xlu0 71
    %4454 = vperm.xlu0 %4453, %v3831
    %v4455 = vpop.permute.xlu0 %4454
    %4457 = vset.pattern.permute.xlu0 71
    %4458 = vperm.xlu0 %4457, %v3832
    %v4459 = vpop.permute.xlu0 %4458
    %4461 = vset.pattern.permute.xlu0 71
    %4462 = vperm.xlu0 %4461, %v3833
    %v4463 = vpop.permute.xlu0 %4462
    %4465 = vset.pattern.permute.xlu0 71
    %4466 = vperm.xlu0 %4465, %v3834
    %v4467 = vpop.permute.xlu0 %4466
    %4469 = vset.pattern.permute.xlu0 71
    %4470 = vperm.xlu0 %4469, %v3835
    %v4471 = vpop.permute.xlu0 %4470
    %4473 = vset.pattern.permute.xlu0 71
    %4474 = vperm.xlu0 %4473, %v3836
    %v4475 = vpop.permute.xlu0 %4474
    %v4477 = vmul.f32 %v3789, %v4415
    %v4478 = vmul.f32 %v3790, %v4419
    %v4479 = vmul.f32 %v3791, %v4423
    %v4480 = vmul.f32 %v3792, %v4427
    %v4481 = vmul.f32 %v3793, %v4431
    %v4482 = vmul.f32 %v3794, %v4435
    %v4483 = vmul.f32 %v3795, %v4439
    %v4484 = vmul.f32 %v3796, %v4443
    %v4485 = vmul.f32 %v3797, %v4447
    %v4486 = vmul.f32 %v3798, %v4451
    %v4487 = vmul.f32 %v3799, %v4455
    %v4488 = vmul.f32 %v3800, %v4459
    %v4489 = vmul.f32 %v3801, %v4463
    %v4490 = vmul.f32 %v3802, %v4467
    %v4491 = vmul.f32 %v3803, %v4471
    %v4492 = vmul.f32 %v3804, %v4475
    %v4493 = vld [vmem:[%s5] sm:$0x1]
    %4510 = vrot.lane.b32.xlu0 %v3997, 127
    %v4511 = vpop.permute.xlu0 %4510
    %4512 = vrot.lane.b32.xlu0 %v3998, 127
    %v4513 = vpop.permute.xlu0 %4512
    %4514 = vrot.lane.b32.xlu0 %v3999, 127
    %v4515 = vpop.permute.xlu0 %4514
    %4516 = vrot.lane.b32.xlu0 %v4000, 127
    %v4517 = vpop.permute.xlu0 %4516
    %4518 = vrot.lane.b32.xlu0 %v4001, 127
    %v4519 = vpop.permute.xlu0 %4518
    %4520 = vrot.lane.b32.xlu0 %v4002, 127
    %v4521 = vpop.permute.xlu0 %4520
    %4522 = vrot.lane.b32.xlu0 %v4003, 127
    %v4523 = vpop.permute.xlu0 %4522
    %4524 = vrot.lane.b32.xlu0 %v4004, 127
    %v4525 = vpop.permute.xlu0 %4524
    %4526 = vrot.lane.b32.xlu0 %v4005, 127
    %v4527 = vpop.permute.xlu0 %4526
    %4528 = vrot.lane.b32.xlu0 %v4006, 127
    %v4529 = vpop.permute.xlu0 %4528
    %4530 = vrot.lane.b32.xlu0 %v4007, 127
    %v4531 = vpop.permute.xlu0 %4530
    %4532 = vrot.lane.b32.xlu0 %v4008, 127
    %v4533 = vpop.permute.xlu0 %4532
    %4534 = vrot.lane.b32.xlu0 %v4009, 127
    %v4535 = vpop.permute.xlu0 %4534
    %4536 = vrot.lane.b32.xlu0 %v4010, 127
    %v4537 = vpop.permute.xlu0 %4536
    %4538 = vrot.lane.b32.xlu0 %v4011, 127
    %v4539 = vpop.permute.xlu0 %4538
    %4540 = vrot.lane.b32.xlu0 %v4012, 127
    %v4541 = vpop.permute.xlu0 %4540
    %4574 = vrot.lane.b32.xlu0 %v4077, 126
    %v4575 = vpop.permute.xlu0 %4574
    %4576 = vrot.lane.b32.xlu0 %v4078, 126
    %v4577 = vpop.permute.xlu0 %4576
    %4578 = vrot.lane.b32.xlu0 %v4079, 126
    %v4579 = vpop.permute.xlu0 %4578
    %4580 = vrot.lane.b32.xlu0 %v4080, 126
    %v4581 = vpop.permute.xlu0 %4580
    %4582 = vrot.lane.b32.xlu0 %v4081, 126
    %v4583 = vpop.permute.xlu0 %4582
    %4584 = vrot.lane.b32.xlu0 %v4082, 126
    %v4585 = vpop.permute.xlu0 %4584
    %4586 = vrot.lane.b32.xlu0 %v4083, 126
    %v4587 = vpop.permute.xlu0 %4586
    %4588 = vrot.lane.b32.xlu0 %v4084, 126
    %v4589 = vpop.permute.xlu0 %4588
    %4590 = vrot.lane.b32.xlu0 %v4085, 126
    %v4591 = vpop.permute.xlu0 %4590
    %4592 = vrot.lane.b32.xlu0 %v4086, 126
    %v4593 = vpop.permute.xlu0 %4592
    %4594 = vrot.lane.b32.xlu0 %v4087, 126
    %v4595 = vpop.permute.xlu0 %4594
    %4596 = vrot.lane.b32.xlu0 %v4088, 126
    %v4597 = vpop.permute.xlu0 %4596
    %4598 = vrot.lane.b32.xlu0 %v4089, 126
    %v4599 = vpop.permute.xlu0 %4598
    %4600 = vrot.lane.b32.xlu0 %v4090, 126
    %v4601 = vpop.permute.xlu0 %4600
    %4602 = vrot.lane.b32.xlu0 %v4091, 126
    %v4603 = vpop.permute.xlu0 %4602
    %4604 = vrot.lane.b32.xlu0 %v4092, 126
    %v4605 = vpop.permute.xlu0 %4604
    %4638 = vrot.lane.b32.xlu0 %v4157, 125
    %v4639 = vpop.permute.xlu0 %4638
    %4640 = vrot.lane.b32.xlu0 %v4158, 125
    %v4641 = vpop.permute.xlu0 %4640
    %4642 = vrot.lane.b32.xlu0 %v4159, 125
    %v4643 = vpop.permute.xlu0 %4642
    %4644 = vrot.lane.b32.xlu0 %v4160, 125
    %v4645 = vpop.permute.xlu0 %4644
    %4646 = vrot.lane.b32.xlu0 %v4161, 125
    %v4647 = vpop.permute.xlu0 %4646
    %4648 = vrot.lane.b32.xlu0 %v4162, 125
    %v4649 = vpop.permute.xlu0 %4648
    %4650 = vrot.lane.b32.xlu0 %v4163, 125
    %v4651 = vpop.permute.xlu0 %4650
    %4652 = vrot.lane.b32.xlu0 %v4164, 125
    %v4653 = vpop.permute.xlu0 %4652
    %4654 = vrot.lane.b32.xlu0 %v4165, 125
    %v4655 = vpop.permute.xlu0 %4654
    %4656 = vrot.lane.b32.xlu0 %v4166, 125
    %v4657 = vpop.permute.xlu0 %4656
    %4658 = vrot.lane.b32.xlu0 %v4167, 125
    %v4659 = vpop.permute.xlu0 %4658
    %4660 = vrot.lane.b32.xlu0 %v4168, 125
    %v4661 = vpop.permute.xlu0 %4660
    %4662 = vrot.lane.b32.xlu0 %v4169, 125
    %v4663 = vpop.permute.xlu0 %4662
    %4664 = vrot.lane.b32.xlu0 %v4170, 125
    %v4665 = vpop.permute.xlu0 %4664
    %4666 = vrot.lane.b32.xlu0 %v4171, 125
    %v4667 = vpop.permute.xlu0 %4666
    %4668 = vrot.lane.b32.xlu0 %v4172, 125
    %v4669 = vpop.permute.xlu0 %4668
    %4702 = vrot.lane.b32.xlu0 %v4237, 124
    %v4703 = vpop.permute.xlu0 %4702
    %4704 = vrot.lane.b32.xlu0 %v4238, 124
    %v4705 = vpop.permute.xlu0 %4704
    %4706 = vrot.lane.b32.xlu0 %v4239, 124
    %v4707 = vpop.permute.xlu0 %4706
    %4708 = vrot.lane.b32.xlu0 %v4240, 124
    %v4709 = vpop.permute.xlu0 %4708
    %4710 = vrot.lane.b32.xlu0 %v4241, 124
    %v4711 = vpop.permute.xlu0 %4710
    %4712 = vrot.lane.b32.xlu0 %v4242, 124
    %v4713 = vpop.permute.xlu0 %4712
    %4714 = vrot.lane.b32.xlu0 %v4243, 124
    %v4715 = vpop.permute.xlu0 %4714
    %4716 = vrot.lane.b32.xlu0 %v4244, 124
    %v4717 = vpop.permute.xlu0 %4716
    %4718 = vrot.lane.b32.xlu0 %v4245, 124
    %v4719 = vpop.permute.xlu0 %4718
    %4720 = vrot.lane.b32.xlu0 %v4246, 124
    %v4721 = vpop.permute.xlu0 %4720
    %4722 = vrot.lane.b32.xlu0 %v4247, 124
    %v4723 = vpop.permute.xlu0 %4722
    %4724 = vrot.lane.b32.xlu0 %v4248, 124
    %v4725 = vpop.permute.xlu0 %4724
    %4726 = vrot.lane.b32.xlu0 %v4249, 124
    %v4727 = vpop.permute.xlu0 %4726
    %4728 = vrot.lane.b32.xlu0 %v4250, 124
    %v4729 = vpop.permute.xlu0 %4728
    %4730 = vrot.lane.b32.xlu0 %v4251, 124
    %v4731 = vpop.permute.xlu0 %4730
    %4732 = vrot.lane.b32.xlu0 %v4252, 124
    %v4733 = vpop.permute.xlu0 %4732
    %4766 = vrot.lane.b32.xlu0 %v4317, 123
    %v4767 = vpop.permute.xlu0 %4766
    %4768 = vrot.lane.b32.xlu0 %v4318, 123
    %v4769 = vpop.permute.xlu0 %4768
    %4770 = vrot.lane.b32.xlu0 %v4319, 123
    %v4771 = vpop.permute.xlu0 %4770
    %4772 = vrot.lane.b32.xlu0 %v4320, 123
    %v4773 = vpop.permute.xlu0 %4772
    %4774 = vrot.lane.b32.xlu0 %v4321, 123
    %v4775 = vpop.permute.xlu0 %4774
    %4776 = vrot.lane.b32.xlu0 %v4322, 123
    %v4777 = vpop.permute.xlu0 %4776
    %4778 = vrot.lane.b32.xlu0 %v4323, 123
    %v4779 = vpop.permute.xlu0 %4778
    %4780 = vrot.lane.b32.xlu0 %v4324, 123
    %v4781 = vpop.permute.xlu0 %4780
    %4782 = vrot.lane.b32.xlu0 %v4325, 123
    %v4783 = vpop.permute.xlu0 %4782
    %4784 = vrot.lane.b32.xlu0 %v4326, 123
    %v4785 = vpop.permute.xlu0 %4784
    %4786 = vrot.lane.b32.xlu0 %v4327, 123
    %v4787 = vpop.permute.xlu0 %4786
    %4788 = vrot.lane.b32.xlu0 %v4328, 123
    %v4789 = vpop.permute.xlu0 %4788
    %4790 = vrot.lane.b32.xlu0 %v4329, 123
    %v4791 = vpop.permute.xlu0 %4790
    %4792 = vrot.lane.b32.xlu0 %v4330, 123
    %v4793 = vpop.permute.xlu0 %4792
    %4794 = vrot.lane.b32.xlu0 %v4331, 123
    %v4795 = vpop.permute.xlu0 %4794
    %4796 = vrot.lane.b32.xlu0 %v4332, 123
    %v4797 = vpop.permute.xlu0 %4796
    %4830 = vrot.lane.b32.xlu0 %v4397, 122
    %v4831 = vpop.permute.xlu0 %4830
    %4832 = vrot.lane.b32.xlu0 %v4398, 122
    %v4833 = vpop.permute.xlu0 %4832
    %4834 = vrot.lane.b32.xlu0 %v4399, 122
    %v4835 = vpop.permute.xlu0 %4834
    %4836 = vrot.lane.b32.xlu0 %v4400, 122
    %v4837 = vpop.permute.xlu0 %4836
    %4838 = vrot.lane.b32.xlu0 %v4401, 122
    %v4839 = vpop.permute.xlu0 %4838
    %4840 = vrot.lane.b32.xlu0 %v4402, 122
    %v4841 = vpop.permute.xlu0 %4840
    %4842 = vrot.lane.b32.xlu0 %v4403, 122
    %v4843 = vpop.permute.xlu0 %4842
    %4844 = vrot.lane.b32.xlu0 %v4404, 122
    %v4845 = vpop.permute.xlu0 %4844
    %4846 = vrot.lane.b32.xlu0 %v4405, 122
    %v4847 = vpop.permute.xlu0 %4846
    %4848 = vrot.lane.b32.xlu0 %v4406, 122
    %v4849 = vpop.permute.xlu0 %4848
    %4850 = vrot.lane.b32.xlu0 %v4407, 122
    %v4851 = vpop.permute.xlu0 %4850
    %4852 = vrot.lane.b32.xlu0 %v4408, 122
    %v4853 = vpop.permute.xlu0 %4852
    %4854 = vrot.lane.b32.xlu0 %v4409, 122
    %v4855 = vpop.permute.xlu0 %4854
    %4856 = vrot.lane.b32.xlu0 %v4410, 122
    %v4857 = vpop.permute.xlu0 %4856
    %4858 = vrot.lane.b32.xlu0 %v4411, 122
    %v4859 = vpop.permute.xlu0 %4858
    %4860 = vrot.lane.b32.xlu0 %v4412, 122
    %v4861 = vpop.permute.xlu0 %4860
    %4894 = vrot.lane.b32.xlu0 %v4477, 121
    %v4895 = vpop.permute.xlu0 %4894
    %4896 = vrot.lane.b32.xlu0 %v4478, 121
    %v4897 = vpop.permute.xlu0 %4896
    %4898 = vrot.lane.b32.xlu0 %v4479, 121
    %v4899 = vpop.permute.xlu0 %4898
    %4900 = vrot.lane.b32.xlu0 %v4480, 121
    %v4901 = vpop.permute.xlu0 %4900
    %4902 = vrot.lane.b32.xlu0 %v4481, 121
    %v4903 = vpop.permute.xlu0 %4902
    %4904 = vrot.lane.b32.xlu0 %v4482, 121
    %v4905 = vpop.permute.xlu0 %4904
    %4906 = vrot.lane.b32.xlu0 %v4483, 121
    %v4907 = vpop.permute.xlu0 %4906
    %4908 = vrot.lane.b32.xlu0 %v4484, 121
    %v4909 = vpop.permute.xlu0 %4908
    %4910 = vrot.lane.b32.xlu0 %v4485, 121
    %v4911 = vpop.permute.xlu0 %4910
    %4912 = vrot.lane.b32.xlu0 %v4486, 121
    %v4913 = vpop.permute.xlu0 %4912
    %4914 = vrot.lane.b32.xlu0 %v4487, 121
    %v4915 = vpop.permute.xlu0 %4914
    %4916 = vrot.lane.b32.xlu0 %v4488, 121
    %v4917 = vpop.permute.xlu0 %4916
    %4918 = vrot.lane.b32.xlu0 %v4489, 121
    %v4919 = vpop.permute.xlu0 %4918
    %4920 = vrot.lane.b32.xlu0 %v4490, 121
    %v4921 = vpop.permute.xlu0 %4920
    %4922 = vrot.lane.b32.xlu0 %v4491, 121
    %v4923 = vpop.permute.xlu0 %4922
    %4924 = vrot.lane.b32.xlu0 %v4492, 121
    %v4925 = vpop.permute.xlu0 %4924
    %vm4942 = vcmask 64512
    %v4943 = vsel %vm4942, %v3917, %v4511
    %v4944 = vsel %vm4942, %v3918, %v4513
    %v4945 = vsel %vm4942, %v3919, %v4515
    %v4946 = vsel %vm4942, %v3920, %v4517
    %v4947 = vsel %vm4942, %v3921, %v4519
    %v4948 = vsel %vm4942, %v3922, %v4521
    %v4949 = vsel %vm4942, %v3923, %v4523
    %v4950 = vsel %vm4942, %v3924, %v4525
    %v4951 = vsel %vm4942, %v3925, %v4527
    %v4952 = vsel %vm4942, %v3926, %v4529
    %v4953 = vsel %vm4942, %v3927, %v4531
    %v4954 = vsel %vm4942, %v3928, %v4533
    %v4955 = vsel %vm4942, %v3929, %v4535
    %v4956 = vsel %vm4942, %v3930, %v4537
    %v4957 = vsel %vm4942, %v3931, %v4539
    %v4958 = vsel %vm4942, %v3932, %v4541
    %vm4959 = vcmask 130048
    %v4960 = vsel %vm4959, %v4943, %v4575
    %v4961 = vsel %vm4959, %v4944, %v4577
    %v4962 = vsel %vm4959, %v4945, %v4579
    %v4963 = vsel %vm4959, %v4946, %v4581
    %v4964 = vsel %vm4959, %v4947, %v4583
    %v4965 = vsel %vm4959, %v4948, %v4585
    %v4966 = vsel %vm4959, %v4949, %v4587
    %v4967 = vsel %vm4959, %v4950, %v4589
    %v4968 = vsel %vm4959, %v4951, %v4591
    %v4969 = vsel %vm4959, %v4952, %v4593
    %v4970 = vsel %vm4959, %v4953, %v4595
    %v4971 = vsel %vm4959, %v4954, %v4597
    %v4972 = vsel %vm4959, %v4955, %v4599
    %v4973 = vsel %vm4959, %v4956, %v4601
    %v4974 = vsel %vm4959, %v4957, %v4603
    %v4975 = vsel %vm4959, %v4958, %v4605
    %vm4976 = vcmask 195584
    %v4977 = vsel %vm4976, %v4960, %v4639
    %v4978 = vsel %vm4976, %v4961, %v4641
    %v4979 = vsel %vm4976, %v4962, %v4643
    %v4980 = vsel %vm4976, %v4963, %v4645
    %v4981 = vsel %vm4976, %v4964, %v4647
    %v4982 = vsel %vm4976, %v4965, %v4649
    %v4983 = vsel %vm4976, %v4966, %v4651
    %v4984 = vsel %vm4976, %v4967, %v4653
    %v4985 = vsel %vm4976, %v4968, %v4655
    %v4986 = vsel %vm4976, %v4969, %v4657
    %v4987 = vsel %vm4976, %v4970, %v4659
    %v4988 = vsel %vm4976, %v4971, %v4661
    %v4989 = vsel %vm4976, %v4972, %v4663
    %v4990 = vsel %vm4976, %v4973, %v4665
    %v4991 = vsel %vm4976, %v4974, %v4667
    %v4992 = vsel %vm4976, %v4975, %v4669
    %vm4993 = vcmask 261120
    %v4994 = vsel %vm4993, %v4977, %v4703
    %v4995 = vsel %vm4993, %v4978, %v4705
    %v4996 = vsel %vm4993, %v4979, %v4707
    %v4997 = vsel %vm4993, %v4980, %v4709
    %v4998 = vsel %vm4993, %v4981, %v4711
    %v4999 = vsel %vm4993, %v4982, %v4713
    %v5000 = vsel %vm4993, %v4983, %v4715
    %v5001 = vsel %vm4993, %v4984, %v4717
    %v5002 = vsel %vm4993, %v4985, %v4719
    %v5003 = vsel %vm4993, %v4986, %v4721
    %v5004 = vsel %vm4993, %v4987, %v4723
    %v5005 = vsel %vm4993, %v4988, %v4725
    %v5006 = vsel %vm4993, %v4989, %v4727
    %v5007 = vsel %vm4993, %v4990, %v4729
    %v5008 = vsel %vm4993, %v4991, %v4731
    %v5009 = vsel %vm4993, %v4992, %v4733
    %vm5010 = vcmask 326656
    %v5011 = vsel %vm5010, %v4994, %v4767
    %v5012 = vsel %vm5010, %v4995, %v4769
    %v5013 = vsel %vm5010, %v4996, %v4771
    %v5014 = vsel %vm5010, %v4997, %v4773
    %v5015 = vsel %vm5010, %v4998, %v4775
    %v5016 = vsel %vm5010, %v4999, %v4777
    %v5017 = vsel %vm5010, %v5000, %v4779
    %v5018 = vsel %vm5010, %v5001, %v4781
    %v5019 = vsel %vm5010, %v5002, %v4783
    %v5020 = vsel %vm5010, %v5003, %v4785
    %v5021 = vsel %vm5010, %v5004, %v4787
    %v5022 = vsel %vm5010, %v5005, %v4789
    %v5023 = vsel %vm5010, %v5006, %v4791
    %v5024 = vsel %vm5010, %v5007, %v4793
    %v5025 = vsel %vm5010, %v5008, %v4795
    %v5026 = vsel %vm5010, %v5009, %v4797
    %vm5027 = vcmask 392192
    %v5028 = vsel %vm5027, %v5011, %v4831
    %v5029 = vsel %vm5027, %v5012, %v4833
    %v5030 = vsel %vm5027, %v5013, %v4835
    %v5031 = vsel %vm5027, %v5014, %v4837
    %v5032 = vsel %vm5027, %v5015, %v4839
    %v5033 = vsel %vm5027, %v5016, %v4841
    %v5034 = vsel %vm5027, %v5017, %v4843
    %v5035 = vsel %vm5027, %v5018, %v4845
    %v5036 = vsel %vm5027, %v5019, %v4847
    %v5037 = vsel %vm5027, %v5020, %v4849
    %v5038 = vsel %vm5027, %v5021, %v4851
    %v5039 = vsel %vm5027, %v5022, %v4853
    %v5040 = vsel %vm5027, %v5023, %v4855
    %v5041 = vsel %vm5027, %v5024, %v4857
    %v5042 = vsel %vm5027, %v5025, %v4859
    %v5043 = vsel %vm5027, %v5026, %v4861
    %vm5044 = vcmask 457728
    %v5045 = vsel %vm5044, %v5028, %v4895
    %v5046 = vsel %vm5044, %v5029, %v4897
    %v5047 = vsel %vm5044, %v5030, %v4899
    %v5048 = vsel %vm5044, %v5031, %v4901
    %v5049 = vsel %vm5044, %v5032, %v4903
    %v5050 = vsel %vm5044, %v5033, %v4905
    %v5051 = vsel %vm5044, %v5034, %v4907
    %v5052 = vsel %vm5044, %v5035, %v4909
    %v5053 = vsel %vm5044, %v5036, %v4911
    %v5054 = vsel %vm5044, %v5037, %v4913
    %v5055 = vsel %vm5044, %v5038, %v4915
    %v5056 = vsel %vm5044, %v5039, %v4917
    %v5057 = vsel %vm5044, %v5040, %v4919
    %v5058 = vsel %vm5044, %v5041, %v4921
    %v5059 = vsel %vm5044, %v5042, %v4923
    %v5060 = vsel %vm5044, %v5043, %v4925
    %v5062 = vlaneseq
    %v5063 = vshrl.u32 %v5062, 7
    %v5064 = vsub.s32 0, %v5063
    %v5065 = vrot.slane %v4493, %v5064
    %v5067 = vadd.f32 %v5045, %v5065
    %v5068 = vadd.f32 %v5046, %v5065
    %v5069 = vadd.f32 %v5047, %v5065
    %v5070 = vadd.f32 %v5048, %v5065
    %v5071 = vadd.f32 %v5049, %v5065
    %v5072 = vadd.f32 %v5050, %v5065
    %v5073 = vadd.f32 %v5051, %v5065
    %v5074 = vadd.f32 %v5052, %v5065
    %v5075 = vadd.f32 %v5053, %v5065
    %v5076 = vadd.f32 %v5054, %v5065
    %v5077 = vadd.f32 %v5055, %v5065
    %v5078 = vadd.f32 %v5056, %v5065
    %v5079 = vadd.f32 %v5057, %v5065
    %v5080 = vadd.f32 %v5058, %v5065
    %v5081 = vadd.f32 %v5059, %v5065
    %v5082 = vadd.f32 %v5060, %v5065
    %vm5083 = vcmp.gt.f32.partialorder %v5067, 0.0
    %vm5084 = vcmp.gt.f32.partialorder %v5068, 0.0
    %vm5085 = vcmp.gt.f32.partialorder %v5069, 0.0
    %vm5086 = vcmp.gt.f32.partialorder %v5070, 0.0
    %vm5087 = vcmp.gt.f32.partialorder %v5071, 0.0
    %vm5088 = vcmp.gt.f32.partialorder %v5072, 0.0
    %vm5089 = vcmp.gt.f32.partialorder %v5073, 0.0
    %vm5090 = vcmp.gt.f32.partialorder %v5074, 0.0
    %vm5091 = vcmp.gt.f32.partialorder %v5075, 0.0
    %vm5092 = vcmp.gt.f32.partialorder %v5076, 0.0
    %vm5093 = vcmp.gt.f32.partialorder %v5077, 0.0
    %vm5094 = vcmp.gt.f32.partialorder %v5078, 0.0
    %vm5095 = vcmp.gt.f32.partialorder %v5079, 0.0
    %vm5096 = vcmp.gt.f32.partialorder %v5080, 0.0
    %vm5097 = vcmp.gt.f32.partialorder %v5081, 0.0
    %vm5098 = vcmp.gt.f32.partialorder %v5082, 0.0
    %v5099 = vmin.f32 %v5067, 0.0
    %v5100 = vmin.f32 %v5068, 0.0
    %v5101 = vmin.f32 %v5069, 0.0
    %v5102 = vmin.f32 %v5070, 0.0
    %v5103 = vmin.f32 %v5071, 0.0
    %v5104 = vmin.f32 %v5072, 0.0
    %v5105 = vmin.f32 %v5073, 0.0
    %v5106 = vmin.f32 %v5074, 0.0
    %v5107 = vmin.f32 %v5075, 0.0
    %v5108 = vmin.f32 %v5076, 0.0
    %v5109 = vmin.f32 %v5077, 0.0
    %v5110 = vmin.f32 %v5078, 0.0
    %v5111 = vmin.f32 %v5079, 0.0
    %v5112 = vmin.f32 %v5080, 0.0
    %v5113 = vmin.f32 %v5081, 0.0
    %v5114 = vmin.f32 %v5082, 0.0
    %v5115 = vmul.f32 %v5099, 1.442695
    %v5116 = vpow.pop %v5115
    %v5117 = vmul.f32 %v5100, 1.442695
    %v5118 = vpow.pop %v5117
    %v5119 = vmul.f32 %v5101, 1.442695
    %v5120 = vpow.pop %v5119
    %v5121 = vmul.f32 %v5102, 1.442695
    %v5122 = vpow.pop %v5121
    %v5123 = vmul.f32 %v5103, 1.442695
    %v5124 = vpow.pop %v5123
    %v5125 = vmul.f32 %v5104, 1.442695
    %v5126 = vpow.pop %v5125
    %v5127 = vmul.f32 %v5105, 1.442695
    %v5128 = vpow.pop %v5127
    %v5129 = vmul.f32 %v5106, 1.442695
    %v5130 = vpow.pop %v5129
    %v5131 = vmul.f32 %v5107, 1.442695
    %v5132 = vpow.pop %v5131
    %v5133 = vmul.f32 %v5108, 1.442695
    %v5134 = vpow.pop %v5133
    %v5135 = vmul.f32 %v5109, 1.442695
    %v5136 = vpow.pop %v5135
    %v5137 = vmul.f32 %v5110, 1.442695
    %v5138 = vpow.pop %v5137
    %v5139 = vmul.f32 %v5111, 1.442695
    %v5140 = vpow.pop %v5139
    %v5141 = vmul.f32 %v5112, 1.442695
    %v5142 = vpow.pop %v5141
    %v5143 = vmul.f32 %v5113, 1.442695
    %v5144 = vpow.pop %v5143
    %v5145 = vmul.f32 %v5114, 1.442695
    %v5146 = vpow.pop %v5145
    %v5147 = vsub.f32 %v5116, 1.0
    %v5148 = vsub.f32 %v5118, 1.0
    %v5149 = vsub.f32 %v5120, 1.0
    %v5150 = vsub.f32 %v5122, 1.0
    %v5151 = vsub.f32 %v5124, 1.0
    %v5152 = vsub.f32 %v5126, 1.0
    %v5153 = vsub.f32 %v5128, 1.0
    %v5154 = vsub.f32 %v5130, 1.0
    %v5155 = vsub.f32 %v5132, 1.0
    %v5156 = vsub.f32 %v5134, 1.0
    %v5157 = vsub.f32 %v5136, 1.0
    %v5158 = vsub.f32 %v5138, 1.0
    %v5159 = vsub.f32 %v5140, 1.0
    %v5160 = vsub.f32 %v5142, 1.0
    %v5161 = vsub.f32 %v5144, 1.0
    %v5162 = vsub.f32 %v5146, 1.0
    %v5163 = vsel %vm5083, %v5067, %v5147
    %v5164 = vsel %vm5084, %v5068, %v5148
    %v5165 = vsel %vm5085, %v5069, %v5149
    %v5166 = vsel %vm5086, %v5070, %v5150
    %v5167 = vsel %vm5087, %v5071, %v5151
    %v5168 = vsel %vm5088, %v5072, %v5152
    %v5169 = vsel %vm5089, %v5073, %v5153
    %v5170 = vsel %vm5090, %v5074, %v5154
    %v5171 = vsel %vm5091, %v5075, %v5155
    %v5172 = vsel %vm5092, %v5076, %v5156
    %v5173 = vsel %vm5093, %v5077, %v5157
    %v5174 = vsel %vm5094, %v5078, %v5158
    %v5175 = vsel %vm5095, %v5079, %v5159
    %v5176 = vsel %vm5096, %v5080, %v5160
    %v5177 = vsel %vm5097, %v5081, %v5161
    %v5178 = vsel %vm5098, %v5082, %v5162
    %v5179 = vpack.c.bf16 %v5164, %v5163
    %v5180 = vpack.c.bf16 %v5166, %v5165
    %v5181 = vpack.c.bf16 %v5168, %v5167
    %v5182 = vpack.c.bf16 %v5170, %v5169
    %v5183 = vpack.c.bf16 %v5172, %v5171
    %v5184 = vpack.c.bf16 %v5174, %v5173
    %v5185 = vpack.c.bf16 %v5176, %v5175
    %v5186 = vpack.c.bf16 %v5178, %v5177
    %v5195 = vunpack.c.l.b16 %v5179
    %v5196 = vunpack.c.h.b16 %v5179
    %v5197 = vunpack.c.l.b16 %v5180
    %v5198 = vunpack.c.h.b16 %v5180
    %v5199 = vunpack.c.l.b16 %v5181
    %v5200 = vunpack.c.h.b16 %v5181
    %v5201 = vunpack.c.l.b16 %v5182
    %v5202 = vunpack.c.h.b16 %v5182
    %v5203 = vunpack.c.l.b16 %v5183
    %v5204 = vunpack.c.h.b16 %v5183
    %v5205 = vunpack.c.l.b16 %v5184
    %v5206 = vunpack.c.h.b16 %v5184
    %v5207 = vunpack.c.l.b16 %v5185
    %v5208 = vunpack.c.h.b16 %v5185
    %v5209 = vunpack.c.l.b16 %v5186
    %v5210 = vunpack.c.h.b16 %v5186
    %v5211 = vpack.c.b16 %v5195, %v5195
    %v5212 = vpack.c.b16 %v5196, %v5196
    %v5213 = vpack.c.b16 %v5197, %v5197
    %v5214 = vpack.c.b16 %v5198, %v5198
    %v5215 = vpack.c.b16 %v5199, %v5199
    %v5216 = vpack.c.b16 %v5200, %v5200
    %v5217 = vpack.c.b16 %v5201, %v5201
    %v5218 = vpack.c.b16 %v5202, %v5202
    %v5219 = vpack.c.b16 %v5203, %v5203
    %v5220 = vpack.c.b16 %v5204, %v5204
    %v5221 = vpack.c.b16 %v5205, %v5205
    %v5222 = vpack.c.b16 %v5206, %v5206
    %v5223 = vpack.c.b16 %v5207, %v5207
    %v5224 = vpack.c.b16 %v5208, %v5208
    %v5225 = vpack.c.b16 %v5209, %v5209
    %v5226 = vpack.c.b16 %v5210, %v5210
    %vm5243 = vcmask 519168
    %5244 = vst.msk [vmem:[%s6] sm:$0xf] %vm5243, %v5211
    %5245 = vst.msk [vmem:[%s6 + $0x4] sm:$0xf] %vm5243, %v5212
    %5246 = vst.msk [vmem:[%s6 + $0x8] sm:$0xf] %vm5243, %v5213
    %5247 = vst.msk [vmem:[%s6 + $0xc] sm:$0xf] %vm5243, %v5214
    %5248 = vst.msk [vmem:[%s6 + $0x10] sm:$0xf] %vm5243, %v5215
    %5249 = vst.msk [vmem:[%s6 + $0x14] sm:$0xf] %vm5243, %v5216
    %5250 = vst.msk [vmem:[%s6 + $0x18] sm:$0xf] %vm5243, %v5217
    %5251 = vst.msk [vmem:[%s6 + $0x1c] sm:$0xf] %vm5243, %v5218
    %5252 = vst.msk [vmem:[%s6 + $0x20] sm:$0xf] %vm5243, %v5219
    %5253 = vst.msk [vmem:[%s6 + $0x24] sm:$0xf] %vm5243, %v5220
    %5254 = vst.msk [vmem:[%s6 + $0x28] sm:$0xf] %vm5243, %v5221
    %5255 = vst.msk [vmem:[%s6 + $0x2c] sm:$0xf] %vm5243, %v5222
    %5256 = vst.msk [vmem:[%s6 + $0x30] sm:$0xf] %vm5243, %v5223
    %5257 = vst.msk [vmem:[%s6 + $0x34] sm:$0xf] %vm5243, %v5224
    %5258 = vst.msk [vmem:[%s6 + $0x38] sm:$0xf] %vm5243, %v5225
    %5259 = vst.msk [vmem:[%s6 + $0x3c] sm:$0xf] %vm5243, %v5226
  $region33: #{gat_forward.5} parent=0 // pred_fallthru
    _
  // Predicated region
  $region34: #{gat_forward.5} parent=0 // pred_check
    _
  $region35: #{gat_forward.5} parent=0 // pred_check_branch
    %5261 = sbr.rel (0) target = $region37
  $region36: #{gat_forward.5} parent=0 // pred_region
    _
  $region37: #{gat_forward.5} parent=0 // pred_fallthru
    _
  // Predicated region
  $region38: #{gat_forward.5} parent=0 // pred_check
    _
  $region39: #{gat_forward.5} parent=0 // pred_check_branch
    %5263 = sbr.rel (0) target = $region41
  $region40: #{gat_forward.5} parent=0 // pred_region
    _
  $region41: #{gat_forward.5} parent=0 // pred_fallthru
    _

</llo_original>
